<compile_context>
chip_gen: v5e
topology: v5e:2x2
jax: 0.10.0
libtpu: 0.0.40
codegen_flags: <defaults>
</compile_context>

<pallas_src>
import math

import jax
import jax.numpy as jnp
from jax import lax
from jax.experimental import pallas as pl
from jax.experimental.pallas import tpu as pltpu

BN_EPS = 1e-5
NEG_BIG = -1e30   # fill value for masked (padded) softmax lanes
N_PAD = 128       # lane-dense width for packed params and head output


def _conv_w_to_mat(w):
    # torch Conv1d weight (C_out, C_in, K) -> (K*C_in, C_out), row = k*C_in + c_in
    c_out, c_in, k = w.shape
    return jnp.transpose(w, (2, 1, 0)).reshape(k * c_in, c_out)


def _pick_row_tile(n_rows, target=256):
    """Largest divisor of n_rows that is <= target and a multiple of 8."""
    for t in range(min(n_rows, target), 7, -1):
        if n_rows % t == 0 and t % 8 == 0:
            return t
    return n_rows


def m5_forward(x, params, n_output=35):
    """x: (B, 1, L) float32 (torch NCL). Returns (B, 1, n_output) log-probs."""
    batch, _, length = x.shape
    k1, s1 = 80, 16
    l1 = (length - k1) // s1 + 1   # conv1 out length
    p1 = l1 // 4                   # pool1
    l2 = p1 - 2                    # conv2 (k=3)
    p2 = l2 // 4                   # pool2
    l3 = p2 - 2                    # conv3
    p3 = l3 // 4                   # pool3
    l4 = p3 - 2                    # conv4
    p4 = l4 // 4                   # pool4
    assert p4 >= 1, "input too short for M5"
    assert n_output <= N_PAD

    c1 = params["conv1_w"].shape[0]   # n_channel
    c3 = params["conv3_w"].shape[0]   # 2 * n_channel

    n1 = batch * l1
    tile1 = _pick_row_tile(n1)
    nt1 = n1 // tile1
    # Roll-fused pooling is valid iff pool groups never straddle tile / batch
    # boundaries (tile multiple of 8 => of 4, and per-batch segments 4-aligned).
    fuse_roll1 = (tile1 % 8 == 0) and (l1 % 4 == 0)

    # ---------- plain-JAX prep: free reshapes + weight repacking only ----------
    nblk = l1 + k1 // s1 - 1                              # number of 16-sample blocks
    xr = x[:, 0, : nblk * s1].reshape(batch, nblk, s1)    # (B, nblk, 16)

    w1 = _conv_w_to_mat(params["conv1_w"])                # (80, c1)
    w2 = _conv_w_to_mat(params["conv2_w"])                # (3*c1, c1)
    w3 = _conv_w_to_mat(params["conv3_w"])                # (3*c1, c3)
    w4 = _conv_w_to_mat(params["conv4_w"])                # (3*c3, c3)
    wf = jnp.zeros((c3, N_PAD), jnp.float32).at[:, :n_output].set(
        jnp.transpose(params["fc1_w"]))                   # (c3, 128) zero-padded

    # Pack the 13 tiny per-channel vectors into ONE (16, 128) f32 input.
    def _row(v):
        v = jnp.asarray(v, jnp.float32).reshape(-1)       # handles (C,) or (1, C)
        return jnp.zeros((N_PAD,), jnp.float32).at[: v.shape[0]].set(v)

    pv = jnp.stack(
        [_row(params["conv1_b"]), _row(params["bn1_g"]), _row(params["bn1_b"]),
         _row(params["conv2_b"]), _row(params["bn2_g"]), _row(params["bn2_b"]),
         _row(params["conv3_b"]), _row(params["bn3_g"]), _row(params["bn3_b"]),
         _row(params["conv4_b"]), _row(params["bn4_g"]), _row(params["bn4_b"]),
         _row(params["fc1_b"])]
        + [jnp.zeros((N_PAD,), jnp.float32)] * 3)         # (16, 128)

    def kernel(xr_ref, w1_ref, w2_ref, w3_ref, w4_ref, wf_ref, pv_ref, o_ref,
               p1s, y1s, a1s, w2s, y2s, a2s, w3s, y3s, a3s, w4s, y4s, a4s):

        # ======== stage 1: in-kernel im2col + ONE (B*L1,80)@(80,c1) matmul ========
        for bi in range(batch):
            for s in range(k1 // s1):
                p1s[pl.ds(bi * l1, l1), pl.ds(s * s1, s1)] = \
                    xr_ref[bi, pl.ds(s, l1), :]
        # Raw conv1 output straight to scratch (never live across the reduction).
        y1s[...] = jnp.dot(p1s[...], w1_ref[...],
                           preferred_element_type=jnp.float32) + pv_ref[0:1, 0:c1]

        # Two-pass batch statistics, read back from scratch in row tiles.
        inv_n1 = 1.0 / float(n1)

        def _mean_body(i, s):
            off = pl.multiple_of(i * tile1, 8)
            return s + jnp.sum(y1s[pl.ds(off, tile1), :], axis=0, keepdims=True)

        mean1 = lax.fori_loop(0, nt1, _mean_body,
                              jnp.zeros((1, c1), jnp.float32)) * inv_n1

        def _var_body(i, v):
            off = pl.multiple_of(i * tile1, 8)
            d = y1s[pl.ds(off, tile1), :] - mean1
            return v + jnp.sum(d * d, axis=0, keepdims=True)

        var1 = lax.fori_loop(0, nt1, _var_body,
                             jnp.zeros((1, c1), jnp.float32)) * inv_n1
        scale1 = lax.rsqrt(var1 + BN_EPS) * pv_ref[1:2, 0:c1]
        shift1 = pv_ref[2:3, 0:c1] - mean1 * scale1

        # BN + ReLU apply, tile-wise, in place.  When aligned, fold the pool-window
        # max via sublane rolls (XLU) so the downselect needs 1 strided load/batch.
        def _apply_body(i, c):
            off = pl.multiple_of(i * tile1, 8)
            a = jnp.maximum(y1s[pl.ds(off, tile1), :] * scale1 + shift1, 0.0)
            if fuse_roll1:
                m = a
                for k in (1, 2, 3):
                    m = jnp.maximum(m, pltpu.roll(a, tile1 - k, axis=0))
                a = m
            y1s[pl.ds(off, tile1), :] = a
            return c

        lax.fori_loop(0, nt1, _apply_body, 0)

        for bi in range(batch):
            pb = y1s[pl.ds(bi * l1, p1, stride=4), :]
            if not fuse_roll1:
                for j in range(1, 4):
                    pb = jnp.maximum(pb, y1s[pl.ds(bi * l1 + j, p1, stride=4), :])
            a1s[bi] = pb                                    # (p1, c1)

        # ======== stages 2-4: k=3 conv as ONE batched K=3*C_in matmul each ========
        def stage_k3(a_prev, c_in, c_out, l_out, w_ref, prow, win, y, a_dst):
            b_row = pv_ref[prow + 0:prow + 1, 0:c_out]
            g_row = pv_ref[prow + 1:prow + 2, 0:c_out]
            be_row = pv_ref[prow + 2:prow + 3, 0:c_out]
            # (B*l_out, 3*c_in) window matrix from VMEM-resident pooled input.
            for bi in range(batch):
                for k in range(3):
                    win[pl.ds(bi * l_out, l_out), pl.ds(k * c_in, c_in)] = \
                        a_prev[bi, pl.ds(k, l_out), :]
            # Single fused conv matmul; raw result straight to scratch.
            y[...] = jnp.dot(win[...], w_ref[...],
                             preferred_element_type=jnp.float32) + b_row
            # Two-pass batch statistics (whole slab is tiny at these stages).
            inv_n = 1.0 / float(batch * l_out)
            mean = jnp.sum(y[...], axis=0, keepdims=True) * inv_n
            d = y[...] - mean
            var = jnp.sum(d * d, axis=0, keepdims=True) * inv_n
            scale = lax.rsqrt(var + BN_EPS) * g_row
            shift = be_row - mean * scale
            y[...] = jnp.maximum(y[...] * scale + shift, 0.0)
            # MaxPool1d(4), floor mode; slabs are tens of rows, strided loads are fine.
            p = l_out // 4
            for bi in range(batch):
                pb = y[pl.ds(bi * l_out, p, stride=4), :]
                for j in range(1, 4):
                    pb = jnp.maximum(pb, y[pl.ds(bi * l_out + j, p, stride=4), :])
                a_dst[bi] = pb                              # (p, c_out)

        stage_k3(a1s, c1, c1, l2, w2_ref, 3, w2s, y2s, a2s)
        stage_k3(a2s, c1, c3, l3, w3_ref, 6, w3s, y3s, a3s)
        stage_k3(a3s, c3, c3, l4, w4_ref, 9, w4s, y4s, a4s)

        # ======== head: mean over time + Linear + log_softmax (lane-dense) ========
        m = jnp.mean(a4s[...], axis=1)                      # (B, c3)
        logits = jnp.dot(m, wf_ref[...],
                         preferred_element_type=jnp.float32) + pv_ref[12:13, :]
        lane = lax.broadcasted_iota(jnp.int32, logits.shape, 1)
        logits = jnp.where(lane < n_output, logits, NEG_BIG)
        z = logits - jnp.max(logits, axis=-1, keepdims=True)
        o_ref[...] = z - jnp.log(jnp.sum(jnp.exp(z), axis=-1, keepdims=True))

    scratch_shapes_list = [
        (n1, k1),                 # stage-1 im2col patches
        (n1, c1),                 # y1 (raw conv out, then activated/rolled)
        (batch, p1, c1),          # a1 pooled
        (batch * l2, 3 * c1),     # win2
        (batch * l2, c1),         # y2
        (batch, p2, c1),          # a2 pooled
        (batch * l3, 3 * c1),     # win3
        (batch * l3, c3),         # y3
        (batch, p3, c3),          # a3 pooled
        (batch * l4, 3 * c3),     # win4
        (batch * l4, c3),         # y4
        (batch, p4, c3),          # a4 pooled
    ]
    scratch_shapes = [pltpu.VMEM(s, jnp.float32) for s in scratch_shapes_list]

    operands = (xr, w1, w2, w3, w4, wf, pv)

    def _padded_f32_bytes(shape):
        s = list(shape)
        s[-1] = -(-s[-1] // 128) * 128
        if len(s) >= 2:
            s[-2] = -(-s[-2] // 8) * 8
        return 4 * math.prod(s)

    vmem_bytes = (sum(_padded_f32_bytes(a.shape) for a in operands)
                  + sum(_padded_f32_bytes(s) for s in scratch_shapes_list)
                  + _padded_f32_bytes((batch, N_PAD)))
    vmem_limit = min(int(1.5 * vmem_bytes) + (4 << 20), 48 << 20)

    out_pad = pl.pallas_call(
        kernel,
        out_shape=jax.ShapeDtypeStruct((batch, N_PAD), jnp.float32),
        in_specs=[pl.BlockSpec(memory_space=pltpu.MemorySpace.VMEM)] * len(operands),
        out_specs=pl.BlockSpec(memory_space=pltpu.MemorySpace.VMEM),
        scratch_shapes=scratch_shapes,
        compiler_params=pltpu.CompilerParams(vmem_limit_bytes=vmem_limit),
    )(*operands)

    return out_pad[:, None, :n_output]


def init_params(key, n_input=1, n_output=35, n_channel=32):
    ks = iter(jax.random.split(key, 10))

    def conv_init(c_out, c_in, ksz):
        bound = 1.0 / jnp.sqrt(c_in * ksz)
        w = jax.random.uniform(next(ks), (c_out, c_in, ksz), jnp.float32, -bound, bound)
        b = jax.random.uniform(next(ks), (1, c_out), jnp.float32, -bound, bound)
        return w, b

    params = {}
    params["conv1_w"], params["conv1_b"] = conv_init(n_channel, n_input, 80)
    params["conv2_w"], params["conv2_b"] = conv_init(n_channel, n_channel, 3)
    params["conv3_w"], params["conv3_b"] = conv_init(2 * n_channel, n_channel, 3)
    params["conv4_w"], params["conv4_b"] = conv_init(2 * n_channel, 2 * n_channel, 3)
    for i, c in zip((1, 2, 3, 4), (n_channel, n_channel, 2 * n_channel, 2 * n_channel)):
        params[f"bn{i}_g"] = jnp.ones((1, c), jnp.float32)   # BatchNorm default init
        params[f"bn{i}_b"] = jnp.zeros((1, c), jnp.float32)
    bound = 1.0 / jnp.sqrt(2 * n_channel)
    params["fc1_w"] = jax.random.uniform(next(ks), (n_output, 2 * n_channel),
                                         jnp.float32, -bound, bound)
    params["fc1_b"] = jax.random.uniform(next(ks), (1, n_output),
                                         jnp.float32, -bound, bound)
    return params


if __name__ == "__main__":
    key = jax.random.PRNGKey(0)
    pkey, xkey = jax.random.split(key)
    params = init_params(pkey)
    # 8000 samples = canonical SpeechCommands input length for M5 (shortest length
    # for which the four pool-by-4 stages stay non-empty).
    x = jax.random.normal(xkey, (2, 1, 8000), jnp.float32)
    out = jax.jit(m5_forward)(x, params)
    out = jax.block_until_ready(out)
    assert out.shape == (2, 1, 35), out.shape
    assert bool(jnp.all(jnp.isfinite(out)))
    # log_softmax rows must exponentiate-sum to 1
    assert bool(jnp.allclose(jnp.sum(jnp.exp(out), axis=-1), 1.0, atol=1e-4))
    print("KERNEL_OK")
</pallas_src>

<mosaic_0001>
module attributes {stable_mosaic.version = 11 : i64} {
  func.func @kernel(%arg0: memref<2x500x16xf32, #tpu.memory_space<vmem>>, %arg1: memref<80x32xf32, #tpu.memory_space<vmem>>, %arg2: memref<96x32xf32, #tpu.memory_space<vmem>>, %arg3: memref<96x64xf32, #tpu.memory_space<vmem>>, %arg4: memref<192x64xf32, #tpu.memory_space<vmem>>, %arg5: memref<64x128xf32, #tpu.memory_space<vmem>>, %arg6: memref<16x128xf32, #tpu.memory_space<vmem>>, %arg7: memref<2x128xf32, #tpu.memory_space<vmem>>, %arg8: memref<992x80xf32, #tpu.memory_space<vmem>>, %arg9: memref<992x32xf32, #tpu.memory_space<vmem>>, %arg10: memref<2x124x32xf32, #tpu.memory_space<vmem>>, %arg11: memref<244x96xf32, #tpu.memory_space<vmem>>, %arg12: memref<244x32xf32, #tpu.memory_space<vmem>>, %arg13: memref<2x30x32xf32, #tpu.memory_space<vmem>>, %arg14: memref<56x96xf32, #tpu.memory_space<vmem>>, %arg15: memref<56x64xf32, #tpu.memory_space<vmem>>, %arg16: memref<2x7x64xf32, #tpu.memory_space<vmem>>, %arg17: memref<10x192xf32, #tpu.memory_space<vmem>>, %arg18: memref<10x64xf32, #tpu.memory_space<vmem>>, %arg19: memref<2x1x64xf32, #tpu.memory_space<vmem>>) attributes {dimension_semantics = [], scalar_prefetch = 0 : i64, scratch_operands = 12 : i64, tpu.core_type = #tpu.core_type<tc>} {
    %c0 = arith.constant 0 : index
    %c0_0 = arith.constant 0 : index
    %c0_1 = arith.constant 0 : index
    %0 = vector.load %arg0[%c0, %c0_0, %c0_1] : memref<2x500x16xf32, #tpu.memory_space<vmem>>, vector<1x496x16xf32>
    %1 = vector.shape_cast %0 : vector<1x496x16xf32> to vector<496x16xf32>
    %c0_2 = arith.constant 0 : index
    %c0_3 = arith.constant 0 : index
    %2 = vector.load %arg8[%c0_2, %c0_3] : memref<992x80xf32, #tpu.memory_space<vmem>>, vector<496x16xf32>
    tpu.vector_store %arg8[%c0_2, %c0_3], %1 {strides = array<i32>} : memref<992x80xf32, #tpu.memory_space<vmem>>, vector<496x16xf32>,
    %c0_4 = arith.constant 0 : index
    %c1 = arith.constant 1 : index
    %c0_5 = arith.constant 0 : index
    %3 = vector.load %arg0[%c0_4, %c1, %c0_5] : memref<2x500x16xf32, #tpu.memory_space<vmem>>, vector<1x496x16xf32>
    %4 = vector.shape_cast %3 : vector<1x496x16xf32> to vector<496x16xf32>
    %c0_6 = arith.constant 0 : index
    %c16 = arith.constant 16 : index
    %5 = vector.load %arg8[%c0_6, %c16] : memref<992x80xf32, #tpu.memory_space<vmem>>, vector<496x16xf32>
    tpu.vector_store %arg8[%c0_6, %c16], %4 {strides = array<i32>} : memref<992x80xf32, #tpu.memory_space<vmem>>, vector<496x16xf32>,
    %c0_7 = arith.constant 0 : index
    %c2 = arith.constant 2 : index
    %c0_8 = arith.constant 0 : index
    %6 = vector.load %arg0[%c0_7, %c2, %c0_8] : memref<2x500x16xf32, #tpu.memory_space<vmem>>, vector<1x496x16xf32>
    %7 = vector.shape_cast %6 : vector<1x496x16xf32> to vector<496x16xf32>
    %c0_9 = arith.constant 0 : index
    %c32 = arith.constant 32 : index
    %8 = vector.load %arg8[%c0_9, %c32] : memref<992x80xf32, #tpu.memory_space<vmem>>, vector<496x16xf32>
    tpu.vector_store %arg8[%c0_9, %c32], %7 {strides = array<i32>} : memref<992x80xf32, #tpu.memory_space<vmem>>, vector<496x16xf32>,
    %c0_10 = arith.constant 0 : index
    %c3 = arith.constant 3 : index
    %c0_11 = arith.constant 0 : index
    %9 = vector.load %arg0[%c0_10, %c3, %c0_11] : memref<2x500x16xf32, #tpu.memory_space<vmem>>, vector<1x496x16xf32>
    %10 = vector.shape_cast %9 : vector<1x496x16xf32> to vector<496x16xf32>
    %c0_12 = arith.constant 0 : index
    %c48 = arith.constant 48 : index
    %11 = vector.load %arg8[%c0_12, %c48] : memref<992x80xf32, #tpu.memory_space<vmem>>, vector<496x16xf32>
    tpu.vector_store %arg8[%c0_12, %c48], %10 {strides = array<i32>} : memref<992x80xf32, #tpu.memory_space<vmem>>, vector<496x16xf32>,
    %c0_13 = arith.constant 0 : index
    %c4 = arith.constant 4 : index
    %c0_14 = arith.constant 0 : index
    %12 = vector.load %arg0[%c0_13, %c4, %c0_14] : memref<2x500x16xf32, #tpu.memory_space<vmem>>, vector<1x496x16xf32>
    %13 = vector.shape_cast %12 : vector<1x496x16xf32> to vector<496x16xf32>
    %c0_15 = arith.constant 0 : index
    %c64 = arith.constant 64 : index
    %14 = vector.load %arg8[%c0_15, %c64] : memref<992x80xf32, #tpu.memory_space<vmem>>, vector<496x16xf32>
    tpu.vector_store %arg8[%c0_15, %c64], %13 {strides = array<i32>} : memref<992x80xf32, #tpu.memory_space<vmem>>, vector<496x16xf32>,
    %c1_16 = arith.constant 1 : index
    %c0_17 = arith.constant 0 : index
    %c0_18 = arith.constant 0 : index
    %15 = vector.load %arg0[%c1_16, %c0_17, %c0_18] : memref<2x500x16xf32, #tpu.memory_space<vmem>>, vector<1x496x16xf32>
    %16 = vector.shape_cast %15 : vector<1x496x16xf32> to vector<496x16xf32>
    %c496 = arith.constant 496 : index
    %c0_19 = arith.constant 0 : index
    %17 = vector.load %arg8[%c496, %c0_19] : memref<992x80xf32, #tpu.memory_space<vmem>>, vector<496x16xf32>
    tpu.vector_store %arg8[%c496, %c0_19], %16 {strides = array<i32>} : memref<992x80xf32, #tpu.memory_space<vmem>>, vector<496x16xf32>,
    %c1_20 = arith.constant 1 : index
    %c1_21 = arith.constant 1 : index
    %c0_22 = arith.constant 0 : index
    %18 = vector.load %arg0[%c1_20, %c1_21, %c0_22] : memref<2x500x16xf32, #tpu.memory_space<vmem>>, vector<1x496x16xf32>
    %19 = vector.shape_cast %18 : vector<1x496x16xf32> to vector<496x16xf32>
    %c496_23 = arith.constant 496 : index
    %c16_24 = arith.constant 16 : index
    %20 = vector.load %arg8[%c496_23, %c16_24] : memref<992x80xf32, #tpu.memory_space<vmem>>, vector<496x16xf32>
    tpu.vector_store %arg8[%c496_23, %c16_24], %19 {strides = array<i32>} : memref<992x80xf32, #tpu.memory_space<vmem>>, vector<496x16xf32>,
    %c1_25 = arith.constant 1 : index
    %c2_26 = arith.constant 2 : index
    %c0_27 = arith.constant 0 : index
    %21 = vector.load %arg0[%c1_25, %c2_26, %c0_27] : memref<2x500x16xf32, #tpu.memory_space<vmem>>, vector<1x496x16xf32>
    %22 = vector.shape_cast %21 : vector<1x496x16xf32> to vector<496x16xf32>
    %c496_28 = arith.constant 496 : index
    %c32_29 = arith.constant 32 : index
    %23 = vector.load %arg8[%c496_28, %c32_29] : memref<992x80xf32, #tpu.memory_space<vmem>>, vector<496x16xf32>
    tpu.vector_store %arg8[%c496_28, %c32_29], %22 {strides = array<i32>} : memref<992x80xf32, #tpu.memory_space<vmem>>, vector<496x16xf32>,
    %c1_30 = arith.constant 1 : index
    %c3_31 = arith.constant 3 : index
    %c0_32 = arith.constant 0 : index
    %24 = vector.load %arg0[%c1_30, %c3_31, %c0_32] : memref<2x500x16xf32, #tpu.memory_space<vmem>>, vector<1x496x16xf32>
    %25 = vector.shape_cast %24 : vector<1x496x16xf32> to vector<496x16xf32>
    %c496_33 = arith.constant 496 : index
    %c48_34 = arith.constant 48 : index
    %26 = vector.load %arg8[%c496_33, %c48_34] : memref<992x80xf32, #tpu.memory_space<vmem>>, vector<496x16xf32>
    tpu.vector_store %arg8[%c496_33, %c48_34], %25 {strides = array<i32>} : memref<992x80xf32, #tpu.memory_space<vmem>>, vector<496x16xf32>,
    %c1_35 = arith.constant 1 : index
    %c4_36 = arith.constant 4 : index
    %c0_37 = arith.constant 0 : index
    %27 = vector.load %arg0[%c1_35, %c4_36, %c0_37] : memref<2x500x16xf32, #tpu.memory_space<vmem>>, vector<1x496x16xf32>
    %28 = vector.shape_cast %27 : vector<1x496x16xf32> to vector<496x16xf32>
    %c496_38 = arith.constant 496 : index
    %c64_39 = arith.constant 64 : index
    %29 = vector.load %arg8[%c496_38, %c64_39] : memref<992x80xf32, #tpu.memory_space<vmem>>, vector<496x16xf32>
    tpu.vector_store %arg8[%c496_38, %c64_39], %28 {strides = array<i32>} : memref<992x80xf32, #tpu.memory_space<vmem>>, vector<496x16xf32>,
    %c0_40 = arith.constant 0 : index
    %c0_41 = arith.constant 0 : index
    %30 = vector.load %arg8[%c0_40, %c0_41] : memref<992x80xf32, #tpu.memory_space<vmem>>, vector<992x80xf32>
    %c0_42 = arith.constant 0 : index
    %c0_43 = arith.constant 0 : index
    %31 = vector.load %arg1[%c0_42, %c0_43] : memref<80x32xf32, #tpu.memory_space<vmem>>, vector<80x32xf32>
    %cst = arith.constant dense<0.000000e+00> : vector<992x32xf32>
    %32 = tpu.matmul %30, %31, %cst {dimension_numbers = #tpu.dot_dimension_numbers<[1], [0], [0], [1], [0, 0, 1, 1], [], []>} : vector<992x80xf32>, vector<80x32xf32>, vector<992x32xf32> -> vector<992x32xf32>
    %c0_44 = arith.constant 0 : index
    %c0_45 = arith.constant 0 : index
    %33 = vector.load %arg6[%c0_44, %c0_45] : memref<16x128xf32, #tpu.memory_space<vmem>>, vector<1x32xf32>
    %34 = vector.broadcast %33 : vector<1x32xf32> to vector<992x32xf32>
    %35 = arith.addf %32, %34 : vector<992x32xf32>
    %c0_46 = arith.constant 0 : index
    %c0_47 = arith.constant 0 : index
    %36 = vector.load %arg9[%c0_46, %c0_47] : memref<992x32xf32, #tpu.memory_space<vmem>>, vector<992x32xf32>
    tpu.vector_store %arg9[%c0_46, %c0_47], %35 {strides = array<i32>} : memref<992x32xf32, #tpu.memory_space<vmem>>, vector<992x32xf32>,
    %cst_48 = arith.constant 0.000000e+00 : f32
    %37 = vector.broadcast %cst_48 : f32 to vector<1x32xf32>
    %c0_i32 = arith.constant 0 : i32
    %c4_i32 = arith.constant 4 : i32
    %38 = arith.addi %c0_i32, %c4_i32 : i32
    %c1_i32 = arith.constant 1 : i32
    %39 = scf.for %arg20 = %c0_i32 to %38 step %c1_i32 iter_args(%arg21 = %37) -> (vector<1x32xf32>)  : i32 {
      %c248_i32 = arith.constant 248 : i32
      %311 = arith.muli %arg20, %c248_i32 : i32
      %312 = tpu.assume_multiple %311, 8 : i32
      %313 = arith.index_cast %312 : i32 to index
      %c0_311 = arith.constant 0 : index
      %314 = vector.load %arg9[%313, %c0_311] : memref<992x32xf32, #tpu.memory_space<vmem>>, vector<248x32xf32>
      %cst_312 = arith.constant dense<0.000000e+00> : vector<32xf32>
      %315 = vector.multi_reduction <add>, %314, %cst_312 [0] : vector<248x32xf32> to vector<32xf32>
      %316 = vector.shape_cast %315 : vector<32xf32> to vector<1x32xf32>
      %317 = arith.addf %arg21, %316 : vector<1x32xf32>
      scf.yield %317 : vector<1x32xf32>
    }
    %c4_i32_49 = arith.constant 4 : i32
    %cst_50 = arith.constant 0.00100806449 : f32
    %40 = vector.broadcast %cst_50 : f32 to vector<1x32xf32>
    %41 = arith.mulf %39, %40 : vector<1x32xf32>
    %cst_51 = arith.constant 0.000000e+00 : f32
    %42 = vector.broadcast %cst_51 : f32 to vector<1x32xf32>
    %c0_i32_52 = arith.constant 0 : i32
    %c4_i32_53 = arith.constant 4 : i32
    %43 = arith.addi %c0_i32_52, %c4_i32_53 : i32
    %c1_i32_54 = arith.constant 1 : i32
    %44 = scf.for %arg20 = %c0_i32_52 to %43 step %c1_i32_54 iter_args(%arg21 = %42) -> (vector<1x32xf32>)  : i32 {
      %c248_i32 = arith.constant 248 : i32
      %311 = arith.muli %arg20, %c248_i32 : i32
      %312 = tpu.assume_multiple %311, 8 : i32
      %313 = arith.index_cast %312 : i32 to index
      %c0_311 = arith.constant 0 : index
      %314 = vector.load %arg9[%313, %c0_311] : memref<992x32xf32, #tpu.memory_space<vmem>>, vector<248x32xf32>
      %315 = vector.broadcast %41 : vector<1x32xf32> to vector<248x32xf32>
      %316 = arith.subf %314, %315 : vector<248x32xf32>
      %317 = arith.mulf %316, %316 : vector<248x32xf32>
      %cst_312 = arith.constant dense<0.000000e+00> : vector<32xf32>
      %318 = vector.multi_reduction <add>, %317, %cst_312 [0] : vector<248x32xf32> to vector<32xf32>
      %319 = vector.shape_cast %318 : vector<32xf32> to vector<1x32xf32>
      %320 = arith.addf %arg21, %319 : vector<1x32xf32>
      scf.yield %320 : vector<1x32xf32>
    }
    %c4_i32_55 = arith.constant 4 : i32
    %cst_56 = arith.constant 0.00100806449 : f32
    %45 = vector.broadcast %cst_56 : f32 to vector<1x32xf32>
    %46 = arith.mulf %44, %45 : vector<1x32xf32>
    %cst_57 = arith.constant 9.99999974E-6 : f32
    %47 = vector.broadcast %cst_57 : f32 to vector<1x32xf32>
    %48 = arith.addf %46, %47 : vector<1x32xf32>
    %49 = math.rsqrt %48 : vector<1x32xf32>
    %c1_58 = arith.constant 1 : index
    %c0_59 = arith.constant 0 : index
    %50 = vector.load %arg6[%c1_58, %c0_59] : memref<16x128xf32, #tpu.memory_space<vmem>>, vector<1x32xf32>
    %51 = arith.mulf %49, %50 : vector<1x32xf32>
    %c2_60 = arith.constant 2 : index
    %c0_61 = arith.constant 0 : index
    %52 = vector.load %arg6[%c2_60, %c0_61] : memref<16x128xf32, #tpu.memory_space<vmem>>, vector<1x32xf32>
    %53 = arith.mulf %41, %51 : vector<1x32xf32>
    %54 = arith.subf %52, %53 : vector<1x32xf32>
    %c0_i32_62 = arith.constant 0 : i32
    %c4_i32_63 = arith.constant 4 : i32
    %55 = arith.addi %c0_i32_62, %c4_i32_63 : i32
    %c1_i32_64 = arith.constant 1 : i32
    scf.for %arg20 = %c0_i32_62 to %55 step %c1_i32_64  : i32 {
      %c248_i32 = arith.constant 248 : i32
      %311 = arith.muli %arg20, %c248_i32 : i32
      %312 = tpu.assume_multiple %311, 8 : i32
      %313 = arith.index_cast %312 : i32 to index
      %c0_311 = arith.constant 0 : index
      %314 = vector.load %arg9[%313, %c0_311] : memref<992x32xf32, #tpu.memory_space<vmem>>, vector<248x32xf32>
      %315 = vector.broadcast %51 : vector<1x32xf32> to vector<248x32xf32>
      %316 = arith.mulf %314, %315 : vector<248x32xf32>
      %317 = vector.broadcast %54 : vector<1x32xf32> to vector<248x32xf32>
      %318 = arith.addf %316, %317 : vector<248x32xf32>
      %cst_312 = arith.constant 0.000000e+00 : f32
      %319 = vector.broadcast %cst_312 : f32 to vector<248x32xf32>
      %320 = arith.maximumf %318, %319 : vector<248x32xf32>
      %c247_i32 = arith.constant 247 : i32
      %321 = tpu.dynamic_rotate %320 by %c247_i32 dim 0 : vector<248x32xf32>, i32 -> vector<248x32xf32>
      %322 = arith.maximumf %320, %321 : vector<248x32xf32>
      %c246_i32 = arith.constant 246 : i32
      %323 = tpu.dynamic_rotate %320 by %c246_i32 dim 0 : vector<248x32xf32>, i32 -> vector<248x32xf32>
      %324 = arith.maximumf %322, %323 : vector<248x32xf32>
      %c245_i32 = arith.constant 245 : i32
      %325 = tpu.dynamic_rotate %320 by %c245_i32 dim 0 : vector<248x32xf32>, i32 -> vector<248x32xf32>
      %326 = arith.maximumf %324, %325 : vector<248x32xf32>
      %327 = arith.index_cast %312 : i32 to index
      %c0_313 = arith.constant 0 : index
      %328 = vector.load %arg9[%327, %c0_313] : memref<992x32xf32, #tpu.memory_space<vmem>>, vector<248x32xf32>
      tpu.vector_store %arg9[%327, %c0_313], %326 {strides = array<i32>} : memref<992x32xf32, #tpu.memory_space<vmem>>, vector<248x32xf32>,
    }
    %c4_i32_65 = arith.constant 4 : i32
    %c0_66 = arith.constant 0 : index
    %c0_67 = arith.constant 0 : index
    %56 = tpu.strided_load %arg9[%c0_66, %c0_67] {strides = array<i32: 4, 1>} : memref<992x32xf32, #tpu.memory_space<vmem>>, vector<124x32xf32>
    %c0_68 = arith.constant 0 : index
    %c0_69 = arith.constant 0 : index
    %c0_70 = arith.constant 0 : index
    %57 = vector.load %arg10[%c0_68, %c0_69, %c0_70] : memref<2x124x32xf32, #tpu.memory_space<vmem>>, vector<1x124x32xf32>
    %58 = vector.shape_cast %57 : vector<1x124x32xf32> to vector<124x32xf32>
    %59 = vector.shape_cast %56 : vector<124x32xf32> to vector<1x124x32xf32>
    tpu.vector_store %arg10[%c0_68, %c0_69, %c0_70], %59 {strides = array<i32>} : memref<2x124x32xf32, #tpu.memory_space<vmem>>, vector<1x124x32xf32>,
    %c496_71 = arith.constant 496 : index
    %c0_72 = arith.constant 0 : index
    %60 = tpu.strided_load %arg9[%c496_71, %c0_72] {strides = array<i32: 4, 1>} : memref<992x32xf32, #tpu.memory_space<vmem>>, vector<124x32xf32>
    %c1_73 = arith.constant 1 : index
    %c0_74 = arith.constant 0 : index
    %c0_75 = arith.constant 0 : index
    %61 = vector.load %arg10[%c1_73, %c0_74, %c0_75] : memref<2x124x32xf32, #tpu.memory_space<vmem>>, vector<1x124x32xf32>
    %62 = vector.shape_cast %61 : vector<1x124x32xf32> to vector<124x32xf32>
    %63 = vector.shape_cast %60 : vector<124x32xf32> to vector<1x124x32xf32>
    tpu.vector_store %arg10[%c1_73, %c0_74, %c0_75], %63 {strides = array<i32>} : memref<2x124x32xf32, #tpu.memory_space<vmem>>, vector<1x124x32xf32>,
    %c3_76 = arith.constant 3 : index
    %c0_77 = arith.constant 0 : index
    %64 = vector.load %arg6[%c3_76, %c0_77] : memref<16x128xf32, #tpu.memory_space<vmem>>, vector<1x32xf32>
    %c4_78 = arith.constant 4 : index
    %c0_79 = arith.constant 0 : index
    %65 = vector.load %arg6[%c4_78, %c0_79] : memref<16x128xf32, #tpu.memory_space<vmem>>, vector<1x32xf32>
    %c5 = arith.constant 5 : index
    %c0_80 = arith.constant 0 : index
    %66 = vector.load %arg6[%c5, %c0_80] : memref<16x128xf32, #tpu.memory_space<vmem>>, vector<1x32xf32>
    %c0_81 = arith.constant 0 : index
    %c0_82 = arith.constant 0 : index
    %c0_83 = arith.constant 0 : index
    %67 = vector.load %arg10[%c0_81, %c0_82, %c0_83] : memref<2x124x32xf32, #tpu.memory_space<vmem>>, vector<1x122x32xf32>
    %68 = vector.shape_cast %67 : vector<1x122x32xf32> to vector<122x32xf32>
    %c0_84 = arith.constant 0 : index
    %c0_85 = arith.constant 0 : index
    %69 = vector.load %arg11[%c0_84, %c0_85] : memref<244x96xf32, #tpu.memory_space<vmem>>, vector<122x32xf32>
    tpu.vector_store %arg11[%c0_84, %c0_85], %68 {strides = array<i32>} : memref<244x96xf32, #tpu.memory_space<vmem>>, vector<122x32xf32>,
    %c0_86 = arith.constant 0 : index
    %c1_87 = arith.constant 1 : index
    %c0_88 = arith.constant 0 : index
    %70 = vector.load %arg10[%c0_86, %c1_87, %c0_88] : memref<2x124x32xf32, #tpu.memory_space<vmem>>, vector<1x122x32xf32>
    %71 = vector.shape_cast %70 : vector<1x122x32xf32> to vector<122x32xf32>
    %c0_89 = arith.constant 0 : index
    %c32_90 = arith.constant 32 : index
    %72 = vector.load %arg11[%c0_89, %c32_90] : memref<244x96xf32, #tpu.memory_space<vmem>>, vector<122x32xf32>
    tpu.vector_store %arg11[%c0_89, %c32_90], %71 {strides = array<i32>} : memref<244x96xf32, #tpu.memory_space<vmem>>, vector<122x32xf32>,
    %c0_91 = arith.constant 0 : index
    %c2_92 = arith.constant 2 : index
    %c0_93 = arith.constant 0 : index
    %73 = vector.load %arg10[%c0_91, %c2_92, %c0_93] : memref<2x124x32xf32, #tpu.memory_space<vmem>>, vector<1x122x32xf32>
    %74 = vector.shape_cast %73 : vector<1x122x32xf32> to vector<122x32xf32>
    %c0_94 = arith.constant 0 : index
    %c64_95 = arith.constant 64 : index
    %75 = vector.load %arg11[%c0_94, %c64_95] : memref<244x96xf32, #tpu.memory_space<vmem>>, vector<122x32xf32>
    tpu.vector_store %arg11[%c0_94, %c64_95], %74 {strides = array<i32>} : memref<244x96xf32, #tpu.memory_space<vmem>>, vector<122x32xf32>,
    %c1_96 = arith.constant 1 : index
    %c0_97 = arith.constant 0 : index
    %c0_98 = arith.constant 0 : index
    %76 = vector.load %arg10[%c1_96, %c0_97, %c0_98] : memref<2x124x32xf32, #tpu.memory_space<vmem>>, vector<1x122x32xf32>
    %77 = vector.shape_cast %76 : vector<1x122x32xf32> to vector<122x32xf32>
    %c122 = arith.constant 122 : index
    %c0_99 = arith.constant 0 : index
    %78 = vector.load %arg11[%c122, %c0_99] : memref<244x96xf32, #tpu.memory_space<vmem>>, vector<122x32xf32>
    tpu.vector_store %arg11[%c122, %c0_99], %77 {strides = array<i32>} : memref<244x96xf32, #tpu.memory_space<vmem>>, vector<122x32xf32>,
    %c1_100 = arith.constant 1 : index
    %c1_101 = arith.constant 1 : index
    %c0_102 = arith.constant 0 : index
    %79 = vector.load %arg10[%c1_100, %c1_101, %c0_102] : memref<2x124x32xf32, #tpu.memory_space<vmem>>, vector<1x122x32xf32>
    %80 = vector.shape_cast %79 : vector<1x122x32xf32> to vector<122x32xf32>
    %c122_103 = arith.constant 122 : index
    %c32_104 = arith.constant 32 : index
    %81 = vector.load %arg11[%c122_103, %c32_104] : memref<244x96xf32, #tpu.memory_space<vmem>>, vector<122x32xf32>
    tpu.vector_store %arg11[%c122_103, %c32_104], %80 {strides = array<i32>} : memref<244x96xf32, #tpu.memory_space<vmem>>, vector<122x32xf32>,
    %c1_105 = arith.constant 1 : index
    %c2_106 = arith.constant 2 : index
    %c0_107 = arith.constant 0 : index
    %82 = vector.load %arg10[%c1_105, %c2_106, %c0_107] : memref<2x124x32xf32, #tpu.memory_space<vmem>>, vector<1x122x32xf32>
    %83 = vector.shape_cast %82 : vector<1x122x32xf32> to vector<122x32xf32>
    %c122_108 = arith.constant 122 : index
    %c64_109 = arith.constant 64 : index
    %84 = vector.load %arg11[%c122_108, %c64_109] : memref<244x96xf32, #tpu.memory_space<vmem>>, vector<122x32xf32>
    tpu.vector_store %arg11[%c122_108, %c64_109], %83 {strides = array<i32>} : memref<244x96xf32, #tpu.memory_space<vmem>>, vector<122x32xf32>,
    %c0_110 = arith.constant 0 : index
    %c0_111 = arith.constant 0 : index
    %85 = vector.load %arg11[%c0_110, %c0_111] : memref<244x96xf32, #tpu.memory_space<vmem>>, vector<244x96xf32>
    %c0_112 = arith.constant 0 : index
    %c0_113 = arith.constant 0 : index
    %86 = vector.load %arg2[%c0_112, %c0_113] : memref<96x32xf32, #tpu.memory_space<vmem>>, vector<96x32xf32>
    %cst_114 = arith.constant dense<0.000000e+00> : vector<244x32xf32>
    %87 = tpu.matmul %85, %86, %cst_114 {dimension_numbers = #tpu.dot_dimension_numbers<[1], [0], [0], [1], [0, 0, 1, 1], [], []>} : vector<244x96xf32>, vector<96x32xf32>, vector<244x32xf32> -> vector<244x32xf32>
    %88 = vector.broadcast %64 : vector<1x32xf32> to vector<244x32xf32>
    %89 = arith.addf %87, %88 : vector<244x32xf32>
    %c0_115 = arith.constant 0 : index
    %c0_116 = arith.constant 0 : index
    %90 = vector.load %arg12[%c0_115, %c0_116] : memref<244x32xf32, #tpu.memory_space<vmem>>, vector<244x32xf32>
    tpu.vector_store %arg12[%c0_115, %c0_116], %89 {strides = array<i32>} : memref<244x32xf32, #tpu.memory_space<vmem>>, vector<244x32xf32>,
    %c0_117 = arith.constant 0 : index
    %c0_118 = arith.constant 0 : index
    %91 = vector.load %arg12[%c0_117, %c0_118] : memref<244x32xf32, #tpu.memory_space<vmem>>, vector<244x32xf32>
    %cst_119 = arith.constant dense<0.000000e+00> : vector<32xf32>
    %92 = vector.multi_reduction <add>, %91, %cst_119 [0] : vector<244x32xf32> to vector<32xf32>
    %93 = vector.shape_cast %92 : vector<32xf32> to vector<1x32xf32>
    %cst_120 = arith.constant 0.00409836043 : f32
    %94 = vector.broadcast %cst_120 : f32 to vector<1x32xf32>
    %95 = arith.mulf %93, %94 : vector<1x32xf32>
    %c0_121 = arith.constant 0 : index
    %c0_122 = arith.constant 0 : index
    %96 = vector.load %arg12[%c0_121, %c0_122] : memref<244x32xf32, #tpu.memory_space<vmem>>, vector<244x32xf32>
    %97 = vector.broadcast %95 : vector<1x32xf32> to vector<244x32xf32>
    %98 = arith.subf %96, %97 : vector<244x32xf32>
    %99 = arith.mulf %98, %98 : vector<244x32xf32>
    %cst_123 = arith.constant dense<0.000000e+00> : vector<32xf32>
    %100 = vector.multi_reduction <add>, %99, %cst_123 [0] : vector<244x32xf32> to vector<32xf32>
    %101 = vector.shape_cast %100 : vector<32xf32> to vector<1x32xf32>
    %cst_124 = arith.constant 0.00409836043 : f32
    %102 = vector.broadcast %cst_124 : f32 to vector<1x32xf32>
    %103 = arith.mulf %101, %102 : vector<1x32xf32>
    %cst_125 = arith.constant 9.99999974E-6 : f32
    %104 = vector.broadcast %cst_125 : f32 to vector<1x32xf32>
    %105 = arith.addf %103, %104 : vector<1x32xf32>
    %106 = math.rsqrt %105 : vector<1x32xf32>
    %107 = arith.mulf %106, %65 : vector<1x32xf32>
    %108 = arith.mulf %95, %107 : vector<1x32xf32>
    %109 = arith.subf %66, %108 : vector<1x32xf32>
    %c0_126 = arith.constant 0 : index
    %c0_127 = arith.constant 0 : index
    %110 = vector.load %arg12[%c0_126, %c0_127] : memref<244x32xf32, #tpu.memory_space<vmem>>, vector<244x32xf32>
    %111 = vector.broadcast %107 : vector<1x32xf32> to vector<244x32xf32>
    %112 = arith.mulf %110, %111 : vector<244x32xf32>
    %113 = vector.broadcast %109 : vector<1x32xf32> to vector<244x32xf32>
    %114 = arith.addf %112, %113 : vector<244x32xf32>
    %cst_128 = arith.constant 0.000000e+00 : f32
    %115 = vector.broadcast %cst_128 : f32 to vector<244x32xf32>
    %116 = arith.maximumf %114, %115 : vector<244x32xf32>
    %c0_129 = arith.constant 0 : index
    %c0_130 = arith.constant 0 : index
    %117 = vector.load %arg12[%c0_129, %c0_130] : memref<244x32xf32, #tpu.memory_space<vmem>>, vector<244x32xf32>
    tpu.vector_store %arg12[%c0_129, %c0_130], %116 {strides = array<i32>} : memref<244x32xf32, #tpu.memory_space<vmem>>, vector<244x32xf32>,
    %c0_131 = arith.constant 0 : index
    %c0_132 = arith.constant 0 : index
    %118 = tpu.strided_load %arg12[%c0_131, %c0_132] {strides = array<i32: 4, 1>} : memref<244x32xf32, #tpu.memory_space<vmem>>, vector<30x32xf32>
    %c1_133 = arith.constant 1 : index
    %c0_134 = arith.constant 0 : index
    %119 = tpu.strided_load %arg12[%c1_133, %c0_134] {strides = array<i32: 4, 1>} : memref<244x32xf32, #tpu.memory_space<vmem>>, vector<30x32xf32>
    %120 = arith.maximumf %118, %119 : vector<30x32xf32>
    %c2_135 = arith.constant 2 : index
    %c0_136 = arith.constant 0 : index
    %121 = tpu.strided_load %arg12[%c2_135, %c0_136] {strides = array<i32: 4, 1>} : memref<244x32xf32, #tpu.memory_space<vmem>>, vector<30x32xf32>
    %122 = arith.maximumf %120, %121 : vector<30x32xf32>
    %c3_137 = arith.constant 3 : index
    %c0_138 = arith.constant 0 : index
    %123 = tpu.strided_load %arg12[%c3_137, %c0_138] {strides = array<i32: 4, 1>} : memref<244x32xf32, #tpu.memory_space<vmem>>, vector<30x32xf32>
    %124 = arith.maximumf %122, %123 : vector<30x32xf32>
    %c0_139 = arith.constant 0 : index
    %c0_140 = arith.constant 0 : index
    %c0_141 = arith.constant 0 : index
    %125 = vector.load %arg13[%c0_139, %c0_140, %c0_141] : memref<2x30x32xf32, #tpu.memory_space<vmem>>, vector<1x30x32xf32>
    %126 = vector.shape_cast %125 : vector<1x30x32xf32> to vector<30x32xf32>
    %127 = vector.shape_cast %124 : vector<30x32xf32> to vector<1x30x32xf32>
    tpu.vector_store %arg13[%c0_139, %c0_140, %c0_141], %127 {strides = array<i32>} : memref<2x30x32xf32, #tpu.memory_space<vmem>>, vector<1x30x32xf32>,
    %c122_142 = arith.constant 122 : index
    %c0_143 = arith.constant 0 : index
    %128 = tpu.strided_load %arg12[%c122_142, %c0_143] {strides = array<i32: 4, 1>} : memref<244x32xf32, #tpu.memory_space<vmem>>, vector<30x32xf32>
    %c123 = arith.constant 123 : index
    %c0_144 = arith.constant 0 : index
    %129 = tpu.strided_load %arg12[%c123, %c0_144] {strides = array<i32: 4, 1>} : memref<244x32xf32, #tpu.memory_space<vmem>>, vector<30x32xf32>
    %130 = arith.maximumf %128, %129 : vector<30x32xf32>
    %c124 = arith.constant 124 : index
    %c0_145 = arith.constant 0 : index
    %131 = tpu.strided_load %arg12[%c124, %c0_145] {strides = array<i32: 4, 1>} : memref<244x32xf32, #tpu.memory_space<vmem>>, vector<30x32xf32>
    %132 = arith.maximumf %130, %131 : vector<30x32xf32>
    %c125 = arith.constant 125 : index
    %c0_146 = arith.constant 0 : index
    %133 = tpu.strided_load %arg12[%c125, %c0_146] {strides = array<i32: 4, 1>} : memref<244x32xf32, #tpu.memory_space<vmem>>, vector<30x32xf32>
    %134 = arith.maximumf %132, %133 : vector<30x32xf32>
    %c1_147 = arith.constant 1 : index
    %c0_148 = arith.constant 0 : index
    %c0_149 = arith.constant 0 : index
    %135 = vector.load %arg13[%c1_147, %c0_148, %c0_149] : memref<2x30x32xf32, #tpu.memory_space<vmem>>, vector<1x30x32xf32>
    %136 = vector.shape_cast %135 : vector<1x30x32xf32> to vector<30x32xf32>
    %137 = vector.shape_cast %134 : vector<30x32xf32> to vector<1x30x32xf32>
    tpu.vector_store %arg13[%c1_147, %c0_148, %c0_149], %137 {strides = array<i32>} : memref<2x30x32xf32, #tpu.memory_space<vmem>>, vector<1x30x32xf32>,
    %c6 = arith.constant 6 : index
    %c0_150 = arith.constant 0 : index
    %138 = vector.load %arg6[%c6, %c0_150] : memref<16x128xf32, #tpu.memory_space<vmem>>, vector<1x64xf32>
    %c7 = arith.constant 7 : index
    %c0_151 = arith.constant 0 : index
    %139 = vector.load %arg6[%c7, %c0_151] : memref<16x128xf32, #tpu.memory_space<vmem>>, vector<1x64xf32>
    %c8 = arith.constant 8 : index
    %c0_152 = arith.constant 0 : index
    %140 = vector.load %arg6[%c8, %c0_152] : memref<16x128xf32, #tpu.memory_space<vmem>>, vector<1x64xf32>
    %c0_153 = arith.constant 0 : index
    %c0_154 = arith.constant 0 : index
    %c0_155 = arith.constant 0 : index
    %141 = vector.load %arg13[%c0_153, %c0_154, %c0_155] : memref<2x30x32xf32, #tpu.memory_space<vmem>>, vector<1x28x32xf32>
    %142 = vector.shape_cast %141 : vector<1x28x32xf32> to vector<28x32xf32>
    %c0_156 = arith.constant 0 : index
    %c0_157 = arith.constant 0 : index
    %143 = vector.load %arg14[%c0_156, %c0_157] : memref<56x96xf32, #tpu.memory_space<vmem>>, vector<28x32xf32>
    tpu.vector_store %arg14[%c0_156, %c0_157], %142 {strides = array<i32>} : memref<56x96xf32, #tpu.memory_space<vmem>>, vector<28x32xf32>,
    %c0_158 = arith.constant 0 : index
    %c1_159 = arith.constant 1 : index
    %c0_160 = arith.constant 0 : index
    %144 = vector.load %arg13[%c0_158, %c1_159, %c0_160] : memref<2x30x32xf32, #tpu.memory_space<vmem>>, vector<1x28x32xf32>
    %145 = vector.shape_cast %144 : vector<1x28x32xf32> to vector<28x32xf32>
    %c0_161 = arith.constant 0 : index
    %c32_162 = arith.constant 32 : index
    %146 = vector.load %arg14[%c0_161, %c32_162] : memref<56x96xf32, #tpu.memory_space<vmem>>, vector<28x32xf32>
    tpu.vector_store %arg14[%c0_161, %c32_162], %145 {strides = array<i32>} : memref<56x96xf32, #tpu.memory_space<vmem>>, vector<28x32xf32>,
    %c0_163 = arith.constant 0 : index
    %c2_164 = arith.constant 2 : index
    %c0_165 = arith.constant 0 : index
    %147 = vector.load %arg13[%c0_163, %c2_164, %c0_165] : memref<2x30x32xf32, #tpu.memory_space<vmem>>, vector<1x28x32xf32>
    %148 = vector.shape_cast %147 : vector<1x28x32xf32> to vector<28x32xf32>
    %c0_166 = arith.constant 0 : index
    %c64_167 = arith.constant 64 : index
    %149 = vector.load %arg14[%c0_166, %c64_167] : memref<56x96xf32, #tpu.memory_space<vmem>>, vector<28x32xf32>
    tpu.vector_store %arg14[%c0_166, %c64_167], %148 {strides = array<i32>} : memref<56x96xf32, #tpu.memory_space<vmem>>, vector<28x32xf32>,
    %c1_168 = arith.constant 1 : index
    %c0_169 = arith.constant 0 : index
    %c0_170 = arith.constant 0 : index
    %150 = vector.load %arg13[%c1_168, %c0_169, %c0_170] : memref<2x30x32xf32, #tpu.memory_space<vmem>>, vector<1x28x32xf32>
    %151 = vector.shape_cast %150 : vector<1x28x32xf32> to vector<28x32xf32>
    %c28 = arith.constant 28 : index
    %c0_171 = arith.constant 0 : index
    %152 = vector.load %arg14[%c28, %c0_171] : memref<56x96xf32, #tpu.memory_space<vmem>>, vector<28x32xf32>
    tpu.vector_store %arg14[%c28, %c0_171], %151 {strides = array<i32>} : memref<56x96xf32, #tpu.memory_space<vmem>>, vector<28x32xf32>,
    %c1_172 = arith.constant 1 : index
    %c1_173 = arith.constant 1 : index
    %c0_174 = arith.constant 0 : index
    %153 = vector.load %arg13[%c1_172, %c1_173, %c0_174] : memref<2x30x32xf32, #tpu.memory_space<vmem>>, vector<1x28x32xf32>
    %154 = vector.shape_cast %153 : vector<1x28x32xf32> to vector<28x32xf32>
    %c28_175 = arith.constant 28 : index
    %c32_176 = arith.constant 32 : index
    %155 = vector.load %arg14[%c28_175, %c32_176] : memref<56x96xf32, #tpu.memory_space<vmem>>, vector<28x32xf32>
    tpu.vector_store %arg14[%c28_175, %c32_176], %154 {strides = array<i32>} : memref<56x96xf32, #tpu.memory_space<vmem>>, vector<28x32xf32>,
    %c1_177 = arith.constant 1 : index
    %c2_178 = arith.constant 2 : index
    %c0_179 = arith.constant 0 : index
    %156 = vector.load %arg13[%c1_177, %c2_178, %c0_179] : memref<2x30x32xf32, #tpu.memory_space<vmem>>, vector<1x28x32xf32>
    %157 = vector.shape_cast %156 : vector<1x28x32xf32> to vector<28x32xf32>
    %c28_180 = arith.constant 28 : index
    %c64_181 = arith.constant 64 : index
    %158 = vector.load %arg14[%c28_180, %c64_181] : memref<56x96xf32, #tpu.memory_space<vmem>>, vector<28x32xf32>
    tpu.vector_store %arg14[%c28_180, %c64_181], %157 {strides = array<i32>} : memref<56x96xf32, #tpu.memory_space<vmem>>, vector<28x32xf32>,
    %c0_182 = arith.constant 0 : index
    %c0_183 = arith.constant 0 : index
    %159 = vector.load %arg14[%c0_182, %c0_183] : memref<56x96xf32, #tpu.memory_space<vmem>>, vector<56x96xf32>
    %c0_184 = arith.constant 0 : index
    %c0_185 = arith.constant 0 : index
    %160 = vector.load %arg3[%c0_184, %c0_185] : memref<96x64xf32, #tpu.memory_space<vmem>>, vector<96x64xf32>
    %cst_186 = arith.constant dense<0.000000e+00> : vector<56x64xf32>
    %161 = tpu.matmul %159, %160, %cst_186 {dimension_numbers = #tpu.dot_dimension_numbers<[1], [0], [0], [1], [0, 0, 1, 1], [], []>} : vector<56x96xf32>, vector<96x64xf32>, vector<56x64xf32> -> vector<56x64xf32>
    %162 = vector.broadcast %138 : vector<1x64xf32> to vector<56x64xf32>
    %163 = arith.addf %161, %162 : vector<56x64xf32>
    %c0_187 = arith.constant 0 : index
    %c0_188 = arith.constant 0 : index
    %164 = vector.load %arg15[%c0_187, %c0_188] : memref<56x64xf32, #tpu.memory_space<vmem>>, vector<56x64xf32>
    tpu.vector_store %arg15[%c0_187, %c0_188], %163 {strides = array<i32>} : memref<56x64xf32, #tpu.memory_space<vmem>>, vector<56x64xf32>,
    %c0_189 = arith.constant 0 : index
    %c0_190 = arith.constant 0 : index
    %165 = vector.load %arg15[%c0_189, %c0_190] : memref<56x64xf32, #tpu.memory_space<vmem>>, vector<56x64xf32>
    %cst_191 = arith.constant dense<0.000000e+00> : vector<64xf32>
    %166 = vector.multi_reduction <add>, %165, %cst_191 [0] : vector<56x64xf32> to vector<64xf32>
    %167 = vector.shape_cast %166 : vector<64xf32> to vector<1x64xf32>
    %cst_192 = arith.constant 0.0178571437 : f32
    %168 = vector.broadcast %cst_192 : f32 to vector<1x64xf32>
    %169 = arith.mulf %167, %168 : vector<1x64xf32>
    %c0_193 = arith.constant 0 : index
    %c0_194 = arith.constant 0 : index
    %170 = vector.load %arg15[%c0_193, %c0_194] : memref<56x64xf32, #tpu.memory_space<vmem>>, vector<56x64xf32>
    %171 = vector.broadcast %169 : vector<1x64xf32> to vector<56x64xf32>
    %172 = arith.subf %170, %171 : vector<56x64xf32>
    %173 = arith.mulf %172, %172 : vector<56x64xf32>
    %cst_195 = arith.constant dense<0.000000e+00> : vector<64xf32>
    %174 = vector.multi_reduction <add>, %173, %cst_195 [0] : vector<56x64xf32> to vector<64xf32>
    %175 = vector.shape_cast %174 : vector<64xf32> to vector<1x64xf32>
    %cst_196 = arith.constant 0.0178571437 : f32
    %176 = vector.broadcast %cst_196 : f32 to vector<1x64xf32>
    %177 = arith.mulf %175, %176 : vector<1x64xf32>
    %cst_197 = arith.constant 9.99999974E-6 : f32
    %178 = vector.broadcast %cst_197 : f32 to vector<1x64xf32>
    %179 = arith.addf %177, %178 : vector<1x64xf32>
    %180 = math.rsqrt %179 : vector<1x64xf32>
    %181 = arith.mulf %180, %139 : vector<1x64xf32>
    %182 = arith.mulf %169, %181 : vector<1x64xf32>
    %183 = arith.subf %140, %182 : vector<1x64xf32>
    %c0_198 = arith.constant 0 : index
    %c0_199 = arith.constant 0 : index
    %184 = vector.load %arg15[%c0_198, %c0_199] : memref<56x64xf32, #tpu.memory_space<vmem>>, vector<56x64xf32>
    %185 = vector.broadcast %181 : vector<1x64xf32> to vector<56x64xf32>
    %186 = arith.mulf %184, %185 : vector<56x64xf32>
    %187 = vector.broadcast %183 : vector<1x64xf32> to vector<56x64xf32>
    %188 = arith.addf %186, %187 : vector<56x64xf32>
    %cst_200 = arith.constant 0.000000e+00 : f32
    %189 = vector.broadcast %cst_200 : f32 to vector<56x64xf32>
    %190 = arith.maximumf %188, %189 : vector<56x64xf32>
    %c0_201 = arith.constant 0 : index
    %c0_202 = arith.constant 0 : index
    %191 = vector.load %arg15[%c0_201, %c0_202] : memref<56x64xf32, #tpu.memory_space<vmem>>, vector<56x64xf32>
    tpu.vector_store %arg15[%c0_201, %c0_202], %190 {strides = array<i32>} : memref<56x64xf32, #tpu.memory_space<vmem>>, vector<56x64xf32>,
    %c0_203 = arith.constant 0 : index
    %c0_204 = arith.constant 0 : index
    %192 = tpu.strided_load %arg15[%c0_203, %c0_204] {strides = array<i32: 4, 1>} : memref<56x64xf32, #tpu.memory_space<vmem>>, vector<7x64xf32>
    %c1_205 = arith.constant 1 : index
    %c0_206 = arith.constant 0 : index
    %193 = tpu.strided_load %arg15[%c1_205, %c0_206] {strides = array<i32: 4, 1>} : memref<56x64xf32, #tpu.memory_space<vmem>>, vector<7x64xf32>
    %194 = arith.maximumf %192, %193 : vector<7x64xf32>
    %c2_207 = arith.constant 2 : index
    %c0_208 = arith.constant 0 : index
    %195 = tpu.strided_load %arg15[%c2_207, %c0_208] {strides = array<i32: 4, 1>} : memref<56x64xf32, #tpu.memory_space<vmem>>, vector<7x64xf32>
    %196 = arith.maximumf %194, %195 : vector<7x64xf32>
    %c3_209 = arith.constant 3 : index
    %c0_210 = arith.constant 0 : index
    %197 = tpu.strided_load %arg15[%c3_209, %c0_210] {strides = array<i32: 4, 1>} : memref<56x64xf32, #tpu.memory_space<vmem>>, vector<7x64xf32>
    %198 = arith.maximumf %196, %197 : vector<7x64xf32>
    %c0_211 = arith.constant 0 : index
    %c0_212 = arith.constant 0 : index
    %c0_213 = arith.constant 0 : index
    %199 = vector.load %arg16[%c0_211, %c0_212, %c0_213] : memref<2x7x64xf32, #tpu.memory_space<vmem>>, vector<1x7x64xf32>
    %200 = vector.shape_cast %199 : vector<1x7x64xf32> to vector<7x64xf32>
    %201 = vector.shape_cast %198 : vector<7x64xf32> to vector<1x7x64xf32>
    tpu.vector_store %arg16[%c0_211, %c0_212, %c0_213], %201 {strides = array<i32>} : memref<2x7x64xf32, #tpu.memory_space<vmem>>, vector<1x7x64xf32>,
    %c28_214 = arith.constant 28 : index
    %c0_215 = arith.constant 0 : index
    %202 = tpu.strided_load %arg15[%c28_214, %c0_215] {strides = array<i32: 4, 1>} : memref<56x64xf32, #tpu.memory_space<vmem>>, vector<7x64xf32>
    %c29 = arith.constant 29 : index
    %c0_216 = arith.constant 0 : index
    %203 = tpu.strided_load %arg15[%c29, %c0_216] {strides = array<i32: 4, 1>} : memref<56x64xf32, #tpu.memory_space<vmem>>, vector<7x64xf32>
    %204 = arith.maximumf %202, %203 : vector<7x64xf32>
    %c30 = arith.constant 30 : index
    %c0_217 = arith.constant 0 : index
    %205 = tpu.strided_load %arg15[%c30, %c0_217] {strides = array<i32: 4, 1>} : memref<56x64xf32, #tpu.memory_space<vmem>>, vector<7x64xf32>
    %206 = arith.maximumf %204, %205 : vector<7x64xf32>
    %c31 = arith.constant 31 : index
    %c0_218 = arith.constant 0 : index
    %207 = tpu.strided_load %arg15[%c31, %c0_218] {strides = array<i32: 4, 1>} : memref<56x64xf32, #tpu.memory_space<vmem>>, vector<7x64xf32>
    %208 = arith.maximumf %206, %207 : vector<7x64xf32>
    %c1_219 = arith.constant 1 : index
    %c0_220 = arith.constant 0 : index
    %c0_221 = arith.constant 0 : index
    %209 = vector.load %arg16[%c1_219, %c0_220, %c0_221] : memref<2x7x64xf32, #tpu.memory_space<vmem>>, vector<1x7x64xf32>
    %210 = vector.shape_cast %209 : vector<1x7x64xf32> to vector<7x64xf32>
    %211 = vector.shape_cast %208 : vector<7x64xf32> to vector<1x7x64xf32>
    tpu.vector_store %arg16[%c1_219, %c0_220, %c0_221], %211 {strides = array<i32>} : memref<2x7x64xf32, #tpu.memory_space<vmem>>, vector<1x7x64xf32>,
    %c9 = arith.constant 9 : index
    %c0_222 = arith.constant 0 : index
    %212 = vector.load %arg6[%c9, %c0_222] : memref<16x128xf32, #tpu.memory_space<vmem>>, vector<1x64xf32>
    %c10 = arith.constant 10 : index
    %c0_223 = arith.constant 0 : index
    %213 = vector.load %arg6[%c10, %c0_223] : memref<16x128xf32, #tpu.memory_space<vmem>>, vector<1x64xf32>
    %c11 = arith.constant 11 : index
    %c0_224 = arith.constant 0 : index
    %214 = vector.load %arg6[%c11, %c0_224] : memref<16x128xf32, #tpu.memory_space<vmem>>, vector<1x64xf32>
    %c0_225 = arith.constant 0 : index
    %c0_226 = arith.constant 0 : index
    %c0_227 = arith.constant 0 : index
    %215 = vector.load %arg16[%c0_225, %c0_226, %c0_227] : memref<2x7x64xf32, #tpu.memory_space<vmem>>, vector<1x5x64xf32>
    %216 = vector.shape_cast %215 : vector<1x5x64xf32> to vector<5x64xf32>
    %c0_228 = arith.constant 0 : index
    %c0_229 = arith.constant 0 : index
    %217 = vector.load %arg17[%c0_228, %c0_229] : memref<10x192xf32, #tpu.memory_space<vmem>>, vector<5x64xf32>
    tpu.vector_store %arg17[%c0_228, %c0_229], %216 {strides = array<i32>} : memref<10x192xf32, #tpu.memory_space<vmem>>, vector<5x64xf32>,
    %c0_230 = arith.constant 0 : index
    %c1_231 = arith.constant 1 : index
    %c0_232 = arith.constant 0 : index
    %218 = vector.load %arg16[%c0_230, %c1_231, %c0_232] : memref<2x7x64xf32, #tpu.memory_space<vmem>>, vector<1x5x64xf32>
    %219 = vector.shape_cast %218 : vector<1x5x64xf32> to vector<5x64xf32>
    %c0_233 = arith.constant 0 : index
    %c64_234 = arith.constant 64 : index
    %220 = vector.load %arg17[%c0_233, %c64_234] : memref<10x192xf32, #tpu.memory_space<vmem>>, vector<5x64xf32>
    tpu.vector_store %arg17[%c0_233, %c64_234], %219 {strides = array<i32>} : memref<10x192xf32, #tpu.memory_space<vmem>>, vector<5x64xf32>,
    %c0_235 = arith.constant 0 : index
    %c2_236 = arith.constant 2 : index
    %c0_237 = arith.constant 0 : index
    %221 = vector.load %arg16[%c0_235, %c2_236, %c0_237] : memref<2x7x64xf32, #tpu.memory_space<vmem>>, vector<1x5x64xf32>
    %222 = vector.shape_cast %221 : vector<1x5x64xf32> to vector<5x64xf32>
    %c0_238 = arith.constant 0 : index
    %c128 = arith.constant 128 : index
    %223 = vector.load %arg17[%c0_238, %c128] : memref<10x192xf32, #tpu.memory_space<vmem>>, vector<5x64xf32>
    tpu.vector_store %arg17[%c0_238, %c128], %222 {strides = array<i32>} : memref<10x192xf32, #tpu.memory_space<vmem>>, vector<5x64xf32>,
    %c1_239 = arith.constant 1 : index
    %c0_240 = arith.constant 0 : index
    %c0_241 = arith.constant 0 : index
    %224 = vector.load %arg16[%c1_239, %c0_240, %c0_241] : memref<2x7x64xf32, #tpu.memory_space<vmem>>, vector<1x5x64xf32>
    %225 = vector.shape_cast %224 : vector<1x5x64xf32> to vector<5x64xf32>
    %c5_242 = arith.constant 5 : index
    %c0_243 = arith.constant 0 : index
    %226 = vector.load %arg17[%c5_242, %c0_243] : memref<10x192xf32, #tpu.memory_space<vmem>>, vector<5x64xf32>
    tpu.vector_store %arg17[%c5_242, %c0_243], %225 {strides = array<i32>} : memref<10x192xf32, #tpu.memory_space<vmem>>, vector<5x64xf32>,
    %c1_244 = arith.constant 1 : index
    %c1_245 = arith.constant 1 : index
    %c0_246 = arith.constant 0 : index
    %227 = vector.load %arg16[%c1_244, %c1_245, %c0_246] : memref<2x7x64xf32, #tpu.memory_space<vmem>>, vector<1x5x64xf32>
    %228 = vector.shape_cast %227 : vector<1x5x64xf32> to vector<5x64xf32>
    %c5_247 = arith.constant 5 : index
    %c64_248 = arith.constant 64 : index
    %229 = vector.load %arg17[%c5_247, %c64_248] : memref<10x192xf32, #tpu.memory_space<vmem>>, vector<5x64xf32>
    tpu.vector_store %arg17[%c5_247, %c64_248], %228 {strides = array<i32>} : memref<10x192xf32, #tpu.memory_space<vmem>>, vector<5x64xf32>,
    %c1_249 = arith.constant 1 : index
    %c2_250 = arith.constant 2 : index
    %c0_251 = arith.constant 0 : index
    %230 = vector.load %arg16[%c1_249, %c2_250, %c0_251] : memref<2x7x64xf32, #tpu.memory_space<vmem>>, vector<1x5x64xf32>
    %231 = vector.shape_cast %230 : vector<1x5x64xf32> to vector<5x64xf32>
    %c5_252 = arith.constant 5 : index
    %c128_253 = arith.constant 128 : index
    %232 = vector.load %arg17[%c5_252, %c128_253] : memref<10x192xf32, #tpu.memory_space<vmem>>, vector<5x64xf32>
    tpu.vector_store %arg17[%c5_252, %c128_253], %231 {strides = array<i32>} : memref<10x192xf32, #tpu.memory_space<vmem>>, vector<5x64xf32>,
    %c0_254 = arith.constant 0 : index
    %c0_255 = arith.constant 0 : index
    %233 = vector.load %arg17[%c0_254, %c0_255] : memref<10x192xf32, #tpu.memory_space<vmem>>, vector<10x192xf32>
    %c0_256 = arith.constant 0 : index
    %c0_257 = arith.constant 0 : index
    %234 = vector.load %arg4[%c0_256, %c0_257] : memref<192x64xf32, #tpu.memory_space<vmem>>, vector<192x64xf32>
    %cst_258 = arith.constant dense<0.000000e+00> : vector<10x64xf32>
    %235 = tpu.matmul %233, %234, %cst_258 {dimension_numbers = #tpu.dot_dimension_numbers<[1], [0], [0], [1], [0, 0, 1, 1], [], []>} : vector<10x192xf32>, vector<192x64xf32>, vector<10x64xf32> -> vector<10x64xf32>
    %236 = vector.broadcast %212 : vector<1x64xf32> to vector<10x64xf32>
    %237 = arith.addf %235, %236 : vector<10x64xf32>
    %c0_259 = arith.constant 0 : index
    %c0_260 = arith.constant 0 : index
    %238 = vector.load %arg18[%c0_259, %c0_260] : memref<10x64xf32, #tpu.memory_space<vmem>>, vector<10x64xf32>
    tpu.vector_store %arg18[%c0_259, %c0_260], %237 {strides = array<i32>} : memref<10x64xf32, #tpu.memory_space<vmem>>, vector<10x64xf32>,
    %c0_261 = arith.constant 0 : index
    %c0_262 = arith.constant 0 : index
    %239 = vector.load %arg18[%c0_261, %c0_262] : memref<10x64xf32, #tpu.memory_space<vmem>>, vector<10x64xf32>
    %cst_263 = arith.constant dense<0.000000e+00> : vector<64xf32>
    %240 = vector.multi_reduction <add>, %239, %cst_263 [0] : vector<10x64xf32> to vector<64xf32>
    %241 = vector.shape_cast %240 : vector<64xf32> to vector<1x64xf32>
    %cst_264 = arith.constant 1.000000e-01 : f32
    %242 = vector.broadcast %cst_264 : f32 to vector<1x64xf32>
    %243 = arith.mulf %241, %242 : vector<1x64xf32>
    %c0_265 = arith.constant 0 : index
    %c0_266 = arith.constant 0 : index
    %244 = vector.load %arg18[%c0_265, %c0_266] : memref<10x64xf32, #tpu.memory_space<vmem>>, vector<10x64xf32>
    %245 = vector.broadcast %243 : vector<1x64xf32> to vector<10x64xf32>
    %246 = arith.subf %244, %245 : vector<10x64xf32>
    %247 = arith.mulf %246, %246 : vector<10x64xf32>
    %cst_267 = arith.constant dense<0.000000e+00> : vector<64xf32>
    %248 = vector.multi_reduction <add>, %247, %cst_267 [0] : vector<10x64xf32> to vector<64xf32>
    %249 = vector.shape_cast %248 : vector<64xf32> to vector<1x64xf32>
    %cst_268 = arith.constant 1.000000e-01 : f32
    %250 = vector.broadcast %cst_268 : f32 to vector<1x64xf32>
    %251 = arith.mulf %249, %250 : vector<1x64xf32>
    %cst_269 = arith.constant 9.99999974E-6 : f32
    %252 = vector.broadcast %cst_269 : f32 to vector<1x64xf32>
    %253 = arith.addf %251, %252 : vector<1x64xf32>
    %254 = math.rsqrt %253 : vector<1x64xf32>
    %255 = arith.mulf %254, %213 : vector<1x64xf32>
    %256 = arith.mulf %243, %255 : vector<1x64xf32>
    %257 = arith.subf %214, %256 : vector<1x64xf32>
    %c0_270 = arith.constant 0 : index
    %c0_271 = arith.constant 0 : index
    %258 = vector.load %arg18[%c0_270, %c0_271] : memref<10x64xf32, #tpu.memory_space<vmem>>, vector<10x64xf32>
    %259 = vector.broadcast %255 : vector<1x64xf32> to vector<10x64xf32>
    %260 = arith.mulf %258, %259 : vector<10x64xf32>
    %261 = vector.broadcast %257 : vector<1x64xf32> to vector<10x64xf32>
    %262 = arith.addf %260, %261 : vector<10x64xf32>
    %cst_272 = arith.constant 0.000000e+00 : f32
    %263 = vector.broadcast %cst_272 : f32 to vector<10x64xf32>
    %264 = arith.maximumf %262, %263 : vector<10x64xf32>
    %c0_273 = arith.constant 0 : index
    %c0_274 = arith.constant 0 : index
    %265 = vector.load %arg18[%c0_273, %c0_274] : memref<10x64xf32, #tpu.memory_space<vmem>>, vector<10x64xf32>
    tpu.vector_store %arg18[%c0_273, %c0_274], %264 {strides = array<i32>} : memref<10x64xf32, #tpu.memory_space<vmem>>, vector<10x64xf32>,
    %c0_275 = arith.constant 0 : index
    %c0_276 = arith.constant 0 : index
    %266 = tpu.strided_load %arg18[%c0_275, %c0_276] {strides = array<i32: 4, 1>} : memref<10x64xf32, #tpu.memory_space<vmem>>, vector<1x64xf32>
    %c1_277 = arith.constant 1 : index
    %c0_278 = arith.constant 0 : index
    %267 = tpu.strided_load %arg18[%c1_277, %c0_278] {strides = array<i32: 4, 1>} : memref<10x64xf32, #tpu.memory_space<vmem>>, vector<1x64xf32>
    %268 = arith.maximumf %266, %267 : vector<1x64xf32>
    %c2_279 = arith.constant 2 : index
    %c0_280 = arith.constant 0 : index
    %269 = tpu.strided_load %arg18[%c2_279, %c0_280] {strides = array<i32: 4, 1>} : memref<10x64xf32, #tpu.memory_space<vmem>>, vector<1x64xf32>
    %270 = arith.maximumf %268, %269 : vector<1x64xf32>
    %c3_281 = arith.constant 3 : index
    %c0_282 = arith.constant 0 : index
    %271 = tpu.strided_load %arg18[%c3_281, %c0_282] {strides = array<i32: 4, 1>} : memref<10x64xf32, #tpu.memory_space<vmem>>, vector<1x64xf32>
    %272 = arith.maximumf %270, %271 : vector<1x64xf32>
    %c0_283 = arith.constant 0 : index
    %c0_284 = arith.constant 0 : index
    %c0_285 = arith.constant 0 : index
    %273 = vector.load %arg19[%c0_283, %c0_284, %c0_285] : memref<2x1x64xf32, #tpu.memory_space<vmem>>, vector<1x1x64xf32>
    %274 = vector.shape_cast %273 : vector<1x1x64xf32> to vector<1x64xf32>
    %275 = vector.shape_cast %272 : vector<1x64xf32> to vector<1x1x64xf32>
    tpu.vector_store %arg19[%c0_283, %c0_284, %c0_285], %275 {strides = array<i32>} : memref<2x1x64xf32, #tpu.memory_space<vmem>>, vector<1x1x64xf32>,
    %c5_286 = arith.constant 5 : index
    %c0_287 = arith.constant 0 : index
    %276 = tpu.strided_load %arg18[%c5_286, %c0_287] {strides = array<i32: 4, 1>} : memref<10x64xf32, #tpu.memory_space<vmem>>, vector<1x64xf32>
    %c6_288 = arith.constant 6 : index
    %c0_289 = arith.constant 0 : index
    %277 = tpu.strided_load %arg18[%c6_288, %c0_289] {strides = array<i32: 4, 1>} : memref<10x64xf32, #tpu.memory_space<vmem>>, vector<1x64xf32>
    %278 = arith.maximumf %276, %277 : vector<1x64xf32>
    %c7_290 = arith.constant 7 : index
    %c0_291 = arith.constant 0 : index
    %279 = tpu.strided_load %arg18[%c7_290, %c0_291] {strides = array<i32: 4, 1>} : memref<10x64xf32, #tpu.memory_space<vmem>>, vector<1x64xf32>
    %280 = arith.maximumf %278, %279 : vector<1x64xf32>
    %c8_292 = arith.constant 8 : index
    %c0_293 = arith.constant 0 : index
    %281 = tpu.strided_load %arg18[%c8_292, %c0_293] {strides = array<i32: 4, 1>} : memref<10x64xf32, #tpu.memory_space<vmem>>, vector<1x64xf32>
    %282 = arith.maximumf %280, %281 : vector<1x64xf32>
    %c1_294 = arith.constant 1 : index
    %c0_295 = arith.constant 0 : index
    %c0_296 = arith.constant 0 : index
    %283 = vector.load %arg19[%c1_294, %c0_295, %c0_296] : memref<2x1x64xf32, #tpu.memory_space<vmem>>, vector<1x1x64xf32>
    %284 = vector.shape_cast %283 : vector<1x1x64xf32> to vector<1x64xf32>
    %285 = vector.shape_cast %282 : vector<1x64xf32> to vector<1x1x64xf32>
    tpu.vector_store %arg19[%c1_294, %c0_295, %c0_296], %285 {strides = array<i32>} : memref<2x1x64xf32, #tpu.memory_space<vmem>>, vector<1x1x64xf32>,
    %c0_297 = arith.constant 0 : index
    %c0_298 = arith.constant 0 : index
    %c0_299 = arith.constant 0 : index
    %286 = vector.load %arg19[%c0_297, %c0_298, %c0_299] : memref<2x1x64xf32, #tpu.memory_space<vmem>>, vector<2x1x64xf32>
    %cst_300 = arith.constant dense<0.000000e+00> : vector<2x64xf32>
    %287 = vector.multi_reduction <add>, %286, %cst_300 [1] : vector<2x1x64xf32> to vector<2x64xf32>
    %cst_301 = arith.constant 1.000000e+00 : f32
    %288 = vector.broadcast %cst_301 : f32 to vector<2x64xf32>
    %289 = arith.divf %287, %288 : vector<2x64xf32>
    %c0_302 = arith.constant 0 : index
    %c0_303 = arith.constant 0 : index
    %290 = vector.load %arg5[%c0_302, %c0_303] : memref<64x128xf32, #tpu.memory_space<vmem>>, vector<64x128xf32>
    %cst_304 = arith.constant dense<0.000000e+00> : vector<2x128xf32>
    %291 = tpu.matmul %289, %290, %cst_304 {dimension_numbers = #tpu.dot_dimension_numbers<[1], [0], [0], [1], [0, 0, 1, 1], [], []>} : vector<2x64xf32>, vector<64x128xf32>, vector<2x128xf32> -> vector<2x128xf32>
    %c12 = arith.constant 12 : index
    %c0_305 = arith.constant 0 : index
    %292 = vector.load %arg6[%c12, %c0_305] : memref<16x128xf32, #tpu.memory_space<vmem>>, vector<1x128xf32>
    %293 = vector.broadcast %292 : vector<1x128xf32> to vector<2x128xf32>
    %294 = arith.addf %291, %293 : vector<2x128xf32>
    %295 = tpu.iota {dimensions = array<i32: 1>} : vector<2x128xi32>
    %c35_i32 = arith.constant 35 : i32
    %296 = vector.broadcast %c35_i32 : i32 to vector<2x128xi32>
    %297 = arith.cmpi slt, %295, %296 : vector<2x128xi32>
    %cst_306 = arith.constant -1.000000e+30 : f32
    %298 = vector.broadcast %cst_306 : f32 to vector<2x128xf32>
    %299 = arith.select %297, %294, %298 : vector<2x128xi1>, vector<2x128xf32>
    %cst_307 = arith.constant dense<0xFF800000> : vector<2xf32>
    %300 = vector.multi_reduction <maximumf>, %299, %cst_307 [1] : vector<2x128xf32> to vector<2xf32>
    %301 = vector.shape_cast %300 : vector<2xf32> to vector<2x1xf32>
    %302 = vector.broadcast %301 : vector<2x1xf32> to vector<2x128xf32>
    %303 = arith.subf %299, %302 : vector<2x128xf32>
    %304 = math.exp %303 : vector<2x128xf32>
    %cst_308 = arith.constant dense<0.000000e+00> : vector<2xf32>
    %305 = vector.multi_reduction <add>, %304, %cst_308 [1] : vector<2x128xf32> to vector<2xf32>
    %306 = vector.shape_cast %305 : vector<2xf32> to vector<2x1xf32>
    %307 = math.log %306 : vector<2x1xf32>
    %308 = vector.broadcast %307 : vector<2x1xf32> to vector<2x128xf32>
    %309 = arith.subf %303, %308 : vector<2x128xf32>
    %c0_309 = arith.constant 0 : index
    %c0_310 = arith.constant 0 : index
    %310 = vector.load %arg7[%c0_309, %c0_310] : memref<2x128xf32, #tpu.memory_space<vmem>>, vector<2x128xf32>
    tpu.vector_store %arg7[%c0_309, %c0_310], %309 {strides = array<i32>} : memref<2x128xf32, #tpu.memory_space<vmem>>, vector<2x128xf32>,
    return
  }
}

</mosaic_0001>

<llo_original>
// kernel: squeeze.1
$region0: #{squeeze.1}
  %s0 = inlined_call_operand.vmem [shape: f32[2,8000], index: 0, kind: input, shape index: {}]
  %s1 = inlined_call_operand.vmem [shape: f32[2,500,16], index: 1, kind: output, shape index: {}]
  $region1: #{squeeze.1} parent=0
    #allocation0 [shape = 'u8[258048]{0}', space=vmem, size = 0x3f000, scoped, tag = 'scoped mem for input reshape']
    %s3 = ssub.s32 4, 1
    %s4 = scalar_lea.vmem %s0, 124
    %v5 = vld [vmem:[%s4] sm:%s3]
    %s6 = scalar_lea.vmem [#allocation0], 496
    %7 = vst [vmem:[%s6] sm:%s3] %v5
    %s8 = scalar_lea.vmem %s0, 122
    %v9 = vld [vmem:[%s8] sm:%s3]
    %s10 = scalar_lea.vmem [#allocation0], 488
    %11 = vst [vmem:[%s10] sm:%s3] %v9
    %s12 = scalar_lea.vmem %s0, 120
    %v13 = vld [vmem:[%s12] sm:%s3]
    %s14 = scalar_lea.vmem [#allocation0], 480
    %15 = vst [vmem:[%s14] sm:%s3] %v13
    %s16 = scalar_lea.vmem %s0, 118
    %v17 = vld [vmem:[%s16] sm:%s3]
    %s18 = scalar_lea.vmem [#allocation0], 472
    %19 = vst [vmem:[%s18] sm:%s3] %v17
    %s20 = scalar_lea.vmem %s0, 116
    %v21 = vld [vmem:[%s20] sm:%s3]
    %s22 = scalar_lea.vmem [#allocation0], 464
    %23 = vst [vmem:[%s22] sm:%s3] %v21
    %s24 = scalar_lea.vmem %s0, 114
    %v25 = vld [vmem:[%s24] sm:%s3]
    %s26 = scalar_lea.vmem [#allocation0], 456
    %27 = vst [vmem:[%s26] sm:%s3] %v25
    %s28 = scalar_lea.vmem %s0, 112
    %v29 = vld [vmem:[%s28] sm:%s3]
    %s30 = scalar_lea.vmem [#allocation0], 448
    %31 = vst [vmem:[%s30] sm:%s3] %v29
    %s32 = scalar_lea.vmem %s0, 110
    %v33 = vld [vmem:[%s32] sm:%s3]
    %s34 = scalar_lea.vmem [#allocation0], 440
    %35 = vst [vmem:[%s34] sm:%s3] %v33
    %s36 = scalar_lea.vmem %s0, 108
    %v37 = vld [vmem:[%s36] sm:%s3]
    %s38 = scalar_lea.vmem [#allocation0], 432
    %39 = vst [vmem:[%s38] sm:%s3] %v37
    %s40 = scalar_lea.vmem %s0, 106
    %v41 = vld [vmem:[%s40] sm:%s3]
    %s42 = scalar_lea.vmem [#allocation0], 424
    %43 = vst [vmem:[%s42] sm:%s3] %v41
    %s44 = scalar_lea.vmem %s0, 104
    %v45 = vld [vmem:[%s44] sm:%s3]
    %s46 = scalar_lea.vmem [#allocation0], 416
    %47 = vst [vmem:[%s46] sm:%s3] %v45
    %s48 = scalar_lea.vmem %s0, 102
    %v49 = vld [vmem:[%s48] sm:%s3]
    %s50 = scalar_lea.vmem [#allocation0], 408
    %51 = vst [vmem:[%s50] sm:%s3] %v49
    %s52 = scalar_lea.vmem %s0, 100
    %v53 = vld [vmem:[%s52] sm:%s3]
    %s54 = scalar_lea.vmem [#allocation0], 400
    %55 = vst [vmem:[%s54] sm:%s3] %v53
    %s56 = scalar_lea.vmem %s0, 98
    %v57 = vld [vmem:[%s56] sm:%s3]
    %s58 = scalar_lea.vmem [#allocation0], 392
    %59 = vst [vmem:[%s58] sm:%s3] %v57
    %s60 = scalar_lea.vmem %s0, 96
    %v61 = vld [vmem:[%s60] sm:%s3]
    %s62 = scalar_lea.vmem [#allocation0], 384
    %63 = vst [vmem:[%s62] sm:%s3] %v61
    %s64 = scalar_lea.vmem %s0, 94
    %v65 = vld [vmem:[%s64] sm:%s3]
    %s66 = scalar_lea.vmem [#allocation0], 376
    %67 = vst [vmem:[%s66] sm:%s3] %v65
    %s68 = scalar_lea.vmem %s0, 92
    %v69 = vld [vmem:[%s68] sm:%s3]
    %s70 = scalar_lea.vmem [#allocation0], 368
    %71 = vst [vmem:[%s70] sm:%s3] %v69
    %s72 = scalar_lea.vmem %s0, 90
    %v73 = vld [vmem:[%s72] sm:%s3]
    %s74 = scalar_lea.vmem [#allocation0], 360
    %75 = vst [vmem:[%s74] sm:%s3] %v73
    %s76 = scalar_lea.vmem %s0, 88
    %v77 = vld [vmem:[%s76] sm:%s3]
    %s78 = scalar_lea.vmem [#allocation0], 352
    %79 = vst [vmem:[%s78] sm:%s3] %v77
    %s80 = scalar_lea.vmem %s0, 86
    %v81 = vld [vmem:[%s80] sm:%s3]
    %s82 = scalar_lea.vmem [#allocation0], 344
    %83 = vst [vmem:[%s82] sm:%s3] %v81
    %s84 = scalar_lea.vmem %s0, 84
    %v85 = vld [vmem:[%s84] sm:%s3]
    %s86 = scalar_lea.vmem [#allocation0], 336
    %87 = vst [vmem:[%s86] sm:%s3] %v85
    %s88 = scalar_lea.vmem %s0, 82
    %v89 = vld [vmem:[%s88] sm:%s3]
    %s90 = scalar_lea.vmem [#allocation0], 328
    %91 = vst [vmem:[%s90] sm:%s3] %v89
    %s92 = scalar_lea.vmem %s0, 80
    %v93 = vld [vmem:[%s92] sm:%s3]
    %s94 = scalar_lea.vmem [#allocation0], 320
    %95 = vst [vmem:[%s94] sm:%s3] %v93
    %s96 = scalar_lea.vmem %s0, 78
    %v97 = vld [vmem:[%s96] sm:%s3]
    %s98 = scalar_lea.vmem [#allocation0], 312
    %99 = vst [vmem:[%s98] sm:%s3] %v97
    %s100 = scalar_lea.vmem %s0, 76
    %v101 = vld [vmem:[%s100] sm:%s3]
    %s102 = scalar_lea.vmem [#allocation0], 304
    %103 = vst [vmem:[%s102] sm:%s3] %v101
    %s104 = scalar_lea.vmem %s0, 74
    %v105 = vld [vmem:[%s104] sm:%s3]
    %s106 = scalar_lea.vmem [#allocation0], 296
    %107 = vst [vmem:[%s106] sm:%s3] %v105
    %s108 = scalar_lea.vmem %s0, 72
    %v109 = vld [vmem:[%s108] sm:%s3]
    %s110 = scalar_lea.vmem [#allocation0], 288
    %111 = vst [vmem:[%s110] sm:%s3] %v109
    %s112 = scalar_lea.vmem %s0, 70
    %v113 = vld [vmem:[%s112] sm:%s3]
    %s114 = scalar_lea.vmem [#allocation0], 280
    %115 = vst [vmem:[%s114] sm:%s3] %v113
    %s116 = scalar_lea.vmem %s0, 68
    %v117 = vld [vmem:[%s116] sm:%s3]
    %s118 = scalar_lea.vmem [#allocation0], 272
    %119 = vst [vmem:[%s118] sm:%s3] %v117
    %s120 = scalar_lea.vmem %s0, 66
    %v121 = vld [vmem:[%s120] sm:%s3]
    %s122 = scalar_lea.vmem [#allocation0], 264
    %123 = vst [vmem:[%s122] sm:%s3] %v121
    %s124 = scalar_lea.vmem %s0, 64
    %v125 = vld [vmem:[%s124] sm:%s3]
    %s126 = scalar_lea.vmem [#allocation0], 256
    %127 = vst [vmem:[%s126] sm:%s3] %v125
    %s128 = scalar_lea.vmem %s0, 62
    %v129 = vld [vmem:[%s128] sm:%s3]
    %s130 = scalar_lea.vmem [#allocation0], 248
    %131 = vst [vmem:[%s130] sm:%s3] %v129
    %s132 = scalar_lea.vmem %s0, 60
    %v133 = vld [vmem:[%s132] sm:%s3]
    %s134 = scalar_lea.vmem [#allocation0], 240
    %135 = vst [vmem:[%s134] sm:%s3] %v133
    %s136 = scalar_lea.vmem %s0, 58
    %v137 = vld [vmem:[%s136] sm:%s3]
    %s138 = scalar_lea.vmem [#allocation0], 232
    %139 = vst [vmem:[%s138] sm:%s3] %v137
    %s140 = scalar_lea.vmem %s0, 56
    %v141 = vld [vmem:[%s140] sm:%s3]
    %s142 = scalar_lea.vmem [#allocation0], 224
    %143 = vst [vmem:[%s142] sm:%s3] %v141
    %s144 = scalar_lea.vmem %s0, 54
    %v145 = vld [vmem:[%s144] sm:%s3]
    %s146 = scalar_lea.vmem [#allocation0], 216
    %147 = vst [vmem:[%s146] sm:%s3] %v145
    %s148 = scalar_lea.vmem %s0, 52
    %v149 = vld [vmem:[%s148] sm:%s3]
    %s150 = scalar_lea.vmem [#allocation0], 208
    %151 = vst [vmem:[%s150] sm:%s3] %v149
    %s152 = scalar_lea.vmem %s0, 50
    %v153 = vld [vmem:[%s152] sm:%s3]
    %s154 = scalar_lea.vmem [#allocation0], 200
    %155 = vst [vmem:[%s154] sm:%s3] %v153
    %s156 = scalar_lea.vmem %s0, 48
    %v157 = vld [vmem:[%s156] sm:%s3]
    %s158 = scalar_lea.vmem [#allocation0], 192
    %159 = vst [vmem:[%s158] sm:%s3] %v157
    %s160 = scalar_lea.vmem %s0, 46
    %v161 = vld [vmem:[%s160] sm:%s3]
    %s162 = scalar_lea.vmem [#allocation0], 184
    %163 = vst [vmem:[%s162] sm:%s3] %v161
    %s164 = scalar_lea.vmem %s0, 44
    %v165 = vld [vmem:[%s164] sm:%s3]
    %s166 = scalar_lea.vmem [#allocation0], 176
    %167 = vst [vmem:[%s166] sm:%s3] %v165
    %s168 = scalar_lea.vmem %s0, 42
    %v169 = vld [vmem:[%s168] sm:%s3]
    %s170 = scalar_lea.vmem [#allocation0], 168
    %171 = vst [vmem:[%s170] sm:%s3] %v169
    %s172 = scalar_lea.vmem %s0, 40
    %v173 = vld [vmem:[%s172] sm:%s3]
    %s174 = scalar_lea.vmem [#allocation0], 160
    %175 = vst [vmem:[%s174] sm:%s3] %v173
    %s176 = scalar_lea.vmem %s0, 38
    %v177 = vld [vmem:[%s176] sm:%s3]
    %s178 = scalar_lea.vmem [#allocation0], 152
    %179 = vst [vmem:[%s178] sm:%s3] %v177
    %s180 = scalar_lea.vmem %s0, 36
    %v181 = vld [vmem:[%s180] sm:%s3]
    %s182 = scalar_lea.vmem [#allocation0], 144
    %183 = vst [vmem:[%s182] sm:%s3] %v181
    %s184 = scalar_lea.vmem %s0, 34
    %v185 = vld [vmem:[%s184] sm:%s3]
    %s186 = scalar_lea.vmem [#allocation0], 136
    %187 = vst [vmem:[%s186] sm:%s3] %v185
    %s188 = scalar_lea.vmem %s0, 32
    %v189 = vld [vmem:[%s188] sm:%s3]
    %s190 = scalar_lea.vmem [#allocation0], 128
    %191 = vst [vmem:[%s190] sm:%s3] %v189
    %s192 = scalar_lea.vmem %s0, 30
    %v193 = vld [vmem:[%s192] sm:%s3]
    %s194 = scalar_lea.vmem [#allocation0], 120
    %195 = vst [vmem:[%s194] sm:%s3] %v193
    %s196 = scalar_lea.vmem %s0, 28
    %v197 = vld [vmem:[%s196] sm:%s3]
    %s198 = scalar_lea.vmem [#allocation0], 112
    %199 = vst [vmem:[%s198] sm:%s3] %v197
    %s200 = scalar_lea.vmem %s0, 26
    %v201 = vld [vmem:[%s200] sm:%s3]
    %s202 = scalar_lea.vmem [#allocation0], 104
    %203 = vst [vmem:[%s202] sm:%s3] %v201
    %s204 = scalar_lea.vmem %s0, 24
    %v205 = vld [vmem:[%s204] sm:%s3]
    %s206 = scalar_lea.vmem [#allocation0], 96
    %207 = vst [vmem:[%s206] sm:%s3] %v205
    %s208 = scalar_lea.vmem %s0, 22
    %v209 = vld [vmem:[%s208] sm:%s3]
    %s210 = scalar_lea.vmem [#allocation0], 88
    %211 = vst [vmem:[%s210] sm:%s3] %v209
    %s212 = scalar_lea.vmem %s0, 20
    %v213 = vld [vmem:[%s212] sm:%s3]
    %s214 = scalar_lea.vmem [#allocation0], 80
    %215 = vst [vmem:[%s214] sm:%s3] %v213
    %s216 = scalar_lea.vmem %s0, 18
    %v217 = vld [vmem:[%s216] sm:%s3]
    %s218 = scalar_lea.vmem [#allocation0], 72
    %219 = vst [vmem:[%s218] sm:%s3] %v217
    %s220 = scalar_lea.vmem %s0, 16
    %v221 = vld [vmem:[%s220] sm:%s3]
    %s222 = scalar_lea.vmem [#allocation0], 64
    %223 = vst [vmem:[%s222] sm:%s3] %v221
    %s224 = scalar_lea.vmem %s0, 14
    %v225 = vld [vmem:[%s224] sm:%s3]
    %s226 = scalar_lea.vmem [#allocation0], 56
    %227 = vst [vmem:[%s226] sm:%s3] %v225
    %s228 = scalar_lea.vmem %s0, 12
    %v229 = vld [vmem:[%s228] sm:%s3]
    %s230 = scalar_lea.vmem [#allocation0], 48
    %231 = vst [vmem:[%s230] sm:%s3] %v229
    %s232 = scalar_lea.vmem %s0, 10
    %v233 = vld [vmem:[%s232] sm:%s3]
    %s234 = scalar_lea.vmem [#allocation0], 40
    %235 = vst [vmem:[%s234] sm:%s3] %v233
    %s236 = scalar_lea.vmem %s0, 8
    %v237 = vld [vmem:[%s236] sm:%s3]
    %s238 = scalar_lea.vmem [#allocation0], 32
    %239 = vst [vmem:[%s238] sm:%s3] %v237
    %s240 = scalar_lea.vmem %s0, 6
    %v241 = vld [vmem:[%s240] sm:%s3]
    %s242 = scalar_lea.vmem [#allocation0], 24
    %243 = vst [vmem:[%s242] sm:%s3] %v241
    %s244 = scalar_lea.vmem %s0, 4
    %v245 = vld [vmem:[%s244] sm:%s3]
    %s246 = scalar_lea.vmem [#allocation0], 16
    %247 = vst [vmem:[%s246] sm:%s3] %v245
    %s248 = scalar_lea.vmem %s0, 2
    %v249 = vld [vmem:[%s248] sm:%s3]
    %s250 = scalar_lea.vmem [#allocation0], 8
    %251 = vst [vmem:[%s250] sm:%s3] %v249
    %v252 = vld [vmem:[%s0] sm:%s3]
    %253 = vst [vmem:[#allocation0] sm:%s3] %v252
    %v254 = vld [vmem:[#allocation0] sm:$0x3]
    %vm255 = vcmask 130048
    %256 = vst.msk [vmem:[%s1] ss:$504 sm:$0x3] %vm255, %v254
    %s257 = scalar_lea.vmem [#allocation0], 8
    %v258 = vld [vmem:[%s257] sm:$0x3]
    %vm259 = vcmask 130048
    %s260 = scalar_lea.vmem %s1, 8
    %261 = vst.msk [vmem:[%s260] ss:$504 sm:$0x3] %vm259, %v258
    %s262 = scalar_lea.vmem [#allocation0], 16
    %v263 = vld [vmem:[%s262] sm:$0x3]
    %vm264 = vcmask 130048
    %s265 = scalar_lea.vmem %s1, 16
    %266 = vst.msk [vmem:[%s265] ss:$504 sm:$0x3] %vm264, %v263
    %s267 = scalar_lea.vmem [#allocation0], 24
    %v268 = vld [vmem:[%s267] sm:$0x3]
    %vm269 = vcmask 130048
    %s270 = scalar_lea.vmem %s1, 24
    %271 = vst.msk [vmem:[%s270] ss:$504 sm:$0x3] %vm269, %v268
    %s272 = scalar_lea.vmem [#allocation0], 32
    %v273 = vld [vmem:[%s272] sm:$0x3]
    %vm274 = vcmask 130048
    %s275 = scalar_lea.vmem %s1, 32
    %276 = vst.msk [vmem:[%s275] ss:$504 sm:$0x3] %vm274, %v273
    %s277 = scalar_lea.vmem [#allocation0], 40
    %v278 = vld [vmem:[%s277] sm:$0x3]
    %vm279 = vcmask 130048
    %s280 = scalar_lea.vmem %s1, 40
    %281 = vst.msk [vmem:[%s280] ss:$504 sm:$0x3] %vm279, %v278
    %s282 = scalar_lea.vmem [#allocation0], 48
    %v283 = vld [vmem:[%s282] sm:$0x3]
    %vm284 = vcmask 130048
    %s285 = scalar_lea.vmem %s1, 48
    %286 = vst.msk [vmem:[%s285] ss:$504 sm:$0x3] %vm284, %v283
    %s287 = scalar_lea.vmem [#allocation0], 56
    %v288 = vld [vmem:[%s287] sm:$0x3]
    %vm289 = vcmask 130048
    %s290 = scalar_lea.vmem %s1, 56
    %291 = vst.msk [vmem:[%s290] ss:$504 sm:$0x3] %vm289, %v288
    %s292 = scalar_lea.vmem [#allocation0], 64
    %v293 = vld [vmem:[%s292] sm:$0x3]
    %vm294 = vcmask 130048
    %s295 = scalar_lea.vmem %s1, 64
    %296 = vst.msk [vmem:[%s295] ss:$504 sm:$0x3] %vm294, %v293
    %s297 = scalar_lea.vmem [#allocation0], 72
    %v298 = vld [vmem:[%s297] sm:$0x3]
    %vm299 = vcmask 130048
    %s300 = scalar_lea.vmem %s1, 72
    %301 = vst.msk [vmem:[%s300] ss:$504 sm:$0x3] %vm299, %v298
    %s302 = scalar_lea.vmem [#allocation0], 80
    %v303 = vld [vmem:[%s302] sm:$0x3]
    %vm304 = vcmask 130048
    %s305 = scalar_lea.vmem %s1, 80
    %306 = vst.msk [vmem:[%s305] ss:$504 sm:$0x3] %vm304, %v303
    %s307 = scalar_lea.vmem [#allocation0], 88
    %v308 = vld [vmem:[%s307] sm:$0x3]
    %vm309 = vcmask 130048
    %s310 = scalar_lea.vmem %s1, 88
    %311 = vst.msk [vmem:[%s310] ss:$504 sm:$0x3] %vm309, %v308
    %s312 = scalar_lea.vmem [#allocation0], 96
    %v313 = vld [vmem:[%s312] sm:$0x3]
    %vm314 = vcmask 130048
    %s315 = scalar_lea.vmem %s1, 96
    %316 = vst.msk [vmem:[%s315] ss:$504 sm:$0x3] %vm314, %v313
    %s317 = scalar_lea.vmem [#allocation0], 104
    %v318 = vld [vmem:[%s317] sm:$0x3]
    %vm319 = vcmask 130048
    %s320 = scalar_lea.vmem %s1, 104
    %321 = vst.msk [vmem:[%s320] ss:$504 sm:$0x3] %vm319, %v318
    %s322 = scalar_lea.vmem [#allocation0], 112
    %v323 = vld [vmem:[%s322] sm:$0x3]
    %vm324 = vcmask 130048
    %s325 = scalar_lea.vmem %s1, 112
    %326 = vst.msk [vmem:[%s325] ss:$504 sm:$0x3] %vm324, %v323
    %s327 = scalar_lea.vmem [#allocation0], 120
    %v328 = vld [vmem:[%s327] sm:$0x3]
    %vm329 = vcmask 130048
    %s330 = scalar_lea.vmem %s1, 120
    %331 = vst.msk [vmem:[%s330] ss:$504 sm:$0x3] %vm329, %v328
    %s332 = scalar_lea.vmem [#allocation0], 128
    %v333 = vld [vmem:[%s332] sm:$0x3]
    %vm334 = vcmask 130048
    %s335 = scalar_lea.vmem %s1, 128
    %336 = vst.msk [vmem:[%s335] ss:$504 sm:$0x3] %vm334, %v333
    %s337 = scalar_lea.vmem [#allocation0], 136
    %v338 = vld [vmem:[%s337] sm:$0x3]
    %vm339 = vcmask 130048
    %s340 = scalar_lea.vmem %s1, 136
    %341 = vst.msk [vmem:[%s340] ss:$504 sm:$0x3] %vm339, %v338
    %s342 = scalar_lea.vmem [#allocation0], 144
    %v343 = vld [vmem:[%s342] sm:$0x3]
    %vm344 = vcmask 130048
    %s345 = scalar_lea.vmem %s1, 144
    %346 = vst.msk [vmem:[%s345] ss:$504 sm:$0x3] %vm344, %v343
    %s347 = scalar_lea.vmem [#allocation0], 152
    %v348 = vld [vmem:[%s347] sm:$0x3]
    %vm349 = vcmask 130048
    %s350 = scalar_lea.vmem %s1, 152
    %351 = vst.msk [vmem:[%s350] ss:$504 sm:$0x3] %vm349, %v348
    %s352 = scalar_lea.vmem [#allocation0], 160
    %v353 = vld [vmem:[%s352] sm:$0x3]
    %vm354 = vcmask 130048
    %s355 = scalar_lea.vmem %s1, 160
    %356 = vst.msk [vmem:[%s355] ss:$504 sm:$0x3] %vm354, %v353
    %s357 = scalar_lea.vmem [#allocation0], 168
    %v358 = vld [vmem:[%s357] sm:$0x3]
    %vm359 = vcmask 130048
    %s360 = scalar_lea.vmem %s1, 168
    %361 = vst.msk [vmem:[%s360] ss:$504 sm:$0x3] %vm359, %v358
    %s362 = scalar_lea.vmem [#allocation0], 176
    %v363 = vld [vmem:[%s362] sm:$0x3]
    %vm364 = vcmask 130048
    %s365 = scalar_lea.vmem %s1, 176
    %366 = vst.msk [vmem:[%s365] ss:$504 sm:$0x3] %vm364, %v363
    %s367 = scalar_lea.vmem [#allocation0], 184
    %v368 = vld [vmem:[%s367] sm:$0x3]
    %vm369 = vcmask 130048
    %s370 = scalar_lea.vmem %s1, 184
    %371 = vst.msk [vmem:[%s370] ss:$504 sm:$0x3] %vm369, %v368
    %s372 = scalar_lea.vmem [#allocation0], 192
    %v373 = vld [vmem:[%s372] sm:$0x3]
    %vm374 = vcmask 130048
    %s375 = scalar_lea.vmem %s1, 192
    %376 = vst.msk [vmem:[%s375] ss:$504 sm:$0x3] %vm374, %v373
    %s377 = scalar_lea.vmem [#allocation0], 200
    %v378 = vld [vmem:[%s377] sm:$0x3]
    %vm379 = vcmask 130048
    %s380 = scalar_lea.vmem %s1, 200
    %381 = vst.msk [vmem:[%s380] ss:$504 sm:$0x3] %vm379, %v378
    %s382 = scalar_lea.vmem [#allocation0], 208
    %v383 = vld [vmem:[%s382] sm:$0x3]
    %vm384 = vcmask 130048
    %s385 = scalar_lea.vmem %s1, 208
    %386 = vst.msk [vmem:[%s385] ss:$504 sm:$0x3] %vm384, %v383
    %s387 = scalar_lea.vmem [#allocation0], 216
    %v388 = vld [vmem:[%s387] sm:$0x3]
    %vm389 = vcmask 130048
    %s390 = scalar_lea.vmem %s1, 216
    %391 = vst.msk [vmem:[%s390] ss:$504 sm:$0x3] %vm389, %v388
    %s392 = scalar_lea.vmem [#allocation0], 224
    %v393 = vld [vmem:[%s392] sm:$0x3]
    %vm394 = vcmask 130048
    %s395 = scalar_lea.vmem %s1, 224
    %396 = vst.msk [vmem:[%s395] ss:$504 sm:$0x3] %vm394, %v393
    %s397 = scalar_lea.vmem [#allocation0], 232
    %v398 = vld [vmem:[%s397] sm:$0x3]
    %vm399 = vcmask 130048
    %s400 = scalar_lea.vmem %s1, 232
    %401 = vst.msk [vmem:[%s400] ss:$504 sm:$0x3] %vm399, %v398
    %s402 = scalar_lea.vmem [#allocation0], 240
    %v403 = vld [vmem:[%s402] sm:$0x3]
    %vm404 = vcmask 130048
    %s405 = scalar_lea.vmem %s1, 240
    %406 = vst.msk [vmem:[%s405] ss:$504 sm:$0x3] %vm404, %v403
    %s407 = scalar_lea.vmem [#allocation0], 248
    %v408 = vld [vmem:[%s407] sm:$0x3]
    %vm409 = vcmask 130048
    %s410 = scalar_lea.vmem %s1, 248
    %411 = vst.msk [vmem:[%s410] ss:$504 sm:$0x3] %vm409, %v408
    %s412 = scalar_lea.vmem [#allocation0], 256
    %v413 = vld [vmem:[%s412] sm:$0x3]
    %vm414 = vcmask 130048
    %s415 = scalar_lea.vmem %s1, 256
    %416 = vst.msk [vmem:[%s415] ss:$504 sm:$0x3] %vm414, %v413
    %s417 = scalar_lea.vmem [#allocation0], 264
    %v418 = vld [vmem:[%s417] sm:$0x3]
    %vm419 = vcmask 130048
    %s420 = scalar_lea.vmem %s1, 264
    %421 = vst.msk [vmem:[%s420] ss:$504 sm:$0x3] %vm419, %v418
    %s422 = scalar_lea.vmem [#allocation0], 272
    %v423 = vld [vmem:[%s422] sm:$0x3]
    %vm424 = vcmask 130048
    %s425 = scalar_lea.vmem %s1, 272
    %426 = vst.msk [vmem:[%s425] ss:$504 sm:$0x3] %vm424, %v423
    %s427 = scalar_lea.vmem [#allocation0], 280
    %v428 = vld [vmem:[%s427] sm:$0x3]
    %vm429 = vcmask 130048
    %s430 = scalar_lea.vmem %s1, 280
    %431 = vst.msk [vmem:[%s430] ss:$504 sm:$0x3] %vm429, %v428
    %s432 = scalar_lea.vmem [#allocation0], 288
    %v433 = vld [vmem:[%s432] sm:$0x3]
    %vm434 = vcmask 130048
    %s435 = scalar_lea.vmem %s1, 288
    %436 = vst.msk [vmem:[%s435] ss:$504 sm:$0x3] %vm434, %v433
    %s437 = scalar_lea.vmem [#allocation0], 296
    %v438 = vld [vmem:[%s437] sm:$0x3]
    %vm439 = vcmask 130048
    %s440 = scalar_lea.vmem %s1, 296
    %441 = vst.msk [vmem:[%s440] ss:$504 sm:$0x3] %vm439, %v438
    %s442 = scalar_lea.vmem [#allocation0], 304
    %v443 = vld [vmem:[%s442] sm:$0x3]
    %vm444 = vcmask 130048
    %s445 = scalar_lea.vmem %s1, 304
    %446 = vst.msk [vmem:[%s445] ss:$504 sm:$0x3] %vm444, %v443
    %s447 = scalar_lea.vmem [#allocation0], 312
    %v448 = vld [vmem:[%s447] sm:$0x3]
    %vm449 = vcmask 130048
    %s450 = scalar_lea.vmem %s1, 312
    %451 = vst.msk [vmem:[%s450] ss:$504 sm:$0x3] %vm449, %v448
    %s452 = scalar_lea.vmem [#allocation0], 320
    %v453 = vld [vmem:[%s452] sm:$0x3]
    %vm454 = vcmask 130048
    %s455 = scalar_lea.vmem %s1, 320
    %456 = vst.msk [vmem:[%s455] ss:$504 sm:$0x3] %vm454, %v453
    %s457 = scalar_lea.vmem [#allocation0], 328
    %v458 = vld [vmem:[%s457] sm:$0x3]
    %vm459 = vcmask 130048
    %s460 = scalar_lea.vmem %s1, 328
    %461 = vst.msk [vmem:[%s460] ss:$504 sm:$0x3] %vm459, %v458
    %s462 = scalar_lea.vmem [#allocation0], 336
    %v463 = vld [vmem:[%s462] sm:$0x3]
    %vm464 = vcmask 130048
    %s465 = scalar_lea.vmem %s1, 336
    %466 = vst.msk [vmem:[%s465] ss:$504 sm:$0x3] %vm464, %v463
    %s467 = scalar_lea.vmem [#allocation0], 344
    %v468 = vld [vmem:[%s467] sm:$0x3]
    %vm469 = vcmask 130048
    %s470 = scalar_lea.vmem %s1, 344
    %471 = vst.msk [vmem:[%s470] ss:$504 sm:$0x3] %vm469, %v468
    %s472 = scalar_lea.vmem [#allocation0], 352
    %v473 = vld [vmem:[%s472] sm:$0x3]
    %vm474 = vcmask 130048
    %s475 = scalar_lea.vmem %s1, 352
    %476 = vst.msk [vmem:[%s475] ss:$504 sm:$0x3] %vm474, %v473
    %s477 = scalar_lea.vmem [#allocation0], 360
    %v478 = vld [vmem:[%s477] sm:$0x3]
    %vm479 = vcmask 130048
    %s480 = scalar_lea.vmem %s1, 360
    %481 = vst.msk [vmem:[%s480] ss:$504 sm:$0x3] %vm479, %v478
    %s482 = scalar_lea.vmem [#allocation0], 368
    %v483 = vld [vmem:[%s482] sm:$0x3]
    %vm484 = vcmask 130048
    %s485 = scalar_lea.vmem %s1, 368
    %486 = vst.msk [vmem:[%s485] ss:$504 sm:$0x3] %vm484, %v483
    %s487 = scalar_lea.vmem [#allocation0], 376
    %v488 = vld [vmem:[%s487] sm:$0x3]
    %vm489 = vcmask 130048
    %s490 = scalar_lea.vmem %s1, 376
    %491 = vst.msk [vmem:[%s490] ss:$504 sm:$0x3] %vm489, %v488
    %s492 = scalar_lea.vmem [#allocation0], 384
    %v493 = vld [vmem:[%s492] sm:$0x3]
    %vm494 = vcmask 130048
    %s495 = scalar_lea.vmem %s1, 384
    %496 = vst.msk [vmem:[%s495] ss:$504 sm:$0x3] %vm494, %v493
    %s497 = scalar_lea.vmem [#allocation0], 392
    %v498 = vld [vmem:[%s497] sm:$0x3]
    %vm499 = vcmask 130048
    %s500 = scalar_lea.vmem %s1, 392
    %501 = vst.msk [vmem:[%s500] ss:$504 sm:$0x3] %vm499, %v498
    %s502 = scalar_lea.vmem [#allocation0], 400
    %v503 = vld [vmem:[%s502] sm:$0x3]
    %vm504 = vcmask 130048
    %s505 = scalar_lea.vmem %s1, 400
    %506 = vst.msk [vmem:[%s505] ss:$504 sm:$0x3] %vm504, %v503
    %s507 = scalar_lea.vmem [#allocation0], 408
    %v508 = vld [vmem:[%s507] sm:$0x3]
    %vm509 = vcmask 130048
    %s510 = scalar_lea.vmem %s1, 408
    %511 = vst.msk [vmem:[%s510] ss:$504 sm:$0x3] %vm509, %v508
    %s512 = scalar_lea.vmem [#allocation0], 416
    %v513 = vld [vmem:[%s512] sm:$0x3]
    %vm514 = vcmask 130048
    %s515 = scalar_lea.vmem %s1, 416
    %516 = vst.msk [vmem:[%s515] ss:$504 sm:$0x3] %vm514, %v513
    %s517 = scalar_lea.vmem [#allocation0], 424
    %v518 = vld [vmem:[%s517] sm:$0x3]
    %vm519 = vcmask 130048
    %s520 = scalar_lea.vmem %s1, 424
    %521 = vst.msk [vmem:[%s520] ss:$504 sm:$0x3] %vm519, %v518
    %s522 = scalar_lea.vmem [#allocation0], 432
    %v523 = vld [vmem:[%s522] sm:$0x3]
    %vm524 = vcmask 130048
    %s525 = scalar_lea.vmem %s1, 432
    %526 = vst.msk [vmem:[%s525] ss:$504 sm:$0x3] %vm524, %v523
    %s527 = scalar_lea.vmem [#allocation0], 440
    %v528 = vld [vmem:[%s527] sm:$0x3]
    %vm529 = vcmask 130048
    %s530 = scalar_lea.vmem %s1, 440
    %531 = vst.msk [vmem:[%s530] ss:$504 sm:$0x3] %vm529, %v528
    %s532 = scalar_lea.vmem [#allocation0], 448
    %v533 = vld [vmem:[%s532] sm:$0x3]
    %vm534 = vcmask 130048
    %s535 = scalar_lea.vmem %s1, 448
    %536 = vst.msk [vmem:[%s535] ss:$504 sm:$0x3] %vm534, %v533
    %s537 = scalar_lea.vmem [#allocation0], 456
    %v538 = vld [vmem:[%s537] sm:$0x3]
    %vm539 = vcmask 130048
    %s540 = scalar_lea.vmem %s1, 456
    %541 = vst.msk [vmem:[%s540] ss:$504 sm:$0x3] %vm539, %v538
    %s542 = scalar_lea.vmem [#allocation0], 464
    %v543 = vld [vmem:[%s542] sm:$0x3]
    %vm544 = vcmask 130048
    %s545 = scalar_lea.vmem %s1, 464
    %546 = vst.msk [vmem:[%s545] ss:$504 sm:$0x3] %vm544, %v543
    %s547 = scalar_lea.vmem [#allocation0], 472
    %v548 = vld [vmem:[%s547] sm:$0x3]
    %vm549 = vcmask 130048
    %s550 = scalar_lea.vmem %s1, 472
    %551 = vst.msk [vmem:[%s550] ss:$504 sm:$0x3] %vm549, %v548
    %s552 = scalar_lea.vmem [#allocation0], 480
    %v553 = vld [vmem:[%s552] sm:$0x3]
    %vm554 = vcmask 130048
    %s555 = scalar_lea.vmem %s1, 480
    %556 = vst.msk [vmem:[%s555] ss:$504 sm:$0x3] %vm554, %v553
    %s557 = scalar_lea.vmem [#allocation0], 488
    %v558 = vld [vmem:[%s557] sm:$0x3]
    %vm559 = vcmask 130048
    %s560 = scalar_lea.vmem %s1, 488
    %561 = vst.msk [vmem:[%s560] ss:$504 sm:$0x3] %vm559, %v558
    %s562 = scalar_lea.vmem [#allocation0], 496
    %v563 = vld [vmem:[%s562] sm:$0x3]
    %vm564 = vcmask 130048
    %s565 = scalar_lea.vmem %s1, 496
    %566 = vst.msk [vmem:[%s565] ss:$504 sm:$0x3] %vm564, %v563
    %v567 = vld [vmem:[#allocation0] ss:$8 sm:$0x7]
    %s568 = scalar_lea.vmem [#allocation0], 4294967273
    %v569 = vld [vmem:[%s568] ss:$8 sm:$0x78]
    %vm570 = vcmask 1046531
    %v571 = vsel %vm570, %v569, %v567
    %s572 = scalar_lea.vmem [#allocation0], 17
    %v573 = vld [vmem:[%s572] sm:$0x80]
    %vm574 = vcmask 1047559
    %v575 = vsel %vm574, %v573, %v571
    %576 = vrot.lane.b32.xlu0 %v575, 112
    %v577 = vpop.permute.xlu0 %576
    %vm578 = vcmask 130048
    %s579 = scalar_lea.vmem %s1, 1
    %580 = vst.msk [vmem:[%s579] ss:$8 sm:$0x7] %vm578, %v577
    %s581 = scalar_lea.vmem %s1, 481
    %582 = vst.msk [vmem:[%s581] ss:$8 sm:$0x78] %vm578, %v577
    %s583 = scalar_lea.vmem %s1, 18
    %584 = vst.msk [vmem:[%s583] sm:$0x80] %vm578, %v577
    %s585 = scalar_lea.vmem [#allocation0], 32
    %v586 = vld [vmem:[%s585] ss:$8 sm:$0x7]
    %s587 = scalar_lea.vmem [#allocation0], 9
    %v588 = vld [vmem:[%s587] ss:$8 sm:$0x78]
    %vm589 = vcmask 1046531
    %v590 = vsel %vm589, %v588, %v586
    %s591 = scalar_lea.vmem [#allocation0], 49
    %v592 = vld [vmem:[%s591] sm:$0x80]
    %vm593 = vcmask 1047559
    %v594 = vsel %vm593, %v592, %v590
    %595 = vrot.lane.b32.xlu0 %v594, 112
    %v596 = vpop.permute.xlu0 %595
    %vm597 = vcmask 130048
    %s598 = scalar_lea.vmem %s1, 33
    %599 = vst.msk [vmem:[%s598] ss:$8 sm:$0x7] %vm597, %v596
    %s600 = scalar_lea.vmem %s1, 513
    %601 = vst.msk [vmem:[%s600] ss:$8 sm:$0x78] %vm597, %v596
    %s602 = scalar_lea.vmem %s1, 50
    %603 = vst.msk [vmem:[%s602] sm:$0x80] %vm597, %v596
    %s604 = scalar_lea.vmem [#allocation0], 64
    %v605 = vld [vmem:[%s604] ss:$8 sm:$0x7]
    %s606 = scalar_lea.vmem [#allocation0], 41
    %v607 = vld [vmem:[%s606] ss:$8 sm:$0x78]
    %vm608 = vcmask 1046531
    %v609 = vsel %vm608, %v607, %v605
    %s610 = scalar_lea.vmem [#allocation0], 81
    %v611 = vld [vmem:[%s610] sm:$0x80]
    %vm612 = vcmask 1047559
    %v613 = vsel %vm612, %v611, %v609
    %614 = vrot.lane.b32.xlu0 %v613, 112
    %v615 = vpop.permute.xlu0 %614
    %vm616 = vcmask 130048
    %s617 = scalar_lea.vmem %s1, 65
    %618 = vst.msk [vmem:[%s617] ss:$8 sm:$0x7] %vm616, %v615
    %s619 = scalar_lea.vmem %s1, 545
    %620 = vst.msk [vmem:[%s619] ss:$8 sm:$0x78] %vm616, %v615
    %s621 = scalar_lea.vmem %s1, 82
    %622 = vst.msk [vmem:[%s621] sm:$0x80] %vm616, %v615
    %s623 = scalar_lea.vmem [#allocation0], 96
    %v624 = vld [vmem:[%s623] ss:$8 sm:$0x7]
    %s625 = scalar_lea.vmem [#allocation0], 73
    %v626 = vld [vmem:[%s625] ss:$8 sm:$0x78]
    %vm627 = vcmask 1046531
    %v628 = vsel %vm627, %v626, %v624
    %s629 = scalar_lea.vmem [#allocation0], 113
    %v630 = vld [vmem:[%s629] sm:$0x80]
    %vm631 = vcmask 1047559
    %v632 = vsel %vm631, %v630, %v628
    %633 = vrot.lane.b32.xlu0 %v632, 112
    %v634 = vpop.permute.xlu0 %633
    %vm635 = vcmask 130048
    %s636 = scalar_lea.vmem %s1, 97
    %637 = vst.msk [vmem:[%s636] ss:$8 sm:$0x7] %vm635, %v634
    %s638 = scalar_lea.vmem %s1, 577
    %639 = vst.msk [vmem:[%s638] ss:$8 sm:$0x78] %vm635, %v634
    %s640 = scalar_lea.vmem %s1, 114
    %641 = vst.msk [vmem:[%s640] sm:$0x80] %vm635, %v634
    %s642 = scalar_lea.vmem [#allocation0], 128
    %v643 = vld [vmem:[%s642] ss:$8 sm:$0x7]
    %s644 = scalar_lea.vmem [#allocation0], 105
    %v645 = vld [vmem:[%s644] ss:$8 sm:$0x78]
    %vm646 = vcmask 1046531
    %v647 = vsel %vm646, %v645, %v643
    %s648 = scalar_lea.vmem [#allocation0], 145
    %v649 = vld [vmem:[%s648] sm:$0x80]
    %vm650 = vcmask 1047559
    %v651 = vsel %vm650, %v649, %v647
    %652 = vrot.lane.b32.xlu0 %v651, 112
    %v653 = vpop.permute.xlu0 %652
    %vm654 = vcmask 130048
    %s655 = scalar_lea.vmem %s1, 129
    %656 = vst.msk [vmem:[%s655] ss:$8 sm:$0x7] %vm654, %v653
    %s657 = scalar_lea.vmem %s1, 609
    %658 = vst.msk [vmem:[%s657] ss:$8 sm:$0x78] %vm654, %v653
    %s659 = scalar_lea.vmem %s1, 146
    %660 = vst.msk [vmem:[%s659] sm:$0x80] %vm654, %v653
    %s661 = scalar_lea.vmem [#allocation0], 160
    %v662 = vld [vmem:[%s661] ss:$8 sm:$0x7]
    %s663 = scalar_lea.vmem [#allocation0], 137
    %v664 = vld [vmem:[%s663] ss:$8 sm:$0x78]
    %vm665 = vcmask 1046531
    %v666 = vsel %vm665, %v664, %v662
    %s667 = scalar_lea.vmem [#allocation0], 177
    %v668 = vld [vmem:[%s667] sm:$0x80]
    %vm669 = vcmask 1047559
    %v670 = vsel %vm669, %v668, %v666
    %671 = vrot.lane.b32.xlu0 %v670, 112
    %v672 = vpop.permute.xlu0 %671
    %vm673 = vcmask 130048
    %s674 = scalar_lea.vmem %s1, 161
    %675 = vst.msk [vmem:[%s674] ss:$8 sm:$0x7] %vm673, %v672
    %s676 = scalar_lea.vmem %s1, 641
    %677 = vst.msk [vmem:[%s676] ss:$8 sm:$0x78] %vm673, %v672
    %s678 = scalar_lea.vmem %s1, 178
    %679 = vst.msk [vmem:[%s678] sm:$0x80] %vm673, %v672
    %s680 = scalar_lea.vmem [#allocation0], 192
    %v681 = vld [vmem:[%s680] ss:$8 sm:$0x7]
    %s682 = scalar_lea.vmem [#allocation0], 169
    %v683 = vld [vmem:[%s682] ss:$8 sm:$0x78]
    %vm684 = vcmask 1046531
    %v685 = vsel %vm684, %v683, %v681
    %s686 = scalar_lea.vmem [#allocation0], 209
    %v687 = vld [vmem:[%s686] sm:$0x80]
    %vm688 = vcmask 1047559
    %v689 = vsel %vm688, %v687, %v685
    %690 = vrot.lane.b32.xlu0 %v689, 112
    %v691 = vpop.permute.xlu0 %690
    %vm692 = vcmask 130048
    %s693 = scalar_lea.vmem %s1, 193
    %694 = vst.msk [vmem:[%s693] ss:$8 sm:$0x7] %vm692, %v691
    %s695 = scalar_lea.vmem %s1, 673
    %696 = vst.msk [vmem:[%s695] ss:$8 sm:$0x78] %vm692, %v691
    %s697 = scalar_lea.vmem %s1, 210
    %698 = vst.msk [vmem:[%s697] sm:$0x80] %vm692, %v691
    %s699 = scalar_lea.vmem [#allocation0], 224
    %v700 = vld [vmem:[%s699] ss:$8 sm:$0x7]
    %s701 = scalar_lea.vmem [#allocation0], 201
    %v702 = vld [vmem:[%s701] ss:$8 sm:$0x78]
    %vm703 = vcmask 1046531
    %v704 = vsel %vm703, %v702, %v700
    %s705 = scalar_lea.vmem [#allocation0], 241
    %v706 = vld [vmem:[%s705] sm:$0x80]
    %vm707 = vcmask 1047559
    %v708 = vsel %vm707, %v706, %v704
    %709 = vrot.lane.b32.xlu0 %v708, 112
    %v710 = vpop.permute.xlu0 %709
    %vm711 = vcmask 130048
    %s712 = scalar_lea.vmem %s1, 225
    %713 = vst.msk [vmem:[%s712] ss:$8 sm:$0x7] %vm711, %v710
    %s714 = scalar_lea.vmem %s1, 705
    %715 = vst.msk [vmem:[%s714] ss:$8 sm:$0x78] %vm711, %v710
    %s716 = scalar_lea.vmem %s1, 242
    %717 = vst.msk [vmem:[%s716] sm:$0x80] %vm711, %v710
    %s718 = scalar_lea.vmem [#allocation0], 256
    %v719 = vld [vmem:[%s718] ss:$8 sm:$0x7]
    %s720 = scalar_lea.vmem [#allocation0], 233
    %v721 = vld [vmem:[%s720] ss:$8 sm:$0x78]
    %vm722 = vcmask 1046531
    %v723 = vsel %vm722, %v721, %v719
    %s724 = scalar_lea.vmem [#allocation0], 273
    %v725 = vld [vmem:[%s724] sm:$0x80]
    %vm726 = vcmask 1047559
    %v727 = vsel %vm726, %v725, %v723
    %728 = vrot.lane.b32.xlu0 %v727, 112
    %v729 = vpop.permute.xlu0 %728
    %vm730 = vcmask 130048
    %s731 = scalar_lea.vmem %s1, 257
    %732 = vst.msk [vmem:[%s731] ss:$8 sm:$0x7] %vm730, %v729
    %s733 = scalar_lea.vmem %s1, 737
    %734 = vst.msk [vmem:[%s733] ss:$8 sm:$0x78] %vm730, %v729
    %s735 = scalar_lea.vmem %s1, 274
    %736 = vst.msk [vmem:[%s735] sm:$0x80] %vm730, %v729
    %s737 = scalar_lea.vmem [#allocation0], 288
    %v738 = vld [vmem:[%s737] ss:$8 sm:$0x7]
    %s739 = scalar_lea.vmem [#allocation0], 265
    %v740 = vld [vmem:[%s739] ss:$8 sm:$0x78]
    %vm741 = vcmask 1046531
    %v742 = vsel %vm741, %v740, %v738
    %s743 = scalar_lea.vmem [#allocation0], 305
    %v744 = vld [vmem:[%s743] sm:$0x80]
    %vm745 = vcmask 1047559
    %v746 = vsel %vm745, %v744, %v742
    %747 = vrot.lane.b32.xlu0 %v746, 112
    %v748 = vpop.permute.xlu0 %747
    %vm749 = vcmask 130048
    %s750 = scalar_lea.vmem %s1, 289
    %751 = vst.msk [vmem:[%s750] ss:$8 sm:$0x7] %vm749, %v748
    %s752 = scalar_lea.vmem %s1, 769
    %753 = vst.msk [vmem:[%s752] ss:$8 sm:$0x78] %vm749, %v748
    %s754 = scalar_lea.vmem %s1, 306
    %755 = vst.msk [vmem:[%s754] sm:$0x80] %vm749, %v748
    %s756 = scalar_lea.vmem [#allocation0], 320
    %v757 = vld [vmem:[%s756] ss:$8 sm:$0x7]
    %s758 = scalar_lea.vmem [#allocation0], 297
    %v759 = vld [vmem:[%s758] ss:$8 sm:$0x78]
    %vm760 = vcmask 1046531
    %v761 = vsel %vm760, %v759, %v757
    %s762 = scalar_lea.vmem [#allocation0], 337
    %v763 = vld [vmem:[%s762] sm:$0x80]
    %vm764 = vcmask 1047559
    %v765 = vsel %vm764, %v763, %v761
    %766 = vrot.lane.b32.xlu0 %v765, 112
    %v767 = vpop.permute.xlu0 %766
    %vm768 = vcmask 130048
    %s769 = scalar_lea.vmem %s1, 321
    %770 = vst.msk [vmem:[%s769] ss:$8 sm:$0x7] %vm768, %v767
    %s771 = scalar_lea.vmem %s1, 801
    %772 = vst.msk [vmem:[%s771] ss:$8 sm:$0x78] %vm768, %v767
    %s773 = scalar_lea.vmem %s1, 338
    %774 = vst.msk [vmem:[%s773] sm:$0x80] %vm768, %v767
    %s775 = scalar_lea.vmem [#allocation0], 352
    %v776 = vld [vmem:[%s775] ss:$8 sm:$0x7]
    %s777 = scalar_lea.vmem [#allocation0], 329
    %v778 = vld [vmem:[%s777] ss:$8 sm:$0x78]
    %vm779 = vcmask 1046531
    %v780 = vsel %vm779, %v778, %v776
    %s781 = scalar_lea.vmem [#allocation0], 369
    %v782 = vld [vmem:[%s781] sm:$0x80]
    %vm783 = vcmask 1047559
    %v784 = vsel %vm783, %v782, %v780
    %785 = vrot.lane.b32.xlu0 %v784, 112
    %v786 = vpop.permute.xlu0 %785
    %vm787 = vcmask 130048
    %s788 = scalar_lea.vmem %s1, 353
    %789 = vst.msk [vmem:[%s788] ss:$8 sm:$0x7] %vm787, %v786
    %s790 = scalar_lea.vmem %s1, 833
    %791 = vst.msk [vmem:[%s790] ss:$8 sm:$0x78] %vm787, %v786
    %s792 = scalar_lea.vmem %s1, 370
    %793 = vst.msk [vmem:[%s792] sm:$0x80] %vm787, %v786
    %s794 = scalar_lea.vmem [#allocation0], 384
    %v795 = vld [vmem:[%s794] ss:$8 sm:$0x7]
    %s796 = scalar_lea.vmem [#allocation0], 361
    %v797 = vld [vmem:[%s796] ss:$8 sm:$0x78]
    %vm798 = vcmask 1046531
    %v799 = vsel %vm798, %v797, %v795
    %s800 = scalar_lea.vmem [#allocation0], 401
    %v801 = vld [vmem:[%s800] sm:$0x80]
    %vm802 = vcmask 1047559
    %v803 = vsel %vm802, %v801, %v799
    %804 = vrot.lane.b32.xlu0 %v803, 112
    %v805 = vpop.permute.xlu0 %804
    %vm806 = vcmask 130048
    %s807 = scalar_lea.vmem %s1, 385
    %808 = vst.msk [vmem:[%s807] ss:$8 sm:$0x7] %vm806, %v805
    %s809 = scalar_lea.vmem %s1, 865
    %810 = vst.msk [vmem:[%s809] ss:$8 sm:$0x78] %vm806, %v805
    %s811 = scalar_lea.vmem %s1, 402
    %812 = vst.msk [vmem:[%s811] sm:$0x80] %vm806, %v805
    %s813 = scalar_lea.vmem [#allocation0], 416
    %v814 = vld [vmem:[%s813] ss:$8 sm:$0x7]
    %s815 = scalar_lea.vmem [#allocation0], 393
    %v816 = vld [vmem:[%s815] ss:$8 sm:$0x78]
    %vm817 = vcmask 1046531
    %v818 = vsel %vm817, %v816, %v814
    %s819 = scalar_lea.vmem [#allocation0], 433
    %v820 = vld [vmem:[%s819] sm:$0x80]
    %vm821 = vcmask 1047559
    %v822 = vsel %vm821, %v820, %v818
    %823 = vrot.lane.b32.xlu0 %v822, 112
    %v824 = vpop.permute.xlu0 %823
    %vm825 = vcmask 130048
    %s826 = scalar_lea.vmem %s1, 417
    %827 = vst.msk [vmem:[%s826] ss:$8 sm:$0x7] %vm825, %v824
    %s828 = scalar_lea.vmem %s1, 897
    %829 = vst.msk [vmem:[%s828] ss:$8 sm:$0x78] %vm825, %v824
    %s830 = scalar_lea.vmem %s1, 434
    %831 = vst.msk [vmem:[%s830] sm:$0x80] %vm825, %v824
    %s832 = scalar_lea.vmem [#allocation0], 448
    %v833 = vld [vmem:[%s832] ss:$8 sm:$0x7]
    %s834 = scalar_lea.vmem [#allocation0], 425
    %v835 = vld [vmem:[%s834] ss:$8 sm:$0x78]
    %vm836 = vcmask 1046531
    %v837 = vsel %vm836, %v835, %v833
    %s838 = scalar_lea.vmem [#allocation0], 465
    %v839 = vld [vmem:[%s838] sm:$0x80]
    %vm840 = vcmask 1047559
    %v841 = vsel %vm840, %v839, %v837
    %842 = vrot.lane.b32.xlu0 %v841, 112
    %v843 = vpop.permute.xlu0 %842
    %vm844 = vcmask 130048
    %s845 = scalar_lea.vmem %s1, 449
    %846 = vst.msk [vmem:[%s845] ss:$8 sm:$0x7] %vm844, %v843
    %s847 = scalar_lea.vmem %s1, 929
    %848 = vst.msk [vmem:[%s847] ss:$8 sm:$0x78] %vm844, %v843
    %s849 = scalar_lea.vmem %s1, 466
    %850 = vst.msk [vmem:[%s849] sm:$0x80] %vm844, %v843
    %s851 = scalar_lea.vmem [#allocation0], 480
    %v852 = vld [vmem:[%s851] ss:$8 sm:$0x7]
    %s853 = scalar_lea.vmem [#allocation0], 457
    %v854 = vld [vmem:[%s853] ss:$8 sm:$0x38]
    %vm855 = vcmask 1045507
    %v856 = vsel %vm855, %v854, %v852
    %857 = vrot.lane.b32.xlu0 %v856, 112
    %v858 = vpop.permute.xlu0 %857
    %vm859 = vcmask 130048
    %s860 = scalar_lea.vmem %s1, 481
    %861 = vst.msk [vmem:[%s860] ss:$8 sm:$0x7] %vm859, %v858
    %s862 = scalar_lea.vmem %s1, 961
    %863 = vst.msk [vmem:[%s862] ss:$8 sm:$0x38] %vm859, %v858
    %v864 = vld [vmem:[#allocation0] ss:$8 sm:$0x7]
    %s865 = scalar_lea.vmem [#allocation0], 4294967273
    %v866 = vld [vmem:[%s865] ss:$8 sm:$0x78]
    %vm867 = vcmask 1046531
    %v868 = vsel %vm867, %v866, %v864
    %s869 = scalar_lea.vmem [#allocation0], 17
    %v870 = vld [vmem:[%s869] sm:$0x80]
    %vm871 = vcmask 1047559
    %v872 = vsel %vm871, %v870, %v868
    %873 = vrot.lane.b32.xlu0 %v872, 96
    %v874 = vpop.permute.xlu0 %873
    %vm875 = vcmask 130048
    %s876 = scalar_lea.vmem %s1, 2
    %877 = vst.msk [vmem:[%s876] ss:$8 sm:$0x7] %vm875, %v874
    %s878 = scalar_lea.vmem %s1, 482
    %879 = vst.msk [vmem:[%s878] ss:$8 sm:$0x78] %vm875, %v874
    %s880 = scalar_lea.vmem %s1, 19
    %881 = vst.msk [vmem:[%s880] sm:$0x80] %vm875, %v874
    %s882 = scalar_lea.vmem [#allocation0], 32
    %v883 = vld [vmem:[%s882] ss:$8 sm:$0x7]
    %s884 = scalar_lea.vmem [#allocation0], 9
    %v885 = vld [vmem:[%s884] ss:$8 sm:$0x78]
    %vm886 = vcmask 1046531
    %v887 = vsel %vm886, %v885, %v883
    %s888 = scalar_lea.vmem [#allocation0], 49
    %v889 = vld [vmem:[%s888] sm:$0x80]
    %vm890 = vcmask 1047559
    %v891 = vsel %vm890, %v889, %v887
    %892 = vrot.lane.b32.xlu0 %v891, 96
    %v893 = vpop.permute.xlu0 %892
    %vm894 = vcmask 130048
    %s895 = scalar_lea.vmem %s1, 34
    %896 = vst.msk [vmem:[%s895] ss:$8 sm:$0x7] %vm894, %v893
    %s897 = scalar_lea.vmem %s1, 514
    %898 = vst.msk [vmem:[%s897] ss:$8 sm:$0x78] %vm894, %v893
    %s899 = scalar_lea.vmem %s1, 51
    %900 = vst.msk [vmem:[%s899] sm:$0x80] %vm894, %v893
    %s901 = scalar_lea.vmem [#allocation0], 64
    %v902 = vld [vmem:[%s901] ss:$8 sm:$0x7]
    %s903 = scalar_lea.vmem [#allocation0], 41
    %v904 = vld [vmem:[%s903] ss:$8 sm:$0x78]
    %vm905 = vcmask 1046531
    %v906 = vsel %vm905, %v904, %v902
    %s907 = scalar_lea.vmem [#allocation0], 81
    %v908 = vld [vmem:[%s907] sm:$0x80]
    %vm909 = vcmask 1047559
    %v910 = vsel %vm909, %v908, %v906
    %911 = vrot.lane.b32.xlu0 %v910, 96
    %v912 = vpop.permute.xlu0 %911
    %vm913 = vcmask 130048
    %s914 = scalar_lea.vmem %s1, 66
    %915 = vst.msk [vmem:[%s914] ss:$8 sm:$0x7] %vm913, %v912
    %s916 = scalar_lea.vmem %s1, 546
    %917 = vst.msk [vmem:[%s916] ss:$8 sm:$0x78] %vm913, %v912
    %s918 = scalar_lea.vmem %s1, 83
    %919 = vst.msk [vmem:[%s918] sm:$0x80] %vm913, %v912
    %s920 = scalar_lea.vmem [#allocation0], 96
    %v921 = vld [vmem:[%s920] ss:$8 sm:$0x7]
    %s922 = scalar_lea.vmem [#allocation0], 73
    %v923 = vld [vmem:[%s922] ss:$8 sm:$0x78]
    %vm924 = vcmask 1046531
    %v925 = vsel %vm924, %v923, %v921
    %s926 = scalar_lea.vmem [#allocation0], 113
    %v927 = vld [vmem:[%s926] sm:$0x80]
    %vm928 = vcmask 1047559
    %v929 = vsel %vm928, %v927, %v925
    %930 = vrot.lane.b32.xlu0 %v929, 96
    %v931 = vpop.permute.xlu0 %930
    %vm932 = vcmask 130048
    %s933 = scalar_lea.vmem %s1, 98
    %934 = vst.msk [vmem:[%s933] ss:$8 sm:$0x7] %vm932, %v931
    %s935 = scalar_lea.vmem %s1, 578
    %936 = vst.msk [vmem:[%s935] ss:$8 sm:$0x78] %vm932, %v931
    %s937 = scalar_lea.vmem %s1, 115
    %938 = vst.msk [vmem:[%s937] sm:$0x80] %vm932, %v931
    %s939 = scalar_lea.vmem [#allocation0], 128
    %v940 = vld [vmem:[%s939] ss:$8 sm:$0x7]
    %s941 = scalar_lea.vmem [#allocation0], 105
    %v942 = vld [vmem:[%s941] ss:$8 sm:$0x78]
    %vm943 = vcmask 1046531
    %v944 = vsel %vm943, %v942, %v940
    %s945 = scalar_lea.vmem [#allocation0], 145
    %v946 = vld [vmem:[%s945] sm:$0x80]
    %vm947 = vcmask 1047559
    %v948 = vsel %vm947, %v946, %v944
    %949 = vrot.lane.b32.xlu0 %v948, 96
    %v950 = vpop.permute.xlu0 %949
    %vm951 = vcmask 130048
    %s952 = scalar_lea.vmem %s1, 130
    %953 = vst.msk [vmem:[%s952] ss:$8 sm:$0x7] %vm951, %v950
    %s954 = scalar_lea.vmem %s1, 610
    %955 = vst.msk [vmem:[%s954] ss:$8 sm:$0x78] %vm951, %v950
    %s956 = scalar_lea.vmem %s1, 147
    %957 = vst.msk [vmem:[%s956] sm:$0x80] %vm951, %v950
    %s958 = scalar_lea.vmem [#allocation0], 160
    %v959 = vld [vmem:[%s958] ss:$8 sm:$0x7]
    %s960 = scalar_lea.vmem [#allocation0], 137
    %v961 = vld [vmem:[%s960] ss:$8 sm:$0x78]
    %vm962 = vcmask 1046531
    %v963 = vsel %vm962, %v961, %v959
    %s964 = scalar_lea.vmem [#allocation0], 177
    %v965 = vld [vmem:[%s964] sm:$0x80]
    %vm966 = vcmask 1047559
    %v967 = vsel %vm966, %v965, %v963
    %968 = vrot.lane.b32.xlu0 %v967, 96
    %v969 = vpop.permute.xlu0 %968
    %vm970 = vcmask 130048
    %s971 = scalar_lea.vmem %s1, 162
    %972 = vst.msk [vmem:[%s971] ss:$8 sm:$0x7] %vm970, %v969
    %s973 = scalar_lea.vmem %s1, 642
    %974 = vst.msk [vmem:[%s973] ss:$8 sm:$0x78] %vm970, %v969
    %s975 = scalar_lea.vmem %s1, 179
    %976 = vst.msk [vmem:[%s975] sm:$0x80] %vm970, %v969
    %s977 = scalar_lea.vmem [#allocation0], 192
    %v978 = vld [vmem:[%s977] ss:$8 sm:$0x7]
    %s979 = scalar_lea.vmem [#allocation0], 169
    %v980 = vld [vmem:[%s979] ss:$8 sm:$0x78]
    %vm981 = vcmask 1046531
    %v982 = vsel %vm981, %v980, %v978
    %s983 = scalar_lea.vmem [#allocation0], 209
    %v984 = vld [vmem:[%s983] sm:$0x80]
    %vm985 = vcmask 1047559
    %v986 = vsel %vm985, %v984, %v982
    %987 = vrot.lane.b32.xlu0 %v986, 96
    %v988 = vpop.permute.xlu0 %987
    %vm989 = vcmask 130048
    %s990 = scalar_lea.vmem %s1, 194
    %991 = vst.msk [vmem:[%s990] ss:$8 sm:$0x7] %vm989, %v988
    %s992 = scalar_lea.vmem %s1, 674
    %993 = vst.msk [vmem:[%s992] ss:$8 sm:$0x78] %vm989, %v988
    %s994 = scalar_lea.vmem %s1, 211
    %995 = vst.msk [vmem:[%s994] sm:$0x80] %vm989, %v988
    %s996 = scalar_lea.vmem [#allocation0], 224
    %v997 = vld [vmem:[%s996] ss:$8 sm:$0x7]
    %s998 = scalar_lea.vmem [#allocation0], 201
    %v999 = vld [vmem:[%s998] ss:$8 sm:$0x78]
    %vm1000 = vcmask 1046531
    %v1001 = vsel %vm1000, %v999, %v997
    %s1002 = scalar_lea.vmem [#allocation0], 241
    %v1003 = vld [vmem:[%s1002] sm:$0x80]
    %vm1004 = vcmask 1047559
    %v1005 = vsel %vm1004, %v1003, %v1001
    %1006 = vrot.lane.b32.xlu0 %v1005, 96
    %v1007 = vpop.permute.xlu0 %1006
    %vm1008 = vcmask 130048
    %s1009 = scalar_lea.vmem %s1, 226
    %1010 = vst.msk [vmem:[%s1009] ss:$8 sm:$0x7] %vm1008, %v1007
    %s1011 = scalar_lea.vmem %s1, 706
    %1012 = vst.msk [vmem:[%s1011] ss:$8 sm:$0x78] %vm1008, %v1007
    %s1013 = scalar_lea.vmem %s1, 243
    %1014 = vst.msk [vmem:[%s1013] sm:$0x80] %vm1008, %v1007
    %s1015 = scalar_lea.vmem [#allocation0], 256
    %v1016 = vld [vmem:[%s1015] ss:$8 sm:$0x7]
    %s1017 = scalar_lea.vmem [#allocation0], 233
    %v1018 = vld [vmem:[%s1017] ss:$8 sm:$0x78]
    %vm1019 = vcmask 1046531
    %v1020 = vsel %vm1019, %v1018, %v1016
    %s1021 = scalar_lea.vmem [#allocation0], 273
    %v1022 = vld [vmem:[%s1021] sm:$0x80]
    %vm1023 = vcmask 1047559
    %v1024 = vsel %vm1023, %v1022, %v1020
    %1025 = vrot.lane.b32.xlu0 %v1024, 96
    %v1026 = vpop.permute.xlu0 %1025
    %vm1027 = vcmask 130048
    %s1028 = scalar_lea.vmem %s1, 258
    %1029 = vst.msk [vmem:[%s1028] ss:$8 sm:$0x7] %vm1027, %v1026
    %s1030 = scalar_lea.vmem %s1, 738
    %1031 = vst.msk [vmem:[%s1030] ss:$8 sm:$0x78] %vm1027, %v1026
    %s1032 = scalar_lea.vmem %s1, 275
    %1033 = vst.msk [vmem:[%s1032] sm:$0x80] %vm1027, %v1026
    %s1034 = scalar_lea.vmem [#allocation0], 288
    %v1035 = vld [vmem:[%s1034] ss:$8 sm:$0x7]
    %s1036 = scalar_lea.vmem [#allocation0], 265
    %v1037 = vld [vmem:[%s1036] ss:$8 sm:$0x78]
    %vm1038 = vcmask 1046531
    %v1039 = vsel %vm1038, %v1037, %v1035
    %s1040 = scalar_lea.vmem [#allocation0], 305
    %v1041 = vld [vmem:[%s1040] sm:$0x80]
    %vm1042 = vcmask 1047559
    %v1043 = vsel %vm1042, %v1041, %v1039
    %1044 = vrot.lane.b32.xlu0 %v1043, 96
    %v1045 = vpop.permute.xlu0 %1044
    %vm1046 = vcmask 130048
    %s1047 = scalar_lea.vmem %s1, 290
    %1048 = vst.msk [vmem:[%s1047] ss:$8 sm:$0x7] %vm1046, %v1045
    %s1049 = scalar_lea.vmem %s1, 770
    %1050 = vst.msk [vmem:[%s1049] ss:$8 sm:$0x78] %vm1046, %v1045
    %s1051 = scalar_lea.vmem %s1, 307
    %1052 = vst.msk [vmem:[%s1051] sm:$0x80] %vm1046, %v1045
    %s1053 = scalar_lea.vmem [#allocation0], 320
    %v1054 = vld [vmem:[%s1053] ss:$8 sm:$0x7]
    %s1055 = scalar_lea.vmem [#allocation0], 297
    %v1056 = vld [vmem:[%s1055] ss:$8 sm:$0x78]
    %vm1057 = vcmask 1046531
    %v1058 = vsel %vm1057, %v1056, %v1054
    %s1059 = scalar_lea.vmem [#allocation0], 337
    %v1060 = vld [vmem:[%s1059] sm:$0x80]
    %vm1061 = vcmask 1047559
    %v1062 = vsel %vm1061, %v1060, %v1058
    %1063 = vrot.lane.b32.xlu0 %v1062, 96
    %v1064 = vpop.permute.xlu0 %1063
    %vm1065 = vcmask 130048
    %s1066 = scalar_lea.vmem %s1, 322
    %1067 = vst.msk [vmem:[%s1066] ss:$8 sm:$0x7] %vm1065, %v1064
    %s1068 = scalar_lea.vmem %s1, 802
    %1069 = vst.msk [vmem:[%s1068] ss:$8 sm:$0x78] %vm1065, %v1064
    %s1070 = scalar_lea.vmem %s1, 339
    %1071 = vst.msk [vmem:[%s1070] sm:$0x80] %vm1065, %v1064
    %s1072 = scalar_lea.vmem [#allocation0], 352
    %v1073 = vld [vmem:[%s1072] ss:$8 sm:$0x7]
    %s1074 = scalar_lea.vmem [#allocation0], 329
    %v1075 = vld [vmem:[%s1074] ss:$8 sm:$0x78]
    %vm1076 = vcmask 1046531
    %v1077 = vsel %vm1076, %v1075, %v1073
    %s1078 = scalar_lea.vmem [#allocation0], 369
    %v1079 = vld [vmem:[%s1078] sm:$0x80]
    %vm1080 = vcmask 1047559
    %v1081 = vsel %vm1080, %v1079, %v1077
    %1082 = vrot.lane.b32.xlu0 %v1081, 96
    %v1083 = vpop.permute.xlu0 %1082
    %vm1084 = vcmask 130048
    %s1085 = scalar_lea.vmem %s1, 354
    %1086 = vst.msk [vmem:[%s1085] ss:$8 sm:$0x7] %vm1084, %v1083
    %s1087 = scalar_lea.vmem %s1, 834
    %1088 = vst.msk [vmem:[%s1087] ss:$8 sm:$0x78] %vm1084, %v1083
    %s1089 = scalar_lea.vmem %s1, 371
    %1090 = vst.msk [vmem:[%s1089] sm:$0x80] %vm1084, %v1083
    %s1091 = scalar_lea.vmem [#allocation0], 384
    %v1092 = vld [vmem:[%s1091] ss:$8 sm:$0x7]
    %s1093 = scalar_lea.vmem [#allocation0], 361
    %v1094 = vld [vmem:[%s1093] ss:$8 sm:$0x78]
    %vm1095 = vcmask 1046531
    %v1096 = vsel %vm1095, %v1094, %v1092
    %s1097 = scalar_lea.vmem [#allocation0], 401
    %v1098 = vld [vmem:[%s1097] sm:$0x80]
    %vm1099 = vcmask 1047559
    %v1100 = vsel %vm1099, %v1098, %v1096
    %1101 = vrot.lane.b32.xlu0 %v1100, 96
    %v1102 = vpop.permute.xlu0 %1101
    %vm1103 = vcmask 130048
    %s1104 = scalar_lea.vmem %s1, 386
    %1105 = vst.msk [vmem:[%s1104] ss:$8 sm:$0x7] %vm1103, %v1102
    %s1106 = scalar_lea.vmem %s1, 866
    %1107 = vst.msk [vmem:[%s1106] ss:$8 sm:$0x78] %vm1103, %v1102
    %s1108 = scalar_lea.vmem %s1, 403
    %1109 = vst.msk [vmem:[%s1108] sm:$0x80] %vm1103, %v1102
    %s1110 = scalar_lea.vmem [#allocation0], 416
    %v1111 = vld [vmem:[%s1110] ss:$8 sm:$0x7]
    %s1112 = scalar_lea.vmem [#allocation0], 393
    %v1113 = vld [vmem:[%s1112] ss:$8 sm:$0x78]
    %vm1114 = vcmask 1046531
    %v1115 = vsel %vm1114, %v1113, %v1111
    %s1116 = scalar_lea.vmem [#allocation0], 433
    %v1117 = vld [vmem:[%s1116] sm:$0x80]
    %vm1118 = vcmask 1047559
    %v1119 = vsel %vm1118, %v1117, %v1115
    %1120 = vrot.lane.b32.xlu0 %v1119, 96
    %v1121 = vpop.permute.xlu0 %1120
    %vm1122 = vcmask 130048
    %s1123 = scalar_lea.vmem %s1, 418
    %1124 = vst.msk [vmem:[%s1123] ss:$8 sm:$0x7] %vm1122, %v1121
    %s1125 = scalar_lea.vmem %s1, 898
    %1126 = vst.msk [vmem:[%s1125] ss:$8 sm:$0x78] %vm1122, %v1121
    %s1127 = scalar_lea.vmem %s1, 435
    %1128 = vst.msk [vmem:[%s1127] sm:$0x80] %vm1122, %v1121
    %s1129 = scalar_lea.vmem [#allocation0], 448
    %v1130 = vld [vmem:[%s1129] ss:$8 sm:$0x7]
    %s1131 = scalar_lea.vmem [#allocation0], 425
    %v1132 = vld [vmem:[%s1131] ss:$8 sm:$0x78]
    %vm1133 = vcmask 1046531
    %v1134 = vsel %vm1133, %v1132, %v1130
    %s1135 = scalar_lea.vmem [#allocation0], 465
    %v1136 = vld [vmem:[%s1135] sm:$0x80]
    %vm1137 = vcmask 1047559
    %v1138 = vsel %vm1137, %v1136, %v1134
    %1139 = vrot.lane.b32.xlu0 %v1138, 96
    %v1140 = vpop.permute.xlu0 %1139
    %vm1141 = vcmask 130048
    %s1142 = scalar_lea.vmem %s1, 450
    %1143 = vst.msk [vmem:[%s1142] ss:$8 sm:$0x7] %vm1141, %v1140
    %s1144 = scalar_lea.vmem %s1, 930
    %1145 = vst.msk [vmem:[%s1144] ss:$8 sm:$0x78] %vm1141, %v1140
    %s1146 = scalar_lea.vmem %s1, 467
    %1147 = vst.msk [vmem:[%s1146] sm:$0x80] %vm1141, %v1140
    %s1148 = scalar_lea.vmem [#allocation0], 480
    %v1149 = vld [vmem:[%s1148] ss:$8 sm:$0x7]
    %s1150 = scalar_lea.vmem [#allocation0], 457
    %v1151 = vld [vmem:[%s1150] ss:$8 sm:$0x38]
    %vm1152 = vcmask 1045507
    %v1153 = vsel %vm1152, %v1151, %v1149
    %1154 = vrot.lane.b32.xlu0 %v1153, 96
    %v1155 = vpop.permute.xlu0 %1154
    %vm1156 = vcmask 130048
    %s1157 = scalar_lea.vmem %s1, 482
    %1158 = vst.msk [vmem:[%s1157] ss:$8 sm:$0x7] %vm1156, %v1155
    %s1159 = scalar_lea.vmem %s1, 962
    %1160 = vst.msk [vmem:[%s1159] ss:$8 sm:$0x38] %vm1156, %v1155
    %v1161 = vld [vmem:[#allocation0] ss:$8 sm:$0x7]
    %s1162 = scalar_lea.vmem [#allocation0], 4294967273
    %v1163 = vld [vmem:[%s1162] ss:$8 sm:$0x78]
    %vm1164 = vcmask 1046531
    %v1165 = vsel %vm1164, %v1163, %v1161
    %s1166 = scalar_lea.vmem [#allocation0], 17
    %v1167 = vld [vmem:[%s1166] sm:$0x80]
    %vm1168 = vcmask 1047559
    %v1169 = vsel %vm1168, %v1167, %v1165
    %1170 = vrot.lane.b32.xlu0 %v1169, 80
    %v1171 = vpop.permute.xlu0 %1170
    %vm1172 = vcmask 130048
    %s1173 = scalar_lea.vmem %s1, 3
    %1174 = vst.msk [vmem:[%s1173] ss:$8 sm:$0x7] %vm1172, %v1171
    %s1175 = scalar_lea.vmem %s1, 483
    %1176 = vst.msk [vmem:[%s1175] ss:$8 sm:$0x78] %vm1172, %v1171
    %s1177 = scalar_lea.vmem %s1, 20
    %1178 = vst.msk [vmem:[%s1177] sm:$0x80] %vm1172, %v1171
    %s1179 = scalar_lea.vmem [#allocation0], 32
    %v1180 = vld [vmem:[%s1179] ss:$8 sm:$0x7]
    %s1181 = scalar_lea.vmem [#allocation0], 9
    %v1182 = vld [vmem:[%s1181] ss:$8 sm:$0x78]
    %vm1183 = vcmask 1046531
    %v1184 = vsel %vm1183, %v1182, %v1180
    %s1185 = scalar_lea.vmem [#allocation0], 49
    %v1186 = vld [vmem:[%s1185] sm:$0x80]
    %vm1187 = vcmask 1047559
    %v1188 = vsel %vm1187, %v1186, %v1184
    %1189 = vrot.lane.b32.xlu0 %v1188, 80
    %v1190 = vpop.permute.xlu0 %1189
    %vm1191 = vcmask 130048
    %s1192 = scalar_lea.vmem %s1, 35
    %1193 = vst.msk [vmem:[%s1192] ss:$8 sm:$0x7] %vm1191, %v1190
    %s1194 = scalar_lea.vmem %s1, 515
    %1195 = vst.msk [vmem:[%s1194] ss:$8 sm:$0x78] %vm1191, %v1190
    %s1196 = scalar_lea.vmem %s1, 52
    %1197 = vst.msk [vmem:[%s1196] sm:$0x80] %vm1191, %v1190
    %s1198 = scalar_lea.vmem [#allocation0], 64
    %v1199 = vld [vmem:[%s1198] ss:$8 sm:$0x7]
    %s1200 = scalar_lea.vmem [#allocation0], 41
    %v1201 = vld [vmem:[%s1200] ss:$8 sm:$0x78]
    %vm1202 = vcmask 1046531
    %v1203 = vsel %vm1202, %v1201, %v1199
    %s1204 = scalar_lea.vmem [#allocation0], 81
    %v1205 = vld [vmem:[%s1204] sm:$0x80]
    %vm1206 = vcmask 1047559
    %v1207 = vsel %vm1206, %v1205, %v1203
    %1208 = vrot.lane.b32.xlu0 %v1207, 80
    %v1209 = vpop.permute.xlu0 %1208
    %vm1210 = vcmask 130048
    %s1211 = scalar_lea.vmem %s1, 67
    %1212 = vst.msk [vmem:[%s1211] ss:$8 sm:$0x7] %vm1210, %v1209
    %s1213 = scalar_lea.vmem %s1, 547
    %1214 = vst.msk [vmem:[%s1213] ss:$8 sm:$0x78] %vm1210, %v1209
    %s1215 = scalar_lea.vmem %s1, 84
    %1216 = vst.msk [vmem:[%s1215] sm:$0x80] %vm1210, %v1209
    %s1217 = scalar_lea.vmem [#allocation0], 96
    %v1218 = vld [vmem:[%s1217] ss:$8 sm:$0x7]
    %s1219 = scalar_lea.vmem [#allocation0], 73
    %v1220 = vld [vmem:[%s1219] ss:$8 sm:$0x78]
    %vm1221 = vcmask 1046531
    %v1222 = vsel %vm1221, %v1220, %v1218
    %s1223 = scalar_lea.vmem [#allocation0], 113
    %v1224 = vld [vmem:[%s1223] sm:$0x80]
    %vm1225 = vcmask 1047559
    %v1226 = vsel %vm1225, %v1224, %v1222
    %1227 = vrot.lane.b32.xlu0 %v1226, 80
    %v1228 = vpop.permute.xlu0 %1227
    %vm1229 = vcmask 130048
    %s1230 = scalar_lea.vmem %s1, 99
    %1231 = vst.msk [vmem:[%s1230] ss:$8 sm:$0x7] %vm1229, %v1228
    %s1232 = scalar_lea.vmem %s1, 579
    %1233 = vst.msk [vmem:[%s1232] ss:$8 sm:$0x78] %vm1229, %v1228
    %s1234 = scalar_lea.vmem %s1, 116
    %1235 = vst.msk [vmem:[%s1234] sm:$0x80] %vm1229, %v1228
    %s1236 = scalar_lea.vmem [#allocation0], 128
    %v1237 = vld [vmem:[%s1236] ss:$8 sm:$0x7]
    %s1238 = scalar_lea.vmem [#allocation0], 105
    %v1239 = vld [vmem:[%s1238] ss:$8 sm:$0x78]
    %vm1240 = vcmask 1046531
    %v1241 = vsel %vm1240, %v1239, %v1237
    %s1242 = scalar_lea.vmem [#allocation0], 145
    %v1243 = vld [vmem:[%s1242] sm:$0x80]
    %vm1244 = vcmask 1047559
    %v1245 = vsel %vm1244, %v1243, %v1241
    %1246 = vrot.lane.b32.xlu0 %v1245, 80
    %v1247 = vpop.permute.xlu0 %1246
    %vm1248 = vcmask 130048
    %s1249 = scalar_lea.vmem %s1, 131
    %1250 = vst.msk [vmem:[%s1249] ss:$8 sm:$0x7] %vm1248, %v1247
    %s1251 = scalar_lea.vmem %s1, 611
    %1252 = vst.msk [vmem:[%s1251] ss:$8 sm:$0x78] %vm1248, %v1247
    %s1253 = scalar_lea.vmem %s1, 148
    %1254 = vst.msk [vmem:[%s1253] sm:$0x80] %vm1248, %v1247
    %s1255 = scalar_lea.vmem [#allocation0], 160
    %v1256 = vld [vmem:[%s1255] ss:$8 sm:$0x7]
    %s1257 = scalar_lea.vmem [#allocation0], 137
    %v1258 = vld [vmem:[%s1257] ss:$8 sm:$0x78]
    %vm1259 = vcmask 1046531
    %v1260 = vsel %vm1259, %v1258, %v1256
    %s1261 = scalar_lea.vmem [#allocation0], 177
    %v1262 = vld [vmem:[%s1261] sm:$0x80]
    %vm1263 = vcmask 1047559
    %v1264 = vsel %vm1263, %v1262, %v1260
    %1265 = vrot.lane.b32.xlu0 %v1264, 80
    %v1266 = vpop.permute.xlu0 %1265
    %vm1267 = vcmask 130048
    %s1268 = scalar_lea.vmem %s1, 163
    %1269 = vst.msk [vmem:[%s1268] ss:$8 sm:$0x7] %vm1267, %v1266
    %s1270 = scalar_lea.vmem %s1, 643
    %1271 = vst.msk [vmem:[%s1270] ss:$8 sm:$0x78] %vm1267, %v1266
    %s1272 = scalar_lea.vmem %s1, 180
    %1273 = vst.msk [vmem:[%s1272] sm:$0x80] %vm1267, %v1266
    %s1274 = scalar_lea.vmem [#allocation0], 192
    %v1275 = vld [vmem:[%s1274] ss:$8 sm:$0x7]
    %s1276 = scalar_lea.vmem [#allocation0], 169
    %v1277 = vld [vmem:[%s1276] ss:$8 sm:$0x78]
    %vm1278 = vcmask 1046531
    %v1279 = vsel %vm1278, %v1277, %v1275
    %s1280 = scalar_lea.vmem [#allocation0], 209
    %v1281 = vld [vmem:[%s1280] sm:$0x80]
    %vm1282 = vcmask 1047559
    %v1283 = vsel %vm1282, %v1281, %v1279
    %1284 = vrot.lane.b32.xlu0 %v1283, 80
    %v1285 = vpop.permute.xlu0 %1284
    %vm1286 = vcmask 130048
    %s1287 = scalar_lea.vmem %s1, 195
    %1288 = vst.msk [vmem:[%s1287] ss:$8 sm:$0x7] %vm1286, %v1285
    %s1289 = scalar_lea.vmem %s1, 675
    %1290 = vst.msk [vmem:[%s1289] ss:$8 sm:$0x78] %vm1286, %v1285
    %s1291 = scalar_lea.vmem %s1, 212
    %1292 = vst.msk [vmem:[%s1291] sm:$0x80] %vm1286, %v1285
    %s1293 = scalar_lea.vmem [#allocation0], 224
    %v1294 = vld [vmem:[%s1293] ss:$8 sm:$0x7]
    %s1295 = scalar_lea.vmem [#allocation0], 201
    %v1296 = vld [vmem:[%s1295] ss:$8 sm:$0x78]
    %vm1297 = vcmask 1046531
    %v1298 = vsel %vm1297, %v1296, %v1294
    %s1299 = scalar_lea.vmem [#allocation0], 241
    %v1300 = vld [vmem:[%s1299] sm:$0x80]
    %vm1301 = vcmask 1047559
    %v1302 = vsel %vm1301, %v1300, %v1298
    %1303 = vrot.lane.b32.xlu0 %v1302, 80
    %v1304 = vpop.permute.xlu0 %1303
    %vm1305 = vcmask 130048
    %s1306 = scalar_lea.vmem %s1, 227
    %1307 = vst.msk [vmem:[%s1306] ss:$8 sm:$0x7] %vm1305, %v1304
    %s1308 = scalar_lea.vmem %s1, 707
    %1309 = vst.msk [vmem:[%s1308] ss:$8 sm:$0x78] %vm1305, %v1304
    %s1310 = scalar_lea.vmem %s1, 244
    %1311 = vst.msk [vmem:[%s1310] sm:$0x80] %vm1305, %v1304
    %s1312 = scalar_lea.vmem [#allocation0], 256
    %v1313 = vld [vmem:[%s1312] ss:$8 sm:$0x7]
    %s1314 = scalar_lea.vmem [#allocation0], 233
    %v1315 = vld [vmem:[%s1314] ss:$8 sm:$0x78]
    %vm1316 = vcmask 1046531
    %v1317 = vsel %vm1316, %v1315, %v1313
    %s1318 = scalar_lea.vmem [#allocation0], 273
    %v1319 = vld [vmem:[%s1318] sm:$0x80]
    %vm1320 = vcmask 1047559
    %v1321 = vsel %vm1320, %v1319, %v1317
    %1322 = vrot.lane.b32.xlu0 %v1321, 80
    %v1323 = vpop.permute.xlu0 %1322
    %vm1324 = vcmask 130048
    %s1325 = scalar_lea.vmem %s1, 259
    %1326 = vst.msk [vmem:[%s1325] ss:$8 sm:$0x7] %vm1324, %v1323
    %s1327 = scalar_lea.vmem %s1, 739
    %1328 = vst.msk [vmem:[%s1327] ss:$8 sm:$0x78] %vm1324, %v1323
    %s1329 = scalar_lea.vmem %s1, 276
    %1330 = vst.msk [vmem:[%s1329] sm:$0x80] %vm1324, %v1323
    %s1331 = scalar_lea.vmem [#allocation0], 288
    %v1332 = vld [vmem:[%s1331] ss:$8 sm:$0x7]
    %s1333 = scalar_lea.vmem [#allocation0], 265
    %v1334 = vld [vmem:[%s1333] ss:$8 sm:$0x78]
    %vm1335 = vcmask 1046531
    %v1336 = vsel %vm1335, %v1334, %v1332
    %s1337 = scalar_lea.vmem [#allocation0], 305
    %v1338 = vld [vmem:[%s1337] sm:$0x80]
    %vm1339 = vcmask 1047559
    %v1340 = vsel %vm1339, %v1338, %v1336
    %1341 = vrot.lane.b32.xlu0 %v1340, 80
    %v1342 = vpop.permute.xlu0 %1341
    %vm1343 = vcmask 130048
    %s1344 = scalar_lea.vmem %s1, 291
    %1345 = vst.msk [vmem:[%s1344] ss:$8 sm:$0x7] %vm1343, %v1342
    %s1346 = scalar_lea.vmem %s1, 771
    %1347 = vst.msk [vmem:[%s1346] ss:$8 sm:$0x78] %vm1343, %v1342
    %s1348 = scalar_lea.vmem %s1, 308
    %1349 = vst.msk [vmem:[%s1348] sm:$0x80] %vm1343, %v1342
    %s1350 = scalar_lea.vmem [#allocation0], 320
    %v1351 = vld [vmem:[%s1350] ss:$8 sm:$0x7]
    %s1352 = scalar_lea.vmem [#allocation0], 297
    %v1353 = vld [vmem:[%s1352] ss:$8 sm:$0x78]
    %vm1354 = vcmask 1046531
    %v1355 = vsel %vm1354, %v1353, %v1351
    %s1356 = scalar_lea.vmem [#allocation0], 337
    %v1357 = vld [vmem:[%s1356] sm:$0x80]
    %vm1358 = vcmask 1047559
    %v1359 = vsel %vm1358, %v1357, %v1355
    %1360 = vrot.lane.b32.xlu0 %v1359, 80
    %v1361 = vpop.permute.xlu0 %1360
    %vm1362 = vcmask 130048
    %s1363 = scalar_lea.vmem %s1, 323
    %1364 = vst.msk [vmem:[%s1363] ss:$8 sm:$0x7] %vm1362, %v1361
    %s1365 = scalar_lea.vmem %s1, 803
    %1366 = vst.msk [vmem:[%s1365] ss:$8 sm:$0x78] %vm1362, %v1361
    %s1367 = scalar_lea.vmem %s1, 340
    %1368 = vst.msk [vmem:[%s1367] sm:$0x80] %vm1362, %v1361
    %s1369 = scalar_lea.vmem [#allocation0], 352
    %v1370 = vld [vmem:[%s1369] ss:$8 sm:$0x7]
    %s1371 = scalar_lea.vmem [#allocation0], 329
    %v1372 = vld [vmem:[%s1371] ss:$8 sm:$0x78]
    %vm1373 = vcmask 1046531
    %v1374 = vsel %vm1373, %v1372, %v1370
    %s1375 = scalar_lea.vmem [#allocation0], 369
    %v1376 = vld [vmem:[%s1375] sm:$0x80]
    %vm1377 = vcmask 1047559
    %v1378 = vsel %vm1377, %v1376, %v1374
    %1379 = vrot.lane.b32.xlu0 %v1378, 80
    %v1380 = vpop.permute.xlu0 %1379
    %vm1381 = vcmask 130048
    %s1382 = scalar_lea.vmem %s1, 355
    %1383 = vst.msk [vmem:[%s1382] ss:$8 sm:$0x7] %vm1381, %v1380
    %s1384 = scalar_lea.vmem %s1, 835
    %1385 = vst.msk [vmem:[%s1384] ss:$8 sm:$0x78] %vm1381, %v1380
    %s1386 = scalar_lea.vmem %s1, 372
    %1387 = vst.msk [vmem:[%s1386] sm:$0x80] %vm1381, %v1380
    %s1388 = scalar_lea.vmem [#allocation0], 384
    %v1389 = vld [vmem:[%s1388] ss:$8 sm:$0x7]
    %s1390 = scalar_lea.vmem [#allocation0], 361
    %v1391 = vld [vmem:[%s1390] ss:$8 sm:$0x78]
    %vm1392 = vcmask 1046531
    %v1393 = vsel %vm1392, %v1391, %v1389
    %s1394 = scalar_lea.vmem [#allocation0], 401
    %v1395 = vld [vmem:[%s1394] sm:$0x80]
    %vm1396 = vcmask 1047559
    %v1397 = vsel %vm1396, %v1395, %v1393
    %1398 = vrot.lane.b32.xlu0 %v1397, 80
    %v1399 = vpop.permute.xlu0 %1398
    %vm1400 = vcmask 130048
    %s1401 = scalar_lea.vmem %s1, 387
    %1402 = vst.msk [vmem:[%s1401] ss:$8 sm:$0x7] %vm1400, %v1399
    %s1403 = scalar_lea.vmem %s1, 867
    %1404 = vst.msk [vmem:[%s1403] ss:$8 sm:$0x78] %vm1400, %v1399
    %s1405 = scalar_lea.vmem %s1, 404
    %1406 = vst.msk [vmem:[%s1405] sm:$0x80] %vm1400, %v1399
    %s1407 = scalar_lea.vmem [#allocation0], 416
    %v1408 = vld [vmem:[%s1407] ss:$8 sm:$0x7]
    %s1409 = scalar_lea.vmem [#allocation0], 393
    %v1410 = vld [vmem:[%s1409] ss:$8 sm:$0x78]
    %vm1411 = vcmask 1046531
    %v1412 = vsel %vm1411, %v1410, %v1408
    %s1413 = scalar_lea.vmem [#allocation0], 433
    %v1414 = vld [vmem:[%s1413] sm:$0x80]
    %vm1415 = vcmask 1047559
    %v1416 = vsel %vm1415, %v1414, %v1412
    %1417 = vrot.lane.b32.xlu0 %v1416, 80
    %v1418 = vpop.permute.xlu0 %1417
    %vm1419 = vcmask 130048
    %s1420 = scalar_lea.vmem %s1, 419
    %1421 = vst.msk [vmem:[%s1420] ss:$8 sm:$0x7] %vm1419, %v1418
    %s1422 = scalar_lea.vmem %s1, 899
    %1423 = vst.msk [vmem:[%s1422] ss:$8 sm:$0x78] %vm1419, %v1418
    %s1424 = scalar_lea.vmem %s1, 436
    %1425 = vst.msk [vmem:[%s1424] sm:$0x80] %vm1419, %v1418
    %s1426 = scalar_lea.vmem [#allocation0], 448
    %v1427 = vld [vmem:[%s1426] ss:$8 sm:$0x7]
    %s1428 = scalar_lea.vmem [#allocation0], 425
    %v1429 = vld [vmem:[%s1428] ss:$8 sm:$0x78]
    %vm1430 = vcmask 1046531
    %v1431 = vsel %vm1430, %v1429, %v1427
    %s1432 = scalar_lea.vmem [#allocation0], 465
    %v1433 = vld [vmem:[%s1432] sm:$0x80]
    %vm1434 = vcmask 1047559
    %v1435 = vsel %vm1434, %v1433, %v1431
    %1436 = vrot.lane.b32.xlu0 %v1435, 80
    %v1437 = vpop.permute.xlu0 %1436
    %vm1438 = vcmask 130048
    %s1439 = scalar_lea.vmem %s1, 451
    %1440 = vst.msk [vmem:[%s1439] ss:$8 sm:$0x7] %vm1438, %v1437
    %s1441 = scalar_lea.vmem %s1, 931
    %1442 = vst.msk [vmem:[%s1441] ss:$8 sm:$0x78] %vm1438, %v1437
    %s1443 = scalar_lea.vmem %s1, 468
    %1444 = vst.msk [vmem:[%s1443] sm:$0x80] %vm1438, %v1437
    %s1445 = scalar_lea.vmem [#allocation0], 480
    %v1446 = vld [vmem:[%s1445] ss:$8 sm:$0x7]
    %s1447 = scalar_lea.vmem [#allocation0], 457
    %v1448 = vld [vmem:[%s1447] ss:$8 sm:$0x38]
    %vm1449 = vcmask 1045507
    %v1450 = vsel %vm1449, %v1448, %v1446
    %1451 = vrot.lane.b32.xlu0 %v1450, 80
    %v1452 = vpop.permute.xlu0 %1451
    %vm1453 = vcmask 130048
    %s1454 = scalar_lea.vmem %s1, 483
    %1455 = vst.msk [vmem:[%s1454] ss:$8 sm:$0x7] %vm1453, %v1452
    %s1456 = scalar_lea.vmem %s1, 963
    %1457 = vst.msk [vmem:[%s1456] ss:$8 sm:$0x38] %vm1453, %v1452
    %v1458 = vld [vmem:[#allocation0] ss:$8 sm:$0x7]
    %s1459 = scalar_lea.vmem [#allocation0], 4294967273
    %v1460 = vld [vmem:[%s1459] ss:$8 sm:$0x78]
    %vm1461 = vcmask 1046531
    %v1462 = vsel %vm1461, %v1460, %v1458
    %s1463 = scalar_lea.vmem [#allocation0], 17
    %v1464 = vld [vmem:[%s1463] sm:$0x80]
    %vm1465 = vcmask 1047559
    %v1466 = vsel %vm1465, %v1464, %v1462
    %1467 = vrot.lane.b32.xlu0 %v1466, 64
    %v1468 = vpop.permute.xlu0 %1467
    %vm1469 = vcmask 130048
    %s1470 = scalar_lea.vmem %s1, 4
    %1471 = vst.msk [vmem:[%s1470] ss:$8 sm:$0x7] %vm1469, %v1468
    %s1472 = scalar_lea.vmem %s1, 484
    %1473 = vst.msk [vmem:[%s1472] ss:$8 sm:$0x78] %vm1469, %v1468
    %s1474 = scalar_lea.vmem %s1, 21
    %1475 = vst.msk [vmem:[%s1474] sm:$0x80] %vm1469, %v1468
    %s1476 = scalar_lea.vmem [#allocation0], 32
    %v1477 = vld [vmem:[%s1476] ss:$8 sm:$0x7]
    %s1478 = scalar_lea.vmem [#allocation0], 9
    %v1479 = vld [vmem:[%s1478] ss:$8 sm:$0x78]
    %vm1480 = vcmask 1046531
    %v1481 = vsel %vm1480, %v1479, %v1477
    %s1482 = scalar_lea.vmem [#allocation0], 49
    %v1483 = vld [vmem:[%s1482] sm:$0x80]
    %vm1484 = vcmask 1047559
    %v1485 = vsel %vm1484, %v1483, %v1481
    %1486 = vrot.lane.b32.xlu0 %v1485, 64
    %v1487 = vpop.permute.xlu0 %1486
    %vm1488 = vcmask 130048
    %s1489 = scalar_lea.vmem %s1, 36
    %1490 = vst.msk [vmem:[%s1489] ss:$8 sm:$0x7] %vm1488, %v1487
    %s1491 = scalar_lea.vmem %s1, 516
    %1492 = vst.msk [vmem:[%s1491] ss:$8 sm:$0x78] %vm1488, %v1487
    %s1493 = scalar_lea.vmem %s1, 53
    %1494 = vst.msk [vmem:[%s1493] sm:$0x80] %vm1488, %v1487
    %s1495 = scalar_lea.vmem [#allocation0], 64
    %v1496 = vld [vmem:[%s1495] ss:$8 sm:$0x7]
    %s1497 = scalar_lea.vmem [#allocation0], 41
    %v1498 = vld [vmem:[%s1497] ss:$8 sm:$0x78]
    %vm1499 = vcmask 1046531
    %v1500 = vsel %vm1499, %v1498, %v1496
    %s1501 = scalar_lea.vmem [#allocation0], 81
    %v1502 = vld [vmem:[%s1501] sm:$0x80]
    %vm1503 = vcmask 1047559
    %v1504 = vsel %vm1503, %v1502, %v1500
    %1505 = vrot.lane.b32.xlu0 %v1504, 64
    %v1506 = vpop.permute.xlu0 %1505
    %vm1507 = vcmask 130048
    %s1508 = scalar_lea.vmem %s1, 68
    %1509 = vst.msk [vmem:[%s1508] ss:$8 sm:$0x7] %vm1507, %v1506
    %s1510 = scalar_lea.vmem %s1, 548
    %1511 = vst.msk [vmem:[%s1510] ss:$8 sm:$0x78] %vm1507, %v1506
    %s1512 = scalar_lea.vmem %s1, 85
    %1513 = vst.msk [vmem:[%s1512] sm:$0x80] %vm1507, %v1506
    %s1514 = scalar_lea.vmem [#allocation0], 96
    %v1515 = vld [vmem:[%s1514] ss:$8 sm:$0x7]
    %s1516 = scalar_lea.vmem [#allocation0], 73
    %v1517 = vld [vmem:[%s1516] ss:$8 sm:$0x78]
    %vm1518 = vcmask 1046531
    %v1519 = vsel %vm1518, %v1517, %v1515
    %s1520 = scalar_lea.vmem [#allocation0], 113
    %v1521 = vld [vmem:[%s1520] sm:$0x80]
    %vm1522 = vcmask 1047559
    %v1523 = vsel %vm1522, %v1521, %v1519
    %1524 = vrot.lane.b32.xlu0 %v1523, 64
    %v1525 = vpop.permute.xlu0 %1524
    %vm1526 = vcmask 130048
    %s1527 = scalar_lea.vmem %s1, 100
    %1528 = vst.msk [vmem:[%s1527] ss:$8 sm:$0x7] %vm1526, %v1525
    %s1529 = scalar_lea.vmem %s1, 580
    %1530 = vst.msk [vmem:[%s1529] ss:$8 sm:$0x78] %vm1526, %v1525
    %s1531 = scalar_lea.vmem %s1, 117
    %1532 = vst.msk [vmem:[%s1531] sm:$0x80] %vm1526, %v1525
    %s1533 = scalar_lea.vmem [#allocation0], 128
    %v1534 = vld [vmem:[%s1533] ss:$8 sm:$0x7]
    %s1535 = scalar_lea.vmem [#allocation0], 105
    %v1536 = vld [vmem:[%s1535] ss:$8 sm:$0x78]
    %vm1537 = vcmask 1046531
    %v1538 = vsel %vm1537, %v1536, %v1534
    %s1539 = scalar_lea.vmem [#allocation0], 145
    %v1540 = vld [vmem:[%s1539] sm:$0x80]
    %vm1541 = vcmask 1047559
    %v1542 = vsel %vm1541, %v1540, %v1538
    %1543 = vrot.lane.b32.xlu0 %v1542, 64
    %v1544 = vpop.permute.xlu0 %1543
    %vm1545 = vcmask 130048
    %s1546 = scalar_lea.vmem %s1, 132
    %1547 = vst.msk [vmem:[%s1546] ss:$8 sm:$0x7] %vm1545, %v1544
    %s1548 = scalar_lea.vmem %s1, 612
    %1549 = vst.msk [vmem:[%s1548] ss:$8 sm:$0x78] %vm1545, %v1544
    %s1550 = scalar_lea.vmem %s1, 149
    %1551 = vst.msk [vmem:[%s1550] sm:$0x80] %vm1545, %v1544
    %s1552 = scalar_lea.vmem [#allocation0], 160
    %v1553 = vld [vmem:[%s1552] ss:$8 sm:$0x7]
    %s1554 = scalar_lea.vmem [#allocation0], 137
    %v1555 = vld [vmem:[%s1554] ss:$8 sm:$0x78]
    %vm1556 = vcmask 1046531
    %v1557 = vsel %vm1556, %v1555, %v1553
    %s1558 = scalar_lea.vmem [#allocation0], 177
    %v1559 = vld [vmem:[%s1558] sm:$0x80]
    %vm1560 = vcmask 1047559
    %v1561 = vsel %vm1560, %v1559, %v1557
    %1562 = vrot.lane.b32.xlu0 %v1561, 64
    %v1563 = vpop.permute.xlu0 %1562
    %vm1564 = vcmask 130048
    %s1565 = scalar_lea.vmem %s1, 164
    %1566 = vst.msk [vmem:[%s1565] ss:$8 sm:$0x7] %vm1564, %v1563
    %s1567 = scalar_lea.vmem %s1, 644
    %1568 = vst.msk [vmem:[%s1567] ss:$8 sm:$0x78] %vm1564, %v1563
    %s1569 = scalar_lea.vmem %s1, 181
    %1570 = vst.msk [vmem:[%s1569] sm:$0x80] %vm1564, %v1563
    %s1571 = scalar_lea.vmem [#allocation0], 192
    %v1572 = vld [vmem:[%s1571] ss:$8 sm:$0x7]
    %s1573 = scalar_lea.vmem [#allocation0], 169
    %v1574 = vld [vmem:[%s1573] ss:$8 sm:$0x78]
    %vm1575 = vcmask 1046531
    %v1576 = vsel %vm1575, %v1574, %v1572
    %s1577 = scalar_lea.vmem [#allocation0], 209
    %v1578 = vld [vmem:[%s1577] sm:$0x80]
    %vm1579 = vcmask 1047559
    %v1580 = vsel %vm1579, %v1578, %v1576
    %1581 = vrot.lane.b32.xlu0 %v1580, 64
    %v1582 = vpop.permute.xlu0 %1581
    %vm1583 = vcmask 130048
    %s1584 = scalar_lea.vmem %s1, 196
    %1585 = vst.msk [vmem:[%s1584] ss:$8 sm:$0x7] %vm1583, %v1582
    %s1586 = scalar_lea.vmem %s1, 676
    %1587 = vst.msk [vmem:[%s1586] ss:$8 sm:$0x78] %vm1583, %v1582
    %s1588 = scalar_lea.vmem %s1, 213
    %1589 = vst.msk [vmem:[%s1588] sm:$0x80] %vm1583, %v1582
    %s1590 = scalar_lea.vmem [#allocation0], 224
    %v1591 = vld [vmem:[%s1590] ss:$8 sm:$0x7]
    %s1592 = scalar_lea.vmem [#allocation0], 201
    %v1593 = vld [vmem:[%s1592] ss:$8 sm:$0x78]
    %vm1594 = vcmask 1046531
    %v1595 = vsel %vm1594, %v1593, %v1591
    %s1596 = scalar_lea.vmem [#allocation0], 241
    %v1597 = vld [vmem:[%s1596] sm:$0x80]
    %vm1598 = vcmask 1047559
    %v1599 = vsel %vm1598, %v1597, %v1595
    %1600 = vrot.lane.b32.xlu0 %v1599, 64
    %v1601 = vpop.permute.xlu0 %1600
    %vm1602 = vcmask 130048
    %s1603 = scalar_lea.vmem %s1, 228
    %1604 = vst.msk [vmem:[%s1603] ss:$8 sm:$0x7] %vm1602, %v1601
    %s1605 = scalar_lea.vmem %s1, 708
    %1606 = vst.msk [vmem:[%s1605] ss:$8 sm:$0x78] %vm1602, %v1601
    %s1607 = scalar_lea.vmem %s1, 245
    %1608 = vst.msk [vmem:[%s1607] sm:$0x80] %vm1602, %v1601
    %s1609 = scalar_lea.vmem [#allocation0], 256
    %v1610 = vld [vmem:[%s1609] ss:$8 sm:$0x7]
    %s1611 = scalar_lea.vmem [#allocation0], 233
    %v1612 = vld [vmem:[%s1611] ss:$8 sm:$0x78]
    %vm1613 = vcmask 1046531
    %v1614 = vsel %vm1613, %v1612, %v1610
    %s1615 = scalar_lea.vmem [#allocation0], 273
    %v1616 = vld [vmem:[%s1615] sm:$0x80]
    %vm1617 = vcmask 1047559
    %v1618 = vsel %vm1617, %v1616, %v1614
    %1619 = vrot.lane.b32.xlu0 %v1618, 64
    %v1620 = vpop.permute.xlu0 %1619
    %vm1621 = vcmask 130048
    %s1622 = scalar_lea.vmem %s1, 260
    %1623 = vst.msk [vmem:[%s1622] ss:$8 sm:$0x7] %vm1621, %v1620
    %s1624 = scalar_lea.vmem %s1, 740
    %1625 = vst.msk [vmem:[%s1624] ss:$8 sm:$0x78] %vm1621, %v1620
    %s1626 = scalar_lea.vmem %s1, 277
    %1627 = vst.msk [vmem:[%s1626] sm:$0x80] %vm1621, %v1620
    %s1628 = scalar_lea.vmem [#allocation0], 288
    %v1629 = vld [vmem:[%s1628] ss:$8 sm:$0x7]
    %s1630 = scalar_lea.vmem [#allocation0], 265
    %v1631 = vld [vmem:[%s1630] ss:$8 sm:$0x78]
    %vm1632 = vcmask 1046531
    %v1633 = vsel %vm1632, %v1631, %v1629
    %s1634 = scalar_lea.vmem [#allocation0], 305
    %v1635 = vld [vmem:[%s1634] sm:$0x80]
    %vm1636 = vcmask 1047559
    %v1637 = vsel %vm1636, %v1635, %v1633
    %1638 = vrot.lane.b32.xlu0 %v1637, 64
    %v1639 = vpop.permute.xlu0 %1638
    %vm1640 = vcmask 130048
    %s1641 = scalar_lea.vmem %s1, 292
    %1642 = vst.msk [vmem:[%s1641] ss:$8 sm:$0x7] %vm1640, %v1639
    %s1643 = scalar_lea.vmem %s1, 772
    %1644 = vst.msk [vmem:[%s1643] ss:$8 sm:$0x78] %vm1640, %v1639
    %s1645 = scalar_lea.vmem %s1, 309
    %1646 = vst.msk [vmem:[%s1645] sm:$0x80] %vm1640, %v1639
    %s1647 = scalar_lea.vmem [#allocation0], 320
    %v1648 = vld [vmem:[%s1647] ss:$8 sm:$0x7]
    %s1649 = scalar_lea.vmem [#allocation0], 297
    %v1650 = vld [vmem:[%s1649] ss:$8 sm:$0x78]
    %vm1651 = vcmask 1046531
    %v1652 = vsel %vm1651, %v1650, %v1648
    %s1653 = scalar_lea.vmem [#allocation0], 337
    %v1654 = vld [vmem:[%s1653] sm:$0x80]
    %vm1655 = vcmask 1047559
    %v1656 = vsel %vm1655, %v1654, %v1652
    %1657 = vrot.lane.b32.xlu0 %v1656, 64
    %v1658 = vpop.permute.xlu0 %1657
    %vm1659 = vcmask 130048
    %s1660 = scalar_lea.vmem %s1, 324
    %1661 = vst.msk [vmem:[%s1660] ss:$8 sm:$0x7] %vm1659, %v1658
    %s1662 = scalar_lea.vmem %s1, 804
    %1663 = vst.msk [vmem:[%s1662] ss:$8 sm:$0x78] %vm1659, %v1658
    %s1664 = scalar_lea.vmem %s1, 341
    %1665 = vst.msk [vmem:[%s1664] sm:$0x80] %vm1659, %v1658
    %s1666 = scalar_lea.vmem [#allocation0], 352
    %v1667 = vld [vmem:[%s1666] ss:$8 sm:$0x7]
    %s1668 = scalar_lea.vmem [#allocation0], 329
    %v1669 = vld [vmem:[%s1668] ss:$8 sm:$0x78]
    %vm1670 = vcmask 1046531
    %v1671 = vsel %vm1670, %v1669, %v1667
    %s1672 = scalar_lea.vmem [#allocation0], 369
    %v1673 = vld [vmem:[%s1672] sm:$0x80]
    %vm1674 = vcmask 1047559
    %v1675 = vsel %vm1674, %v1673, %v1671
    %1676 = vrot.lane.b32.xlu0 %v1675, 64
    %v1677 = vpop.permute.xlu0 %1676
    %vm1678 = vcmask 130048
    %s1679 = scalar_lea.vmem %s1, 356
    %1680 = vst.msk [vmem:[%s1679] ss:$8 sm:$0x7] %vm1678, %v1677
    %s1681 = scalar_lea.vmem %s1, 836
    %1682 = vst.msk [vmem:[%s1681] ss:$8 sm:$0x78] %vm1678, %v1677
    %s1683 = scalar_lea.vmem %s1, 373
    %1684 = vst.msk [vmem:[%s1683] sm:$0x80] %vm1678, %v1677
    %s1685 = scalar_lea.vmem [#allocation0], 384
    %v1686 = vld [vmem:[%s1685] ss:$8 sm:$0x7]
    %s1687 = scalar_lea.vmem [#allocation0], 361
    %v1688 = vld [vmem:[%s1687] ss:$8 sm:$0x78]
    %vm1689 = vcmask 1046531
    %v1690 = vsel %vm1689, %v1688, %v1686
    %s1691 = scalar_lea.vmem [#allocation0], 401
    %v1692 = vld [vmem:[%s1691] sm:$0x80]
    %vm1693 = vcmask 1047559
    %v1694 = vsel %vm1693, %v1692, %v1690
    %1695 = vrot.lane.b32.xlu0 %v1694, 64
    %v1696 = vpop.permute.xlu0 %1695
    %vm1697 = vcmask 130048
    %s1698 = scalar_lea.vmem %s1, 388
    %1699 = vst.msk [vmem:[%s1698] ss:$8 sm:$0x7] %vm1697, %v1696
    %s1700 = scalar_lea.vmem %s1, 868
    %1701 = vst.msk [vmem:[%s1700] ss:$8 sm:$0x78] %vm1697, %v1696
    %s1702 = scalar_lea.vmem %s1, 405
    %1703 = vst.msk [vmem:[%s1702] sm:$0x80] %vm1697, %v1696
    %s1704 = scalar_lea.vmem [#allocation0], 416
    %v1705 = vld [vmem:[%s1704] ss:$8 sm:$0x7]
    %s1706 = scalar_lea.vmem [#allocation0], 393
    %v1707 = vld [vmem:[%s1706] ss:$8 sm:$0x78]
    %vm1708 = vcmask 1046531
    %v1709 = vsel %vm1708, %v1707, %v1705
    %s1710 = scalar_lea.vmem [#allocation0], 433
    %v1711 = vld [vmem:[%s1710] sm:$0x80]
    %vm1712 = vcmask 1047559
    %v1713 = vsel %vm1712, %v1711, %v1709
    %1714 = vrot.lane.b32.xlu0 %v1713, 64
    %v1715 = vpop.permute.xlu0 %1714
    %vm1716 = vcmask 130048
    %s1717 = scalar_lea.vmem %s1, 420
    %1718 = vst.msk [vmem:[%s1717] ss:$8 sm:$0x7] %vm1716, %v1715
    %s1719 = scalar_lea.vmem %s1, 900
    %1720 = vst.msk [vmem:[%s1719] ss:$8 sm:$0x78] %vm1716, %v1715
    %s1721 = scalar_lea.vmem %s1, 437
    %1722 = vst.msk [vmem:[%s1721] sm:$0x80] %vm1716, %v1715
    %s1723 = scalar_lea.vmem [#allocation0], 448
    %v1724 = vld [vmem:[%s1723] ss:$8 sm:$0x7]
    %s1725 = scalar_lea.vmem [#allocation0], 425
    %v1726 = vld [vmem:[%s1725] ss:$8 sm:$0x78]
    %vm1727 = vcmask 1046531
    %v1728 = vsel %vm1727, %v1726, %v1724
    %s1729 = scalar_lea.vmem [#allocation0], 465
    %v1730 = vld [vmem:[%s1729] sm:$0x80]
    %vm1731 = vcmask 1047559
    %v1732 = vsel %vm1731, %v1730, %v1728
    %1733 = vrot.lane.b32.xlu0 %v1732, 64
    %v1734 = vpop.permute.xlu0 %1733
    %vm1735 = vcmask 130048
    %s1736 = scalar_lea.vmem %s1, 452
    %1737 = vst.msk [vmem:[%s1736] ss:$8 sm:$0x7] %vm1735, %v1734
    %s1738 = scalar_lea.vmem %s1, 932
    %1739 = vst.msk [vmem:[%s1738] ss:$8 sm:$0x78] %vm1735, %v1734
    %s1740 = scalar_lea.vmem %s1, 469
    %1741 = vst.msk [vmem:[%s1740] sm:$0x80] %vm1735, %v1734
    %s1742 = scalar_lea.vmem [#allocation0], 480
    %v1743 = vld.sshfl [vmem:[%s1742] sm:$0xff pattern:$0x99999180]
    %1744 = vrot.lane.b32.xlu0 %v1743, 64
    %v1745 = vpop.permute.xlu0 %1744
    %vm1746 = vcmask 130048
    %s1747 = scalar_lea.vmem %s1, 484
    %1748 = vst.msk [vmem:[%s1747] ss:$8 sm:$0x3] %vm1746, %v1745
    %s1749 = scalar_lea.vmem %s1, 972
    %1750 = vst.msk [vmem:[%s1749] ss:$8 sm:$0xc] %vm1746, %v1745
    %v1751 = vld [vmem:[#allocation0] ss:$8 sm:$0x7]
    %s1752 = scalar_lea.vmem [#allocation0], 4294967273
    %v1753 = vld [vmem:[%s1752] ss:$8 sm:$0x78]
    %vm1754 = vcmask 1046531
    %v1755 = vsel %vm1754, %v1753, %v1751
    %s1756 = scalar_lea.vmem [#allocation0], 17
    %v1757 = vld [vmem:[%s1756] sm:$0x80]
    %vm1758 = vcmask 1047559
    %v1759 = vsel %vm1758, %v1757, %v1755
    %1760 = vrot.lane.b32.xlu0 %v1759, 48
    %v1761 = vpop.permute.xlu0 %1760
    %vm1762 = vcmask 130048
    %s1763 = scalar_lea.vmem %s1, 5
    %1764 = vst.msk [vmem:[%s1763] ss:$8 sm:$0x7] %vm1762, %v1761
    %s1765 = scalar_lea.vmem %s1, 485
    %1766 = vst.msk [vmem:[%s1765] ss:$8 sm:$0x78] %vm1762, %v1761
    %s1767 = scalar_lea.vmem %s1, 22
    %1768 = vst.msk [vmem:[%s1767] sm:$0x80] %vm1762, %v1761
    %s1769 = scalar_lea.vmem [#allocation0], 32
    %v1770 = vld [vmem:[%s1769] ss:$8 sm:$0x7]
    %s1771 = scalar_lea.vmem [#allocation0], 9
    %v1772 = vld [vmem:[%s1771] ss:$8 sm:$0x78]
    %vm1773 = vcmask 1046531
    %v1774 = vsel %vm1773, %v1772, %v1770
    %s1775 = scalar_lea.vmem [#allocation0], 49
    %v1776 = vld [vmem:[%s1775] sm:$0x80]
    %vm1777 = vcmask 1047559
    %v1778 = vsel %vm1777, %v1776, %v1774
    %1779 = vrot.lane.b32.xlu0 %v1778, 48
    %v1780 = vpop.permute.xlu0 %1779
    %vm1781 = vcmask 130048
    %s1782 = scalar_lea.vmem %s1, 37
    %1783 = vst.msk [vmem:[%s1782] ss:$8 sm:$0x7] %vm1781, %v1780
    %s1784 = scalar_lea.vmem %s1, 517
    %1785 = vst.msk [vmem:[%s1784] ss:$8 sm:$0x78] %vm1781, %v1780
    %s1786 = scalar_lea.vmem %s1, 54
    %1787 = vst.msk [vmem:[%s1786] sm:$0x80] %vm1781, %v1780
    %s1788 = scalar_lea.vmem [#allocation0], 64
    %v1789 = vld [vmem:[%s1788] ss:$8 sm:$0x7]
    %s1790 = scalar_lea.vmem [#allocation0], 41
    %v1791 = vld [vmem:[%s1790] ss:$8 sm:$0x78]
    %vm1792 = vcmask 1046531
    %v1793 = vsel %vm1792, %v1791, %v1789
    %s1794 = scalar_lea.vmem [#allocation0], 81
    %v1795 = vld [vmem:[%s1794] sm:$0x80]
    %vm1796 = vcmask 1047559
    %v1797 = vsel %vm1796, %v1795, %v1793
    %1798 = vrot.lane.b32.xlu0 %v1797, 48
    %v1799 = vpop.permute.xlu0 %1798
    %vm1800 = vcmask 130048
    %s1801 = scalar_lea.vmem %s1, 69
    %1802 = vst.msk [vmem:[%s1801] ss:$8 sm:$0x7] %vm1800, %v1799
    %s1803 = scalar_lea.vmem %s1, 549
    %1804 = vst.msk [vmem:[%s1803] ss:$8 sm:$0x78] %vm1800, %v1799
    %s1805 = scalar_lea.vmem %s1, 86
    %1806 = vst.msk [vmem:[%s1805] sm:$0x80] %vm1800, %v1799
    %s1807 = scalar_lea.vmem [#allocation0], 96
    %v1808 = vld [vmem:[%s1807] ss:$8 sm:$0x7]
    %s1809 = scalar_lea.vmem [#allocation0], 73
    %v1810 = vld [vmem:[%s1809] ss:$8 sm:$0x78]
    %vm1811 = vcmask 1046531
    %v1812 = vsel %vm1811, %v1810, %v1808
    %s1813 = scalar_lea.vmem [#allocation0], 113
    %v1814 = vld [vmem:[%s1813] sm:$0x80]
    %vm1815 = vcmask 1047559
    %v1816 = vsel %vm1815, %v1814, %v1812
    %1817 = vrot.lane.b32.xlu0 %v1816, 48
    %v1818 = vpop.permute.xlu0 %1817
    %vm1819 = vcmask 130048
    %s1820 = scalar_lea.vmem %s1, 101
    %1821 = vst.msk [vmem:[%s1820] ss:$8 sm:$0x7] %vm1819, %v1818
    %s1822 = scalar_lea.vmem %s1, 581
    %1823 = vst.msk [vmem:[%s1822] ss:$8 sm:$0x78] %vm1819, %v1818
    %s1824 = scalar_lea.vmem %s1, 118
    %1825 = vst.msk [vmem:[%s1824] sm:$0x80] %vm1819, %v1818
    %s1826 = scalar_lea.vmem [#allocation0], 128
    %v1827 = vld [vmem:[%s1826] ss:$8 sm:$0x7]
    %s1828 = scalar_lea.vmem [#allocation0], 105
    %v1829 = vld [vmem:[%s1828] ss:$8 sm:$0x78]
    %vm1830 = vcmask 1046531
    %v1831 = vsel %vm1830, %v1829, %v1827
    %s1832 = scalar_lea.vmem [#allocation0], 145
    %v1833 = vld [vmem:[%s1832] sm:$0x80]
    %vm1834 = vcmask 1047559
    %v1835 = vsel %vm1834, %v1833, %v1831
    %1836 = vrot.lane.b32.xlu0 %v1835, 48
    %v1837 = vpop.permute.xlu0 %1836
    %vm1838 = vcmask 130048
    %s1839 = scalar_lea.vmem %s1, 133
    %1840 = vst.msk [vmem:[%s1839] ss:$8 sm:$0x7] %vm1838, %v1837
    %s1841 = scalar_lea.vmem %s1, 613
    %1842 = vst.msk [vmem:[%s1841] ss:$8 sm:$0x78] %vm1838, %v1837
    %s1843 = scalar_lea.vmem %s1, 150
    %1844 = vst.msk [vmem:[%s1843] sm:$0x80] %vm1838, %v1837
    %s1845 = scalar_lea.vmem [#allocation0], 160
    %v1846 = vld [vmem:[%s1845] ss:$8 sm:$0x7]
    %s1847 = scalar_lea.vmem [#allocation0], 137
    %v1848 = vld [vmem:[%s1847] ss:$8 sm:$0x78]
    %vm1849 = vcmask 1046531
    %v1850 = vsel %vm1849, %v1848, %v1846
    %s1851 = scalar_lea.vmem [#allocation0], 177
    %v1852 = vld [vmem:[%s1851] sm:$0x80]
    %vm1853 = vcmask 1047559
    %v1854 = vsel %vm1853, %v1852, %v1850
    %1855 = vrot.lane.b32.xlu0 %v1854, 48
    %v1856 = vpop.permute.xlu0 %1855
    %vm1857 = vcmask 130048
    %s1858 = scalar_lea.vmem %s1, 165
    %1859 = vst.msk [vmem:[%s1858] ss:$8 sm:$0x7] %vm1857, %v1856
    %s1860 = scalar_lea.vmem %s1, 645
    %1861 = vst.msk [vmem:[%s1860] ss:$8 sm:$0x78] %vm1857, %v1856
    %s1862 = scalar_lea.vmem %s1, 182
    %1863 = vst.msk [vmem:[%s1862] sm:$0x80] %vm1857, %v1856
    %s1864 = scalar_lea.vmem [#allocation0], 192
    %v1865 = vld [vmem:[%s1864] ss:$8 sm:$0x7]
    %s1866 = scalar_lea.vmem [#allocation0], 169
    %v1867 = vld [vmem:[%s1866] ss:$8 sm:$0x78]
    %vm1868 = vcmask 1046531
    %v1869 = vsel %vm1868, %v1867, %v1865
    %s1870 = scalar_lea.vmem [#allocation0], 209
    %v1871 = vld [vmem:[%s1870] sm:$0x80]
    %vm1872 = vcmask 1047559
    %v1873 = vsel %vm1872, %v1871, %v1869
    %1874 = vrot.lane.b32.xlu0 %v1873, 48
    %v1875 = vpop.permute.xlu0 %1874
    %vm1876 = vcmask 130048
    %s1877 = scalar_lea.vmem %s1, 197
    %1878 = vst.msk [vmem:[%s1877] ss:$8 sm:$0x7] %vm1876, %v1875
    %s1879 = scalar_lea.vmem %s1, 677
    %1880 = vst.msk [vmem:[%s1879] ss:$8 sm:$0x78] %vm1876, %v1875
    %s1881 = scalar_lea.vmem %s1, 214
    %1882 = vst.msk [vmem:[%s1881] sm:$0x80] %vm1876, %v1875
    %s1883 = scalar_lea.vmem [#allocation0], 224
    %v1884 = vld [vmem:[%s1883] ss:$8 sm:$0x7]
    %s1885 = scalar_lea.vmem [#allocation0], 201
    %v1886 = vld [vmem:[%s1885] ss:$8 sm:$0x78]
    %vm1887 = vcmask 1046531
    %v1888 = vsel %vm1887, %v1886, %v1884
    %s1889 = scalar_lea.vmem [#allocation0], 241
    %v1890 = vld [vmem:[%s1889] sm:$0x80]
    %vm1891 = vcmask 1047559
    %v1892 = vsel %vm1891, %v1890, %v1888
    %1893 = vrot.lane.b32.xlu0 %v1892, 48
    %v1894 = vpop.permute.xlu0 %1893
    %vm1895 = vcmask 130048
    %s1896 = scalar_lea.vmem %s1, 229
    %1897 = vst.msk [vmem:[%s1896] ss:$8 sm:$0x7] %vm1895, %v1894
    %s1898 = scalar_lea.vmem %s1, 709
    %1899 = vst.msk [vmem:[%s1898] ss:$8 sm:$0x78] %vm1895, %v1894
    %s1900 = scalar_lea.vmem %s1, 246
    %1901 = vst.msk [vmem:[%s1900] sm:$0x80] %vm1895, %v1894
    %s1902 = scalar_lea.vmem [#allocation0], 256
    %v1903 = vld [vmem:[%s1902] ss:$8 sm:$0x7]
    %s1904 = scalar_lea.vmem [#allocation0], 233
    %v1905 = vld [vmem:[%s1904] ss:$8 sm:$0x78]
    %vm1906 = vcmask 1046531
    %v1907 = vsel %vm1906, %v1905, %v1903
    %s1908 = scalar_lea.vmem [#allocation0], 273
    %v1909 = vld [vmem:[%s1908] sm:$0x80]
    %vm1910 = vcmask 1047559
    %v1911 = vsel %vm1910, %v1909, %v1907
    %1912 = vrot.lane.b32.xlu0 %v1911, 48
    %v1913 = vpop.permute.xlu0 %1912
    %vm1914 = vcmask 130048
    %s1915 = scalar_lea.vmem %s1, 261
    %1916 = vst.msk [vmem:[%s1915] ss:$8 sm:$0x7] %vm1914, %v1913
    %s1917 = scalar_lea.vmem %s1, 741
    %1918 = vst.msk [vmem:[%s1917] ss:$8 sm:$0x78] %vm1914, %v1913
    %s1919 = scalar_lea.vmem %s1, 278
    %1920 = vst.msk [vmem:[%s1919] sm:$0x80] %vm1914, %v1913
    %s1921 = scalar_lea.vmem [#allocation0], 288
    %v1922 = vld [vmem:[%s1921] ss:$8 sm:$0x7]
    %s1923 = scalar_lea.vmem [#allocation0], 265
    %v1924 = vld [vmem:[%s1923] ss:$8 sm:$0x78]
    %vm1925 = vcmask 1046531
    %v1926 = vsel %vm1925, %v1924, %v1922
    %s1927 = scalar_lea.vmem [#allocation0], 305
    %v1928 = vld [vmem:[%s1927] sm:$0x80]
    %vm1929 = vcmask 1047559
    %v1930 = vsel %vm1929, %v1928, %v1926
    %1931 = vrot.lane.b32.xlu0 %v1930, 48
    %v1932 = vpop.permute.xlu0 %1931
    %vm1933 = vcmask 130048
    %s1934 = scalar_lea.vmem %s1, 293
    %1935 = vst.msk [vmem:[%s1934] ss:$8 sm:$0x7] %vm1933, %v1932
    %s1936 = scalar_lea.vmem %s1, 773
    %1937 = vst.msk [vmem:[%s1936] ss:$8 sm:$0x78] %vm1933, %v1932
    %s1938 = scalar_lea.vmem %s1, 310
    %1939 = vst.msk [vmem:[%s1938] sm:$0x80] %vm1933, %v1932
    %s1940 = scalar_lea.vmem [#allocation0], 320
    %v1941 = vld [vmem:[%s1940] ss:$8 sm:$0x7]
    %s1942 = scalar_lea.vmem [#allocation0], 297
    %v1943 = vld [vmem:[%s1942] ss:$8 sm:$0x78]
    %vm1944 = vcmask 1046531
    %v1945 = vsel %vm1944, %v1943, %v1941
    %s1946 = scalar_lea.vmem [#allocation0], 337
    %v1947 = vld [vmem:[%s1946] sm:$0x80]
    %vm1948 = vcmask 1047559
    %v1949 = vsel %vm1948, %v1947, %v1945
    %1950 = vrot.lane.b32.xlu0 %v1949, 48
    %v1951 = vpop.permute.xlu0 %1950
    %vm1952 = vcmask 130048
    %s1953 = scalar_lea.vmem %s1, 325
    %1954 = vst.msk [vmem:[%s1953] ss:$8 sm:$0x7] %vm1952, %v1951
    %s1955 = scalar_lea.vmem %s1, 805
    %1956 = vst.msk [vmem:[%s1955] ss:$8 sm:$0x78] %vm1952, %v1951
    %s1957 = scalar_lea.vmem %s1, 342
    %1958 = vst.msk [vmem:[%s1957] sm:$0x80] %vm1952, %v1951
    %s1959 = scalar_lea.vmem [#allocation0], 352
    %v1960 = vld [vmem:[%s1959] ss:$8 sm:$0x7]
    %s1961 = scalar_lea.vmem [#allocation0], 329
    %v1962 = vld [vmem:[%s1961] ss:$8 sm:$0x78]
    %vm1963 = vcmask 1046531
    %v1964 = vsel %vm1963, %v1962, %v1960
    %s1965 = scalar_lea.vmem [#allocation0], 369
    %v1966 = vld [vmem:[%s1965] sm:$0x80]
    %vm1967 = vcmask 1047559
    %v1968 = vsel %vm1967, %v1966, %v1964
    %1969 = vrot.lane.b32.xlu0 %v1968, 48
    %v1970 = vpop.permute.xlu0 %1969
    %vm1971 = vcmask 130048
    %s1972 = scalar_lea.vmem %s1, 357
    %1973 = vst.msk [vmem:[%s1972] ss:$8 sm:$0x7] %vm1971, %v1970
    %s1974 = scalar_lea.vmem %s1, 837
    %1975 = vst.msk [vmem:[%s1974] ss:$8 sm:$0x78] %vm1971, %v1970
    %s1976 = scalar_lea.vmem %s1, 374
    %1977 = vst.msk [vmem:[%s1976] sm:$0x80] %vm1971, %v1970
    %s1978 = scalar_lea.vmem [#allocation0], 384
    %v1979 = vld [vmem:[%s1978] ss:$8 sm:$0x7]
    %s1980 = scalar_lea.vmem [#allocation0], 361
    %v1981 = vld [vmem:[%s1980] ss:$8 sm:$0x78]
    %vm1982 = vcmask 1046531
    %v1983 = vsel %vm1982, %v1981, %v1979
    %s1984 = scalar_lea.vmem [#allocation0], 401
    %v1985 = vld [vmem:[%s1984] sm:$0x80]
    %vm1986 = vcmask 1047559
    %v1987 = vsel %vm1986, %v1985, %v1983
    %1988 = vrot.lane.b32.xlu0 %v1987, 48
    %v1989 = vpop.permute.xlu0 %1988
    %vm1990 = vcmask 130048
    %s1991 = scalar_lea.vmem %s1, 389
    %1992 = vst.msk [vmem:[%s1991] ss:$8 sm:$0x7] %vm1990, %v1989
    %s1993 = scalar_lea.vmem %s1, 869
    %1994 = vst.msk [vmem:[%s1993] ss:$8 sm:$0x78] %vm1990, %v1989
    %s1995 = scalar_lea.vmem %s1, 406
    %1996 = vst.msk [vmem:[%s1995] sm:$0x80] %vm1990, %v1989
    %s1997 = scalar_lea.vmem [#allocation0], 416
    %v1998 = vld [vmem:[%s1997] ss:$8 sm:$0x7]
    %s1999 = scalar_lea.vmem [#allocation0], 393
    %v2000 = vld [vmem:[%s1999] ss:$8 sm:$0x78]
    %vm2001 = vcmask 1046531
    %v2002 = vsel %vm2001, %v2000, %v1998
    %s2003 = scalar_lea.vmem [#allocation0], 433
    %v2004 = vld [vmem:[%s2003] sm:$0x80]
    %vm2005 = vcmask 1047559
    %v2006 = vsel %vm2005, %v2004, %v2002
    %2007 = vrot.lane.b32.xlu0 %v2006, 48
    %v2008 = vpop.permute.xlu0 %2007
    %vm2009 = vcmask 130048
    %s2010 = scalar_lea.vmem %s1, 421
    %2011 = vst.msk [vmem:[%s2010] ss:$8 sm:$0x7] %vm2009, %v2008
    %s2012 = scalar_lea.vmem %s1, 901
    %2013 = vst.msk [vmem:[%s2012] ss:$8 sm:$0x78] %vm2009, %v2008
    %s2014 = scalar_lea.vmem %s1, 438
    %2015 = vst.msk [vmem:[%s2014] sm:$0x80] %vm2009, %v2008
    %s2016 = scalar_lea.vmem [#allocation0], 448
    %v2017 = vld [vmem:[%s2016] ss:$8 sm:$0x7]
    %s2018 = scalar_lea.vmem [#allocation0], 425
    %v2019 = vld [vmem:[%s2018] ss:$8 sm:$0x78]
    %vm2020 = vcmask 1046531
    %v2021 = vsel %vm2020, %v2019, %v2017
    %s2022 = scalar_lea.vmem [#allocation0], 465
    %v2023 = vld [vmem:[%s2022] sm:$0x80]
    %vm2024 = vcmask 1047559
    %v2025 = vsel %vm2024, %v2023, %v2021
    %2026 = vrot.lane.b32.xlu0 %v2025, 48
    %v2027 = vpop.permute.xlu0 %2026
    %vm2028 = vcmask 130048
    %s2029 = scalar_lea.vmem %s1, 453
    %2030 = vst.msk [vmem:[%s2029] ss:$8 sm:$0x7] %vm2028, %v2027
    %s2031 = scalar_lea.vmem %s1, 933
    %2032 = vst.msk [vmem:[%s2031] ss:$8 sm:$0x78] %vm2028, %v2027
    %s2033 = scalar_lea.vmem %s1, 470
    %2034 = vst.msk [vmem:[%s2033] sm:$0x80] %vm2028, %v2027
    %s2035 = scalar_lea.vmem [#allocation0], 480
    %v2036 = vld.sshfl [vmem:[%s2035] sm:$0xff pattern:$0x99999180]
    %2037 = vrot.lane.b32.xlu0 %v2036, 48
    %v2038 = vpop.permute.xlu0 %2037
    %vm2039 = vcmask 130048
    %s2040 = scalar_lea.vmem %s1, 485
    %2041 = vst.msk [vmem:[%s2040] ss:$8 sm:$0x3] %vm2039, %v2038
    %s2042 = scalar_lea.vmem %s1, 973
    %2043 = vst.msk [vmem:[%s2042] ss:$8 sm:$0xc] %vm2039, %v2038
    %v2044 = vld [vmem:[#allocation0] ss:$8 sm:$0x7]
    %s2045 = scalar_lea.vmem [#allocation0], 4294967273
    %v2046 = vld [vmem:[%s2045] ss:$8 sm:$0x78]
    %vm2047 = vcmask 1046531
    %v2048 = vsel %vm2047, %v2046, %v2044
    %s2049 = scalar_lea.vmem [#allocation0], 17
    %v2050 = vld [vmem:[%s2049] sm:$0x80]
    %vm2051 = vcmask 1047559
    %v2052 = vsel %vm2051, %v2050, %v2048
    %2053 = vrot.lane.b32.xlu0 %v2052, 32
    %v2054 = vpop.permute.xlu0 %2053
    %vm2055 = vcmask 130048
    %s2056 = scalar_lea.vmem %s1, 6
    %2057 = vst.msk [vmem:[%s2056] ss:$8 sm:$0x7] %vm2055, %v2054
    %s2058 = scalar_lea.vmem %s1, 486
    %2059 = vst.msk [vmem:[%s2058] ss:$8 sm:$0x78] %vm2055, %v2054
    %s2060 = scalar_lea.vmem %s1, 23
    %2061 = vst.msk [vmem:[%s2060] sm:$0x80] %vm2055, %v2054
    %s2062 = scalar_lea.vmem [#allocation0], 32
    %v2063 = vld [vmem:[%s2062] ss:$8 sm:$0x7]
    %s2064 = scalar_lea.vmem [#allocation0], 9
    %v2065 = vld [vmem:[%s2064] ss:$8 sm:$0x78]
    %vm2066 = vcmask 1046531
    %v2067 = vsel %vm2066, %v2065, %v2063
    %s2068 = scalar_lea.vmem [#allocation0], 49
    %v2069 = vld [vmem:[%s2068] sm:$0x80]
    %vm2070 = vcmask 1047559
    %v2071 = vsel %vm2070, %v2069, %v2067
    %2072 = vrot.lane.b32.xlu0 %v2071, 32
    %v2073 = vpop.permute.xlu0 %2072
    %vm2074 = vcmask 130048
    %s2075 = scalar_lea.vmem %s1, 38
    %2076 = vst.msk [vmem:[%s2075] ss:$8 sm:$0x7] %vm2074, %v2073
    %s2077 = scalar_lea.vmem %s1, 518
    %2078 = vst.msk [vmem:[%s2077] ss:$8 sm:$0x78] %vm2074, %v2073
    %s2079 = scalar_lea.vmem %s1, 55
    %2080 = vst.msk [vmem:[%s2079] sm:$0x80] %vm2074, %v2073
    %s2081 = scalar_lea.vmem [#allocation0], 64
    %v2082 = vld [vmem:[%s2081] ss:$8 sm:$0x7]
    %s2083 = scalar_lea.vmem [#allocation0], 41
    %v2084 = vld [vmem:[%s2083] ss:$8 sm:$0x78]
    %vm2085 = vcmask 1046531
    %v2086 = vsel %vm2085, %v2084, %v2082
    %s2087 = scalar_lea.vmem [#allocation0], 81
    %v2088 = vld [vmem:[%s2087] sm:$0x80]
    %vm2089 = vcmask 1047559
    %v2090 = vsel %vm2089, %v2088, %v2086
    %2091 = vrot.lane.b32.xlu0 %v2090, 32
    %v2092 = vpop.permute.xlu0 %2091
    %vm2093 = vcmask 130048
    %s2094 = scalar_lea.vmem %s1, 70
    %2095 = vst.msk [vmem:[%s2094] ss:$8 sm:$0x7] %vm2093, %v2092
    %s2096 = scalar_lea.vmem %s1, 550
    %2097 = vst.msk [vmem:[%s2096] ss:$8 sm:$0x78] %vm2093, %v2092
    %s2098 = scalar_lea.vmem %s1, 87
    %2099 = vst.msk [vmem:[%s2098] sm:$0x80] %vm2093, %v2092
    %s2100 = scalar_lea.vmem [#allocation0], 96
    %v2101 = vld [vmem:[%s2100] ss:$8 sm:$0x7]
    %s2102 = scalar_lea.vmem [#allocation0], 73
    %v2103 = vld [vmem:[%s2102] ss:$8 sm:$0x78]
    %vm2104 = vcmask 1046531
    %v2105 = vsel %vm2104, %v2103, %v2101
    %s2106 = scalar_lea.vmem [#allocation0], 113
    %v2107 = vld [vmem:[%s2106] sm:$0x80]
    %vm2108 = vcmask 1047559
    %v2109 = vsel %vm2108, %v2107, %v2105
    %2110 = vrot.lane.b32.xlu0 %v2109, 32
    %v2111 = vpop.permute.xlu0 %2110
    %vm2112 = vcmask 130048
    %s2113 = scalar_lea.vmem %s1, 102
    %2114 = vst.msk [vmem:[%s2113] ss:$8 sm:$0x7] %vm2112, %v2111
    %s2115 = scalar_lea.vmem %s1, 582
    %2116 = vst.msk [vmem:[%s2115] ss:$8 sm:$0x78] %vm2112, %v2111
    %s2117 = scalar_lea.vmem %s1, 119
    %2118 = vst.msk [vmem:[%s2117] sm:$0x80] %vm2112, %v2111
    %s2119 = scalar_lea.vmem [#allocation0], 128
    %v2120 = vld [vmem:[%s2119] ss:$8 sm:$0x7]
    %s2121 = scalar_lea.vmem [#allocation0], 105
    %v2122 = vld [vmem:[%s2121] ss:$8 sm:$0x78]
    %vm2123 = vcmask 1046531
    %v2124 = vsel %vm2123, %v2122, %v2120
    %s2125 = scalar_lea.vmem [#allocation0], 145
    %v2126 = vld [vmem:[%s2125] sm:$0x80]
    %vm2127 = vcmask 1047559
    %v2128 = vsel %vm2127, %v2126, %v2124
    %2129 = vrot.lane.b32.xlu0 %v2128, 32
    %v2130 = vpop.permute.xlu0 %2129
    %vm2131 = vcmask 130048
    %s2132 = scalar_lea.vmem %s1, 134
    %2133 = vst.msk [vmem:[%s2132] ss:$8 sm:$0x7] %vm2131, %v2130
    %s2134 = scalar_lea.vmem %s1, 614
    %2135 = vst.msk [vmem:[%s2134] ss:$8 sm:$0x78] %vm2131, %v2130
    %s2136 = scalar_lea.vmem %s1, 151
    %2137 = vst.msk [vmem:[%s2136] sm:$0x80] %vm2131, %v2130
    %s2138 = scalar_lea.vmem [#allocation0], 160
    %v2139 = vld [vmem:[%s2138] ss:$8 sm:$0x7]
    %s2140 = scalar_lea.vmem [#allocation0], 137
    %v2141 = vld [vmem:[%s2140] ss:$8 sm:$0x78]
    %vm2142 = vcmask 1046531
    %v2143 = vsel %vm2142, %v2141, %v2139
    %s2144 = scalar_lea.vmem [#allocation0], 177
    %v2145 = vld [vmem:[%s2144] sm:$0x80]
    %vm2146 = vcmask 1047559
    %v2147 = vsel %vm2146, %v2145, %v2143
    %2148 = vrot.lane.b32.xlu0 %v2147, 32
    %v2149 = vpop.permute.xlu0 %2148
    %vm2150 = vcmask 130048
    %s2151 = scalar_lea.vmem %s1, 166
    %2152 = vst.msk [vmem:[%s2151] ss:$8 sm:$0x7] %vm2150, %v2149
    %s2153 = scalar_lea.vmem %s1, 646
    %2154 = vst.msk [vmem:[%s2153] ss:$8 sm:$0x78] %vm2150, %v2149
    %s2155 = scalar_lea.vmem %s1, 183
    %2156 = vst.msk [vmem:[%s2155] sm:$0x80] %vm2150, %v2149
    %s2157 = scalar_lea.vmem [#allocation0], 192
    %v2158 = vld [vmem:[%s2157] ss:$8 sm:$0x7]
    %s2159 = scalar_lea.vmem [#allocation0], 169
    %v2160 = vld [vmem:[%s2159] ss:$8 sm:$0x78]
    %vm2161 = vcmask 1046531
    %v2162 = vsel %vm2161, %v2160, %v2158
    %s2163 = scalar_lea.vmem [#allocation0], 209
    %v2164 = vld [vmem:[%s2163] sm:$0x80]
    %vm2165 = vcmask 1047559
    %v2166 = vsel %vm2165, %v2164, %v2162
    %2167 = vrot.lane.b32.xlu0 %v2166, 32
    %v2168 = vpop.permute.xlu0 %2167
    %vm2169 = vcmask 130048
    %s2170 = scalar_lea.vmem %s1, 198
    %2171 = vst.msk [vmem:[%s2170] ss:$8 sm:$0x7] %vm2169, %v2168
    %s2172 = scalar_lea.vmem %s1, 678
    %2173 = vst.msk [vmem:[%s2172] ss:$8 sm:$0x78] %vm2169, %v2168
    %s2174 = scalar_lea.vmem %s1, 215
    %2175 = vst.msk [vmem:[%s2174] sm:$0x80] %vm2169, %v2168
    %s2176 = scalar_lea.vmem [#allocation0], 224
    %v2177 = vld [vmem:[%s2176] ss:$8 sm:$0x7]
    %s2178 = scalar_lea.vmem [#allocation0], 201
    %v2179 = vld [vmem:[%s2178] ss:$8 sm:$0x78]
    %vm2180 = vcmask 1046531
    %v2181 = vsel %vm2180, %v2179, %v2177
    %s2182 = scalar_lea.vmem [#allocation0], 241
    %v2183 = vld [vmem:[%s2182] sm:$0x80]
    %vm2184 = vcmask 1047559
    %v2185 = vsel %vm2184, %v2183, %v2181
    %2186 = vrot.lane.b32.xlu0 %v2185, 32
    %v2187 = vpop.permute.xlu0 %2186
    %vm2188 = vcmask 130048
    %s2189 = scalar_lea.vmem %s1, 230
    %2190 = vst.msk [vmem:[%s2189] ss:$8 sm:$0x7] %vm2188, %v2187
    %s2191 = scalar_lea.vmem %s1, 710
    %2192 = vst.msk [vmem:[%s2191] ss:$8 sm:$0x78] %vm2188, %v2187
    %s2193 = scalar_lea.vmem %s1, 247
    %2194 = vst.msk [vmem:[%s2193] sm:$0x80] %vm2188, %v2187
    %s2195 = scalar_lea.vmem [#allocation0], 256
    %v2196 = vld [vmem:[%s2195] ss:$8 sm:$0x7]
    %s2197 = scalar_lea.vmem [#allocation0], 233
    %v2198 = vld [vmem:[%s2197] ss:$8 sm:$0x78]
    %vm2199 = vcmask 1046531
    %v2200 = vsel %vm2199, %v2198, %v2196
    %s2201 = scalar_lea.vmem [#allocation0], 273
    %v2202 = vld [vmem:[%s2201] sm:$0x80]
    %vm2203 = vcmask 1047559
    %v2204 = vsel %vm2203, %v2202, %v2200
    %2205 = vrot.lane.b32.xlu0 %v2204, 32
    %v2206 = vpop.permute.xlu0 %2205
    %vm2207 = vcmask 130048
    %s2208 = scalar_lea.vmem %s1, 262
    %2209 = vst.msk [vmem:[%s2208] ss:$8 sm:$0x7] %vm2207, %v2206
    %s2210 = scalar_lea.vmem %s1, 742
    %2211 = vst.msk [vmem:[%s2210] ss:$8 sm:$0x78] %vm2207, %v2206
    %s2212 = scalar_lea.vmem %s1, 279
    %2213 = vst.msk [vmem:[%s2212] sm:$0x80] %vm2207, %v2206
    %s2214 = scalar_lea.vmem [#allocation0], 288
    %v2215 = vld [vmem:[%s2214] ss:$8 sm:$0x7]
    %s2216 = scalar_lea.vmem [#allocation0], 265
    %v2217 = vld [vmem:[%s2216] ss:$8 sm:$0x78]
    %vm2218 = vcmask 1046531
    %v2219 = vsel %vm2218, %v2217, %v2215
    %s2220 = scalar_lea.vmem [#allocation0], 305
    %v2221 = vld [vmem:[%s2220] sm:$0x80]
    %vm2222 = vcmask 1047559
    %v2223 = vsel %vm2222, %v2221, %v2219
    %2224 = vrot.lane.b32.xlu0 %v2223, 32
    %v2225 = vpop.permute.xlu0 %2224
    %vm2226 = vcmask 130048
    %s2227 = scalar_lea.vmem %s1, 294
    %2228 = vst.msk [vmem:[%s2227] ss:$8 sm:$0x7] %vm2226, %v2225
    %s2229 = scalar_lea.vmem %s1, 774
    %2230 = vst.msk [vmem:[%s2229] ss:$8 sm:$0x78] %vm2226, %v2225
    %s2231 = scalar_lea.vmem %s1, 311
    %2232 = vst.msk [vmem:[%s2231] sm:$0x80] %vm2226, %v2225
    %s2233 = scalar_lea.vmem [#allocation0], 320
    %v2234 = vld [vmem:[%s2233] ss:$8 sm:$0x7]
    %s2235 = scalar_lea.vmem [#allocation0], 297
    %v2236 = vld [vmem:[%s2235] ss:$8 sm:$0x78]
    %vm2237 = vcmask 1046531
    %v2238 = vsel %vm2237, %v2236, %v2234
    %s2239 = scalar_lea.vmem [#allocation0], 337
    %v2240 = vld [vmem:[%s2239] sm:$0x80]
    %vm2241 = vcmask 1047559
    %v2242 = vsel %vm2241, %v2240, %v2238
    %2243 = vrot.lane.b32.xlu0 %v2242, 32
    %v2244 = vpop.permute.xlu0 %2243
    %vm2245 = vcmask 130048
    %s2246 = scalar_lea.vmem %s1, 326
    %2247 = vst.msk [vmem:[%s2246] ss:$8 sm:$0x7] %vm2245, %v2244
    %s2248 = scalar_lea.vmem %s1, 806
    %2249 = vst.msk [vmem:[%s2248] ss:$8 sm:$0x78] %vm2245, %v2244
    %s2250 = scalar_lea.vmem %s1, 343
    %2251 = vst.msk [vmem:[%s2250] sm:$0x80] %vm2245, %v2244
    %s2252 = scalar_lea.vmem [#allocation0], 352
    %v2253 = vld [vmem:[%s2252] ss:$8 sm:$0x7]
    %s2254 = scalar_lea.vmem [#allocation0], 329
    %v2255 = vld [vmem:[%s2254] ss:$8 sm:$0x78]
    %vm2256 = vcmask 1046531
    %v2257 = vsel %vm2256, %v2255, %v2253
    %s2258 = scalar_lea.vmem [#allocation0], 369
    %v2259 = vld [vmem:[%s2258] sm:$0x80]
    %vm2260 = vcmask 1047559
    %v2261 = vsel %vm2260, %v2259, %v2257
    %2262 = vrot.lane.b32.xlu0 %v2261, 32
    %v2263 = vpop.permute.xlu0 %2262
    %vm2264 = vcmask 130048
    %s2265 = scalar_lea.vmem %s1, 358
    %2266 = vst.msk [vmem:[%s2265] ss:$8 sm:$0x7] %vm2264, %v2263
    %s2267 = scalar_lea.vmem %s1, 838
    %2268 = vst.msk [vmem:[%s2267] ss:$8 sm:$0x78] %vm2264, %v2263
    %s2269 = scalar_lea.vmem %s1, 375
    %2270 = vst.msk [vmem:[%s2269] sm:$0x80] %vm2264, %v2263
    %s2271 = scalar_lea.vmem [#allocation0], 384
    %v2272 = vld [vmem:[%s2271] ss:$8 sm:$0x7]
    %s2273 = scalar_lea.vmem [#allocation0], 361
    %v2274 = vld [vmem:[%s2273] ss:$8 sm:$0x78]
    %vm2275 = vcmask 1046531
    %v2276 = vsel %vm2275, %v2274, %v2272
    %s2277 = scalar_lea.vmem [#allocation0], 401
    %v2278 = vld [vmem:[%s2277] sm:$0x80]
    %vm2279 = vcmask 1047559
    %v2280 = vsel %vm2279, %v2278, %v2276
    %2281 = vrot.lane.b32.xlu0 %v2280, 32
    %v2282 = vpop.permute.xlu0 %2281
    %vm2283 = vcmask 130048
    %s2284 = scalar_lea.vmem %s1, 390
    %2285 = vst.msk [vmem:[%s2284] ss:$8 sm:$0x7] %vm2283, %v2282
    %s2286 = scalar_lea.vmem %s1, 870
    %2287 = vst.msk [vmem:[%s2286] ss:$8 sm:$0x78] %vm2283, %v2282
    %s2288 = scalar_lea.vmem %s1, 407
    %2289 = vst.msk [vmem:[%s2288] sm:$0x80] %vm2283, %v2282
    %s2290 = scalar_lea.vmem [#allocation0], 416
    %v2291 = vld [vmem:[%s2290] ss:$8 sm:$0x7]
    %s2292 = scalar_lea.vmem [#allocation0], 393
    %v2293 = vld [vmem:[%s2292] ss:$8 sm:$0x78]
    %vm2294 = vcmask 1046531
    %v2295 = vsel %vm2294, %v2293, %v2291
    %s2296 = scalar_lea.vmem [#allocation0], 433
    %v2297 = vld [vmem:[%s2296] sm:$0x80]
    %vm2298 = vcmask 1047559
    %v2299 = vsel %vm2298, %v2297, %v2295
    %2300 = vrot.lane.b32.xlu0 %v2299, 32
    %v2301 = vpop.permute.xlu0 %2300
    %vm2302 = vcmask 130048
    %s2303 = scalar_lea.vmem %s1, 422
    %2304 = vst.msk [vmem:[%s2303] ss:$8 sm:$0x7] %vm2302, %v2301
    %s2305 = scalar_lea.vmem %s1, 902
    %2306 = vst.msk [vmem:[%s2305] ss:$8 sm:$0x78] %vm2302, %v2301
    %s2307 = scalar_lea.vmem %s1, 439
    %2308 = vst.msk [vmem:[%s2307] sm:$0x80] %vm2302, %v2301
    %s2309 = scalar_lea.vmem [#allocation0], 448
    %v2310 = vld [vmem:[%s2309] ss:$8 sm:$0x7]
    %s2311 = scalar_lea.vmem [#allocation0], 425
    %v2312 = vld [vmem:[%s2311] ss:$8 sm:$0x78]
    %vm2313 = vcmask 1046531
    %v2314 = vsel %vm2313, %v2312, %v2310
    %s2315 = scalar_lea.vmem [#allocation0], 465
    %v2316 = vld [vmem:[%s2315] sm:$0x80]
    %vm2317 = vcmask 1047559
    %v2318 = vsel %vm2317, %v2316, %v2314
    %2319 = vrot.lane.b32.xlu0 %v2318, 32
    %v2320 = vpop.permute.xlu0 %2319
    %vm2321 = vcmask 130048
    %s2322 = scalar_lea.vmem %s1, 454
    %2323 = vst.msk [vmem:[%s2322] ss:$8 sm:$0x7] %vm2321, %v2320
    %s2324 = scalar_lea.vmem %s1, 934
    %2325 = vst.msk [vmem:[%s2324] ss:$8 sm:$0x78] %vm2321, %v2320
    %s2326 = scalar_lea.vmem %s1, 471
    %2327 = vst.msk [vmem:[%s2326] sm:$0x80] %vm2321, %v2320
    %s2328 = scalar_lea.vmem [#allocation0], 480
    %v2329 = vld.sshfl [vmem:[%s2328] sm:$0xff pattern:$0x99999180]
    %2330 = vrot.lane.b32.xlu0 %v2329, 32
    %v2331 = vpop.permute.xlu0 %2330
    %vm2332 = vcmask 130048
    %s2333 = scalar_lea.vmem %s1, 486
    %2334 = vst.msk [vmem:[%s2333] ss:$8 sm:$0x3] %vm2332, %v2331
    %s2335 = scalar_lea.vmem %s1, 974
    %2336 = vst.msk [vmem:[%s2335] ss:$8 sm:$0xc] %vm2332, %v2331
    %v2337 = vld [vmem:[#allocation0] ss:$8 sm:$0x7]
    %s2338 = scalar_lea.vmem [#allocation0], 4294967273
    %v2339 = vld [vmem:[%s2338] ss:$8 sm:$0x78]
    %vm2340 = vcmask 1046531
    %v2341 = vsel %vm2340, %v2339, %v2337
    %s2342 = scalar_lea.vmem [#allocation0], 17
    %v2343 = vld [vmem:[%s2342] sm:$0x80]
    %vm2344 = vcmask 1047559
    %v2345 = vsel %vm2344, %v2343, %v2341
    %2346 = vrot.lane.b32.xlu0 %v2345, 16
    %v2347 = vpop.permute.xlu0 %2346
    %vm2348 = vcmask 130048
    %s2349 = scalar_lea.vmem %s1, 7
    %2350 = vst.msk [vmem:[%s2349] ss:$8 sm:$0x7] %vm2348, %v2347
    %s2351 = scalar_lea.vmem %s1, 487
    %2352 = vst.msk [vmem:[%s2351] ss:$8 sm:$0x78] %vm2348, %v2347
    %s2353 = scalar_lea.vmem %s1, 24
    %2354 = vst.msk [vmem:[%s2353] sm:$0x80] %vm2348, %v2347
    %s2355 = scalar_lea.vmem [#allocation0], 32
    %v2356 = vld [vmem:[%s2355] ss:$8 sm:$0x7]
    %s2357 = scalar_lea.vmem [#allocation0], 9
    %v2358 = vld [vmem:[%s2357] ss:$8 sm:$0x78]
    %vm2359 = vcmask 1046531
    %v2360 = vsel %vm2359, %v2358, %v2356
    %s2361 = scalar_lea.vmem [#allocation0], 49
    %v2362 = vld [vmem:[%s2361] sm:$0x80]
    %vm2363 = vcmask 1047559
    %v2364 = vsel %vm2363, %v2362, %v2360
    %2365 = vrot.lane.b32.xlu0 %v2364, 16
    %v2366 = vpop.permute.xlu0 %2365
    %vm2367 = vcmask 130048
    %s2368 = scalar_lea.vmem %s1, 39
    %2369 = vst.msk [vmem:[%s2368] ss:$8 sm:$0x7] %vm2367, %v2366
    %s2370 = scalar_lea.vmem %s1, 519
    %2371 = vst.msk [vmem:[%s2370] ss:$8 sm:$0x78] %vm2367, %v2366
    %s2372 = scalar_lea.vmem %s1, 56
    %2373 = vst.msk [vmem:[%s2372] sm:$0x80] %vm2367, %v2366
    %s2374 = scalar_lea.vmem [#allocation0], 64
    %v2375 = vld [vmem:[%s2374] ss:$8 sm:$0x7]
    %s2376 = scalar_lea.vmem [#allocation0], 41
    %v2377 = vld [vmem:[%s2376] ss:$8 sm:$0x78]
    %vm2378 = vcmask 1046531
    %v2379 = vsel %vm2378, %v2377, %v2375
    %s2380 = scalar_lea.vmem [#allocation0], 81
    %v2381 = vld [vmem:[%s2380] sm:$0x80]
    %vm2382 = vcmask 1047559
    %v2383 = vsel %vm2382, %v2381, %v2379
    %2384 = vrot.lane.b32.xlu0 %v2383, 16
    %v2385 = vpop.permute.xlu0 %2384
    %vm2386 = vcmask 130048
    %s2387 = scalar_lea.vmem %s1, 71
    %2388 = vst.msk [vmem:[%s2387] ss:$8 sm:$0x7] %vm2386, %v2385
    %s2389 = scalar_lea.vmem %s1, 551
    %2390 = vst.msk [vmem:[%s2389] ss:$8 sm:$0x78] %vm2386, %v2385
    %s2391 = scalar_lea.vmem %s1, 88
    %2392 = vst.msk [vmem:[%s2391] sm:$0x80] %vm2386, %v2385
    %s2393 = scalar_lea.vmem [#allocation0], 96
    %v2394 = vld [vmem:[%s2393] ss:$8 sm:$0x7]
    %s2395 = scalar_lea.vmem [#allocation0], 73
    %v2396 = vld [vmem:[%s2395] ss:$8 sm:$0x78]
    %vm2397 = vcmask 1046531
    %v2398 = vsel %vm2397, %v2396, %v2394
    %s2399 = scalar_lea.vmem [#allocation0], 113
    %v2400 = vld [vmem:[%s2399] sm:$0x80]
    %vm2401 = vcmask 1047559
    %v2402 = vsel %vm2401, %v2400, %v2398
    %2403 = vrot.lane.b32.xlu0 %v2402, 16
    %v2404 = vpop.permute.xlu0 %2403
    %vm2405 = vcmask 130048
    %s2406 = scalar_lea.vmem %s1, 103
    %2407 = vst.msk [vmem:[%s2406] ss:$8 sm:$0x7] %vm2405, %v2404
    %s2408 = scalar_lea.vmem %s1, 583
    %2409 = vst.msk [vmem:[%s2408] ss:$8 sm:$0x78] %vm2405, %v2404
    %s2410 = scalar_lea.vmem %s1, 120
    %2411 = vst.msk [vmem:[%s2410] sm:$0x80] %vm2405, %v2404
    %s2412 = scalar_lea.vmem [#allocation0], 128
    %v2413 = vld [vmem:[%s2412] ss:$8 sm:$0x7]
    %s2414 = scalar_lea.vmem [#allocation0], 105
    %v2415 = vld [vmem:[%s2414] ss:$8 sm:$0x78]
    %vm2416 = vcmask 1046531
    %v2417 = vsel %vm2416, %v2415, %v2413
    %s2418 = scalar_lea.vmem [#allocation0], 145
    %v2419 = vld [vmem:[%s2418] sm:$0x80]
    %vm2420 = vcmask 1047559
    %v2421 = vsel %vm2420, %v2419, %v2417
    %2422 = vrot.lane.b32.xlu0 %v2421, 16
    %v2423 = vpop.permute.xlu0 %2422
    %vm2424 = vcmask 130048
    %s2425 = scalar_lea.vmem %s1, 135
    %2426 = vst.msk [vmem:[%s2425] ss:$8 sm:$0x7] %vm2424, %v2423
    %s2427 = scalar_lea.vmem %s1, 615
    %2428 = vst.msk [vmem:[%s2427] ss:$8 sm:$0x78] %vm2424, %v2423
    %s2429 = scalar_lea.vmem %s1, 152
    %2430 = vst.msk [vmem:[%s2429] sm:$0x80] %vm2424, %v2423
    %s2431 = scalar_lea.vmem [#allocation0], 160
    %v2432 = vld [vmem:[%s2431] ss:$8 sm:$0x7]
    %s2433 = scalar_lea.vmem [#allocation0], 137
    %v2434 = vld [vmem:[%s2433] ss:$8 sm:$0x78]
    %vm2435 = vcmask 1046531
    %v2436 = vsel %vm2435, %v2434, %v2432
    %s2437 = scalar_lea.vmem [#allocation0], 177
    %v2438 = vld [vmem:[%s2437] sm:$0x80]
    %vm2439 = vcmask 1047559
    %v2440 = vsel %vm2439, %v2438, %v2436
    %2441 = vrot.lane.b32.xlu0 %v2440, 16
    %v2442 = vpop.permute.xlu0 %2441
    %vm2443 = vcmask 130048
    %s2444 = scalar_lea.vmem %s1, 167
    %2445 = vst.msk [vmem:[%s2444] ss:$8 sm:$0x7] %vm2443, %v2442
    %s2446 = scalar_lea.vmem %s1, 647
    %2447 = vst.msk [vmem:[%s2446] ss:$8 sm:$0x78] %vm2443, %v2442
    %s2448 = scalar_lea.vmem %s1, 184
    %2449 = vst.msk [vmem:[%s2448] sm:$0x80] %vm2443, %v2442
    %s2450 = scalar_lea.vmem [#allocation0], 192
    %v2451 = vld [vmem:[%s2450] ss:$8 sm:$0x7]
    %s2452 = scalar_lea.vmem [#allocation0], 169
    %v2453 = vld [vmem:[%s2452] ss:$8 sm:$0x78]
    %vm2454 = vcmask 1046531
    %v2455 = vsel %vm2454, %v2453, %v2451
    %s2456 = scalar_lea.vmem [#allocation0], 209
    %v2457 = vld [vmem:[%s2456] sm:$0x80]
    %vm2458 = vcmask 1047559
    %v2459 = vsel %vm2458, %v2457, %v2455
    %2460 = vrot.lane.b32.xlu0 %v2459, 16
    %v2461 = vpop.permute.xlu0 %2460
    %vm2462 = vcmask 130048
    %s2463 = scalar_lea.vmem %s1, 199
    %2464 = vst.msk [vmem:[%s2463] ss:$8 sm:$0x7] %vm2462, %v2461
    %s2465 = scalar_lea.vmem %s1, 679
    %2466 = vst.msk [vmem:[%s2465] ss:$8 sm:$0x78] %vm2462, %v2461
    %s2467 = scalar_lea.vmem %s1, 216
    %2468 = vst.msk [vmem:[%s2467] sm:$0x80] %vm2462, %v2461
    %s2469 = scalar_lea.vmem [#allocation0], 224
    %v2470 = vld [vmem:[%s2469] ss:$8 sm:$0x7]
    %s2471 = scalar_lea.vmem [#allocation0], 201
    %v2472 = vld [vmem:[%s2471] ss:$8 sm:$0x78]
    %vm2473 = vcmask 1046531
    %v2474 = vsel %vm2473, %v2472, %v2470
    %s2475 = scalar_lea.vmem [#allocation0], 241
    %v2476 = vld [vmem:[%s2475] sm:$0x80]
    %vm2477 = vcmask 1047559
    %v2478 = vsel %vm2477, %v2476, %v2474
    %2479 = vrot.lane.b32.xlu0 %v2478, 16
    %v2480 = vpop.permute.xlu0 %2479
    %vm2481 = vcmask 130048
    %s2482 = scalar_lea.vmem %s1, 231
    %2483 = vst.msk [vmem:[%s2482] ss:$8 sm:$0x7] %vm2481, %v2480
    %s2484 = scalar_lea.vmem %s1, 711
    %2485 = vst.msk [vmem:[%s2484] ss:$8 sm:$0x78] %vm2481, %v2480
    %s2486 = scalar_lea.vmem %s1, 248
    %2487 = vst.msk [vmem:[%s2486] sm:$0x80] %vm2481, %v2480
    %s2488 = scalar_lea.vmem [#allocation0], 256
    %v2489 = vld [vmem:[%s2488] ss:$8 sm:$0x7]
    %s2490 = scalar_lea.vmem [#allocation0], 233
    %v2491 = vld [vmem:[%s2490] ss:$8 sm:$0x78]
    %vm2492 = vcmask 1046531
    %v2493 = vsel %vm2492, %v2491, %v2489
    %s2494 = scalar_lea.vmem [#allocation0], 273
    %v2495 = vld [vmem:[%s2494] sm:$0x80]
    %vm2496 = vcmask 1047559
    %v2497 = vsel %vm2496, %v2495, %v2493
    %2498 = vrot.lane.b32.xlu0 %v2497, 16
    %v2499 = vpop.permute.xlu0 %2498
    %vm2500 = vcmask 130048
    %s2501 = scalar_lea.vmem %s1, 263
    %2502 = vst.msk [vmem:[%s2501] ss:$8 sm:$0x7] %vm2500, %v2499
    %s2503 = scalar_lea.vmem %s1, 743
    %2504 = vst.msk [vmem:[%s2503] ss:$8 sm:$0x78] %vm2500, %v2499
    %s2505 = scalar_lea.vmem %s1, 280
    %2506 = vst.msk [vmem:[%s2505] sm:$0x80] %vm2500, %v2499
    %s2507 = scalar_lea.vmem [#allocation0], 288
    %v2508 = vld [vmem:[%s2507] ss:$8 sm:$0x7]
    %s2509 = scalar_lea.vmem [#allocation0], 265
    %v2510 = vld [vmem:[%s2509] ss:$8 sm:$0x78]
    %vm2511 = vcmask 1046531
    %v2512 = vsel %vm2511, %v2510, %v2508
    %s2513 = scalar_lea.vmem [#allocation0], 305
    %v2514 = vld [vmem:[%s2513] sm:$0x80]
    %vm2515 = vcmask 1047559
    %v2516 = vsel %vm2515, %v2514, %v2512
    %2517 = vrot.lane.b32.xlu0 %v2516, 16
    %v2518 = vpop.permute.xlu0 %2517
    %vm2519 = vcmask 130048
    %s2520 = scalar_lea.vmem %s1, 295
    %2521 = vst.msk [vmem:[%s2520] ss:$8 sm:$0x7] %vm2519, %v2518
    %s2522 = scalar_lea.vmem %s1, 775
    %2523 = vst.msk [vmem:[%s2522] ss:$8 sm:$0x78] %vm2519, %v2518
    %s2524 = scalar_lea.vmem %s1, 312
    %2525 = vst.msk [vmem:[%s2524] sm:$0x80] %vm2519, %v2518
    %s2526 = scalar_lea.vmem [#allocation0], 320
    %v2527 = vld [vmem:[%s2526] ss:$8 sm:$0x7]
    %s2528 = scalar_lea.vmem [#allocation0], 297
    %v2529 = vld [vmem:[%s2528] ss:$8 sm:$0x78]
    %vm2530 = vcmask 1046531
    %v2531 = vsel %vm2530, %v2529, %v2527
    %s2532 = scalar_lea.vmem [#allocation0], 337
    %v2533 = vld [vmem:[%s2532] sm:$0x80]
    %vm2534 = vcmask 1047559
    %v2535 = vsel %vm2534, %v2533, %v2531
    %2536 = vrot.lane.b32.xlu0 %v2535, 16
    %v2537 = vpop.permute.xlu0 %2536
    %vm2538 = vcmask 130048
    %s2539 = scalar_lea.vmem %s1, 327
    %2540 = vst.msk [vmem:[%s2539] ss:$8 sm:$0x7] %vm2538, %v2537
    %s2541 = scalar_lea.vmem %s1, 807
    %2542 = vst.msk [vmem:[%s2541] ss:$8 sm:$0x78] %vm2538, %v2537
    %s2543 = scalar_lea.vmem %s1, 344
    %2544 = vst.msk [vmem:[%s2543] sm:$0x80] %vm2538, %v2537
    %s2545 = scalar_lea.vmem [#allocation0], 352
    %v2546 = vld [vmem:[%s2545] ss:$8 sm:$0x7]
    %s2547 = scalar_lea.vmem [#allocation0], 329
    %v2548 = vld [vmem:[%s2547] ss:$8 sm:$0x78]
    %vm2549 = vcmask 1046531
    %v2550 = vsel %vm2549, %v2548, %v2546
    %s2551 = scalar_lea.vmem [#allocation0], 369
    %v2552 = vld [vmem:[%s2551] sm:$0x80]
    %vm2553 = vcmask 1047559
    %v2554 = vsel %vm2553, %v2552, %v2550
    %2555 = vrot.lane.b32.xlu0 %v2554, 16
    %v2556 = vpop.permute.xlu0 %2555
    %vm2557 = vcmask 130048
    %s2558 = scalar_lea.vmem %s1, 359
    %2559 = vst.msk [vmem:[%s2558] ss:$8 sm:$0x7] %vm2557, %v2556
    %s2560 = scalar_lea.vmem %s1, 839
    %2561 = vst.msk [vmem:[%s2560] ss:$8 sm:$0x78] %vm2557, %v2556
    %s2562 = scalar_lea.vmem %s1, 376
    %2563 = vst.msk [vmem:[%s2562] sm:$0x80] %vm2557, %v2556
    %s2564 = scalar_lea.vmem [#allocation0], 384
    %v2565 = vld [vmem:[%s2564] ss:$8 sm:$0x7]
    %s2566 = scalar_lea.vmem [#allocation0], 361
    %v2567 = vld [vmem:[%s2566] ss:$8 sm:$0x78]
    %vm2568 = vcmask 1046531
    %v2569 = vsel %vm2568, %v2567, %v2565
    %s2570 = scalar_lea.vmem [#allocation0], 401
    %v2571 = vld [vmem:[%s2570] sm:$0x80]
    %vm2572 = vcmask 1047559
    %v2573 = vsel %vm2572, %v2571, %v2569
    %2574 = vrot.lane.b32.xlu0 %v2573, 16
    %v2575 = vpop.permute.xlu0 %2574
    %vm2576 = vcmask 130048
    %s2577 = scalar_lea.vmem %s1, 391
    %2578 = vst.msk [vmem:[%s2577] ss:$8 sm:$0x7] %vm2576, %v2575
    %s2579 = scalar_lea.vmem %s1, 871
    %2580 = vst.msk [vmem:[%s2579] ss:$8 sm:$0x78] %vm2576, %v2575
    %s2581 = scalar_lea.vmem %s1, 408
    %2582 = vst.msk [vmem:[%s2581] sm:$0x80] %vm2576, %v2575
    %s2583 = scalar_lea.vmem [#allocation0], 416
    %v2584 = vld [vmem:[%s2583] ss:$8 sm:$0x7]
    %s2585 = scalar_lea.vmem [#allocation0], 393
    %v2586 = vld [vmem:[%s2585] ss:$8 sm:$0x78]
    %vm2587 = vcmask 1046531
    %v2588 = vsel %vm2587, %v2586, %v2584
    %s2589 = scalar_lea.vmem [#allocation0], 433
    %v2590 = vld [vmem:[%s2589] sm:$0x80]
    %vm2591 = vcmask 1047559
    %v2592 = vsel %vm2591, %v2590, %v2588
    %2593 = vrot.lane.b32.xlu0 %v2592, 16
    %v2594 = vpop.permute.xlu0 %2593
    %vm2595 = vcmask 130048
    %s2596 = scalar_lea.vmem %s1, 423
    %2597 = vst.msk [vmem:[%s2596] ss:$8 sm:$0x7] %vm2595, %v2594
    %s2598 = scalar_lea.vmem %s1, 903
    %2599 = vst.msk [vmem:[%s2598] ss:$8 sm:$0x78] %vm2595, %v2594
    %s2600 = scalar_lea.vmem %s1, 440
    %2601 = vst.msk [vmem:[%s2600] sm:$0x80] %vm2595, %v2594
    %s2602 = scalar_lea.vmem [#allocation0], 448
    %v2603 = vld [vmem:[%s2602] ss:$8 sm:$0x7]
    %s2604 = scalar_lea.vmem [#allocation0], 425
    %v2605 = vld [vmem:[%s2604] ss:$8 sm:$0x78]
    %vm2606 = vcmask 1046531
    %v2607 = vsel %vm2606, %v2605, %v2603
    %s2608 = scalar_lea.vmem [#allocation0], 465
    %v2609 = vld [vmem:[%s2608] sm:$0x80]
    %vm2610 = vcmask 1047559
    %v2611 = vsel %vm2610, %v2609, %v2607
    %2612 = vrot.lane.b32.xlu0 %v2611, 16
    %v2613 = vpop.permute.xlu0 %2612
    %vm2614 = vcmask 130048
    %s2615 = scalar_lea.vmem %s1, 455
    %2616 = vst.msk [vmem:[%s2615] ss:$8 sm:$0x7] %vm2614, %v2613
    %s2617 = scalar_lea.vmem %s1, 935
    %2618 = vst.msk [vmem:[%s2617] ss:$8 sm:$0x78] %vm2614, %v2613
    %s2619 = scalar_lea.vmem %s1, 472
    %2620 = vst.msk [vmem:[%s2619] sm:$0x80] %vm2614, %v2613
    %s2621 = scalar_lea.vmem [#allocation0], 480
    %v2622 = vld.sshfl [vmem:[%s2621] sm:$0xff pattern:$0x99999180]
    %2623 = vrot.lane.b32.xlu0 %v2622, 16
    %v2624 = vpop.permute.xlu0 %2623
    %vm2625 = vcmask 130048
    %s2626 = scalar_lea.vmem %s1, 487
    %2627 = vst.msk [vmem:[%s2626] ss:$8 sm:$0x3] %vm2625, %v2624
    %s2628 = scalar_lea.vmem %s1, 975
    %2629 = vst.msk [vmem:[%s2628] ss:$8 sm:$0xc] %vm2625, %v2624

// kernel: m5_forward.1
$region0: #{m5_forward.1}
  #allocation0 [shape = 'u32[]', space=smem, size = 0x4, offset = 0x4, fixed_abs, tag = 'smem constant byte address 0x4 - core index']
  #allocation1 [shape = 'u32[72,128]{1,0:T(1,128)}', space=vmem, size = 0x9000, scoped, tag = 'internal scratch']
  #allocation2 [shape = 'f32[992,80]{1,0:T(8,128)}', space=vmem, size = 0x7c000, scoped, tag = 'scratch operand']
  #allocation3 [shape = 'f32[992,32]{1,0:T(8,128)}', space=vmem, size = 0x7c000, scoped, tag = 'scratch operand']
  #allocation4 [shape = 'f32[2,124,32]{2,1,0:T(8,128)}', space=vmem, size = 0x20000, scoped, tag = 'scratch operand']
  #allocation5 [shape = 'f32[244,96]{1,0:T(8,128)}', space=vmem, size = 0x1f000, scoped, tag = 'scratch operand']
  #allocation6 [shape = 'f32[244,32]{1,0:T(8,128)}', space=vmem, size = 0x1f000, scoped, tag = 'scratch operand']
  #allocation7 [shape = 'f32[2,30,32]{2,1,0:T(8,128)}', space=vmem, size = 0x8000, scoped, tag = 'scratch operand']
  #allocation8 [shape = 'f32[56,96]{1,0:T(8,128)}', space=vmem, size = 0x7000, scoped, tag = 'scratch operand']
  #allocation9 [shape = 'f32[56,64]{1,0:T(8,128)}', space=vmem, size = 0x7000, scoped, tag = 'scratch operand']
  #allocation10 [shape = 'f32[2,7,64]{2,1,0:T(8,128)}', space=vmem, size = 0x2000, scoped, tag = 'scratch operand']
  #allocation11 [shape = 'f32[10,192]{1,0:T(8,128)}', space=vmem, size = 0x4000, scoped, tag = 'scratch operand']
  #allocation12 [shape = 'f32[10,64]{1,0:T(8,128)}', space=vmem, size = 0x2000, scoped, tag = 'scratch operand']
  #allocation13 [shape = 'f32[2,1,64]{2,1,0:T(1,128)}', space=vmem, size = 0x400, scoped, tag = 'scratch operand']
  %s0 = inlined_call_operand.vmem [shape: f32[2,500,16], index: 0, kind: input, shape index: {}]
  %s1 = inlined_call_operand.vmem [shape: f32[80,32], index: 1, kind: input, shape index: {}]
  %s2 = inlined_call_operand.vmem [shape: f32[96,32], index: 2, kind: input, shape index: {}]
  %s3 = inlined_call_operand.vmem [shape: f32[96,64], index: 3, kind: input, shape index: {}]
  %s4 = inlined_call_operand.vmem [shape: f32[192,64], index: 4, kind: input, shape index: {}]
  %s5 = inlined_call_operand.vmem [shape: f32[64,128], index: 5, kind: input, shape index: {}]
  %s6 = inlined_call_operand.vmem [shape: f32[16,128], index: 6, kind: input, shape index: {}]
  %s7 = inlined_call_operand.hbm [shape: f32[2,128], index: 7, kind: output, shape index: {}]
  %s8 = sld [smem:[#allocation0]]
  $region59: #{m5_forward.1} parent=0
    _
  %s10 = ssub.s32 1, %s8
  %s11 = scalar_select 0, %s10, %s8
  $region1: #{m5_forward.1} parent=0
    #allocation14 [shape = 'u8[1024]{0}', space=vmem, size = 0x400, scoped, tag = 'output window, operand 0, single buffered']
    #allocation15 [shape = 's32[1]{0}', space=sflag, size = 0x4, scoped, tag = 'scoped memory for m5_forward.1']
    %12 = vsyncpa [#allocation15], 0
    // Predicated region
    $region2: #{m5_forward.1} parent=1 // pred_check
      _
    $region3: #{m5_forward.1} parent=1 // pred_check_branch
      %14 = sbr.rel (0) target = $region5
    $region4: #{m5_forward.1} parent=1 // pred_region
      _
    $region5: #{m5_forward.1} parent=1 // pred_fallthru
      _
    // Predicated region
    $region6: #{m5_forward.1} parent=1 // pred_check
      _
    $region7: #{m5_forward.1} parent=1 // pred_check_branch
      %16 = sbr.rel (0) target = $region9
    $region8: #{m5_forward.1} parent=1 // pred_region
      _
    $region9: #{m5_forward.1} parent=1 // pred_fallthru
      _
    // Predicated region
    $region10: #{m5_forward.1} parent=1 // pred_check
      _
    $region11: #{m5_forward.1} parent=1 // pred_check_branch
      %18 = sbr.rel (0) target = $region13
    $region12: #{m5_forward.1} parent=1 // pred_region
      _
    $region13: #{m5_forward.1} parent=1 // pred_fallthru
      _
    // Predicated region
    $region14: #{m5_forward.1} parent=1 // pred_check
      _
    $region15: #{m5_forward.1} parent=1 // pred_check_branch
      %20 = sbr.rel (0) target = $region17
    $region16: #{m5_forward.1} parent=1 // pred_region
      _
    $region17: #{m5_forward.1} parent=1 // pred_fallthru
      _
    // Predicated region
    $region18: #{m5_forward.1} parent=1 // pred_check
      _
    $region19: #{m5_forward.1} parent=1 // pred_check_branch
      %22 = sbr.rel (0) target = $region21
    $region20: #{m5_forward.1} parent=1 // pred_region
      _
    $region21: #{m5_forward.1} parent=1 // pred_fallthru
      _
    // Predicated region
    $region22: #{m5_forward.1} parent=1 // pred_check
      _
    $region23: #{m5_forward.1} parent=1 // pred_check_branch
      %24 = sbr.rel (0) target = $region25
    $region24: #{m5_forward.1} parent=1 // pred_region
      _
    $region25: #{m5_forward.1} parent=1 // pred_fallthru
      _
    // Predicated region
    $region26: #{m5_forward.1} parent=1 // pred_check
      _
    $region27: #{m5_forward.1} parent=1 // pred_check_branch
      %26 = sbr.rel (0) target = $region29
    $region28: #{m5_forward.1} parent=1 // pred_region
      _
    $region29: #{m5_forward.1} parent=1 // pred_fallthru
      _
    %v27 = vld [vmem:[%s0] sm:$0xff]
    %v28 = vld [vmem:[%s0 + $0x8] sm:$0xff]
    %v29 = vld [vmem:[%s0 + $0x10] sm:$0xff]
    %v30 = vld [vmem:[%s0 + $0x18] sm:$0xff]
    %v31 = vld [vmem:[%s0 + $0x20] sm:$0xff]
    %v32 = vld [vmem:[%s0 + $0x28] sm:$0xff]
    %v33 = vld [vmem:[%s0 + $0x30] sm:$0xff]
    %v34 = vld [vmem:[%s0 + $0x38] sm:$0xff]
    %v35 = vld [vmem:[%s0 + $0x40] sm:$0xff]
    %v36 = vld [vmem:[%s0 + $0x48] sm:$0xff]
    %v37 = vld [vmem:[%s0 + $0x50] sm:$0xff]
    %v38 = vld [vmem:[%s0 + $0x58] sm:$0xff]
    %v39 = vld [vmem:[%s0 + $0x60] sm:$0xff]
    %v40 = vld [vmem:[%s0 + $0x68] sm:$0xff]
    %v41 = vld [vmem:[%s0 + $0x70] sm:$0xff]
    %v42 = vld [vmem:[%s0 + $0x78] sm:$0xff]
    %v43 = vld [vmem:[%s0 + $0x80] sm:$0xff]
    %v44 = vld [vmem:[%s0 + $0x88] sm:$0xff]
    %v45 = vld [vmem:[%s0 + $0x90] sm:$0xff]
    %v46 = vld [vmem:[%s0 + $0x98] sm:$0xff]
    %v47 = vld [vmem:[%s0 + $0xa0] sm:$0xff]
    %v48 = vld [vmem:[%s0 + $0xa8] sm:$0xff]
    %v49 = vld [vmem:[%s0 + $0xb0] sm:$0xff]
    %v50 = vld [vmem:[%s0 + $0xb8] sm:$0xff]
    %v51 = vld [vmem:[%s0 + $0xc0] sm:$0xff]
    %v52 = vld [vmem:[%s0 + $0xc8] sm:$0xff]
    %v53 = vld [vmem:[%s0 + $0xd0] sm:$0xff]
    %v54 = vld [vmem:[%s0 + $0xd8] sm:$0xff]
    %v55 = vld [vmem:[%s0 + $0xe0] sm:$0xff]
    %v56 = vld [vmem:[%s0 + $0xe8] sm:$0xff]
    %v57 = vld [vmem:[%s0 + $0xf0] sm:$0xff]
    %v58 = vld [vmem:[%s0 + $0xf8] sm:$0xff]
    %v59 = vld [vmem:[%s0 + $0x100] sm:$0xff]
    %v60 = vld [vmem:[%s0 + $0x108] sm:$0xff]
    %v61 = vld [vmem:[%s0 + $0x110] sm:$0xff]
    %v62 = vld [vmem:[%s0 + $0x118] sm:$0xff]
    %v63 = vld [vmem:[%s0 + $0x120] sm:$0xff]
    %v64 = vld [vmem:[%s0 + $0x128] sm:$0xff]
    %v65 = vld [vmem:[%s0 + $0x130] sm:$0xff]
    %v66 = vld [vmem:[%s0 + $0x138] sm:$0xff]
    %v67 = vld [vmem:[%s0 + $0x140] sm:$0xff]
    %v68 = vld [vmem:[%s0 + $0x148] sm:$0xff]
    %v69 = vld [vmem:[%s0 + $0x150] sm:$0xff]
    %v70 = vld [vmem:[%s0 + $0x158] sm:$0xff]
    %v71 = vld [vmem:[%s0 + $0x160] sm:$0xff]
    %v72 = vld [vmem:[%s0 + $0x168] sm:$0xff]
    %v73 = vld [vmem:[%s0 + $0x170] sm:$0xff]
    %v74 = vld [vmem:[%s0 + $0x178] sm:$0xff]
    %v75 = vld [vmem:[%s0 + $0x180] sm:$0xff]
    %v76 = vld [vmem:[%s0 + $0x188] sm:$0xff]
    %v77 = vld [vmem:[%s0 + $0x190] sm:$0xff]
    %v78 = vld [vmem:[%s0 + $0x198] sm:$0xff]
    %v79 = vld [vmem:[%s0 + $0x1a0] sm:$0xff]
    %v80 = vld [vmem:[%s0 + $0x1a8] sm:$0xff]
    %v81 = vld [vmem:[%s0 + $0x1b0] sm:$0xff]
    %v82 = vld [vmem:[%s0 + $0x1b8] sm:$0xff]
    %v83 = vld [vmem:[%s0 + $0x1c0] sm:$0xff]
    %v84 = vld [vmem:[%s0 + $0x1c8] sm:$0xff]
    %v85 = vld [vmem:[%s0 + $0x1d0] sm:$0xff]
    %v86 = vld [vmem:[%s0 + $0x1d8] sm:$0xff]
    %v87 = vld [vmem:[%s0 + $0x1e0] sm:$0xff]
    %v88 = vld [vmem:[%s0 + $0x1e8] sm:$0xff]
    %vm89 = vcmask 130048
    %90 = vst.msk [vmem:[#allocation2] sm:$0xff] %vm89, %v27
    %91 = vst.msk [vmem:[#allocation2 + $0x8] sm:$0xff] %vm89, %v28
    %92 = vst.msk [vmem:[#allocation2 + $0x10] sm:$0xff] %vm89, %v29
    %93 = vst.msk [vmem:[#allocation2 + $0x18] sm:$0xff] %vm89, %v30
    %94 = vst.msk [vmem:[#allocation2 + $0x20] sm:$0xff] %vm89, %v31
    %95 = vst.msk [vmem:[#allocation2 + $0x28] sm:$0xff] %vm89, %v32
    %96 = vst.msk [vmem:[#allocation2 + $0x30] sm:$0xff] %vm89, %v33
    %97 = vst.msk [vmem:[#allocation2 + $0x38] sm:$0xff] %vm89, %v34
    %98 = vst.msk [vmem:[#allocation2 + $0x40] sm:$0xff] %vm89, %v35
    %99 = vst.msk [vmem:[#allocation2 + $0x48] sm:$0xff] %vm89, %v36
    %100 = vst.msk [vmem:[#allocation2 + $0x50] sm:$0xff] %vm89, %v37
    %101 = vst.msk [vmem:[#allocation2 + $0x58] sm:$0xff] %vm89, %v38
    %102 = vst.msk [vmem:[#allocation2 + $0x60] sm:$0xff] %vm89, %v39
    %103 = vst.msk [vmem:[#allocation2 + $0x68] sm:$0xff] %vm89, %v40
    %104 = vst.msk [vmem:[#allocation2 + $0x70] sm:$0xff] %vm89, %v41
    %105 = vst.msk [vmem:[#allocation2 + $0x78] sm:$0xff] %vm89, %v42
    %106 = vst.msk [vmem:[#allocation2 + $0x80] sm:$0xff] %vm89, %v43
    %107 = vst.msk [vmem:[#allocation2 + $0x88] sm:$0xff] %vm89, %v44
    %108 = vst.msk [vmem:[#allocation2 + $0x90] sm:$0xff] %vm89, %v45
    %109 = vst.msk [vmem:[#allocation2 + $0x98] sm:$0xff] %vm89, %v46
    %110 = vst.msk [vmem:[#allocation2 + $0xa0] sm:$0xff] %vm89, %v47
    %111 = vst.msk [vmem:[#allocation2 + $0xa8] sm:$0xff] %vm89, %v48
    %112 = vst.msk [vmem:[#allocation2 + $0xb0] sm:$0xff] %vm89, %v49
    %113 = vst.msk [vmem:[#allocation2 + $0xb8] sm:$0xff] %vm89, %v50
    %114 = vst.msk [vmem:[#allocation2 + $0xc0] sm:$0xff] %vm89, %v51
    %115 = vst.msk [vmem:[#allocation2 + $0xc8] sm:$0xff] %vm89, %v52
    %116 = vst.msk [vmem:[#allocation2 + $0xd0] sm:$0xff] %vm89, %v53
    %117 = vst.msk [vmem:[#allocation2 + $0xd8] sm:$0xff] %vm89, %v54
    %118 = vst.msk [vmem:[#allocation2 + $0xe0] sm:$0xff] %vm89, %v55
    %119 = vst.msk [vmem:[#allocation2 + $0xe8] sm:$0xff] %vm89, %v56
    %120 = vst.msk [vmem:[#allocation2 + $0xf0] sm:$0xff] %vm89, %v57
    %121 = vst.msk [vmem:[#allocation2 + $0xf8] sm:$0xff] %vm89, %v58
    %122 = vst.msk [vmem:[#allocation2 + $0x100] sm:$0xff] %vm89, %v59
    %123 = vst.msk [vmem:[#allocation2 + $0x108] sm:$0xff] %vm89, %v60
    %124 = vst.msk [vmem:[#allocation2 + $0x110] sm:$0xff] %vm89, %v61
    %125 = vst.msk [vmem:[#allocation2 + $0x118] sm:$0xff] %vm89, %v62
    %126 = vst.msk [vmem:[#allocation2 + $0x120] sm:$0xff] %vm89, %v63
    %127 = vst.msk [vmem:[#allocation2 + $0x128] sm:$0xff] %vm89, %v64
    %128 = vst.msk [vmem:[#allocation2 + $0x130] sm:$0xff] %vm89, %v65
    %129 = vst.msk [vmem:[#allocation2 + $0x138] sm:$0xff] %vm89, %v66
    %130 = vst.msk [vmem:[#allocation2 + $0x140] sm:$0xff] %vm89, %v67
    %131 = vst.msk [vmem:[#allocation2 + $0x148] sm:$0xff] %vm89, %v68
    %132 = vst.msk [vmem:[#allocation2 + $0x150] sm:$0xff] %vm89, %v69
    %133 = vst.msk [vmem:[#allocation2 + $0x158] sm:$0xff] %vm89, %v70
    %134 = vst.msk [vmem:[#allocation2 + $0x160] sm:$0xff] %vm89, %v71
    %135 = vst.msk [vmem:[#allocation2 + $0x168] sm:$0xff] %vm89, %v72
    %136 = vst.msk [vmem:[#allocation2 + $0x170] sm:$0xff] %vm89, %v73
    %137 = vst.msk [vmem:[#allocation2 + $0x178] sm:$0xff] %vm89, %v74
    %138 = vst.msk [vmem:[#allocation2 + $0x180] sm:$0xff] %vm89, %v75
    %139 = vst.msk [vmem:[#allocation2 + $0x188] sm:$0xff] %vm89, %v76
    %140 = vst.msk [vmem:[#allocation2 + $0x190] sm:$0xff] %vm89, %v77
    %141 = vst.msk [vmem:[#allocation2 + $0x198] sm:$0xff] %vm89, %v78
    %142 = vst.msk [vmem:[#allocation2 + $0x1a0] sm:$0xff] %vm89, %v79
    %143 = vst.msk [vmem:[#allocation2 + $0x1a8] sm:$0xff] %vm89, %v80
    %144 = vst.msk [vmem:[#allocation2 + $0x1b0] sm:$0xff] %vm89, %v81
    %145 = vst.msk [vmem:[#allocation2 + $0x1b8] sm:$0xff] %vm89, %v82
    %146 = vst.msk [vmem:[#allocation2 + $0x1c0] sm:$0xff] %vm89, %v83
    %147 = vst.msk [vmem:[#allocation2 + $0x1c8] sm:$0xff] %vm89, %v84
    %148 = vst.msk [vmem:[#allocation2 + $0x1d0] sm:$0xff] %vm89, %v85
    %149 = vst.msk [vmem:[#allocation2 + $0x1d8] sm:$0xff] %vm89, %v86
    %150 = vst.msk [vmem:[#allocation2 + $0x1e0] sm:$0xff] %vm89, %v87
    %151 = vst.msk [vmem:[#allocation2 + $0x1e8] sm:$0xff] %vm89, %v88
    %v152 = vld [vmem:[%s0 + $0x1] sm:$0xff]
    %v153 = vld [vmem:[%s0 + $0x9] sm:$0xff]
    %v154 = vld [vmem:[%s0 + $0x11] sm:$0xff]
    %v155 = vld [vmem:[%s0 + $0x19] sm:$0xff]
    %v156 = vld [vmem:[%s0 + $0x21] sm:$0xff]
    %v157 = vld [vmem:[%s0 + $0x29] sm:$0xff]
    %v158 = vld [vmem:[%s0 + $0x31] sm:$0xff]
    %v159 = vld [vmem:[%s0 + $0x39] sm:$0xff]
    %v160 = vld [vmem:[%s0 + $0x41] sm:$0xff]
    %v161 = vld [vmem:[%s0 + $0x49] sm:$0xff]
    %v162 = vld [vmem:[%s0 + $0x51] sm:$0xff]
    %v163 = vld [vmem:[%s0 + $0x59] sm:$0xff]
    %v164 = vld [vmem:[%s0 + $0x61] sm:$0xff]
    %v165 = vld [vmem:[%s0 + $0x69] sm:$0xff]
    %v166 = vld [vmem:[%s0 + $0x71] sm:$0xff]
    %v167 = vld [vmem:[%s0 + $0x79] sm:$0xff]
    %v168 = vld [vmem:[%s0 + $0x81] sm:$0xff]
    %v169 = vld [vmem:[%s0 + $0x89] sm:$0xff]
    %v170 = vld [vmem:[%s0 + $0x91] sm:$0xff]
    %v171 = vld [vmem:[%s0 + $0x99] sm:$0xff]
    %v172 = vld [vmem:[%s0 + $0xa1] sm:$0xff]
    %v173 = vld [vmem:[%s0 + $0xa9] sm:$0xff]
    %v174 = vld [vmem:[%s0 + $0xb1] sm:$0xff]
    %v175 = vld [vmem:[%s0 + $0xb9] sm:$0xff]
    %v176 = vld [vmem:[%s0 + $0xc1] sm:$0xff]
    %v177 = vld [vmem:[%s0 + $0xc9] sm:$0xff]
    %v178 = vld [vmem:[%s0 + $0xd1] sm:$0xff]
    %v179 = vld [vmem:[%s0 + $0xd9] sm:$0xff]
    %v180 = vld [vmem:[%s0 + $0xe1] sm:$0xff]
    %v181 = vld [vmem:[%s0 + $0xe9] sm:$0xff]
    %v182 = vld [vmem:[%s0 + $0xf1] sm:$0xff]
    %v183 = vld [vmem:[%s0 + $0xf9] sm:$0xff]
    %v184 = vld [vmem:[%s0 + $0x101] sm:$0xff]
    %v185 = vld [vmem:[%s0 + $0x109] sm:$0xff]
    %v186 = vld [vmem:[%s0 + $0x111] sm:$0xff]
    %v187 = vld [vmem:[%s0 + $0x119] sm:$0xff]
    %v188 = vld [vmem:[%s0 + $0x121] sm:$0xff]
    %v189 = vld [vmem:[%s0 + $0x129] sm:$0xff]
    %v190 = vld [vmem:[%s0 + $0x131] sm:$0xff]
    %v191 = vld [vmem:[%s0 + $0x139] sm:$0xff]
    %v192 = vld [vmem:[%s0 + $0x141] sm:$0xff]
    %v193 = vld [vmem:[%s0 + $0x149] sm:$0xff]
    %v194 = vld [vmem:[%s0 + $0x151] sm:$0xff]
    %v195 = vld [vmem:[%s0 + $0x159] sm:$0xff]
    %v196 = vld [vmem:[%s0 + $0x161] sm:$0xff]
    %v197 = vld [vmem:[%s0 + $0x169] sm:$0xff]
    %v198 = vld [vmem:[%s0 + $0x171] sm:$0xff]
    %v199 = vld [vmem:[%s0 + $0x179] sm:$0xff]
    %v200 = vld [vmem:[%s0 + $0x181] sm:$0xff]
    %v201 = vld [vmem:[%s0 + $0x189] sm:$0xff]
    %v202 = vld [vmem:[%s0 + $0x191] sm:$0xff]
    %v203 = vld [vmem:[%s0 + $0x199] sm:$0xff]
    %v204 = vld [vmem:[%s0 + $0x1a1] sm:$0xff]
    %v205 = vld [vmem:[%s0 + $0x1a9] sm:$0xff]
    %v206 = vld [vmem:[%s0 + $0x1b1] sm:$0xff]
    %v207 = vld [vmem:[%s0 + $0x1b9] sm:$0xff]
    %v208 = vld [vmem:[%s0 + $0x1c1] sm:$0xff]
    %v209 = vld [vmem:[%s0 + $0x1c9] sm:$0xff]
    %v210 = vld [vmem:[%s0 + $0x1d1] sm:$0xff]
    %v211 = vld [vmem:[%s0 + $0x1d9] sm:$0xff]
    %v212 = vld [vmem:[%s0 + $0x1e1] sm:$0xff]
    %v213 = vld [vmem:[%s0 + $0x1e9] sm:$0xff]
    %276 = vrot.lane.b32.xlu0 %v152, 16
    %v277 = vpop.permute.xlu0 %276
    %278 = vrot.lane.b32.xlu0 %v153, 16
    %v279 = vpop.permute.xlu0 %278
    %280 = vrot.lane.b32.xlu0 %v154, 16
    %v281 = vpop.permute.xlu0 %280
    %282 = vrot.lane.b32.xlu0 %v155, 16
    %v283 = vpop.permute.xlu0 %282
    %284 = vrot.lane.b32.xlu0 %v156, 16
    %v285 = vpop.permute.xlu0 %284
    %286 = vrot.lane.b32.xlu0 %v157, 16
    %v287 = vpop.permute.xlu0 %286
    %288 = vrot.lane.b32.xlu0 %v158, 16
    %v289 = vpop.permute.xlu0 %288
    %290 = vrot.lane.b32.xlu0 %v159, 16
    %v291 = vpop.permute.xlu0 %290
    %292 = vrot.lane.b32.xlu0 %v160, 16
    %v293 = vpop.permute.xlu0 %292
    %294 = vrot.lane.b32.xlu0 %v161, 16
    %v295 = vpop.permute.xlu0 %294
    %296 = vrot.lane.b32.xlu0 %v162, 16
    %v297 = vpop.permute.xlu0 %296
    %298 = vrot.lane.b32.xlu0 %v163, 16
    %v299 = vpop.permute.xlu0 %298
    %300 = vrot.lane.b32.xlu0 %v164, 16
    %v301 = vpop.permute.xlu0 %300
    %302 = vrot.lane.b32.xlu0 %v165, 16
    %v303 = vpop.permute.xlu0 %302
    %304 = vrot.lane.b32.xlu0 %v166, 16
    %v305 = vpop.permute.xlu0 %304
    %306 = vrot.lane.b32.xlu0 %v167, 16
    %v307 = vpop.permute.xlu0 %306
    %308 = vrot.lane.b32.xlu0 %v168, 16
    %v309 = vpop.permute.xlu0 %308
    %310 = vrot.lane.b32.xlu0 %v169, 16
    %v311 = vpop.permute.xlu0 %310
    %312 = vrot.lane.b32.xlu0 %v170, 16
    %v313 = vpop.permute.xlu0 %312
    %314 = vrot.lane.b32.xlu0 %v171, 16
    %v315 = vpop.permute.xlu0 %314
    %316 = vrot.lane.b32.xlu0 %v172, 16
    %v317 = vpop.permute.xlu0 %316
    %318 = vrot.lane.b32.xlu0 %v173, 16
    %v319 = vpop.permute.xlu0 %318
    %320 = vrot.lane.b32.xlu0 %v174, 16
    %v321 = vpop.permute.xlu0 %320
    %322 = vrot.lane.b32.xlu0 %v175, 16
    %v323 = vpop.permute.xlu0 %322
    %324 = vrot.lane.b32.xlu0 %v176, 16
    %v325 = vpop.permute.xlu0 %324
    %326 = vrot.lane.b32.xlu0 %v177, 16
    %v327 = vpop.permute.xlu0 %326
    %328 = vrot.lane.b32.xlu0 %v178, 16
    %v329 = vpop.permute.xlu0 %328
    %330 = vrot.lane.b32.xlu0 %v179, 16
    %v331 = vpop.permute.xlu0 %330
    %332 = vrot.lane.b32.xlu0 %v180, 16
    %v333 = vpop.permute.xlu0 %332
    %334 = vrot.lane.b32.xlu0 %v181, 16
    %v335 = vpop.permute.xlu0 %334
    %336 = vrot.lane.b32.xlu0 %v182, 16
    %v337 = vpop.permute.xlu0 %336
    %338 = vrot.lane.b32.xlu0 %v183, 16
    %v339 = vpop.permute.xlu0 %338
    %340 = vrot.lane.b32.xlu0 %v184, 16
    %v341 = vpop.permute.xlu0 %340
    %342 = vrot.lane.b32.xlu0 %v185, 16
    %v343 = vpop.permute.xlu0 %342
    %344 = vrot.lane.b32.xlu0 %v186, 16
    %v345 = vpop.permute.xlu0 %344
    %346 = vrot.lane.b32.xlu0 %v187, 16
    %v347 = vpop.permute.xlu0 %346
    %348 = vrot.lane.b32.xlu0 %v188, 16
    %v349 = vpop.permute.xlu0 %348
    %350 = vrot.lane.b32.xlu0 %v189, 16
    %v351 = vpop.permute.xlu0 %350
    %352 = vrot.lane.b32.xlu0 %v190, 16
    %v353 = vpop.permute.xlu0 %352
    %354 = vrot.lane.b32.xlu0 %v191, 16
    %v355 = vpop.permute.xlu0 %354
    %356 = vrot.lane.b32.xlu0 %v192, 16
    %v357 = vpop.permute.xlu0 %356
    %358 = vrot.lane.b32.xlu0 %v193, 16
    %v359 = vpop.permute.xlu0 %358
    %360 = vrot.lane.b32.xlu0 %v194, 16
    %v361 = vpop.permute.xlu0 %360
    %362 = vrot.lane.b32.xlu0 %v195, 16
    %v363 = vpop.permute.xlu0 %362
    %364 = vrot.lane.b32.xlu0 %v196, 16
    %v365 = vpop.permute.xlu0 %364
    %366 = vrot.lane.b32.xlu0 %v197, 16
    %v367 = vpop.permute.xlu0 %366
    %368 = vrot.lane.b32.xlu0 %v198, 16
    %v369 = vpop.permute.xlu0 %368
    %370 = vrot.lane.b32.xlu0 %v199, 16
    %v371 = vpop.permute.xlu0 %370
    %372 = vrot.lane.b32.xlu0 %v200, 16
    %v373 = vpop.permute.xlu0 %372
    %374 = vrot.lane.b32.xlu0 %v201, 16
    %v375 = vpop.permute.xlu0 %374
    %376 = vrot.lane.b32.xlu0 %v202, 16
    %v377 = vpop.permute.xlu0 %376
    %378 = vrot.lane.b32.xlu0 %v203, 16
    %v379 = vpop.permute.xlu0 %378
    %380 = vrot.lane.b32.xlu0 %v204, 16
    %v381 = vpop.permute.xlu0 %380
    %382 = vrot.lane.b32.xlu0 %v205, 16
    %v383 = vpop.permute.xlu0 %382
    %384 = vrot.lane.b32.xlu0 %v206, 16
    %v385 = vpop.permute.xlu0 %384
    %386 = vrot.lane.b32.xlu0 %v207, 16
    %v387 = vpop.permute.xlu0 %386
    %388 = vrot.lane.b32.xlu0 %v208, 16
    %v389 = vpop.permute.xlu0 %388
    %390 = vrot.lane.b32.xlu0 %v209, 16
    %v391 = vpop.permute.xlu0 %390
    %392 = vrot.lane.b32.xlu0 %v210, 16
    %v393 = vpop.permute.xlu0 %392
    %394 = vrot.lane.b32.xlu0 %v211, 16
    %v395 = vpop.permute.xlu0 %394
    %396 = vrot.lane.b32.xlu0 %v212, 16
    %v397 = vpop.permute.xlu0 %396
    %398 = vrot.lane.b32.xlu0 %v213, 16
    %v399 = vpop.permute.xlu0 %398
    %vm462 = vcmask 261248
    %463 = vst.msk [vmem:[#allocation2] sm:$0xff] %vm462, %v277
    %464 = vst.msk [vmem:[#allocation2 + $0x8] sm:$0xff] %vm462, %v279
    %465 = vst.msk [vmem:[#allocation2 + $0x10] sm:$0xff] %vm462, %v281
    %466 = vst.msk [vmem:[#allocation2 + $0x18] sm:$0xff] %vm462, %v283
    %467 = vst.msk [vmem:[#allocation2 + $0x20] sm:$0xff] %vm462, %v285
    %468 = vst.msk [vmem:[#allocation2 + $0x28] sm:$0xff] %vm462, %v287
    %469 = vst.msk [vmem:[#allocation2 + $0x30] sm:$0xff] %vm462, %v289
    %470 = vst.msk [vmem:[#allocation2 + $0x38] sm:$0xff] %vm462, %v291
    %471 = vst.msk [vmem:[#allocation2 + $0x40] sm:$0xff] %vm462, %v293
    %472 = vst.msk [vmem:[#allocation2 + $0x48] sm:$0xff] %vm462, %v295
    %473 = vst.msk [vmem:[#allocation2 + $0x50] sm:$0xff] %vm462, %v297
    %474 = vst.msk [vmem:[#allocation2 + $0x58] sm:$0xff] %vm462, %v299
    %475 = vst.msk [vmem:[#allocation2 + $0x60] sm:$0xff] %vm462, %v301
    %476 = vst.msk [vmem:[#allocation2 + $0x68] sm:$0xff] %vm462, %v303
    %477 = vst.msk [vmem:[#allocation2 + $0x70] sm:$0xff] %vm462, %v305
    %478 = vst.msk [vmem:[#allocation2 + $0x78] sm:$0xff] %vm462, %v307
    %479 = vst.msk [vmem:[#allocation2 + $0x80] sm:$0xff] %vm462, %v309
    %480 = vst.msk [vmem:[#allocation2 + $0x88] sm:$0xff] %vm462, %v311
    %481 = vst.msk [vmem:[#allocation2 + $0x90] sm:$0xff] %vm462, %v313
    %482 = vst.msk [vmem:[#allocation2 + $0x98] sm:$0xff] %vm462, %v315
    %483 = vst.msk [vmem:[#allocation2 + $0xa0] sm:$0xff] %vm462, %v317
    %484 = vst.msk [vmem:[#allocation2 + $0xa8] sm:$0xff] %vm462, %v319
    %485 = vst.msk [vmem:[#allocation2 + $0xb0] sm:$0xff] %vm462, %v321
    %486 = vst.msk [vmem:[#allocation2 + $0xb8] sm:$0xff] %vm462, %v323
    %487 = vst.msk [vmem:[#allocation2 + $0xc0] sm:$0xff] %vm462, %v325
    %488 = vst.msk [vmem:[#allocation2 + $0xc8] sm:$0xff] %vm462, %v327
    %489 = vst.msk [vmem:[#allocation2 + $0xd0] sm:$0xff] %vm462, %v329
    %490 = vst.msk [vmem:[#allocation2 + $0xd8] sm:$0xff] %vm462, %v331
    %491 = vst.msk [vmem:[#allocation2 + $0xe0] sm:$0xff] %vm462, %v333
    %492 = vst.msk [vmem:[#allocation2 + $0xe8] sm:$0xff] %vm462, %v335
    %493 = vst.msk [vmem:[#allocation2 + $0xf0] sm:$0xff] %vm462, %v337
    %494 = vst.msk [vmem:[#allocation2 + $0xf8] sm:$0xff] %vm462, %v339
    %495 = vst.msk [vmem:[#allocation2 + $0x100] sm:$0xff] %vm462, %v341
    %496 = vst.msk [vmem:[#allocation2 + $0x108] sm:$0xff] %vm462, %v343
    %497 = vst.msk [vmem:[#allocation2 + $0x110] sm:$0xff] %vm462, %v345
    %498 = vst.msk [vmem:[#allocation2 + $0x118] sm:$0xff] %vm462, %v347
    %499 = vst.msk [vmem:[#allocation2 + $0x120] sm:$0xff] %vm462, %v349
    %500 = vst.msk [vmem:[#allocation2 + $0x128] sm:$0xff] %vm462, %v351
    %501 = vst.msk [vmem:[#allocation2 + $0x130] sm:$0xff] %vm462, %v353
    %502 = vst.msk [vmem:[#allocation2 + $0x138] sm:$0xff] %vm462, %v355
    %503 = vst.msk [vmem:[#allocation2 + $0x140] sm:$0xff] %vm462, %v357
    %504 = vst.msk [vmem:[#allocation2 + $0x148] sm:$0xff] %vm462, %v359
    %505 = vst.msk [vmem:[#allocation2 + $0x150] sm:$0xff] %vm462, %v361
    %506 = vst.msk [vmem:[#allocation2 + $0x158] sm:$0xff] %vm462, %v363
    %507 = vst.msk [vmem:[#allocation2 + $0x160] sm:$0xff] %vm462, %v365
    %508 = vst.msk [vmem:[#allocation2 + $0x168] sm:$0xff] %vm462, %v367
    %509 = vst.msk [vmem:[#allocation2 + $0x170] sm:$0xff] %vm462, %v369
    %510 = vst.msk [vmem:[#allocation2 + $0x178] sm:$0xff] %vm462, %v371
    %511 = vst.msk [vmem:[#allocation2 + $0x180] sm:$0xff] %vm462, %v373
    %512 = vst.msk [vmem:[#allocation2 + $0x188] sm:$0xff] %vm462, %v375
    %513 = vst.msk [vmem:[#allocation2 + $0x190] sm:$0xff] %vm462, %v377
    %514 = vst.msk [vmem:[#allocation2 + $0x198] sm:$0xff] %vm462, %v379
    %515 = vst.msk [vmem:[#allocation2 + $0x1a0] sm:$0xff] %vm462, %v381
    %516 = vst.msk [vmem:[#allocation2 + $0x1a8] sm:$0xff] %vm462, %v383
    %517 = vst.msk [vmem:[#allocation2 + $0x1b0] sm:$0xff] %vm462, %v385
    %518 = vst.msk [vmem:[#allocation2 + $0x1b8] sm:$0xff] %vm462, %v387
    %519 = vst.msk [vmem:[#allocation2 + $0x1c0] sm:$0xff] %vm462, %v389
    %520 = vst.msk [vmem:[#allocation2 + $0x1c8] sm:$0xff] %vm462, %v391
    %521 = vst.msk [vmem:[#allocation2 + $0x1d0] sm:$0xff] %vm462, %v393
    %522 = vst.msk [vmem:[#allocation2 + $0x1d8] sm:$0xff] %vm462, %v395
    %523 = vst.msk [vmem:[#allocation2 + $0x1e0] sm:$0xff] %vm462, %v397
    %524 = vst.msk [vmem:[#allocation2 + $0x1e8] sm:$0xff] %vm462, %v399
    %v525 = vld [vmem:[%s0 + $0x2] sm:$0xff]
    %v526 = vld [vmem:[%s0 + $0xa] sm:$0xff]
    %v527 = vld [vmem:[%s0 + $0x12] sm:$0xff]
    %v528 = vld [vmem:[%s0 + $0x1a] sm:$0xff]
    %v529 = vld [vmem:[%s0 + $0x22] sm:$0xff]
    %v530 = vld [vmem:[%s0 + $0x2a] sm:$0xff]
    %v531 = vld [vmem:[%s0 + $0x32] sm:$0xff]
    %v532 = vld [vmem:[%s0 + $0x3a] sm:$0xff]
    %v533 = vld [vmem:[%s0 + $0x42] sm:$0xff]
    %v534 = vld [vmem:[%s0 + $0x4a] sm:$0xff]
    %v535 = vld [vmem:[%s0 + $0x52] sm:$0xff]
    %v536 = vld [vmem:[%s0 + $0x5a] sm:$0xff]
    %v537 = vld [vmem:[%s0 + $0x62] sm:$0xff]
    %v538 = vld [vmem:[%s0 + $0x6a] sm:$0xff]
    %v539 = vld [vmem:[%s0 + $0x72] sm:$0xff]
    %v540 = vld [vmem:[%s0 + $0x7a] sm:$0xff]
    %v541 = vld [vmem:[%s0 + $0x82] sm:$0xff]
    %v542 = vld [vmem:[%s0 + $0x8a] sm:$0xff]
    %v543 = vld [vmem:[%s0 + $0x92] sm:$0xff]
    %v544 = vld [vmem:[%s0 + $0x9a] sm:$0xff]
    %v545 = vld [vmem:[%s0 + $0xa2] sm:$0xff]
    %v546 = vld [vmem:[%s0 + $0xaa] sm:$0xff]
    %v547 = vld [vmem:[%s0 + $0xb2] sm:$0xff]
    %v548 = vld [vmem:[%s0 + $0xba] sm:$0xff]
    %v549 = vld [vmem:[%s0 + $0xc2] sm:$0xff]
    %v550 = vld [vmem:[%s0 + $0xca] sm:$0xff]
    %v551 = vld [vmem:[%s0 + $0xd2] sm:$0xff]
    %v552 = vld [vmem:[%s0 + $0xda] sm:$0xff]
    %v553 = vld [vmem:[%s0 + $0xe2] sm:$0xff]
    %v554 = vld [vmem:[%s0 + $0xea] sm:$0xff]
    %v555 = vld [vmem:[%s0 + $0xf2] sm:$0xff]
    %v556 = vld [vmem:[%s0 + $0xfa] sm:$0xff]
    %v557 = vld [vmem:[%s0 + $0x102] sm:$0xff]
    %v558 = vld [vmem:[%s0 + $0x10a] sm:$0xff]
    %v559 = vld [vmem:[%s0 + $0x112] sm:$0xff]
    %v560 = vld [vmem:[%s0 + $0x11a] sm:$0xff]
    %v561 = vld [vmem:[%s0 + $0x122] sm:$0xff]
    %v562 = vld [vmem:[%s0 + $0x12a] sm:$0xff]
    %v563 = vld [vmem:[%s0 + $0x132] sm:$0xff]
    %v564 = vld [vmem:[%s0 + $0x13a] sm:$0xff]
    %v565 = vld [vmem:[%s0 + $0x142] sm:$0xff]
    %v566 = vld [vmem:[%s0 + $0x14a] sm:$0xff]
    %v567 = vld [vmem:[%s0 + $0x152] sm:$0xff]
    %v568 = vld [vmem:[%s0 + $0x15a] sm:$0xff]
    %v569 = vld [vmem:[%s0 + $0x162] sm:$0xff]
    %v570 = vld [vmem:[%s0 + $0x16a] sm:$0xff]
    %v571 = vld [vmem:[%s0 + $0x172] sm:$0xff]
    %v572 = vld [vmem:[%s0 + $0x17a] sm:$0xff]
    %v573 = vld [vmem:[%s0 + $0x182] sm:$0xff]
    %v574 = vld [vmem:[%s0 + $0x18a] sm:$0xff]
    %v575 = vld [vmem:[%s0 + $0x192] sm:$0xff]
    %v576 = vld [vmem:[%s0 + $0x19a] sm:$0xff]
    %v577 = vld [vmem:[%s0 + $0x1a2] sm:$0xff]
    %v578 = vld [vmem:[%s0 + $0x1aa] sm:$0xff]
    %v579 = vld [vmem:[%s0 + $0x1b2] sm:$0xff]
    %v580 = vld [vmem:[%s0 + $0x1ba] sm:$0xff]
    %v581 = vld [vmem:[%s0 + $0x1c2] sm:$0xff]
    %v582 = vld [vmem:[%s0 + $0x1ca] sm:$0xff]
    %v583 = vld [vmem:[%s0 + $0x1d2] sm:$0xff]
    %v584 = vld [vmem:[%s0 + $0x1da] sm:$0xff]
    %v585 = vld [vmem:[%s0 + $0x1e2] sm:$0xff]
    %v586 = vld [vmem:[%s0 + $0x1ea] sm:$0xff]
    %649 = vrot.lane.b32.xlu0 %v525, 32
    %v650 = vpop.permute.xlu0 %649
    %651 = vrot.lane.b32.xlu0 %v526, 32
    %v652 = vpop.permute.xlu0 %651
    %653 = vrot.lane.b32.xlu0 %v527, 32
    %v654 = vpop.permute.xlu0 %653
    %655 = vrot.lane.b32.xlu0 %v528, 32
    %v656 = vpop.permute.xlu0 %655
    %657 = vrot.lane.b32.xlu0 %v529, 32
    %v658 = vpop.permute.xlu0 %657
    %659 = vrot.lane.b32.xlu0 %v530, 32
    %v660 = vpop.permute.xlu0 %659
    %661 = vrot.lane.b32.xlu0 %v531, 32
    %v662 = vpop.permute.xlu0 %661
    %663 = vrot.lane.b32.xlu0 %v532, 32
    %v664 = vpop.permute.xlu0 %663
    %665 = vrot.lane.b32.xlu0 %v533, 32
    %v666 = vpop.permute.xlu0 %665
    %667 = vrot.lane.b32.xlu0 %v534, 32
    %v668 = vpop.permute.xlu0 %667
    %669 = vrot.lane.b32.xlu0 %v535, 32
    %v670 = vpop.permute.xlu0 %669
    %671 = vrot.lane.b32.xlu0 %v536, 32
    %v672 = vpop.permute.xlu0 %671
    %673 = vrot.lane.b32.xlu0 %v537, 32
    %v674 = vpop.permute.xlu0 %673
    %675 = vrot.lane.b32.xlu0 %v538, 32
    %v676 = vpop.permute.xlu0 %675
    %677 = vrot.lane.b32.xlu0 %v539, 32
    %v678 = vpop.permute.xlu0 %677
    %679 = vrot.lane.b32.xlu0 %v540, 32
    %v680 = vpop.permute.xlu0 %679
    %681 = vrot.lane.b32.xlu0 %v541, 32
    %v682 = vpop.permute.xlu0 %681
    %683 = vrot.lane.b32.xlu0 %v542, 32
    %v684 = vpop.permute.xlu0 %683
    %685 = vrot.lane.b32.xlu0 %v543, 32
    %v686 = vpop.permute.xlu0 %685
    %687 = vrot.lane.b32.xlu0 %v544, 32
    %v688 = vpop.permute.xlu0 %687
    %689 = vrot.lane.b32.xlu0 %v545, 32
    %v690 = vpop.permute.xlu0 %689
    %691 = vrot.lane.b32.xlu0 %v546, 32
    %v692 = vpop.permute.xlu0 %691
    %693 = vrot.lane.b32.xlu0 %v547, 32
    %v694 = vpop.permute.xlu0 %693
    %695 = vrot.lane.b32.xlu0 %v548, 32
    %v696 = vpop.permute.xlu0 %695
    %697 = vrot.lane.b32.xlu0 %v549, 32
    %v698 = vpop.permute.xlu0 %697
    %699 = vrot.lane.b32.xlu0 %v550, 32
    %v700 = vpop.permute.xlu0 %699
    %701 = vrot.lane.b32.xlu0 %v551, 32
    %v702 = vpop.permute.xlu0 %701
    %703 = vrot.lane.b32.xlu0 %v552, 32
    %v704 = vpop.permute.xlu0 %703
    %705 = vrot.lane.b32.xlu0 %v553, 32
    %v706 = vpop.permute.xlu0 %705
    %707 = vrot.lane.b32.xlu0 %v554, 32
    %v708 = vpop.permute.xlu0 %707
    %709 = vrot.lane.b32.xlu0 %v555, 32
    %v710 = vpop.permute.xlu0 %709
    %711 = vrot.lane.b32.xlu0 %v556, 32
    %v712 = vpop.permute.xlu0 %711
    %713 = vrot.lane.b32.xlu0 %v557, 32
    %v714 = vpop.permute.xlu0 %713
    %715 = vrot.lane.b32.xlu0 %v558, 32
    %v716 = vpop.permute.xlu0 %715
    %717 = vrot.lane.b32.xlu0 %v559, 32
    %v718 = vpop.permute.xlu0 %717
    %719 = vrot.lane.b32.xlu0 %v560, 32
    %v720 = vpop.permute.xlu0 %719
    %721 = vrot.lane.b32.xlu0 %v561, 32
    %v722 = vpop.permute.xlu0 %721
    %723 = vrot.lane.b32.xlu0 %v562, 32
    %v724 = vpop.permute.xlu0 %723
    %725 = vrot.lane.b32.xlu0 %v563, 32
    %v726 = vpop.permute.xlu0 %725
    %727 = vrot.lane.b32.xlu0 %v564, 32
    %v728 = vpop.permute.xlu0 %727
    %729 = vrot.lane.b32.xlu0 %v565, 32
    %v730 = vpop.permute.xlu0 %729
    %731 = vrot.lane.b32.xlu0 %v566, 32
    %v732 = vpop.permute.xlu0 %731
    %733 = vrot.lane.b32.xlu0 %v567, 32
    %v734 = vpop.permute.xlu0 %733
    %735 = vrot.lane.b32.xlu0 %v568, 32
    %v736 = vpop.permute.xlu0 %735
    %737 = vrot.lane.b32.xlu0 %v569, 32
    %v738 = vpop.permute.xlu0 %737
    %739 = vrot.lane.b32.xlu0 %v570, 32
    %v740 = vpop.permute.xlu0 %739
    %741 = vrot.lane.b32.xlu0 %v571, 32
    %v742 = vpop.permute.xlu0 %741
    %743 = vrot.lane.b32.xlu0 %v572, 32
    %v744 = vpop.permute.xlu0 %743
    %745 = vrot.lane.b32.xlu0 %v573, 32
    %v746 = vpop.permute.xlu0 %745
    %747 = vrot.lane.b32.xlu0 %v574, 32
    %v748 = vpop.permute.xlu0 %747
    %749 = vrot.lane.b32.xlu0 %v575, 32
    %v750 = vpop.permute.xlu0 %749
    %751 = vrot.lane.b32.xlu0 %v576, 32
    %v752 = vpop.permute.xlu0 %751
    %753 = vrot.lane.b32.xlu0 %v577, 32
    %v754 = vpop.permute.xlu0 %753
    %755 = vrot.lane.b32.xlu0 %v578, 32
    %v756 = vpop.permute.xlu0 %755
    %757 = vrot.lane.b32.xlu0 %v579, 32
    %v758 = vpop.permute.xlu0 %757
    %759 = vrot.lane.b32.xlu0 %v580, 32
    %v760 = vpop.permute.xlu0 %759
    %761 = vrot.lane.b32.xlu0 %v581, 32
    %v762 = vpop.permute.xlu0 %761
    %763 = vrot.lane.b32.xlu0 %v582, 32
    %v764 = vpop.permute.xlu0 %763
    %765 = vrot.lane.b32.xlu0 %v583, 32
    %v766 = vpop.permute.xlu0 %765
    %767 = vrot.lane.b32.xlu0 %v584, 32
    %v768 = vpop.permute.xlu0 %767
    %769 = vrot.lane.b32.xlu0 %v585, 32
    %v770 = vpop.permute.xlu0 %769
    %771 = vrot.lane.b32.xlu0 %v586, 32
    %v772 = vpop.permute.xlu0 %771
    %vm835 = vcmask 392448
    %836 = vst.msk [vmem:[#allocation2] sm:$0xff] %vm835, %v650
    %837 = vst.msk [vmem:[#allocation2 + $0x8] sm:$0xff] %vm835, %v652
    %838 = vst.msk [vmem:[#allocation2 + $0x10] sm:$0xff] %vm835, %v654
    %839 = vst.msk [vmem:[#allocation2 + $0x18] sm:$0xff] %vm835, %v656
    %840 = vst.msk [vmem:[#allocation2 + $0x20] sm:$0xff] %vm835, %v658
    %841 = vst.msk [vmem:[#allocation2 + $0x28] sm:$0xff] %vm835, %v660
    %842 = vst.msk [vmem:[#allocation2 + $0x30] sm:$0xff] %vm835, %v662
    %843 = vst.msk [vmem:[#allocation2 + $0x38] sm:$0xff] %vm835, %v664
    %844 = vst.msk [vmem:[#allocation2 + $0x40] sm:$0xff] %vm835, %v666
    %845 = vst.msk [vmem:[#allocation2 + $0x48] sm:$0xff] %vm835, %v668
    %846 = vst.msk [vmem:[#allocation2 + $0x50] sm:$0xff] %vm835, %v670
    %847 = vst.msk [vmem:[#allocation2 + $0x58] sm:$0xff] %vm835, %v672
    %848 = vst.msk [vmem:[#allocation2 + $0x60] sm:$0xff] %vm835, %v674
    %849 = vst.msk [vmem:[#allocation2 + $0x68] sm:$0xff] %vm835, %v676
    %850 = vst.msk [vmem:[#allocation2 + $0x70] sm:$0xff] %vm835, %v678
    %851 = vst.msk [vmem:[#allocation2 + $0x78] sm:$0xff] %vm835, %v680
    %852 = vst.msk [vmem:[#allocation2 + $0x80] sm:$0xff] %vm835, %v682
    %853 = vst.msk [vmem:[#allocation2 + $0x88] sm:$0xff] %vm835, %v684
    %854 = vst.msk [vmem:[#allocation2 + $0x90] sm:$0xff] %vm835, %v686
    %855 = vst.msk [vmem:[#allocation2 + $0x98] sm:$0xff] %vm835, %v688
    %856 = vst.msk [vmem:[#allocation2 + $0xa0] sm:$0xff] %vm835, %v690
    %857 = vst.msk [vmem:[#allocation2 + $0xa8] sm:$0xff] %vm835, %v692
    %858 = vst.msk [vmem:[#allocation2 + $0xb0] sm:$0xff] %vm835, %v694
    %859 = vst.msk [vmem:[#allocation2 + $0xb8] sm:$0xff] %vm835, %v696
    %860 = vst.msk [vmem:[#allocation2 + $0xc0] sm:$0xff] %vm835, %v698
    %861 = vst.msk [vmem:[#allocation2 + $0xc8] sm:$0xff] %vm835, %v700
    %862 = vst.msk [vmem:[#allocation2 + $0xd0] sm:$0xff] %vm835, %v702
    %863 = vst.msk [vmem:[#allocation2 + $0xd8] sm:$0xff] %vm835, %v704
    %864 = vst.msk [vmem:[#allocation2 + $0xe0] sm:$0xff] %vm835, %v706
    %865 = vst.msk [vmem:[#allocation2 + $0xe8] sm:$0xff] %vm835, %v708
    %866 = vst.msk [vmem:[#allocation2 + $0xf0] sm:$0xff] %vm835, %v710
    %867 = vst.msk [vmem:[#allocation2 + $0xf8] sm:$0xff] %vm835, %v712
    %868 = vst.msk [vmem:[#allocation2 + $0x100] sm:$0xff] %vm835, %v714
    %869 = vst.msk [vmem:[#allocation2 + $0x108] sm:$0xff] %vm835, %v716
    %870 = vst.msk [vmem:[#allocation2 + $0x110] sm:$0xff] %vm835, %v718
    %871 = vst.msk [vmem:[#allocation2 + $0x118] sm:$0xff] %vm835, %v720
    %872 = vst.msk [vmem:[#allocation2 + $0x120] sm:$0xff] %vm835, %v722
    %873 = vst.msk [vmem:[#allocation2 + $0x128] sm:$0xff] %vm835, %v724
    %874 = vst.msk [vmem:[#allocation2 + $0x130] sm:$0xff] %vm835, %v726
    %875 = vst.msk [vmem:[#allocation2 + $0x138] sm:$0xff] %vm835, %v728
    %876 = vst.msk [vmem:[#allocation2 + $0x140] sm:$0xff] %vm835, %v730
    %877 = vst.msk [vmem:[#allocation2 + $0x148] sm:$0xff] %vm835, %v732
    %878 = vst.msk [vmem:[#allocation2 + $0x150] sm:$0xff] %vm835, %v734
    %879 = vst.msk [vmem:[#allocation2 + $0x158] sm:$0xff] %vm835, %v736
    %880 = vst.msk [vmem:[#allocation2 + $0x160] sm:$0xff] %vm835, %v738
    %881 = vst.msk [vmem:[#allocation2 + $0x168] sm:$0xff] %vm835, %v740
    %882 = vst.msk [vmem:[#allocation2 + $0x170] sm:$0xff] %vm835, %v742
    %883 = vst.msk [vmem:[#allocation2 + $0x178] sm:$0xff] %vm835, %v744
    %884 = vst.msk [vmem:[#allocation2 + $0x180] sm:$0xff] %vm835, %v746
    %885 = vst.msk [vmem:[#allocation2 + $0x188] sm:$0xff] %vm835, %v748
    %886 = vst.msk [vmem:[#allocation2 + $0x190] sm:$0xff] %vm835, %v750
    %887 = vst.msk [vmem:[#allocation2 + $0x198] sm:$0xff] %vm835, %v752
    %888 = vst.msk [vmem:[#allocation2 + $0x1a0] sm:$0xff] %vm835, %v754
    %889 = vst.msk [vmem:[#allocation2 + $0x1a8] sm:$0xff] %vm835, %v756
    %890 = vst.msk [vmem:[#allocation2 + $0x1b0] sm:$0xff] %vm835, %v758
    %891 = vst.msk [vmem:[#allocation2 + $0x1b8] sm:$0xff] %vm835, %v760
    %892 = vst.msk [vmem:[#allocation2 + $0x1c0] sm:$0xff] %vm835, %v762
    %893 = vst.msk [vmem:[#allocation2 + $0x1c8] sm:$0xff] %vm835, %v764
    %894 = vst.msk [vmem:[#allocation2 + $0x1d0] sm:$0xff] %vm835, %v766
    %895 = vst.msk [vmem:[#allocation2 + $0x1d8] sm:$0xff] %vm835, %v768
    %896 = vst.msk [vmem:[#allocation2 + $0x1e0] sm:$0xff] %vm835, %v770
    %897 = vst.msk [vmem:[#allocation2 + $0x1e8] sm:$0xff] %vm835, %v772
    %v898 = vld [vmem:[%s0 + $0x3] sm:$0xff]
    %v899 = vld [vmem:[%s0 + $0xb] sm:$0xff]
    %v900 = vld [vmem:[%s0 + $0x13] sm:$0xff]
    %v901 = vld [vmem:[%s0 + $0x1b] sm:$0xff]
    %v902 = vld [vmem:[%s0 + $0x23] sm:$0xff]
    %v903 = vld [vmem:[%s0 + $0x2b] sm:$0xff]
    %v904 = vld [vmem:[%s0 + $0x33] sm:$0xff]
    %v905 = vld [vmem:[%s0 + $0x3b] sm:$0xff]
    %v906 = vld [vmem:[%s0 + $0x43] sm:$0xff]
    %v907 = vld [vmem:[%s0 + $0x4b] sm:$0xff]
    %v908 = vld [vmem:[%s0 + $0x53] sm:$0xff]
    %v909 = vld [vmem:[%s0 + $0x5b] sm:$0xff]
    %v910 = vld [vmem:[%s0 + $0x63] sm:$0xff]
    %v911 = vld [vmem:[%s0 + $0x6b] sm:$0xff]
    %v912 = vld [vmem:[%s0 + $0x73] sm:$0xff]
    %v913 = vld [vmem:[%s0 + $0x7b] sm:$0xff]
    %v914 = vld [vmem:[%s0 + $0x83] sm:$0xff]
    %v915 = vld [vmem:[%s0 + $0x8b] sm:$0xff]
    %v916 = vld [vmem:[%s0 + $0x93] sm:$0xff]
    %v917 = vld [vmem:[%s0 + $0x9b] sm:$0xff]
    %v918 = vld [vmem:[%s0 + $0xa3] sm:$0xff]
    %v919 = vld [vmem:[%s0 + $0xab] sm:$0xff]
    %v920 = vld [vmem:[%s0 + $0xb3] sm:$0xff]
    %v921 = vld [vmem:[%s0 + $0xbb] sm:$0xff]
    %v922 = vld [vmem:[%s0 + $0xc3] sm:$0xff]
    %v923 = vld [vmem:[%s0 + $0xcb] sm:$0xff]
    %v924 = vld [vmem:[%s0 + $0xd3] sm:$0xff]
    %v925 = vld [vmem:[%s0 + $0xdb] sm:$0xff]
    %v926 = vld [vmem:[%s0 + $0xe3] sm:$0xff]
    %v927 = vld [vmem:[%s0 + $0xeb] sm:$0xff]
    %v928 = vld [vmem:[%s0 + $0xf3] sm:$0xff]
    %v929 = vld [vmem:[%s0 + $0xfb] sm:$0xff]
    %v930 = vld [vmem:[%s0 + $0x103] sm:$0xff]
    %v931 = vld [vmem:[%s0 + $0x10b] sm:$0xff]
    %v932 = vld [vmem:[%s0 + $0x113] sm:$0xff]
    %v933 = vld [vmem:[%s0 + $0x11b] sm:$0xff]
    %v934 = vld [vmem:[%s0 + $0x123] sm:$0xff]
    %v935 = vld [vmem:[%s0 + $0x12b] sm:$0xff]
    %v936 = vld [vmem:[%s0 + $0x133] sm:$0xff]
    %v937 = vld [vmem:[%s0 + $0x13b] sm:$0xff]
    %v938 = vld [vmem:[%s0 + $0x143] sm:$0xff]
    %v939 = vld [vmem:[%s0 + $0x14b] sm:$0xff]
    %v940 = vld [vmem:[%s0 + $0x153] sm:$0xff]
    %v941 = vld [vmem:[%s0 + $0x15b] sm:$0xff]
    %v942 = vld [vmem:[%s0 + $0x163] sm:$0xff]
    %v943 = vld [vmem:[%s0 + $0x16b] sm:$0xff]
    %v944 = vld [vmem:[%s0 + $0x173] sm:$0xff]
    %v945 = vld [vmem:[%s0 + $0x17b] sm:$0xff]
    %v946 = vld [vmem:[%s0 + $0x183] sm:$0xff]
    %v947 = vld [vmem:[%s0 + $0x18b] sm:$0xff]
    %v948 = vld [vmem:[%s0 + $0x193] sm:$0xff]
    %v949 = vld [vmem:[%s0 + $0x19b] sm:$0xff]
    %v950 = vld [vmem:[%s0 + $0x1a3] sm:$0xff]
    %v951 = vld [vmem:[%s0 + $0x1ab] sm:$0xff]
    %v952 = vld [vmem:[%s0 + $0x1b3] sm:$0xff]
    %v953 = vld [vmem:[%s0 + $0x1bb] sm:$0xff]
    %v954 = vld [vmem:[%s0 + $0x1c3] sm:$0xff]
    %v955 = vld [vmem:[%s0 + $0x1cb] sm:$0xff]
    %v956 = vld [vmem:[%s0 + $0x1d3] sm:$0xff]
    %v957 = vld [vmem:[%s0 + $0x1db] sm:$0xff]
    %v958 = vld [vmem:[%s0 + $0x1e3] sm:$0xff]
    %v959 = vld [vmem:[%s0 + $0x1eb] sm:$0xff]
    %1022 = vrot.lane.b32.xlu0 %v898, 48
    %v1023 = vpop.permute.xlu0 %1022
    %1024 = vrot.lane.b32.xlu0 %v899, 48
    %v1025 = vpop.permute.xlu0 %1024
    %1026 = vrot.lane.b32.xlu0 %v900, 48
    %v1027 = vpop.permute.xlu0 %1026
    %1028 = vrot.lane.b32.xlu0 %v901, 48
    %v1029 = vpop.permute.xlu0 %1028
    %1030 = vrot.lane.b32.xlu0 %v902, 48
    %v1031 = vpop.permute.xlu0 %1030
    %1032 = vrot.lane.b32.xlu0 %v903, 48
    %v1033 = vpop.permute.xlu0 %1032
    %1034 = vrot.lane.b32.xlu0 %v904, 48
    %v1035 = vpop.permute.xlu0 %1034
    %1036 = vrot.lane.b32.xlu0 %v905, 48
    %v1037 = vpop.permute.xlu0 %1036
    %1038 = vrot.lane.b32.xlu0 %v906, 48
    %v1039 = vpop.permute.xlu0 %1038
    %1040 = vrot.lane.b32.xlu0 %v907, 48
    %v1041 = vpop.permute.xlu0 %1040
    %1042 = vrot.lane.b32.xlu0 %v908, 48
    %v1043 = vpop.permute.xlu0 %1042
    %1044 = vrot.lane.b32.xlu0 %v909, 48
    %v1045 = vpop.permute.xlu0 %1044
    %1046 = vrot.lane.b32.xlu0 %v910, 48
    %v1047 = vpop.permute.xlu0 %1046
    %1048 = vrot.lane.b32.xlu0 %v911, 48
    %v1049 = vpop.permute.xlu0 %1048
    %1050 = vrot.lane.b32.xlu0 %v912, 48
    %v1051 = vpop.permute.xlu0 %1050
    %1052 = vrot.lane.b32.xlu0 %v913, 48
    %v1053 = vpop.permute.xlu0 %1052
    %1054 = vrot.lane.b32.xlu0 %v914, 48
    %v1055 = vpop.permute.xlu0 %1054
    %1056 = vrot.lane.b32.xlu0 %v915, 48
    %v1057 = vpop.permute.xlu0 %1056
    %1058 = vrot.lane.b32.xlu0 %v916, 48
    %v1059 = vpop.permute.xlu0 %1058
    %1060 = vrot.lane.b32.xlu0 %v917, 48
    %v1061 = vpop.permute.xlu0 %1060
    %1062 = vrot.lane.b32.xlu0 %v918, 48
    %v1063 = vpop.permute.xlu0 %1062
    %1064 = vrot.lane.b32.xlu0 %v919, 48
    %v1065 = vpop.permute.xlu0 %1064
    %1066 = vrot.lane.b32.xlu0 %v920, 48
    %v1067 = vpop.permute.xlu0 %1066
    %1068 = vrot.lane.b32.xlu0 %v921, 48
    %v1069 = vpop.permute.xlu0 %1068
    %1070 = vrot.lane.b32.xlu0 %v922, 48
    %v1071 = vpop.permute.xlu0 %1070
    %1072 = vrot.lane.b32.xlu0 %v923, 48
    %v1073 = vpop.permute.xlu0 %1072
    %1074 = vrot.lane.b32.xlu0 %v924, 48
    %v1075 = vpop.permute.xlu0 %1074
    %1076 = vrot.lane.b32.xlu0 %v925, 48
    %v1077 = vpop.permute.xlu0 %1076
    %1078 = vrot.lane.b32.xlu0 %v926, 48
    %v1079 = vpop.permute.xlu0 %1078
    %1080 = vrot.lane.b32.xlu0 %v927, 48
    %v1081 = vpop.permute.xlu0 %1080
    %1082 = vrot.lane.b32.xlu0 %v928, 48
    %v1083 = vpop.permute.xlu0 %1082
    %1084 = vrot.lane.b32.xlu0 %v929, 48
    %v1085 = vpop.permute.xlu0 %1084
    %1086 = vrot.lane.b32.xlu0 %v930, 48
    %v1087 = vpop.permute.xlu0 %1086
    %1088 = vrot.lane.b32.xlu0 %v931, 48
    %v1089 = vpop.permute.xlu0 %1088
    %1090 = vrot.lane.b32.xlu0 %v932, 48
    %v1091 = vpop.permute.xlu0 %1090
    %1092 = vrot.lane.b32.xlu0 %v933, 48
    %v1093 = vpop.permute.xlu0 %1092
    %1094 = vrot.lane.b32.xlu0 %v934, 48
    %v1095 = vpop.permute.xlu0 %1094
    %1096 = vrot.lane.b32.xlu0 %v935, 48
    %v1097 = vpop.permute.xlu0 %1096
    %1098 = vrot.lane.b32.xlu0 %v936, 48
    %v1099 = vpop.permute.xlu0 %1098
    %1100 = vrot.lane.b32.xlu0 %v937, 48
    %v1101 = vpop.permute.xlu0 %1100
    %1102 = vrot.lane.b32.xlu0 %v938, 48
    %v1103 = vpop.permute.xlu0 %1102
    %1104 = vrot.lane.b32.xlu0 %v939, 48
    %v1105 = vpop.permute.xlu0 %1104
    %1106 = vrot.lane.b32.xlu0 %v940, 48
    %v1107 = vpop.permute.xlu0 %1106
    %1108 = vrot.lane.b32.xlu0 %v941, 48
    %v1109 = vpop.permute.xlu0 %1108
    %1110 = vrot.lane.b32.xlu0 %v942, 48
    %v1111 = vpop.permute.xlu0 %1110
    %1112 = vrot.lane.b32.xlu0 %v943, 48
    %v1113 = vpop.permute.xlu0 %1112
    %1114 = vrot.lane.b32.xlu0 %v944, 48
    %v1115 = vpop.permute.xlu0 %1114
    %1116 = vrot.lane.b32.xlu0 %v945, 48
    %v1117 = vpop.permute.xlu0 %1116
    %1118 = vrot.lane.b32.xlu0 %v946, 48
    %v1119 = vpop.permute.xlu0 %1118
    %1120 = vrot.lane.b32.xlu0 %v947, 48
    %v1121 = vpop.permute.xlu0 %1120
    %1122 = vrot.lane.b32.xlu0 %v948, 48
    %v1123 = vpop.permute.xlu0 %1122
    %1124 = vrot.lane.b32.xlu0 %v949, 48
    %v1125 = vpop.permute.xlu0 %1124
    %1126 = vrot.lane.b32.xlu0 %v950, 48
    %v1127 = vpop.permute.xlu0 %1126
    %1128 = vrot.lane.b32.xlu0 %v951, 48
    %v1129 = vpop.permute.xlu0 %1128
    %1130 = vrot.lane.b32.xlu0 %v952, 48
    %v1131 = vpop.permute.xlu0 %1130
    %1132 = vrot.lane.b32.xlu0 %v953, 48
    %v1133 = vpop.permute.xlu0 %1132
    %1134 = vrot.lane.b32.xlu0 %v954, 48
    %v1135 = vpop.permute.xlu0 %1134
    %1136 = vrot.lane.b32.xlu0 %v955, 48
    %v1137 = vpop.permute.xlu0 %1136
    %1138 = vrot.lane.b32.xlu0 %v956, 48
    %v1139 = vpop.permute.xlu0 %1138
    %1140 = vrot.lane.b32.xlu0 %v957, 48
    %v1141 = vpop.permute.xlu0 %1140
    %1142 = vrot.lane.b32.xlu0 %v958, 48
    %v1143 = vpop.permute.xlu0 %1142
    %1144 = vrot.lane.b32.xlu0 %v959, 48
    %v1145 = vpop.permute.xlu0 %1144
    %vm1208 = vcmask 523648
    %1209 = vst.msk [vmem:[#allocation2] sm:$0xff] %vm1208, %v1023
    %1210 = vst.msk [vmem:[#allocation2 + $0x8] sm:$0xff] %vm1208, %v1025
    %1211 = vst.msk [vmem:[#allocation2 + $0x10] sm:$0xff] %vm1208, %v1027
    %1212 = vst.msk [vmem:[#allocation2 + $0x18] sm:$0xff] %vm1208, %v1029
    %1213 = vst.msk [vmem:[#allocation2 + $0x20] sm:$0xff] %vm1208, %v1031
    %1214 = vst.msk [vmem:[#allocation2 + $0x28] sm:$0xff] %vm1208, %v1033
    %1215 = vst.msk [vmem:[#allocation2 + $0x30] sm:$0xff] %vm1208, %v1035
    %1216 = vst.msk [vmem:[#allocation2 + $0x38] sm:$0xff] %vm1208, %v1037
    %1217 = vst.msk [vmem:[#allocation2 + $0x40] sm:$0xff] %vm1208, %v1039
    %1218 = vst.msk [vmem:[#allocation2 + $0x48] sm:$0xff] %vm1208, %v1041
    %1219 = vst.msk [vmem:[#allocation2 + $0x50] sm:$0xff] %vm1208, %v1043
    %1220 = vst.msk [vmem:[#allocation2 + $0x58] sm:$0xff] %vm1208, %v1045
    %1221 = vst.msk [vmem:[#allocation2 + $0x60] sm:$0xff] %vm1208, %v1047
    %1222 = vst.msk [vmem:[#allocation2 + $0x68] sm:$0xff] %vm1208, %v1049
    %1223 = vst.msk [vmem:[#allocation2 + $0x70] sm:$0xff] %vm1208, %v1051
    %1224 = vst.msk [vmem:[#allocation2 + $0x78] sm:$0xff] %vm1208, %v1053
    %1225 = vst.msk [vmem:[#allocation2 + $0x80] sm:$0xff] %vm1208, %v1055
    %1226 = vst.msk [vmem:[#allocation2 + $0x88] sm:$0xff] %vm1208, %v1057
    %1227 = vst.msk [vmem:[#allocation2 + $0x90] sm:$0xff] %vm1208, %v1059
    %1228 = vst.msk [vmem:[#allocation2 + $0x98] sm:$0xff] %vm1208, %v1061
    %1229 = vst.msk [vmem:[#allocation2 + $0xa0] sm:$0xff] %vm1208, %v1063
    %1230 = vst.msk [vmem:[#allocation2 + $0xa8] sm:$0xff] %vm1208, %v1065
    %1231 = vst.msk [vmem:[#allocation2 + $0xb0] sm:$0xff] %vm1208, %v1067
    %1232 = vst.msk [vmem:[#allocation2 + $0xb8] sm:$0xff] %vm1208, %v1069
    %1233 = vst.msk [vmem:[#allocation2 + $0xc0] sm:$0xff] %vm1208, %v1071
    %1234 = vst.msk [vmem:[#allocation2 + $0xc8] sm:$0xff] %vm1208, %v1073
    %1235 = vst.msk [vmem:[#allocation2 + $0xd0] sm:$0xff] %vm1208, %v1075
    %1236 = vst.msk [vmem:[#allocation2 + $0xd8] sm:$0xff] %vm1208, %v1077
    %1237 = vst.msk [vmem:[#allocation2 + $0xe0] sm:$0xff] %vm1208, %v1079
    %1238 = vst.msk [vmem:[#allocation2 + $0xe8] sm:$0xff] %vm1208, %v1081
    %1239 = vst.msk [vmem:[#allocation2 + $0xf0] sm:$0xff] %vm1208, %v1083
    %1240 = vst.msk [vmem:[#allocation2 + $0xf8] sm:$0xff] %vm1208, %v1085
    %1241 = vst.msk [vmem:[#allocation2 + $0x100] sm:$0xff] %vm1208, %v1087
    %1242 = vst.msk [vmem:[#allocation2 + $0x108] sm:$0xff] %vm1208, %v1089
    %1243 = vst.msk [vmem:[#allocation2 + $0x110] sm:$0xff] %vm1208, %v1091
    %1244 = vst.msk [vmem:[#allocation2 + $0x118] sm:$0xff] %vm1208, %v1093
    %1245 = vst.msk [vmem:[#allocation2 + $0x120] sm:$0xff] %vm1208, %v1095
    %1246 = vst.msk [vmem:[#allocation2 + $0x128] sm:$0xff] %vm1208, %v1097
    %1247 = vst.msk [vmem:[#allocation2 + $0x130] sm:$0xff] %vm1208, %v1099
    %1248 = vst.msk [vmem:[#allocation2 + $0x138] sm:$0xff] %vm1208, %v1101
    %1249 = vst.msk [vmem:[#allocation2 + $0x140] sm:$0xff] %vm1208, %v1103
    %1250 = vst.msk [vmem:[#allocation2 + $0x148] sm:$0xff] %vm1208, %v1105
    %1251 = vst.msk [vmem:[#allocation2 + $0x150] sm:$0xff] %vm1208, %v1107
    %1252 = vst.msk [vmem:[#allocation2 + $0x158] sm:$0xff] %vm1208, %v1109
    %1253 = vst.msk [vmem:[#allocation2 + $0x160] sm:$0xff] %vm1208, %v1111
    %1254 = vst.msk [vmem:[#allocation2 + $0x168] sm:$0xff] %vm1208, %v1113
    %1255 = vst.msk [vmem:[#allocation2 + $0x170] sm:$0xff] %vm1208, %v1115
    %1256 = vst.msk [vmem:[#allocation2 + $0x178] sm:$0xff] %vm1208, %v1117
    %1257 = vst.msk [vmem:[#allocation2 + $0x180] sm:$0xff] %vm1208, %v1119
    %1258 = vst.msk [vmem:[#allocation2 + $0x188] sm:$0xff] %vm1208, %v1121
    %1259 = vst.msk [vmem:[#allocation2 + $0x190] sm:$0xff] %vm1208, %v1123
    %1260 = vst.msk [vmem:[#allocation2 + $0x198] sm:$0xff] %vm1208, %v1125
    %1261 = vst.msk [vmem:[#allocation2 + $0x1a0] sm:$0xff] %vm1208, %v1127
    %1262 = vst.msk [vmem:[#allocation2 + $0x1a8] sm:$0xff] %vm1208, %v1129
    %1263 = vst.msk [vmem:[#allocation2 + $0x1b0] sm:$0xff] %vm1208, %v1131
    %1264 = vst.msk [vmem:[#allocation2 + $0x1b8] sm:$0xff] %vm1208, %v1133
    %1265 = vst.msk [vmem:[#allocation2 + $0x1c0] sm:$0xff] %vm1208, %v1135
    %1266 = vst.msk [vmem:[#allocation2 + $0x1c8] sm:$0xff] %vm1208, %v1137
    %1267 = vst.msk [vmem:[#allocation2 + $0x1d0] sm:$0xff] %vm1208, %v1139
    %1268 = vst.msk [vmem:[#allocation2 + $0x1d8] sm:$0xff] %vm1208, %v1141
    %1269 = vst.msk [vmem:[#allocation2 + $0x1e0] sm:$0xff] %vm1208, %v1143
    %1270 = vst.msk [vmem:[#allocation2 + $0x1e8] sm:$0xff] %vm1208, %v1145
    %v1271 = vld [vmem:[%s0 + $0x4] sm:$0xff]
    %v1272 = vld [vmem:[%s0 + $0xc] sm:$0xff]
    %v1273 = vld [vmem:[%s0 + $0x14] sm:$0xff]
    %v1274 = vld [vmem:[%s0 + $0x1c] sm:$0xff]
    %v1275 = vld [vmem:[%s0 + $0x24] sm:$0xff]
    %v1276 = vld [vmem:[%s0 + $0x2c] sm:$0xff]
    %v1277 = vld [vmem:[%s0 + $0x34] sm:$0xff]
    %v1278 = vld [vmem:[%s0 + $0x3c] sm:$0xff]
    %v1279 = vld [vmem:[%s0 + $0x44] sm:$0xff]
    %v1280 = vld [vmem:[%s0 + $0x4c] sm:$0xff]
    %v1281 = vld [vmem:[%s0 + $0x54] sm:$0xff]
    %v1282 = vld [vmem:[%s0 + $0x5c] sm:$0xff]
    %v1283 = vld [vmem:[%s0 + $0x64] sm:$0xff]
    %v1284 = vld [vmem:[%s0 + $0x6c] sm:$0xff]
    %v1285 = vld [vmem:[%s0 + $0x74] sm:$0xff]
    %v1286 = vld [vmem:[%s0 + $0x7c] sm:$0xff]
    %v1287 = vld [vmem:[%s0 + $0x84] sm:$0xff]
    %v1288 = vld [vmem:[%s0 + $0x8c] sm:$0xff]
    %v1289 = vld [vmem:[%s0 + $0x94] sm:$0xff]
    %v1290 = vld [vmem:[%s0 + $0x9c] sm:$0xff]
    %v1291 = vld [vmem:[%s0 + $0xa4] sm:$0xff]
    %v1292 = vld [vmem:[%s0 + $0xac] sm:$0xff]
    %v1293 = vld [vmem:[%s0 + $0xb4] sm:$0xff]
    %v1294 = vld [vmem:[%s0 + $0xbc] sm:$0xff]
    %v1295 = vld [vmem:[%s0 + $0xc4] sm:$0xff]
    %v1296 = vld [vmem:[%s0 + $0xcc] sm:$0xff]
    %v1297 = vld [vmem:[%s0 + $0xd4] sm:$0xff]
    %v1298 = vld [vmem:[%s0 + $0xdc] sm:$0xff]
    %v1299 = vld [vmem:[%s0 + $0xe4] sm:$0xff]
    %v1300 = vld [vmem:[%s0 + $0xec] sm:$0xff]
    %v1301 = vld [vmem:[%s0 + $0xf4] sm:$0xff]
    %v1302 = vld [vmem:[%s0 + $0xfc] sm:$0xff]
    %v1303 = vld [vmem:[%s0 + $0x104] sm:$0xff]
    %v1304 = vld [vmem:[%s0 + $0x10c] sm:$0xff]
    %v1305 = vld [vmem:[%s0 + $0x114] sm:$0xff]
    %v1306 = vld [vmem:[%s0 + $0x11c] sm:$0xff]
    %v1307 = vld [vmem:[%s0 + $0x124] sm:$0xff]
    %v1308 = vld [vmem:[%s0 + $0x12c] sm:$0xff]
    %v1309 = vld [vmem:[%s0 + $0x134] sm:$0xff]
    %v1310 = vld [vmem:[%s0 + $0x13c] sm:$0xff]
    %v1311 = vld [vmem:[%s0 + $0x144] sm:$0xff]
    %v1312 = vld [vmem:[%s0 + $0x14c] sm:$0xff]
    %v1313 = vld [vmem:[%s0 + $0x154] sm:$0xff]
    %v1314 = vld [vmem:[%s0 + $0x15c] sm:$0xff]
    %v1315 = vld [vmem:[%s0 + $0x164] sm:$0xff]
    %v1316 = vld [vmem:[%s0 + $0x16c] sm:$0xff]
    %v1317 = vld [vmem:[%s0 + $0x174] sm:$0xff]
    %v1318 = vld [vmem:[%s0 + $0x17c] sm:$0xff]
    %v1319 = vld [vmem:[%s0 + $0x184] sm:$0xff]
    %v1320 = vld [vmem:[%s0 + $0x18c] sm:$0xff]
    %v1321 = vld [vmem:[%s0 + $0x194] sm:$0xff]
    %v1322 = vld [vmem:[%s0 + $0x19c] sm:$0xff]
    %v1323 = vld [vmem:[%s0 + $0x1a4] sm:$0xff]
    %v1324 = vld [vmem:[%s0 + $0x1ac] sm:$0xff]
    %v1325 = vld [vmem:[%s0 + $0x1b4] sm:$0xff]
    %v1326 = vld [vmem:[%s0 + $0x1bc] sm:$0xff]
    %v1327 = vld [vmem:[%s0 + $0x1c4] sm:$0xff]
    %v1328 = vld [vmem:[%s0 + $0x1cc] sm:$0xff]
    %v1329 = vld [vmem:[%s0 + $0x1d4] sm:$0xff]
    %v1330 = vld [vmem:[%s0 + $0x1dc] sm:$0xff]
    %v1331 = vld [vmem:[%s0 + $0x1e4] sm:$0xff]
    %v1332 = vld [vmem:[%s0 + $0x1ec] sm:$0xff]
    %1395 = vrot.lane.b32.xlu0 %v1271, 64
    %v1396 = vpop.permute.xlu0 %1395
    %1397 = vrot.lane.b32.xlu0 %v1272, 64
    %v1398 = vpop.permute.xlu0 %1397
    %1399 = vrot.lane.b32.xlu0 %v1273, 64
    %v1400 = vpop.permute.xlu0 %1399
    %1401 = vrot.lane.b32.xlu0 %v1274, 64
    %v1402 = vpop.permute.xlu0 %1401
    %1403 = vrot.lane.b32.xlu0 %v1275, 64
    %v1404 = vpop.permute.xlu0 %1403
    %1405 = vrot.lane.b32.xlu0 %v1276, 64
    %v1406 = vpop.permute.xlu0 %1405
    %1407 = vrot.lane.b32.xlu0 %v1277, 64
    %v1408 = vpop.permute.xlu0 %1407
    %1409 = vrot.lane.b32.xlu0 %v1278, 64
    %v1410 = vpop.permute.xlu0 %1409
    %1411 = vrot.lane.b32.xlu0 %v1279, 64
    %v1412 = vpop.permute.xlu0 %1411
    %1413 = vrot.lane.b32.xlu0 %v1280, 64
    %v1414 = vpop.permute.xlu0 %1413
    %1415 = vrot.lane.b32.xlu0 %v1281, 64
    %v1416 = vpop.permute.xlu0 %1415
    %1417 = vrot.lane.b32.xlu0 %v1282, 64
    %v1418 = vpop.permute.xlu0 %1417
    %1419 = vrot.lane.b32.xlu0 %v1283, 64
    %v1420 = vpop.permute.xlu0 %1419
    %1421 = vrot.lane.b32.xlu0 %v1284, 64
    %v1422 = vpop.permute.xlu0 %1421
    %1423 = vrot.lane.b32.xlu0 %v1285, 64
    %v1424 = vpop.permute.xlu0 %1423
    %1425 = vrot.lane.b32.xlu0 %v1286, 64
    %v1426 = vpop.permute.xlu0 %1425
    %1427 = vrot.lane.b32.xlu0 %v1287, 64
    %v1428 = vpop.permute.xlu0 %1427
    %1429 = vrot.lane.b32.xlu0 %v1288, 64
    %v1430 = vpop.permute.xlu0 %1429
    %1431 = vrot.lane.b32.xlu0 %v1289, 64
    %v1432 = vpop.permute.xlu0 %1431
    %1433 = vrot.lane.b32.xlu0 %v1290, 64
    %v1434 = vpop.permute.xlu0 %1433
    %1435 = vrot.lane.b32.xlu0 %v1291, 64
    %v1436 = vpop.permute.xlu0 %1435
    %1437 = vrot.lane.b32.xlu0 %v1292, 64
    %v1438 = vpop.permute.xlu0 %1437
    %1439 = vrot.lane.b32.xlu0 %v1293, 64
    %v1440 = vpop.permute.xlu0 %1439
    %1441 = vrot.lane.b32.xlu0 %v1294, 64
    %v1442 = vpop.permute.xlu0 %1441
    %1443 = vrot.lane.b32.xlu0 %v1295, 64
    %v1444 = vpop.permute.xlu0 %1443
    %1445 = vrot.lane.b32.xlu0 %v1296, 64
    %v1446 = vpop.permute.xlu0 %1445
    %1447 = vrot.lane.b32.xlu0 %v1297, 64
    %v1448 = vpop.permute.xlu0 %1447
    %1449 = vrot.lane.b32.xlu0 %v1298, 64
    %v1450 = vpop.permute.xlu0 %1449
    %1451 = vrot.lane.b32.xlu0 %v1299, 64
    %v1452 = vpop.permute.xlu0 %1451
    %1453 = vrot.lane.b32.xlu0 %v1300, 64
    %v1454 = vpop.permute.xlu0 %1453
    %1455 = vrot.lane.b32.xlu0 %v1301, 64
    %v1456 = vpop.permute.xlu0 %1455
    %1457 = vrot.lane.b32.xlu0 %v1302, 64
    %v1458 = vpop.permute.xlu0 %1457
    %1459 = vrot.lane.b32.xlu0 %v1303, 64
    %v1460 = vpop.permute.xlu0 %1459
    %1461 = vrot.lane.b32.xlu0 %v1304, 64
    %v1462 = vpop.permute.xlu0 %1461
    %1463 = vrot.lane.b32.xlu0 %v1305, 64
    %v1464 = vpop.permute.xlu0 %1463
    %1465 = vrot.lane.b32.xlu0 %v1306, 64
    %v1466 = vpop.permute.xlu0 %1465
    %1467 = vrot.lane.b32.xlu0 %v1307, 64
    %v1468 = vpop.permute.xlu0 %1467
    %1469 = vrot.lane.b32.xlu0 %v1308, 64
    %v1470 = vpop.permute.xlu0 %1469
    %1471 = vrot.lane.b32.xlu0 %v1309, 64
    %v1472 = vpop.permute.xlu0 %1471
    %1473 = vrot.lane.b32.xlu0 %v1310, 64
    %v1474 = vpop.permute.xlu0 %1473
    %1475 = vrot.lane.b32.xlu0 %v1311, 64
    %v1476 = vpop.permute.xlu0 %1475
    %1477 = vrot.lane.b32.xlu0 %v1312, 64
    %v1478 = vpop.permute.xlu0 %1477
    %1479 = vrot.lane.b32.xlu0 %v1313, 64
    %v1480 = vpop.permute.xlu0 %1479
    %1481 = vrot.lane.b32.xlu0 %v1314, 64
    %v1482 = vpop.permute.xlu0 %1481
    %1483 = vrot.lane.b32.xlu0 %v1315, 64
    %v1484 = vpop.permute.xlu0 %1483
    %1485 = vrot.lane.b32.xlu0 %v1316, 64
    %v1486 = vpop.permute.xlu0 %1485
    %1487 = vrot.lane.b32.xlu0 %v1317, 64
    %v1488 = vpop.permute.xlu0 %1487
    %1489 = vrot.lane.b32.xlu0 %v1318, 64
    %v1490 = vpop.permute.xlu0 %1489
    %1491 = vrot.lane.b32.xlu0 %v1319, 64
    %v1492 = vpop.permute.xlu0 %1491
    %1493 = vrot.lane.b32.xlu0 %v1320, 64
    %v1494 = vpop.permute.xlu0 %1493
    %1495 = vrot.lane.b32.xlu0 %v1321, 64
    %v1496 = vpop.permute.xlu0 %1495
    %1497 = vrot.lane.b32.xlu0 %v1322, 64
    %v1498 = vpop.permute.xlu0 %1497
    %1499 = vrot.lane.b32.xlu0 %v1323, 64
    %v1500 = vpop.permute.xlu0 %1499
    %1501 = vrot.lane.b32.xlu0 %v1324, 64
    %v1502 = vpop.permute.xlu0 %1501
    %1503 = vrot.lane.b32.xlu0 %v1325, 64
    %v1504 = vpop.permute.xlu0 %1503
    %1505 = vrot.lane.b32.xlu0 %v1326, 64
    %v1506 = vpop.permute.xlu0 %1505
    %1507 = vrot.lane.b32.xlu0 %v1327, 64
    %v1508 = vpop.permute.xlu0 %1507
    %1509 = vrot.lane.b32.xlu0 %v1328, 64
    %v1510 = vpop.permute.xlu0 %1509
    %1511 = vrot.lane.b32.xlu0 %v1329, 64
    %v1512 = vpop.permute.xlu0 %1511
    %1513 = vrot.lane.b32.xlu0 %v1330, 64
    %v1514 = vpop.permute.xlu0 %1513
    %1515 = vrot.lane.b32.xlu0 %v1331, 64
    %v1516 = vpop.permute.xlu0 %1515
    %1517 = vrot.lane.b32.xlu0 %v1332, 64
    %v1518 = vpop.permute.xlu0 %1517
    %vm1581 = vcmask 654848
    %1582 = vst.msk [vmem:[#allocation2] sm:$0xff] %vm1581, %v1396
    %1583 = vst.msk [vmem:[#allocation2 + $0x8] sm:$0xff] %vm1581, %v1398
    %1584 = vst.msk [vmem:[#allocation2 + $0x10] sm:$0xff] %vm1581, %v1400
    %1585 = vst.msk [vmem:[#allocation2 + $0x18] sm:$0xff] %vm1581, %v1402
    %1586 = vst.msk [vmem:[#allocation2 + $0x20] sm:$0xff] %vm1581, %v1404
    %1587 = vst.msk [vmem:[#allocation2 + $0x28] sm:$0xff] %vm1581, %v1406
    %1588 = vst.msk [vmem:[#allocation2 + $0x30] sm:$0xff] %vm1581, %v1408
    %1589 = vst.msk [vmem:[#allocation2 + $0x38] sm:$0xff] %vm1581, %v1410
    %1590 = vst.msk [vmem:[#allocation2 + $0x40] sm:$0xff] %vm1581, %v1412
    %1591 = vst.msk [vmem:[#allocation2 + $0x48] sm:$0xff] %vm1581, %v1414
    %1592 = vst.msk [vmem:[#allocation2 + $0x50] sm:$0xff] %vm1581, %v1416
    %1593 = vst.msk [vmem:[#allocation2 + $0x58] sm:$0xff] %vm1581, %v1418
    %1594 = vst.msk [vmem:[#allocation2 + $0x60] sm:$0xff] %vm1581, %v1420
    %1595 = vst.msk [vmem:[#allocation2 + $0x68] sm:$0xff] %vm1581, %v1422
    %1596 = vst.msk [vmem:[#allocation2 + $0x70] sm:$0xff] %vm1581, %v1424
    %1597 = vst.msk [vmem:[#allocation2 + $0x78] sm:$0xff] %vm1581, %v1426
    %1598 = vst.msk [vmem:[#allocation2 + $0x80] sm:$0xff] %vm1581, %v1428
    %1599 = vst.msk [vmem:[#allocation2 + $0x88] sm:$0xff] %vm1581, %v1430
    %1600 = vst.msk [vmem:[#allocation2 + $0x90] sm:$0xff] %vm1581, %v1432
    %1601 = vst.msk [vmem:[#allocation2 + $0x98] sm:$0xff] %vm1581, %v1434
    %1602 = vst.msk [vmem:[#allocation2 + $0xa0] sm:$0xff] %vm1581, %v1436
    %1603 = vst.msk [vmem:[#allocation2 + $0xa8] sm:$0xff] %vm1581, %v1438
    %1604 = vst.msk [vmem:[#allocation2 + $0xb0] sm:$0xff] %vm1581, %v1440
    %1605 = vst.msk [vmem:[#allocation2 + $0xb8] sm:$0xff] %vm1581, %v1442
    %1606 = vst.msk [vmem:[#allocation2 + $0xc0] sm:$0xff] %vm1581, %v1444
    %1607 = vst.msk [vmem:[#allocation2 + $0xc8] sm:$0xff] %vm1581, %v1446
    %1608 = vst.msk [vmem:[#allocation2 + $0xd0] sm:$0xff] %vm1581, %v1448
    %1609 = vst.msk [vmem:[#allocation2 + $0xd8] sm:$0xff] %vm1581, %v1450
    %1610 = vst.msk [vmem:[#allocation2 + $0xe0] sm:$0xff] %vm1581, %v1452
    %1611 = vst.msk [vmem:[#allocation2 + $0xe8] sm:$0xff] %vm1581, %v1454
    %1612 = vst.msk [vmem:[#allocation2 + $0xf0] sm:$0xff] %vm1581, %v1456
    %1613 = vst.msk [vmem:[#allocation2 + $0xf8] sm:$0xff] %vm1581, %v1458
    %1614 = vst.msk [vmem:[#allocation2 + $0x100] sm:$0xff] %vm1581, %v1460
    %1615 = vst.msk [vmem:[#allocation2 + $0x108] sm:$0xff] %vm1581, %v1462
    %1616 = vst.msk [vmem:[#allocation2 + $0x110] sm:$0xff] %vm1581, %v1464
    %1617 = vst.msk [vmem:[#allocation2 + $0x118] sm:$0xff] %vm1581, %v1466
    %1618 = vst.msk [vmem:[#allocation2 + $0x120] sm:$0xff] %vm1581, %v1468
    %1619 = vst.msk [vmem:[#allocation2 + $0x128] sm:$0xff] %vm1581, %v1470
    %1620 = vst.msk [vmem:[#allocation2 + $0x130] sm:$0xff] %vm1581, %v1472
    %1621 = vst.msk [vmem:[#allocation2 + $0x138] sm:$0xff] %vm1581, %v1474
    %1622 = vst.msk [vmem:[#allocation2 + $0x140] sm:$0xff] %vm1581, %v1476
    %1623 = vst.msk [vmem:[#allocation2 + $0x148] sm:$0xff] %vm1581, %v1478
    %1624 = vst.msk [vmem:[#allocation2 + $0x150] sm:$0xff] %vm1581, %v1480
    %1625 = vst.msk [vmem:[#allocation2 + $0x158] sm:$0xff] %vm1581, %v1482
    %1626 = vst.msk [vmem:[#allocation2 + $0x160] sm:$0xff] %vm1581, %v1484
    %1627 = vst.msk [vmem:[#allocation2 + $0x168] sm:$0xff] %vm1581, %v1486
    %1628 = vst.msk [vmem:[#allocation2 + $0x170] sm:$0xff] %vm1581, %v1488
    %1629 = vst.msk [vmem:[#allocation2 + $0x178] sm:$0xff] %vm1581, %v1490
    %1630 = vst.msk [vmem:[#allocation2 + $0x180] sm:$0xff] %vm1581, %v1492
    %1631 = vst.msk [vmem:[#allocation2 + $0x188] sm:$0xff] %vm1581, %v1494
    %1632 = vst.msk [vmem:[#allocation2 + $0x190] sm:$0xff] %vm1581, %v1496
    %1633 = vst.msk [vmem:[#allocation2 + $0x198] sm:$0xff] %vm1581, %v1498
    %1634 = vst.msk [vmem:[#allocation2 + $0x1a0] sm:$0xff] %vm1581, %v1500
    %1635 = vst.msk [vmem:[#allocation2 + $0x1a8] sm:$0xff] %vm1581, %v1502
    %1636 = vst.msk [vmem:[#allocation2 + $0x1b0] sm:$0xff] %vm1581, %v1504
    %1637 = vst.msk [vmem:[#allocation2 + $0x1b8] sm:$0xff] %vm1581, %v1506
    %1638 = vst.msk [vmem:[#allocation2 + $0x1c0] sm:$0xff] %vm1581, %v1508
    %1639 = vst.msk [vmem:[#allocation2 + $0x1c8] sm:$0xff] %vm1581, %v1510
    %1640 = vst.msk [vmem:[#allocation2 + $0x1d0] sm:$0xff] %vm1581, %v1512
    %1641 = vst.msk [vmem:[#allocation2 + $0x1d8] sm:$0xff] %vm1581, %v1514
    %1642 = vst.msk [vmem:[#allocation2 + $0x1e0] sm:$0xff] %vm1581, %v1516
    %1643 = vst.msk [vmem:[#allocation2 + $0x1e8] sm:$0xff] %vm1581, %v1518
    %s1644 = scalar_lea.vmem %s0, 504
    %v1645 = vld [vmem:[%s1644] sm:$0xff]
    %v1646 = vld [vmem:[%s1644 + $0x8] sm:$0xff]
    %v1647 = vld [vmem:[%s1644 + $0x10] sm:$0xff]
    %v1648 = vld [vmem:[%s1644 + $0x18] sm:$0xff]
    %v1649 = vld [vmem:[%s1644 + $0x20] sm:$0xff]
    %v1650 = vld [vmem:[%s1644 + $0x28] sm:$0xff]
    %v1651 = vld [vmem:[%s1644 + $0x30] sm:$0xff]
    %v1652 = vld [vmem:[%s1644 + $0x38] sm:$0xff]
    %v1653 = vld [vmem:[%s1644 + $0x40] sm:$0xff]
    %v1654 = vld [vmem:[%s1644 + $0x48] sm:$0xff]
    %v1655 = vld [vmem:[%s1644 + $0x50] sm:$0xff]
    %v1656 = vld [vmem:[%s1644 + $0x58] sm:$0xff]
    %v1657 = vld [vmem:[%s1644 + $0x60] sm:$0xff]
    %v1658 = vld [vmem:[%s1644 + $0x68] sm:$0xff]
    %v1659 = vld [vmem:[%s1644 + $0x70] sm:$0xff]
    %v1660 = vld [vmem:[%s1644 + $0x78] sm:$0xff]
    %v1661 = vld [vmem:[%s1644 + $0x80] sm:$0xff]
    %v1662 = vld [vmem:[%s1644 + $0x88] sm:$0xff]
    %v1663 = vld [vmem:[%s1644 + $0x90] sm:$0xff]
    %v1664 = vld [vmem:[%s1644 + $0x98] sm:$0xff]
    %v1665 = vld [vmem:[%s1644 + $0xa0] sm:$0xff]
    %v1666 = vld [vmem:[%s1644 + $0xa8] sm:$0xff]
    %v1667 = vld [vmem:[%s1644 + $0xb0] sm:$0xff]
    %v1668 = vld [vmem:[%s1644 + $0xb8] sm:$0xff]
    %v1669 = vld [vmem:[%s1644 + $0xc0] sm:$0xff]
    %v1670 = vld [vmem:[%s1644 + $0xc8] sm:$0xff]
    %v1671 = vld [vmem:[%s1644 + $0xd0] sm:$0xff]
    %v1672 = vld [vmem:[%s1644 + $0xd8] sm:$0xff]
    %v1673 = vld [vmem:[%s1644 + $0xe0] sm:$0xff]
    %v1674 = vld [vmem:[%s1644 + $0xe8] sm:$0xff]
    %v1675 = vld [vmem:[%s1644 + $0xf0] sm:$0xff]
    %v1676 = vld [vmem:[%s1644 + $0xf8] sm:$0xff]
    %v1677 = vld [vmem:[%s1644 + $0x100] sm:$0xff]
    %v1678 = vld [vmem:[%s1644 + $0x108] sm:$0xff]
    %v1679 = vld [vmem:[%s1644 + $0x110] sm:$0xff]
    %v1680 = vld [vmem:[%s1644 + $0x118] sm:$0xff]
    %v1681 = vld [vmem:[%s1644 + $0x120] sm:$0xff]
    %v1682 = vld [vmem:[%s1644 + $0x128] sm:$0xff]
    %v1683 = vld [vmem:[%s1644 + $0x130] sm:$0xff]
    %v1684 = vld [vmem:[%s1644 + $0x138] sm:$0xff]
    %v1685 = vld [vmem:[%s1644 + $0x140] sm:$0xff]
    %v1686 = vld [vmem:[%s1644 + $0x148] sm:$0xff]
    %v1687 = vld [vmem:[%s1644 + $0x150] sm:$0xff]
    %v1688 = vld [vmem:[%s1644 + $0x158] sm:$0xff]
    %v1689 = vld [vmem:[%s1644 + $0x160] sm:$0xff]
    %v1690 = vld [vmem:[%s1644 + $0x168] sm:$0xff]
    %v1691 = vld [vmem:[%s1644 + $0x170] sm:$0xff]
    %v1692 = vld [vmem:[%s1644 + $0x178] sm:$0xff]
    %v1693 = vld [vmem:[%s1644 + $0x180] sm:$0xff]
    %v1694 = vld [vmem:[%s1644 + $0x188] sm:$0xff]
    %v1695 = vld [vmem:[%s1644 + $0x190] sm:$0xff]
    %v1696 = vld [vmem:[%s1644 + $0x198] sm:$0xff]
    %v1697 = vld [vmem:[%s1644 + $0x1a0] sm:$0xff]
    %v1698 = vld [vmem:[%s1644 + $0x1a8] sm:$0xff]
    %v1699 = vld [vmem:[%s1644 + $0x1b0] sm:$0xff]
    %v1700 = vld [vmem:[%s1644 + $0x1b8] sm:$0xff]
    %v1701 = vld [vmem:[%s1644 + $0x1c0] sm:$0xff]
    %v1702 = vld [vmem:[%s1644 + $0x1c8] sm:$0xff]
    %v1703 = vld [vmem:[%s1644 + $0x1d0] sm:$0xff]
    %v1704 = vld [vmem:[%s1644 + $0x1d8] sm:$0xff]
    %v1705 = vld [vmem:[%s1644 + $0x1e0] sm:$0xff]
    %v1706 = vld [vmem:[%s1644 + $0x1e8] sm:$0xff]
    %1707 = vst.msk [vmem:[#allocation2 + $0x1f0] sm:$0xff] %vm89, %v1645
    %1708 = vst.msk [vmem:[#allocation2 + $0x1f8] sm:$0xff] %vm89, %v1646
    %1709 = vst.msk [vmem:[#allocation2 + $0x200] sm:$0xff] %vm89, %v1647
    %1710 = vst.msk [vmem:[#allocation2 + $0x208] sm:$0xff] %vm89, %v1648
    %1711 = vst.msk [vmem:[#allocation2 + $0x210] sm:$0xff] %vm89, %v1649
    %1712 = vst.msk [vmem:[#allocation2 + $0x218] sm:$0xff] %vm89, %v1650
    %1713 = vst.msk [vmem:[#allocation2 + $0x220] sm:$0xff] %vm89, %v1651
    %1714 = vst.msk [vmem:[#allocation2 + $0x228] sm:$0xff] %vm89, %v1652
    %1715 = vst.msk [vmem:[#allocation2 + $0x230] sm:$0xff] %vm89, %v1653
    %1716 = vst.msk [vmem:[#allocation2 + $0x238] sm:$0xff] %vm89, %v1654
    %1717 = vst.msk [vmem:[#allocation2 + $0x240] sm:$0xff] %vm89, %v1655
    %1718 = vst.msk [vmem:[#allocation2 + $0x248] sm:$0xff] %vm89, %v1656
    %1719 = vst.msk [vmem:[#allocation2 + $0x250] sm:$0xff] %vm89, %v1657
    %1720 = vst.msk [vmem:[#allocation2 + $0x258] sm:$0xff] %vm89, %v1658
    %1721 = vst.msk [vmem:[#allocation2 + $0x260] sm:$0xff] %vm89, %v1659
    %1722 = vst.msk [vmem:[#allocation2 + $0x268] sm:$0xff] %vm89, %v1660
    %1723 = vst.msk [vmem:[#allocation2 + $0x270] sm:$0xff] %vm89, %v1661
    %1724 = vst.msk [vmem:[#allocation2 + $0x278] sm:$0xff] %vm89, %v1662
    %1725 = vst.msk [vmem:[#allocation2 + $0x280] sm:$0xff] %vm89, %v1663
    %1726 = vst.msk [vmem:[#allocation2 + $0x288] sm:$0xff] %vm89, %v1664
    %1727 = vst.msk [vmem:[#allocation2 + $0x290] sm:$0xff] %vm89, %v1665
    %1728 = vst.msk [vmem:[#allocation2 + $0x298] sm:$0xff] %vm89, %v1666
    %1729 = vst.msk [vmem:[#allocation2 + $0x2a0] sm:$0xff] %vm89, %v1667
    %1730 = vst.msk [vmem:[#allocation2 + $0x2a8] sm:$0xff] %vm89, %v1668
    %1731 = vst.msk [vmem:[#allocation2 + $0x2b0] sm:$0xff] %vm89, %v1669
    %1732 = vst.msk [vmem:[#allocation2 + $0x2b8] sm:$0xff] %vm89, %v1670
    %1733 = vst.msk [vmem:[#allocation2 + $0x2c0] sm:$0xff] %vm89, %v1671
    %1734 = vst.msk [vmem:[#allocation2 + $0x2c8] sm:$0xff] %vm89, %v1672
    %1735 = vst.msk [vmem:[#allocation2 + $0x2d0] sm:$0xff] %vm89, %v1673
    %1736 = vst.msk [vmem:[#allocation2 + $0x2d8] sm:$0xff] %vm89, %v1674
    %1737 = vst.msk [vmem:[#allocation2 + $0x2e0] sm:$0xff] %vm89, %v1675
    %1738 = vst.msk [vmem:[#allocation2 + $0x2e8] sm:$0xff] %vm89, %v1676
    %1739 = vst.msk [vmem:[#allocation2 + $0x2f0] sm:$0xff] %vm89, %v1677
    %1740 = vst.msk [vmem:[#allocation2 + $0x2f8] sm:$0xff] %vm89, %v1678
    %1741 = vst.msk [vmem:[#allocation2 + $0x300] sm:$0xff] %vm89, %v1679
    %1742 = vst.msk [vmem:[#allocation2 + $0x308] sm:$0xff] %vm89, %v1680
    %1743 = vst.msk [vmem:[#allocation2 + $0x310] sm:$0xff] %vm89, %v1681
    %1744 = vst.msk [vmem:[#allocation2 + $0x318] sm:$0xff] %vm89, %v1682
    %1745 = vst.msk [vmem:[#allocation2 + $0x320] sm:$0xff] %vm89, %v1683
    %1746 = vst.msk [vmem:[#allocation2 + $0x328] sm:$0xff] %vm89, %v1684
    %1747 = vst.msk [vmem:[#allocation2 + $0x330] sm:$0xff] %vm89, %v1685
    %1748 = vst.msk [vmem:[#allocation2 + $0x338] sm:$0xff] %vm89, %v1686
    %1749 = vst.msk [vmem:[#allocation2 + $0x340] sm:$0xff] %vm89, %v1687
    %1750 = vst.msk [vmem:[#allocation2 + $0x348] sm:$0xff] %vm89, %v1688
    %1751 = vst.msk [vmem:[#allocation2 + $0x350] sm:$0xff] %vm89, %v1689
    %1752 = vst.msk [vmem:[#allocation2 + $0x358] sm:$0xff] %vm89, %v1690
    %1753 = vst.msk [vmem:[#allocation2 + $0x360] sm:$0xff] %vm89, %v1691
    %1754 = vst.msk [vmem:[#allocation2 + $0x368] sm:$0xff] %vm89, %v1692
    %1755 = vst.msk [vmem:[#allocation2 + $0x370] sm:$0xff] %vm89, %v1693
    %1756 = vst.msk [vmem:[#allocation2 + $0x378] sm:$0xff] %vm89, %v1694
    %1757 = vst.msk [vmem:[#allocation2 + $0x380] sm:$0xff] %vm89, %v1695
    %1758 = vst.msk [vmem:[#allocation2 + $0x388] sm:$0xff] %vm89, %v1696
    %1759 = vst.msk [vmem:[#allocation2 + $0x390] sm:$0xff] %vm89, %v1697
    %1760 = vst.msk [vmem:[#allocation2 + $0x398] sm:$0xff] %vm89, %v1698
    %1761 = vst.msk [vmem:[#allocation2 + $0x3a0] sm:$0xff] %vm89, %v1699
    %1762 = vst.msk [vmem:[#allocation2 + $0x3a8] sm:$0xff] %vm89, %v1700
    %1763 = vst.msk [vmem:[#allocation2 + $0x3b0] sm:$0xff] %vm89, %v1701
    %1764 = vst.msk [vmem:[#allocation2 + $0x3b8] sm:$0xff] %vm89, %v1702
    %1765 = vst.msk [vmem:[#allocation2 + $0x3c0] sm:$0xff] %vm89, %v1703
    %1766 = vst.msk [vmem:[#allocation2 + $0x3c8] sm:$0xff] %vm89, %v1704
    %1767 = vst.msk [vmem:[#allocation2 + $0x3d0] sm:$0xff] %vm89, %v1705
    %1768 = vst.msk [vmem:[#allocation2 + $0x3d8] sm:$0xff] %vm89, %v1706
    %v1769 = vld [vmem:[%s1644 + $0x1] sm:$0xff]
    %v1770 = vld [vmem:[%s1644 + $0x9] sm:$0xff]
    %v1771 = vld [vmem:[%s1644 + $0x11] sm:$0xff]
    %v1772 = vld [vmem:[%s1644 + $0x19] sm:$0xff]
    %v1773 = vld [vmem:[%s1644 + $0x21] sm:$0xff]
    %v1774 = vld [vmem:[%s1644 + $0x29] sm:$0xff]
    %v1775 = vld [vmem:[%s1644 + $0x31] sm:$0xff]
    %v1776 = vld [vmem:[%s1644 + $0x39] sm:$0xff]
    %v1777 = vld [vmem:[%s1644 + $0x41] sm:$0xff]
    %v1778 = vld [vmem:[%s1644 + $0x49] sm:$0xff]
    %v1779 = vld [vmem:[%s1644 + $0x51] sm:$0xff]
    %v1780 = vld [vmem:[%s1644 + $0x59] sm:$0xff]
    %v1781 = vld [vmem:[%s1644 + $0x61] sm:$0xff]
    %v1782 = vld [vmem:[%s1644 + $0x69] sm:$0xff]
    %v1783 = vld [vmem:[%s1644 + $0x71] sm:$0xff]
    %v1784 = vld [vmem:[%s1644 + $0x79] sm:$0xff]
    %v1785 = vld [vmem:[%s1644 + $0x81] sm:$0xff]
    %v1786 = vld [vmem:[%s1644 + $0x89] sm:$0xff]
    %v1787 = vld [vmem:[%s1644 + $0x91] sm:$0xff]
    %v1788 = vld [vmem:[%s1644 + $0x99] sm:$0xff]
    %v1789 = vld [vmem:[%s1644 + $0xa1] sm:$0xff]
    %v1790 = vld [vmem:[%s1644 + $0xa9] sm:$0xff]
    %v1791 = vld [vmem:[%s1644 + $0xb1] sm:$0xff]
    %v1792 = vld [vmem:[%s1644 + $0xb9] sm:$0xff]
    %v1793 = vld [vmem:[%s1644 + $0xc1] sm:$0xff]
    %v1794 = vld [vmem:[%s1644 + $0xc9] sm:$0xff]
    %v1795 = vld [vmem:[%s1644 + $0xd1] sm:$0xff]
    %v1796 = vld [vmem:[%s1644 + $0xd9] sm:$0xff]
    %v1797 = vld [vmem:[%s1644 + $0xe1] sm:$0xff]
    %v1798 = vld [vmem:[%s1644 + $0xe9] sm:$0xff]
    %v1799 = vld [vmem:[%s1644 + $0xf1] sm:$0xff]
    %v1800 = vld [vmem:[%s1644 + $0xf9] sm:$0xff]
    %v1801 = vld [vmem:[%s1644 + $0x101] sm:$0xff]
    %v1802 = vld [vmem:[%s1644 + $0x109] sm:$0xff]
    %v1803 = vld [vmem:[%s1644 + $0x111] sm:$0xff]
    %v1804 = vld [vmem:[%s1644 + $0x119] sm:$0xff]
    %v1805 = vld [vmem:[%s1644 + $0x121] sm:$0xff]
    %v1806 = vld [vmem:[%s1644 + $0x129] sm:$0xff]
    %v1807 = vld [vmem:[%s1644 + $0x131] sm:$0xff]
    %v1808 = vld [vmem:[%s1644 + $0x139] sm:$0xff]
    %v1809 = vld [vmem:[%s1644 + $0x141] sm:$0xff]
    %v1810 = vld [vmem:[%s1644 + $0x149] sm:$0xff]
    %v1811 = vld [vmem:[%s1644 + $0x151] sm:$0xff]
    %v1812 = vld [vmem:[%s1644 + $0x159] sm:$0xff]
    %v1813 = vld [vmem:[%s1644 + $0x161] sm:$0xff]
    %v1814 = vld [vmem:[%s1644 + $0x169] sm:$0xff]
    %v1815 = vld [vmem:[%s1644 + $0x171] sm:$0xff]
    %v1816 = vld [vmem:[%s1644 + $0x179] sm:$0xff]
    %v1817 = vld [vmem:[%s1644 + $0x181] sm:$0xff]
    %v1818 = vld [vmem:[%s1644 + $0x189] sm:$0xff]
    %v1819 = vld [vmem:[%s1644 + $0x191] sm:$0xff]
    %v1820 = vld [vmem:[%s1644 + $0x199] sm:$0xff]
    %v1821 = vld [vmem:[%s1644 + $0x1a1] sm:$0xff]
    %v1822 = vld [vmem:[%s1644 + $0x1a9] sm:$0xff]
    %v1823 = vld [vmem:[%s1644 + $0x1b1] sm:$0xff]
    %v1824 = vld [vmem:[%s1644 + $0x1b9] sm:$0xff]
    %v1825 = vld [vmem:[%s1644 + $0x1c1] sm:$0xff]
    %v1826 = vld [vmem:[%s1644 + $0x1c9] sm:$0xff]
    %v1827 = vld [vmem:[%s1644 + $0x1d1] sm:$0xff]
    %v1828 = vld [vmem:[%s1644 + $0x1d9] sm:$0xff]
    %v1829 = vld [vmem:[%s1644 + $0x1e1] sm:$0xff]
    %v1830 = vld [vmem:[%s1644 + $0x1e9] sm:$0xff]
    %1893 = vrot.lane.b32.xlu0 %v1769, 16
    %v1894 = vpop.permute.xlu0 %1893
    %1895 = vrot.lane.b32.xlu0 %v1770, 16
    %v1896 = vpop.permute.xlu0 %1895
    %1897 = vrot.lane.b32.xlu0 %v1771, 16
    %v1898 = vpop.permute.xlu0 %1897
    %1899 = vrot.lane.b32.xlu0 %v1772, 16
    %v1900 = vpop.permute.xlu0 %1899
    %1901 = vrot.lane.b32.xlu0 %v1773, 16
    %v1902 = vpop.permute.xlu0 %1901
    %1903 = vrot.lane.b32.xlu0 %v1774, 16
    %v1904 = vpop.permute.xlu0 %1903
    %1905 = vrot.lane.b32.xlu0 %v1775, 16
    %v1906 = vpop.permute.xlu0 %1905
    %1907 = vrot.lane.b32.xlu0 %v1776, 16
    %v1908 = vpop.permute.xlu0 %1907
    %1909 = vrot.lane.b32.xlu0 %v1777, 16
    %v1910 = vpop.permute.xlu0 %1909
    %1911 = vrot.lane.b32.xlu0 %v1778, 16
    %v1912 = vpop.permute.xlu0 %1911
    %1913 = vrot.lane.b32.xlu0 %v1779, 16
    %v1914 = vpop.permute.xlu0 %1913
    %1915 = vrot.lane.b32.xlu0 %v1780, 16
    %v1916 = vpop.permute.xlu0 %1915
    %1917 = vrot.lane.b32.xlu0 %v1781, 16
    %v1918 = vpop.permute.xlu0 %1917
    %1919 = vrot.lane.b32.xlu0 %v1782, 16
    %v1920 = vpop.permute.xlu0 %1919
    %1921 = vrot.lane.b32.xlu0 %v1783, 16
    %v1922 = vpop.permute.xlu0 %1921
    %1923 = vrot.lane.b32.xlu0 %v1784, 16
    %v1924 = vpop.permute.xlu0 %1923
    %1925 = vrot.lane.b32.xlu0 %v1785, 16
    %v1926 = vpop.permute.xlu0 %1925
    %1927 = vrot.lane.b32.xlu0 %v1786, 16
    %v1928 = vpop.permute.xlu0 %1927
    %1929 = vrot.lane.b32.xlu0 %v1787, 16
    %v1930 = vpop.permute.xlu0 %1929
    %1931 = vrot.lane.b32.xlu0 %v1788, 16
    %v1932 = vpop.permute.xlu0 %1931
    %1933 = vrot.lane.b32.xlu0 %v1789, 16
    %v1934 = vpop.permute.xlu0 %1933
    %1935 = vrot.lane.b32.xlu0 %v1790, 16
    %v1936 = vpop.permute.xlu0 %1935
    %1937 = vrot.lane.b32.xlu0 %v1791, 16
    %v1938 = vpop.permute.xlu0 %1937
    %1939 = vrot.lane.b32.xlu0 %v1792, 16
    %v1940 = vpop.permute.xlu0 %1939
    %1941 = vrot.lane.b32.xlu0 %v1793, 16
    %v1942 = vpop.permute.xlu0 %1941
    %1943 = vrot.lane.b32.xlu0 %v1794, 16
    %v1944 = vpop.permute.xlu0 %1943
    %1945 = vrot.lane.b32.xlu0 %v1795, 16
    %v1946 = vpop.permute.xlu0 %1945
    %1947 = vrot.lane.b32.xlu0 %v1796, 16
    %v1948 = vpop.permute.xlu0 %1947
    %1949 = vrot.lane.b32.xlu0 %v1797, 16
    %v1950 = vpop.permute.xlu0 %1949
    %1951 = vrot.lane.b32.xlu0 %v1798, 16
    %v1952 = vpop.permute.xlu0 %1951
    %1953 = vrot.lane.b32.xlu0 %v1799, 16
    %v1954 = vpop.permute.xlu0 %1953
    %1955 = vrot.lane.b32.xlu0 %v1800, 16
    %v1956 = vpop.permute.xlu0 %1955
    %1957 = vrot.lane.b32.xlu0 %v1801, 16
    %v1958 = vpop.permute.xlu0 %1957
    %1959 = vrot.lane.b32.xlu0 %v1802, 16
    %v1960 = vpop.permute.xlu0 %1959
    %1961 = vrot.lane.b32.xlu0 %v1803, 16
    %v1962 = vpop.permute.xlu0 %1961
    %1963 = vrot.lane.b32.xlu0 %v1804, 16
    %v1964 = vpop.permute.xlu0 %1963
    %1965 = vrot.lane.b32.xlu0 %v1805, 16
    %v1966 = vpop.permute.xlu0 %1965
    %1967 = vrot.lane.b32.xlu0 %v1806, 16
    %v1968 = vpop.permute.xlu0 %1967
    %1969 = vrot.lane.b32.xlu0 %v1807, 16
    %v1970 = vpop.permute.xlu0 %1969
    %1971 = vrot.lane.b32.xlu0 %v1808, 16
    %v1972 = vpop.permute.xlu0 %1971
    %1973 = vrot.lane.b32.xlu0 %v1809, 16
    %v1974 = vpop.permute.xlu0 %1973
    %1975 = vrot.lane.b32.xlu0 %v1810, 16
    %v1976 = vpop.permute.xlu0 %1975
    %1977 = vrot.lane.b32.xlu0 %v1811, 16
    %v1978 = vpop.permute.xlu0 %1977
    %1979 = vrot.lane.b32.xlu0 %v1812, 16
    %v1980 = vpop.permute.xlu0 %1979
    %1981 = vrot.lane.b32.xlu0 %v1813, 16
    %v1982 = vpop.permute.xlu0 %1981
    %1983 = vrot.lane.b32.xlu0 %v1814, 16
    %v1984 = vpop.permute.xlu0 %1983
    %1985 = vrot.lane.b32.xlu0 %v1815, 16
    %v1986 = vpop.permute.xlu0 %1985
    %1987 = vrot.lane.b32.xlu0 %v1816, 16
    %v1988 = vpop.permute.xlu0 %1987
    %1989 = vrot.lane.b32.xlu0 %v1817, 16
    %v1990 = vpop.permute.xlu0 %1989
    %1991 = vrot.lane.b32.xlu0 %v1818, 16
    %v1992 = vpop.permute.xlu0 %1991
    %1993 = vrot.lane.b32.xlu0 %v1819, 16
    %v1994 = vpop.permute.xlu0 %1993
    %1995 = vrot.lane.b32.xlu0 %v1820, 16
    %v1996 = vpop.permute.xlu0 %1995
    %1997 = vrot.lane.b32.xlu0 %v1821, 16
    %v1998 = vpop.permute.xlu0 %1997
    %1999 = vrot.lane.b32.xlu0 %v1822, 16
    %v2000 = vpop.permute.xlu0 %1999
    %2001 = vrot.lane.b32.xlu0 %v1823, 16
    %v2002 = vpop.permute.xlu0 %2001
    %2003 = vrot.lane.b32.xlu0 %v1824, 16
    %v2004 = vpop.permute.xlu0 %2003
    %2005 = vrot.lane.b32.xlu0 %v1825, 16
    %v2006 = vpop.permute.xlu0 %2005
    %2007 = vrot.lane.b32.xlu0 %v1826, 16
    %v2008 = vpop.permute.xlu0 %2007
    %2009 = vrot.lane.b32.xlu0 %v1827, 16
    %v2010 = vpop.permute.xlu0 %2009
    %2011 = vrot.lane.b32.xlu0 %v1828, 16
    %v2012 = vpop.permute.xlu0 %2011
    %2013 = vrot.lane.b32.xlu0 %v1829, 16
    %v2014 = vpop.permute.xlu0 %2013
    %2015 = vrot.lane.b32.xlu0 %v1830, 16
    %v2016 = vpop.permute.xlu0 %2015
    %2079 = vst.msk [vmem:[#allocation2 + $0x1f0] sm:$0xff] %vm462, %v1894
    %2080 = vst.msk [vmem:[#allocation2 + $0x1f8] sm:$0xff] %vm462, %v1896
    %2081 = vst.msk [vmem:[#allocation2 + $0x200] sm:$0xff] %vm462, %v1898
    %2082 = vst.msk [vmem:[#allocation2 + $0x208] sm:$0xff] %vm462, %v1900
    %2083 = vst.msk [vmem:[#allocation2 + $0x210] sm:$0xff] %vm462, %v1902
    %2084 = vst.msk [vmem:[#allocation2 + $0x218] sm:$0xff] %vm462, %v1904
    %2085 = vst.msk [vmem:[#allocation2 + $0x220] sm:$0xff] %vm462, %v1906
    %2086 = vst.msk [vmem:[#allocation2 + $0x228] sm:$0xff] %vm462, %v1908
    %2087 = vst.msk [vmem:[#allocation2 + $0x230] sm:$0xff] %vm462, %v1910
    %2088 = vst.msk [vmem:[#allocation2 + $0x238] sm:$0xff] %vm462, %v1912
    %2089 = vst.msk [vmem:[#allocation2 + $0x240] sm:$0xff] %vm462, %v1914
    %2090 = vst.msk [vmem:[#allocation2 + $0x248] sm:$0xff] %vm462, %v1916
    %2091 = vst.msk [vmem:[#allocation2 + $0x250] sm:$0xff] %vm462, %v1918
    %2092 = vst.msk [vmem:[#allocation2 + $0x258] sm:$0xff] %vm462, %v1920
    %2093 = vst.msk [vmem:[#allocation2 + $0x260] sm:$0xff] %vm462, %v1922
    %2094 = vst.msk [vmem:[#allocation2 + $0x268] sm:$0xff] %vm462, %v1924
    %2095 = vst.msk [vmem:[#allocation2 + $0x270] sm:$0xff] %vm462, %v1926
    %2096 = vst.msk [vmem:[#allocation2 + $0x278] sm:$0xff] %vm462, %v1928
    %2097 = vst.msk [vmem:[#allocation2 + $0x280] sm:$0xff] %vm462, %v1930
    %2098 = vst.msk [vmem:[#allocation2 + $0x288] sm:$0xff] %vm462, %v1932
    %2099 = vst.msk [vmem:[#allocation2 + $0x290] sm:$0xff] %vm462, %v1934
    %2100 = vst.msk [vmem:[#allocation2 + $0x298] sm:$0xff] %vm462, %v1936
    %2101 = vst.msk [vmem:[#allocation2 + $0x2a0] sm:$0xff] %vm462, %v1938
    %2102 = vst.msk [vmem:[#allocation2 + $0x2a8] sm:$0xff] %vm462, %v1940
    %2103 = vst.msk [vmem:[#allocation2 + $0x2b0] sm:$0xff] %vm462, %v1942
    %2104 = vst.msk [vmem:[#allocation2 + $0x2b8] sm:$0xff] %vm462, %v1944
    %2105 = vst.msk [vmem:[#allocation2 + $0x2c0] sm:$0xff] %vm462, %v1946
    %2106 = vst.msk [vmem:[#allocation2 + $0x2c8] sm:$0xff] %vm462, %v1948
    %2107 = vst.msk [vmem:[#allocation2 + $0x2d0] sm:$0xff] %vm462, %v1950
    %2108 = vst.msk [vmem:[#allocation2 + $0x2d8] sm:$0xff] %vm462, %v1952
    %2109 = vst.msk [vmem:[#allocation2 + $0x2e0] sm:$0xff] %vm462, %v1954
    %2110 = vst.msk [vmem:[#allocation2 + $0x2e8] sm:$0xff] %vm462, %v1956
    %2111 = vst.msk [vmem:[#allocation2 + $0x2f0] sm:$0xff] %vm462, %v1958
    %2112 = vst.msk [vmem:[#allocation2 + $0x2f8] sm:$0xff] %vm462, %v1960
    %2113 = vst.msk [vmem:[#allocation2 + $0x300] sm:$0xff] %vm462, %v1962
    %2114 = vst.msk [vmem:[#allocation2 + $0x308] sm:$0xff] %vm462, %v1964
    %2115 = vst.msk [vmem:[#allocation2 + $0x310] sm:$0xff] %vm462, %v1966
    %2116 = vst.msk [vmem:[#allocation2 + $0x318] sm:$0xff] %vm462, %v1968
    %2117 = vst.msk [vmem:[#allocation2 + $0x320] sm:$0xff] %vm462, %v1970
    %2118 = vst.msk [vmem:[#allocation2 + $0x328] sm:$0xff] %vm462, %v1972
    %2119 = vst.msk [vmem:[#allocation2 + $0x330] sm:$0xff] %vm462, %v1974
    %2120 = vst.msk [vmem:[#allocation2 + $0x338] sm:$0xff] %vm462, %v1976
    %2121 = vst.msk [vmem:[#allocation2 + $0x340] sm:$0xff] %vm462, %v1978
    %2122 = vst.msk [vmem:[#allocation2 + $0x348] sm:$0xff] %vm462, %v1980
    %2123 = vst.msk [vmem:[#allocation2 + $0x350] sm:$0xff] %vm462, %v1982
    %2124 = vst.msk [vmem:[#allocation2 + $0x358] sm:$0xff] %vm462, %v1984
    %2125 = vst.msk [vmem:[#allocation2 + $0x360] sm:$0xff] %vm462, %v1986
    %2126 = vst.msk [vmem:[#allocation2 + $0x368] sm:$0xff] %vm462, %v1988
    %2127 = vst.msk [vmem:[#allocation2 + $0x370] sm:$0xff] %vm462, %v1990
    %2128 = vst.msk [vmem:[#allocation2 + $0x378] sm:$0xff] %vm462, %v1992
    %2129 = vst.msk [vmem:[#allocation2 + $0x380] sm:$0xff] %vm462, %v1994
    %2130 = vst.msk [vmem:[#allocation2 + $0x388] sm:$0xff] %vm462, %v1996
    %2131 = vst.msk [vmem:[#allocation2 + $0x390] sm:$0xff] %vm462, %v1998
    %2132 = vst.msk [vmem:[#allocation2 + $0x398] sm:$0xff] %vm462, %v2000
    %2133 = vst.msk [vmem:[#allocation2 + $0x3a0] sm:$0xff] %vm462, %v2002
    %2134 = vst.msk [vmem:[#allocation2 + $0x3a8] sm:$0xff] %vm462, %v2004
    %2135 = vst.msk [vmem:[#allocation2 + $0x3b0] sm:$0xff] %vm462, %v2006
    %2136 = vst.msk [vmem:[#allocation2 + $0x3b8] sm:$0xff] %vm462, %v2008
    %2137 = vst.msk [vmem:[#allocation2 + $0x3c0] sm:$0xff] %vm462, %v2010
    %2138 = vst.msk [vmem:[#allocation2 + $0x3c8] sm:$0xff] %vm462, %v2012
    %2139 = vst.msk [vmem:[#allocation2 + $0x3d0] sm:$0xff] %vm462, %v2014
    %2140 = vst.msk [vmem:[#allocation2 + $0x3d8] sm:$0xff] %vm462, %v2016
    %v2141 = vld [vmem:[%s1644 + $0x2] sm:$0xff]
    %v2142 = vld [vmem:[%s1644 + $0xa] sm:$0xff]
    %v2143 = vld [vmem:[%s1644 + $0x12] sm:$0xff]
    %v2144 = vld [vmem:[%s1644 + $0x1a] sm:$0xff]
    %v2145 = vld [vmem:[%s1644 + $0x22] sm:$0xff]
    %v2146 = vld [vmem:[%s1644 + $0x2a] sm:$0xff]
    %v2147 = vld [vmem:[%s1644 + $0x32] sm:$0xff]
    %v2148 = vld [vmem:[%s1644 + $0x3a] sm:$0xff]
    %v2149 = vld [vmem:[%s1644 + $0x42] sm:$0xff]
    %v2150 = vld [vmem:[%s1644 + $0x4a] sm:$0xff]
    %v2151 = vld [vmem:[%s1644 + $0x52] sm:$0xff]
    %v2152 = vld [vmem:[%s1644 + $0x5a] sm:$0xff]
    %v2153 = vld [vmem:[%s1644 + $0x62] sm:$0xff]
    %v2154 = vld [vmem:[%s1644 + $0x6a] sm:$0xff]
    %v2155 = vld [vmem:[%s1644 + $0x72] sm:$0xff]
    %v2156 = vld [vmem:[%s1644 + $0x7a] sm:$0xff]
    %v2157 = vld [vmem:[%s1644 + $0x82] sm:$0xff]
    %v2158 = vld [vmem:[%s1644 + $0x8a] sm:$0xff]
    %v2159 = vld [vmem:[%s1644 + $0x92] sm:$0xff]
    %v2160 = vld [vmem:[%s1644 + $0x9a] sm:$0xff]
    %v2161 = vld [vmem:[%s1644 + $0xa2] sm:$0xff]
    %v2162 = vld [vmem:[%s1644 + $0xaa] sm:$0xff]
    %v2163 = vld [vmem:[%s1644 + $0xb2] sm:$0xff]
    %v2164 = vld [vmem:[%s1644 + $0xba] sm:$0xff]
    %v2165 = vld [vmem:[%s1644 + $0xc2] sm:$0xff]
    %v2166 = vld [vmem:[%s1644 + $0xca] sm:$0xff]
    %v2167 = vld [vmem:[%s1644 + $0xd2] sm:$0xff]
    %v2168 = vld [vmem:[%s1644 + $0xda] sm:$0xff]
    %v2169 = vld [vmem:[%s1644 + $0xe2] sm:$0xff]
    %v2170 = vld [vmem:[%s1644 + $0xea] sm:$0xff]
    %v2171 = vld [vmem:[%s1644 + $0xf2] sm:$0xff]
    %v2172 = vld [vmem:[%s1644 + $0xfa] sm:$0xff]
    %v2173 = vld [vmem:[%s1644 + $0x102] sm:$0xff]
    %v2174 = vld [vmem:[%s1644 + $0x10a] sm:$0xff]
    %v2175 = vld [vmem:[%s1644 + $0x112] sm:$0xff]
    %v2176 = vld [vmem:[%s1644 + $0x11a] sm:$0xff]
    %v2177 = vld [vmem:[%s1644 + $0x122] sm:$0xff]
    %v2178 = vld [vmem:[%s1644 + $0x12a] sm:$0xff]
    %v2179 = vld [vmem:[%s1644 + $0x132] sm:$0xff]
    %v2180 = vld [vmem:[%s1644 + $0x13a] sm:$0xff]
    %v2181 = vld [vmem:[%s1644 + $0x142] sm:$0xff]
    %v2182 = vld [vmem:[%s1644 + $0x14a] sm:$0xff]
    %v2183 = vld [vmem:[%s1644 + $0x152] sm:$0xff]
    %v2184 = vld [vmem:[%s1644 + $0x15a] sm:$0xff]
    %v2185 = vld [vmem:[%s1644 + $0x162] sm:$0xff]
    %v2186 = vld [vmem:[%s1644 + $0x16a] sm:$0xff]
    %v2187 = vld [vmem:[%s1644 + $0x172] sm:$0xff]
    %v2188 = vld [vmem:[%s1644 + $0x17a] sm:$0xff]
    %v2189 = vld [vmem:[%s1644 + $0x182] sm:$0xff]
    %v2190 = vld [vmem:[%s1644 + $0x18a] sm:$0xff]
    %v2191 = vld [vmem:[%s1644 + $0x192] sm:$0xff]
    %v2192 = vld [vmem:[%s1644 + $0x19a] sm:$0xff]
    %v2193 = vld [vmem:[%s1644 + $0x1a2] sm:$0xff]
    %v2194 = vld [vmem:[%s1644 + $0x1aa] sm:$0xff]
    %v2195 = vld [vmem:[%s1644 + $0x1b2] sm:$0xff]
    %v2196 = vld [vmem:[%s1644 + $0x1ba] sm:$0xff]
    %v2197 = vld [vmem:[%s1644 + $0x1c2] sm:$0xff]
    %v2198 = vld [vmem:[%s1644 + $0x1ca] sm:$0xff]
    %v2199 = vld [vmem:[%s1644 + $0x1d2] sm:$0xff]
    %v2200 = vld [vmem:[%s1644 + $0x1da] sm:$0xff]
    %v2201 = vld [vmem:[%s1644 + $0x1e2] sm:$0xff]
    %v2202 = vld [vmem:[%s1644 + $0x1ea] sm:$0xff]
    %2265 = vrot.lane.b32.xlu0 %v2141, 32
    %v2266 = vpop.permute.xlu0 %2265
    %2267 = vrot.lane.b32.xlu0 %v2142, 32
    %v2268 = vpop.permute.xlu0 %2267
    %2269 = vrot.lane.b32.xlu0 %v2143, 32
    %v2270 = vpop.permute.xlu0 %2269
    %2271 = vrot.lane.b32.xlu0 %v2144, 32
    %v2272 = vpop.permute.xlu0 %2271
    %2273 = vrot.lane.b32.xlu0 %v2145, 32
    %v2274 = vpop.permute.xlu0 %2273
    %2275 = vrot.lane.b32.xlu0 %v2146, 32
    %v2276 = vpop.permute.xlu0 %2275
    %2277 = vrot.lane.b32.xlu0 %v2147, 32
    %v2278 = vpop.permute.xlu0 %2277
    %2279 = vrot.lane.b32.xlu0 %v2148, 32
    %v2280 = vpop.permute.xlu0 %2279
    %2281 = vrot.lane.b32.xlu0 %v2149, 32
    %v2282 = vpop.permute.xlu0 %2281
    %2283 = vrot.lane.b32.xlu0 %v2150, 32
    %v2284 = vpop.permute.xlu0 %2283
    %2285 = vrot.lane.b32.xlu0 %v2151, 32
    %v2286 = vpop.permute.xlu0 %2285
    %2287 = vrot.lane.b32.xlu0 %v2152, 32
    %v2288 = vpop.permute.xlu0 %2287
    %2289 = vrot.lane.b32.xlu0 %v2153, 32
    %v2290 = vpop.permute.xlu0 %2289
    %2291 = vrot.lane.b32.xlu0 %v2154, 32
    %v2292 = vpop.permute.xlu0 %2291
    %2293 = vrot.lane.b32.xlu0 %v2155, 32
    %v2294 = vpop.permute.xlu0 %2293
    %2295 = vrot.lane.b32.xlu0 %v2156, 32
    %v2296 = vpop.permute.xlu0 %2295
    %2297 = vrot.lane.b32.xlu0 %v2157, 32
    %v2298 = vpop.permute.xlu0 %2297
    %2299 = vrot.lane.b32.xlu0 %v2158, 32
    %v2300 = vpop.permute.xlu0 %2299
    %2301 = vrot.lane.b32.xlu0 %v2159, 32
    %v2302 = vpop.permute.xlu0 %2301
    %2303 = vrot.lane.b32.xlu0 %v2160, 32
    %v2304 = vpop.permute.xlu0 %2303
    %2305 = vrot.lane.b32.xlu0 %v2161, 32
    %v2306 = vpop.permute.xlu0 %2305
    %2307 = vrot.lane.b32.xlu0 %v2162, 32
    %v2308 = vpop.permute.xlu0 %2307
    %2309 = vrot.lane.b32.xlu0 %v2163, 32
    %v2310 = vpop.permute.xlu0 %2309
    %2311 = vrot.lane.b32.xlu0 %v2164, 32
    %v2312 = vpop.permute.xlu0 %2311
    %2313 = vrot.lane.b32.xlu0 %v2165, 32
    %v2314 = vpop.permute.xlu0 %2313
    %2315 = vrot.lane.b32.xlu0 %v2166, 32
    %v2316 = vpop.permute.xlu0 %2315
    %2317 = vrot.lane.b32.xlu0 %v2167, 32
    %v2318 = vpop.permute.xlu0 %2317
    %2319 = vrot.lane.b32.xlu0 %v2168, 32
    %v2320 = vpop.permute.xlu0 %2319
    %2321 = vrot.lane.b32.xlu0 %v2169, 32
    %v2322 = vpop.permute.xlu0 %2321
    %2323 = vrot.lane.b32.xlu0 %v2170, 32
    %v2324 = vpop.permute.xlu0 %2323
    %2325 = vrot.lane.b32.xlu0 %v2171, 32
    %v2326 = vpop.permute.xlu0 %2325
    %2327 = vrot.lane.b32.xlu0 %v2172, 32
    %v2328 = vpop.permute.xlu0 %2327
    %2329 = vrot.lane.b32.xlu0 %v2173, 32
    %v2330 = vpop.permute.xlu0 %2329
    %2331 = vrot.lane.b32.xlu0 %v2174, 32
    %v2332 = vpop.permute.xlu0 %2331
    %2333 = vrot.lane.b32.xlu0 %v2175, 32
    %v2334 = vpop.permute.xlu0 %2333
    %2335 = vrot.lane.b32.xlu0 %v2176, 32
    %v2336 = vpop.permute.xlu0 %2335
    %2337 = vrot.lane.b32.xlu0 %v2177, 32
    %v2338 = vpop.permute.xlu0 %2337
    %2339 = vrot.lane.b32.xlu0 %v2178, 32
    %v2340 = vpop.permute.xlu0 %2339
    %2341 = vrot.lane.b32.xlu0 %v2179, 32
    %v2342 = vpop.permute.xlu0 %2341
    %2343 = vrot.lane.b32.xlu0 %v2180, 32
    %v2344 = vpop.permute.xlu0 %2343
    %2345 = vrot.lane.b32.xlu0 %v2181, 32
    %v2346 = vpop.permute.xlu0 %2345
    %2347 = vrot.lane.b32.xlu0 %v2182, 32
    %v2348 = vpop.permute.xlu0 %2347
    %2349 = vrot.lane.b32.xlu0 %v2183, 32
    %v2350 = vpop.permute.xlu0 %2349
    %2351 = vrot.lane.b32.xlu0 %v2184, 32
    %v2352 = vpop.permute.xlu0 %2351
    %2353 = vrot.lane.b32.xlu0 %v2185, 32
    %v2354 = vpop.permute.xlu0 %2353
    %2355 = vrot.lane.b32.xlu0 %v2186, 32
    %v2356 = vpop.permute.xlu0 %2355
    %2357 = vrot.lane.b32.xlu0 %v2187, 32
    %v2358 = vpop.permute.xlu0 %2357
    %2359 = vrot.lane.b32.xlu0 %v2188, 32
    %v2360 = vpop.permute.xlu0 %2359
    %2361 = vrot.lane.b32.xlu0 %v2189, 32
    %v2362 = vpop.permute.xlu0 %2361
    %2363 = vrot.lane.b32.xlu0 %v2190, 32
    %v2364 = vpop.permute.xlu0 %2363
    %2365 = vrot.lane.b32.xlu0 %v2191, 32
    %v2366 = vpop.permute.xlu0 %2365
    %2367 = vrot.lane.b32.xlu0 %v2192, 32
    %v2368 = vpop.permute.xlu0 %2367
    %2369 = vrot.lane.b32.xlu0 %v2193, 32
    %v2370 = vpop.permute.xlu0 %2369
    %2371 = vrot.lane.b32.xlu0 %v2194, 32
    %v2372 = vpop.permute.xlu0 %2371
    %2373 = vrot.lane.b32.xlu0 %v2195, 32
    %v2374 = vpop.permute.xlu0 %2373
    %2375 = vrot.lane.b32.xlu0 %v2196, 32
    %v2376 = vpop.permute.xlu0 %2375
    %2377 = vrot.lane.b32.xlu0 %v2197, 32
    %v2378 = vpop.permute.xlu0 %2377
    %2379 = vrot.lane.b32.xlu0 %v2198, 32
    %v2380 = vpop.permute.xlu0 %2379
    %2381 = vrot.lane.b32.xlu0 %v2199, 32
    %v2382 = vpop.permute.xlu0 %2381
    %2383 = vrot.lane.b32.xlu0 %v2200, 32
    %v2384 = vpop.permute.xlu0 %2383
    %2385 = vrot.lane.b32.xlu0 %v2201, 32
    %v2386 = vpop.permute.xlu0 %2385
    %2387 = vrot.lane.b32.xlu0 %v2202, 32
    %v2388 = vpop.permute.xlu0 %2387
    %2451 = vst.msk [vmem:[#allocation2 + $0x1f0] sm:$0xff] %vm835, %v2266
    %2452 = vst.msk [vmem:[#allocation2 + $0x1f8] sm:$0xff] %vm835, %v2268
    %2453 = vst.msk [vmem:[#allocation2 + $0x200] sm:$0xff] %vm835, %v2270
    %2454 = vst.msk [vmem:[#allocation2 + $0x208] sm:$0xff] %vm835, %v2272
    %2455 = vst.msk [vmem:[#allocation2 + $0x210] sm:$0xff] %vm835, %v2274
    %2456 = vst.msk [vmem:[#allocation2 + $0x218] sm:$0xff] %vm835, %v2276
    %2457 = vst.msk [vmem:[#allocation2 + $0x220] sm:$0xff] %vm835, %v2278
    %2458 = vst.msk [vmem:[#allocation2 + $0x228] sm:$0xff] %vm835, %v2280
    %2459 = vst.msk [vmem:[#allocation2 + $0x230] sm:$0xff] %vm835, %v2282
    %2460 = vst.msk [vmem:[#allocation2 + $0x238] sm:$0xff] %vm835, %v2284
    %2461 = vst.msk [vmem:[#allocation2 + $0x240] sm:$0xff] %vm835, %v2286
    %2462 = vst.msk [vmem:[#allocation2 + $0x248] sm:$0xff] %vm835, %v2288
    %2463 = vst.msk [vmem:[#allocation2 + $0x250] sm:$0xff] %vm835, %v2290
    %2464 = vst.msk [vmem:[#allocation2 + $0x258] sm:$0xff] %vm835, %v2292
    %2465 = vst.msk [vmem:[#allocation2 + $0x260] sm:$0xff] %vm835, %v2294
    %2466 = vst.msk [vmem:[#allocation2 + $0x268] sm:$0xff] %vm835, %v2296
    %2467 = vst.msk [vmem:[#allocation2 + $0x270] sm:$0xff] %vm835, %v2298
    %2468 = vst.msk [vmem:[#allocation2 + $0x278] sm:$0xff] %vm835, %v2300
    %2469 = vst.msk [vmem:[#allocation2 + $0x280] sm:$0xff] %vm835, %v2302
    %2470 = vst.msk [vmem:[#allocation2 + $0x288] sm:$0xff] %vm835, %v2304
    %2471 = vst.msk [vmem:[#allocation2 + $0x290] sm:$0xff] %vm835, %v2306
    %2472 = vst.msk [vmem:[#allocation2 + $0x298] sm:$0xff] %vm835, %v2308
    %2473 = vst.msk [vmem:[#allocation2 + $0x2a0] sm:$0xff] %vm835, %v2310
    %2474 = vst.msk [vmem:[#allocation2 + $0x2a8] sm:$0xff] %vm835, %v2312
    %2475 = vst.msk [vmem:[#allocation2 + $0x2b0] sm:$0xff] %vm835, %v2314
    %2476 = vst.msk [vmem:[#allocation2 + $0x2b8] sm:$0xff] %vm835, %v2316
    %2477 = vst.msk [vmem:[#allocation2 + $0x2c0] sm:$0xff] %vm835, %v2318
    %2478 = vst.msk [vmem:[#allocation2 + $0x2c8] sm:$0xff] %vm835, %v2320
    %2479 = vst.msk [vmem:[#allocation2 + $0x2d0] sm:$0xff] %vm835, %v2322
    %2480 = vst.msk [vmem:[#allocation2 + $0x2d8] sm:$0xff] %vm835, %v2324
    %2481 = vst.msk [vmem:[#allocation2 + $0x2e0] sm:$0xff] %vm835, %v2326
    %2482 = vst.msk [vmem:[#allocation2 + $0x2e8] sm:$0xff] %vm835, %v2328
    %2483 = vst.msk [vmem:[#allocation2 + $0x2f0] sm:$0xff] %vm835, %v2330
    %2484 = vst.msk [vmem:[#allocation2 + $0x2f8] sm:$0xff] %vm835, %v2332
    %2485 = vst.msk [vmem:[#allocation2 + $0x300] sm:$0xff] %vm835, %v2334
    %2486 = vst.msk [vmem:[#allocation2 + $0x308] sm:$0xff] %vm835, %v2336
    %2487 = vst.msk [vmem:[#allocation2 + $0x310] sm:$0xff] %vm835, %v2338
    %2488 = vst.msk [vmem:[#allocation2 + $0x318] sm:$0xff] %vm835, %v2340
    %2489 = vst.msk [vmem:[#allocation2 + $0x320] sm:$0xff] %vm835, %v2342
    %2490 = vst.msk [vmem:[#allocation2 + $0x328] sm:$0xff] %vm835, %v2344
    %2491 = vst.msk [vmem:[#allocation2 + $0x330] sm:$0xff] %vm835, %v2346
    %2492 = vst.msk [vmem:[#allocation2 + $0x338] sm:$0xff] %vm835, %v2348
    %2493 = vst.msk [vmem:[#allocation2 + $0x340] sm:$0xff] %vm835, %v2350
    %2494 = vst.msk [vmem:[#allocation2 + $0x348] sm:$0xff] %vm835, %v2352
    %2495 = vst.msk [vmem:[#allocation2 + $0x350] sm:$0xff] %vm835, %v2354
    %2496 = vst.msk [vmem:[#allocation2 + $0x358] sm:$0xff] %vm835, %v2356
    %2497 = vst.msk [vmem:[#allocation2 + $0x360] sm:$0xff] %vm835, %v2358
    %2498 = vst.msk [vmem:[#allocation2 + $0x368] sm:$0xff] %vm835, %v2360
    %2499 = vst.msk [vmem:[#allocation2 + $0x370] sm:$0xff] %vm835, %v2362
    %2500 = vst.msk [vmem:[#allocation2 + $0x378] sm:$0xff] %vm835, %v2364
    %2501 = vst.msk [vmem:[#allocation2 + $0x380] sm:$0xff] %vm835, %v2366
    %2502 = vst.msk [vmem:[#allocation2 + $0x388] sm:$0xff] %vm835, %v2368
    %2503 = vst.msk [vmem:[#allocation2 + $0x390] sm:$0xff] %vm835, %v2370
    %2504 = vst.msk [vmem:[#allocation2 + $0x398] sm:$0xff] %vm835, %v2372
    %2505 = vst.msk [vmem:[#allocation2 + $0x3a0] sm:$0xff] %vm835, %v2374
    %2506 = vst.msk [vmem:[#allocation2 + $0x3a8] sm:$0xff] %vm835, %v2376
    %2507 = vst.msk [vmem:[#allocation2 + $0x3b0] sm:$0xff] %vm835, %v2378
    %2508 = vst.msk [vmem:[#allocation2 + $0x3b8] sm:$0xff] %vm835, %v2380
    %2509 = vst.msk [vmem:[#allocation2 + $0x3c0] sm:$0xff] %vm835, %v2382
    %2510 = vst.msk [vmem:[#allocation2 + $0x3c8] sm:$0xff] %vm835, %v2384
    %2511 = vst.msk [vmem:[#allocation2 + $0x3d0] sm:$0xff] %vm835, %v2386
    %2512 = vst.msk [vmem:[#allocation2 + $0x3d8] sm:$0xff] %vm835, %v2388
    %v2513 = vld [vmem:[%s1644 + $0x3] sm:$0xff]
    %v2514 = vld [vmem:[%s1644 + $0xb] sm:$0xff]
    %v2515 = vld [vmem:[%s1644 + $0x13] sm:$0xff]
    %v2516 = vld [vmem:[%s1644 + $0x1b] sm:$0xff]
    %v2517 = vld [vmem:[%s1644 + $0x23] sm:$0xff]
    %v2518 = vld [vmem:[%s1644 + $0x2b] sm:$0xff]
    %v2519 = vld [vmem:[%s1644 + $0x33] sm:$0xff]
    %v2520 = vld [vmem:[%s1644 + $0x3b] sm:$0xff]
    %v2521 = vld [vmem:[%s1644 + $0x43] sm:$0xff]
    %v2522 = vld [vmem:[%s1644 + $0x4b] sm:$0xff]
    %v2523 = vld [vmem:[%s1644 + $0x53] sm:$0xff]
    %v2524 = vld [vmem:[%s1644 + $0x5b] sm:$0xff]
    %v2525 = vld [vmem:[%s1644 + $0x63] sm:$0xff]
    %v2526 = vld [vmem:[%s1644 + $0x6b] sm:$0xff]
    %v2527 = vld [vmem:[%s1644 + $0x73] sm:$0xff]
    %v2528 = vld [vmem:[%s1644 + $0x7b] sm:$0xff]
    %v2529 = vld [vmem:[%s1644 + $0x83] sm:$0xff]
    %v2530 = vld [vmem:[%s1644 + $0x8b] sm:$0xff]
    %v2531 = vld [vmem:[%s1644 + $0x93] sm:$0xff]
    %v2532 = vld [vmem:[%s1644 + $0x9b] sm:$0xff]
    %v2533 = vld [vmem:[%s1644 + $0xa3] sm:$0xff]
    %v2534 = vld [vmem:[%s1644 + $0xab] sm:$0xff]
    %v2535 = vld [vmem:[%s1644 + $0xb3] sm:$0xff]
    %v2536 = vld [vmem:[%s1644 + $0xbb] sm:$0xff]
    %v2537 = vld [vmem:[%s1644 + $0xc3] sm:$0xff]
    %v2538 = vld [vmem:[%s1644 + $0xcb] sm:$0xff]
    %v2539 = vld [vmem:[%s1644 + $0xd3] sm:$0xff]
    %v2540 = vld [vmem:[%s1644 + $0xdb] sm:$0xff]
    %v2541 = vld [vmem:[%s1644 + $0xe3] sm:$0xff]
    %v2542 = vld [vmem:[%s1644 + $0xeb] sm:$0xff]
    %v2543 = vld [vmem:[%s1644 + $0xf3] sm:$0xff]
    %v2544 = vld [vmem:[%s1644 + $0xfb] sm:$0xff]
    %v2545 = vld [vmem:[%s1644 + $0x103] sm:$0xff]
    %v2546 = vld [vmem:[%s1644 + $0x10b] sm:$0xff]
    %v2547 = vld [vmem:[%s1644 + $0x113] sm:$0xff]
    %v2548 = vld [vmem:[%s1644 + $0x11b] sm:$0xff]
    %v2549 = vld [vmem:[%s1644 + $0x123] sm:$0xff]
    %v2550 = vld [vmem:[%s1644 + $0x12b] sm:$0xff]
    %v2551 = vld [vmem:[%s1644 + $0x133] sm:$0xff]
    %v2552 = vld [vmem:[%s1644 + $0x13b] sm:$0xff]
    %v2553 = vld [vmem:[%s1644 + $0x143] sm:$0xff]
    %v2554 = vld [vmem:[%s1644 + $0x14b] sm:$0xff]
    %v2555 = vld [vmem:[%s1644 + $0x153] sm:$0xff]
    %v2556 = vld [vmem:[%s1644 + $0x15b] sm:$0xff]
    %v2557 = vld [vmem:[%s1644 + $0x163] sm:$0xff]
    %v2558 = vld [vmem:[%s1644 + $0x16b] sm:$0xff]
    %v2559 = vld [vmem:[%s1644 + $0x173] sm:$0xff]
    %v2560 = vld [vmem:[%s1644 + $0x17b] sm:$0xff]
    %v2561 = vld [vmem:[%s1644 + $0x183] sm:$0xff]
    %v2562 = vld [vmem:[%s1644 + $0x18b] sm:$0xff]
    %v2563 = vld [vmem:[%s1644 + $0x193] sm:$0xff]
    %v2564 = vld [vmem:[%s1644 + $0x19b] sm:$0xff]
    %v2565 = vld [vmem:[%s1644 + $0x1a3] sm:$0xff]
    %v2566 = vld [vmem:[%s1644 + $0x1ab] sm:$0xff]
    %v2567 = vld [vmem:[%s1644 + $0x1b3] sm:$0xff]
    %v2568 = vld [vmem:[%s1644 + $0x1bb] sm:$0xff]
    %v2569 = vld [vmem:[%s1644 + $0x1c3] sm:$0xff]
    %v2570 = vld [vmem:[%s1644 + $0x1cb] sm:$0xff]
    %v2571 = vld [vmem:[%s1644 + $0x1d3] sm:$0xff]
    %v2572 = vld [vmem:[%s1644 + $0x1db] sm:$0xff]
    %v2573 = vld [vmem:[%s1644 + $0x1e3] sm:$0xff]
    %v2574 = vld [vmem:[%s1644 + $0x1eb] sm:$0xff]
    %2637 = vrot.lane.b32.xlu0 %v2513, 48
    %v2638 = vpop.permute.xlu0 %2637
    %2639 = vrot.lane.b32.xlu0 %v2514, 48
    %v2640 = vpop.permute.xlu0 %2639
    %2641 = vrot.lane.b32.xlu0 %v2515, 48
    %v2642 = vpop.permute.xlu0 %2641
    %2643 = vrot.lane.b32.xlu0 %v2516, 48
    %v2644 = vpop.permute.xlu0 %2643
    %2645 = vrot.lane.b32.xlu0 %v2517, 48
    %v2646 = vpop.permute.xlu0 %2645
    %2647 = vrot.lane.b32.xlu0 %v2518, 48
    %v2648 = vpop.permute.xlu0 %2647
    %2649 = vrot.lane.b32.xlu0 %v2519, 48
    %v2650 = vpop.permute.xlu0 %2649
    %2651 = vrot.lane.b32.xlu0 %v2520, 48
    %v2652 = vpop.permute.xlu0 %2651
    %2653 = vrot.lane.b32.xlu0 %v2521, 48
    %v2654 = vpop.permute.xlu0 %2653
    %2655 = vrot.lane.b32.xlu0 %v2522, 48
    %v2656 = vpop.permute.xlu0 %2655
    %2657 = vrot.lane.b32.xlu0 %v2523, 48
    %v2658 = vpop.permute.xlu0 %2657
    %2659 = vrot.lane.b32.xlu0 %v2524, 48
    %v2660 = vpop.permute.xlu0 %2659
    %2661 = vrot.lane.b32.xlu0 %v2525, 48
    %v2662 = vpop.permute.xlu0 %2661
    %2663 = vrot.lane.b32.xlu0 %v2526, 48
    %v2664 = vpop.permute.xlu0 %2663
    %2665 = vrot.lane.b32.xlu0 %v2527, 48
    %v2666 = vpop.permute.xlu0 %2665
    %2667 = vrot.lane.b32.xlu0 %v2528, 48
    %v2668 = vpop.permute.xlu0 %2667
    %2669 = vrot.lane.b32.xlu0 %v2529, 48
    %v2670 = vpop.permute.xlu0 %2669
    %2671 = vrot.lane.b32.xlu0 %v2530, 48
    %v2672 = vpop.permute.xlu0 %2671
    %2673 = vrot.lane.b32.xlu0 %v2531, 48
    %v2674 = vpop.permute.xlu0 %2673
    %2675 = vrot.lane.b32.xlu0 %v2532, 48
    %v2676 = vpop.permute.xlu0 %2675
    %2677 = vrot.lane.b32.xlu0 %v2533, 48
    %v2678 = vpop.permute.xlu0 %2677
    %2679 = vrot.lane.b32.xlu0 %v2534, 48
    %v2680 = vpop.permute.xlu0 %2679
    %2681 = vrot.lane.b32.xlu0 %v2535, 48
    %v2682 = vpop.permute.xlu0 %2681
    %2683 = vrot.lane.b32.xlu0 %v2536, 48
    %v2684 = vpop.permute.xlu0 %2683
    %2685 = vrot.lane.b32.xlu0 %v2537, 48
    %v2686 = vpop.permute.xlu0 %2685
    %2687 = vrot.lane.b32.xlu0 %v2538, 48
    %v2688 = vpop.permute.xlu0 %2687
    %2689 = vrot.lane.b32.xlu0 %v2539, 48
    %v2690 = vpop.permute.xlu0 %2689
    %2691 = vrot.lane.b32.xlu0 %v2540, 48
    %v2692 = vpop.permute.xlu0 %2691
    %2693 = vrot.lane.b32.xlu0 %v2541, 48
    %v2694 = vpop.permute.xlu0 %2693
    %2695 = vrot.lane.b32.xlu0 %v2542, 48
    %v2696 = vpop.permute.xlu0 %2695
    %2697 = vrot.lane.b32.xlu0 %v2543, 48
    %v2698 = vpop.permute.xlu0 %2697
    %2699 = vrot.lane.b32.xlu0 %v2544, 48
    %v2700 = vpop.permute.xlu0 %2699
    %2701 = vrot.lane.b32.xlu0 %v2545, 48
    %v2702 = vpop.permute.xlu0 %2701
    %2703 = vrot.lane.b32.xlu0 %v2546, 48
    %v2704 = vpop.permute.xlu0 %2703
    %2705 = vrot.lane.b32.xlu0 %v2547, 48
    %v2706 = vpop.permute.xlu0 %2705
    %2707 = vrot.lane.b32.xlu0 %v2548, 48
    %v2708 = vpop.permute.xlu0 %2707
    %2709 = vrot.lane.b32.xlu0 %v2549, 48
    %v2710 = vpop.permute.xlu0 %2709
    %2711 = vrot.lane.b32.xlu0 %v2550, 48
    %v2712 = vpop.permute.xlu0 %2711
    %2713 = vrot.lane.b32.xlu0 %v2551, 48
    %v2714 = vpop.permute.xlu0 %2713
    %2715 = vrot.lane.b32.xlu0 %v2552, 48
    %v2716 = vpop.permute.xlu0 %2715
    %2717 = vrot.lane.b32.xlu0 %v2553, 48
    %v2718 = vpop.permute.xlu0 %2717
    %2719 = vrot.lane.b32.xlu0 %v2554, 48
    %v2720 = vpop.permute.xlu0 %2719
    %2721 = vrot.lane.b32.xlu0 %v2555, 48
    %v2722 = vpop.permute.xlu0 %2721
    %2723 = vrot.lane.b32.xlu0 %v2556, 48
    %v2724 = vpop.permute.xlu0 %2723
    %2725 = vrot.lane.b32.xlu0 %v2557, 48
    %v2726 = vpop.permute.xlu0 %2725
    %2727 = vrot.lane.b32.xlu0 %v2558, 48
    %v2728 = vpop.permute.xlu0 %2727
    %2729 = vrot.lane.b32.xlu0 %v2559, 48
    %v2730 = vpop.permute.xlu0 %2729
    %2731 = vrot.lane.b32.xlu0 %v2560, 48
    %v2732 = vpop.permute.xlu0 %2731
    %2733 = vrot.lane.b32.xlu0 %v2561, 48
    %v2734 = vpop.permute.xlu0 %2733
    %2735 = vrot.lane.b32.xlu0 %v2562, 48
    %v2736 = vpop.permute.xlu0 %2735
    %2737 = vrot.lane.b32.xlu0 %v2563, 48
    %v2738 = vpop.permute.xlu0 %2737
    %2739 = vrot.lane.b32.xlu0 %v2564, 48
    %v2740 = vpop.permute.xlu0 %2739
    %2741 = vrot.lane.b32.xlu0 %v2565, 48
    %v2742 = vpop.permute.xlu0 %2741
    %2743 = vrot.lane.b32.xlu0 %v2566, 48
    %v2744 = vpop.permute.xlu0 %2743
    %2745 = vrot.lane.b32.xlu0 %v2567, 48
    %v2746 = vpop.permute.xlu0 %2745
    %2747 = vrot.lane.b32.xlu0 %v2568, 48
    %v2748 = vpop.permute.xlu0 %2747
    %2749 = vrot.lane.b32.xlu0 %v2569, 48
    %v2750 = vpop.permute.xlu0 %2749
    %2751 = vrot.lane.b32.xlu0 %v2570, 48
    %v2752 = vpop.permute.xlu0 %2751
    %2753 = vrot.lane.b32.xlu0 %v2571, 48
    %v2754 = vpop.permute.xlu0 %2753
    %2755 = vrot.lane.b32.xlu0 %v2572, 48
    %v2756 = vpop.permute.xlu0 %2755
    %2757 = vrot.lane.b32.xlu0 %v2573, 48
    %v2758 = vpop.permute.xlu0 %2757
    %2759 = vrot.lane.b32.xlu0 %v2574, 48
    %v2760 = vpop.permute.xlu0 %2759
    %2823 = vst.msk [vmem:[#allocation2 + $0x1f0] sm:$0xff] %vm1208, %v2638
    %2824 = vst.msk [vmem:[#allocation2 + $0x1f8] sm:$0xff] %vm1208, %v2640
    %2825 = vst.msk [vmem:[#allocation2 + $0x200] sm:$0xff] %vm1208, %v2642
    %2826 = vst.msk [vmem:[#allocation2 + $0x208] sm:$0xff] %vm1208, %v2644
    %2827 = vst.msk [vmem:[#allocation2 + $0x210] sm:$0xff] %vm1208, %v2646
    %2828 = vst.msk [vmem:[#allocation2 + $0x218] sm:$0xff] %vm1208, %v2648
    %2829 = vst.msk [vmem:[#allocation2 + $0x220] sm:$0xff] %vm1208, %v2650
    %2830 = vst.msk [vmem:[#allocation2 + $0x228] sm:$0xff] %vm1208, %v2652
    %2831 = vst.msk [vmem:[#allocation2 + $0x230] sm:$0xff] %vm1208, %v2654
    %2832 = vst.msk [vmem:[#allocation2 + $0x238] sm:$0xff] %vm1208, %v2656
    %2833 = vst.msk [vmem:[#allocation2 + $0x240] sm:$0xff] %vm1208, %v2658
    %2834 = vst.msk [vmem:[#allocation2 + $0x248] sm:$0xff] %vm1208, %v2660
    %2835 = vst.msk [vmem:[#allocation2 + $0x250] sm:$0xff] %vm1208, %v2662
    %2836 = vst.msk [vmem:[#allocation2 + $0x258] sm:$0xff] %vm1208, %v2664
    %2837 = vst.msk [vmem:[#allocation2 + $0x260] sm:$0xff] %vm1208, %v2666
    %2838 = vst.msk [vmem:[#allocation2 + $0x268] sm:$0xff] %vm1208, %v2668
    %2839 = vst.msk [vmem:[#allocation2 + $0x270] sm:$0xff] %vm1208, %v2670
    %2840 = vst.msk [vmem:[#allocation2 + $0x278] sm:$0xff] %vm1208, %v2672
    %2841 = vst.msk [vmem:[#allocation2 + $0x280] sm:$0xff] %vm1208, %v2674
    %2842 = vst.msk [vmem:[#allocation2 + $0x288] sm:$0xff] %vm1208, %v2676
    %2843 = vst.msk [vmem:[#allocation2 + $0x290] sm:$0xff] %vm1208, %v2678
    %2844 = vst.msk [vmem:[#allocation2 + $0x298] sm:$0xff] %vm1208, %v2680
    %2845 = vst.msk [vmem:[#allocation2 + $0x2a0] sm:$0xff] %vm1208, %v2682
    %2846 = vst.msk [vmem:[#allocation2 + $0x2a8] sm:$0xff] %vm1208, %v2684
    %2847 = vst.msk [vmem:[#allocation2 + $0x2b0] sm:$0xff] %vm1208, %v2686
    %2848 = vst.msk [vmem:[#allocation2 + $0x2b8] sm:$0xff] %vm1208, %v2688
    %2849 = vst.msk [vmem:[#allocation2 + $0x2c0] sm:$0xff] %vm1208, %v2690
    %2850 = vst.msk [vmem:[#allocation2 + $0x2c8] sm:$0xff] %vm1208, %v2692
    %2851 = vst.msk [vmem:[#allocation2 + $0x2d0] sm:$0xff] %vm1208, %v2694
    %2852 = vst.msk [vmem:[#allocation2 + $0x2d8] sm:$0xff] %vm1208, %v2696
    %2853 = vst.msk [vmem:[#allocation2 + $0x2e0] sm:$0xff] %vm1208, %v2698
    %2854 = vst.msk [vmem:[#allocation2 + $0x2e8] sm:$0xff] %vm1208, %v2700
    %2855 = vst.msk [vmem:[#allocation2 + $0x2f0] sm:$0xff] %vm1208, %v2702
    %2856 = vst.msk [vmem:[#allocation2 + $0x2f8] sm:$0xff] %vm1208, %v2704
    %2857 = vst.msk [vmem:[#allocation2 + $0x300] sm:$0xff] %vm1208, %v2706
    %2858 = vst.msk [vmem:[#allocation2 + $0x308] sm:$0xff] %vm1208, %v2708
    %2859 = vst.msk [vmem:[#allocation2 + $0x310] sm:$0xff] %vm1208, %v2710
    %2860 = vst.msk [vmem:[#allocation2 + $0x318] sm:$0xff] %vm1208, %v2712
    %2861 = vst.msk [vmem:[#allocation2 + $0x320] sm:$0xff] %vm1208, %v2714
    %2862 = vst.msk [vmem:[#allocation2 + $0x328] sm:$0xff] %vm1208, %v2716
    %2863 = vst.msk [vmem:[#allocation2 + $0x330] sm:$0xff] %vm1208, %v2718
    %2864 = vst.msk [vmem:[#allocation2 + $0x338] sm:$0xff] %vm1208, %v2720
    %2865 = vst.msk [vmem:[#allocation2 + $0x340] sm:$0xff] %vm1208, %v2722
    %2866 = vst.msk [vmem:[#allocation2 + $0x348] sm:$0xff] %vm1208, %v2724
    %2867 = vst.msk [vmem:[#allocation2 + $0x350] sm:$0xff] %vm1208, %v2726
    %2868 = vst.msk [vmem:[#allocation2 + $0x358] sm:$0xff] %vm1208, %v2728
    %2869 = vst.msk [vmem:[#allocation2 + $0x360] sm:$0xff] %vm1208, %v2730
    %2870 = vst.msk [vmem:[#allocation2 + $0x368] sm:$0xff] %vm1208, %v2732
    %2871 = vst.msk [vmem:[#allocation2 + $0x370] sm:$0xff] %vm1208, %v2734
    %2872 = vst.msk [vmem:[#allocation2 + $0x378] sm:$0xff] %vm1208, %v2736
    %2873 = vst.msk [vmem:[#allocation2 + $0x380] sm:$0xff] %vm1208, %v2738
    %2874 = vst.msk [vmem:[#allocation2 + $0x388] sm:$0xff] %vm1208, %v2740
    %2875 = vst.msk [vmem:[#allocation2 + $0x390] sm:$0xff] %vm1208, %v2742
    %2876 = vst.msk [vmem:[#allocation2 + $0x398] sm:$0xff] %vm1208, %v2744
    %2877 = vst.msk [vmem:[#allocation2 + $0x3a0] sm:$0xff] %vm1208, %v2746
    %2878 = vst.msk [vmem:[#allocation2 + $0x3a8] sm:$0xff] %vm1208, %v2748
    %2879 = vst.msk [vmem:[#allocation2 + $0x3b0] sm:$0xff] %vm1208, %v2750
    %2880 = vst.msk [vmem:[#allocation2 + $0x3b8] sm:$0xff] %vm1208, %v2752
    %2881 = vst.msk [vmem:[#allocation2 + $0x3c0] sm:$0xff] %vm1208, %v2754
    %2882 = vst.msk [vmem:[#allocation2 + $0x3c8] sm:$0xff] %vm1208, %v2756
    %2883 = vst.msk [vmem:[#allocation2 + $0x3d0] sm:$0xff] %vm1208, %v2758
    %2884 = vst.msk [vmem:[#allocation2 + $0x3d8] sm:$0xff] %vm1208, %v2760
    %v2885 = vld [vmem:[%s1644 + $0x4] sm:$0xff]
    %v2886 = vld [vmem:[%s1644 + $0xc] sm:$0xff]
    %v2887 = vld [vmem:[%s1644 + $0x14] sm:$0xff]
    %v2888 = vld [vmem:[%s1644 + $0x1c] sm:$0xff]
    %v2889 = vld [vmem:[%s1644 + $0x24] sm:$0xff]
    %v2890 = vld [vmem:[%s1644 + $0x2c] sm:$0xff]
    %v2891 = vld [vmem:[%s1644 + $0x34] sm:$0xff]
    %v2892 = vld [vmem:[%s1644 + $0x3c] sm:$0xff]
    %v2893 = vld [vmem:[%s1644 + $0x44] sm:$0xff]
    %v2894 = vld [vmem:[%s1644 + $0x4c] sm:$0xff]
    %v2895 = vld [vmem:[%s1644 + $0x54] sm:$0xff]
    %v2896 = vld [vmem:[%s1644 + $0x5c] sm:$0xff]
    %v2897 = vld [vmem:[%s1644 + $0x64] sm:$0xff]
    %v2898 = vld [vmem:[%s1644 + $0x6c] sm:$0xff]
    %v2899 = vld [vmem:[%s1644 + $0x74] sm:$0xff]
    %v2900 = vld [vmem:[%s1644 + $0x7c] sm:$0xff]
    %v2901 = vld [vmem:[%s1644 + $0x84] sm:$0xff]
    %v2902 = vld [vmem:[%s1644 + $0x8c] sm:$0xff]
    %v2903 = vld [vmem:[%s1644 + $0x94] sm:$0xff]
    %v2904 = vld [vmem:[%s1644 + $0x9c] sm:$0xff]
    %v2905 = vld [vmem:[%s1644 + $0xa4] sm:$0xff]
    %v2906 = vld [vmem:[%s1644 + $0xac] sm:$0xff]
    %v2907 = vld [vmem:[%s1644 + $0xb4] sm:$0xff]
    %v2908 = vld [vmem:[%s1644 + $0xbc] sm:$0xff]
    %v2909 = vld [vmem:[%s1644 + $0xc4] sm:$0xff]
    %v2910 = vld [vmem:[%s1644 + $0xcc] sm:$0xff]
    %v2911 = vld [vmem:[%s1644 + $0xd4] sm:$0xff]
    %v2912 = vld [vmem:[%s1644 + $0xdc] sm:$0xff]
    %v2913 = vld [vmem:[%s1644 + $0xe4] sm:$0xff]
    %v2914 = vld [vmem:[%s1644 + $0xec] sm:$0xff]
    %v2915 = vld [vmem:[%s1644 + $0xf4] sm:$0xff]
    %v2916 = vld [vmem:[%s1644 + $0xfc] sm:$0xff]
    %v2917 = vld [vmem:[%s1644 + $0x104] sm:$0xff]
    %v2918 = vld [vmem:[%s1644 + $0x10c] sm:$0xff]
    %v2919 = vld [vmem:[%s1644 + $0x114] sm:$0xff]
    %v2920 = vld [vmem:[%s1644 + $0x11c] sm:$0xff]
    %v2921 = vld [vmem:[%s1644 + $0x124] sm:$0xff]
    %v2922 = vld [vmem:[%s1644 + $0x12c] sm:$0xff]
    %v2923 = vld [vmem:[%s1644 + $0x134] sm:$0xff]
    %v2924 = vld [vmem:[%s1644 + $0x13c] sm:$0xff]
    %v2925 = vld [vmem:[%s1644 + $0x144] sm:$0xff]
    %v2926 = vld [vmem:[%s1644 + $0x14c] sm:$0xff]
    %v2927 = vld [vmem:[%s1644 + $0x154] sm:$0xff]
    %v2928 = vld [vmem:[%s1644 + $0x15c] sm:$0xff]
    %v2929 = vld [vmem:[%s1644 + $0x164] sm:$0xff]
    %v2930 = vld [vmem:[%s1644 + $0x16c] sm:$0xff]
    %v2931 = vld [vmem:[%s1644 + $0x174] sm:$0xff]
    %v2932 = vld [vmem:[%s1644 + $0x17c] sm:$0xff]
    %v2933 = vld [vmem:[%s1644 + $0x184] sm:$0xff]
    %v2934 = vld [vmem:[%s1644 + $0x18c] sm:$0xff]
    %v2935 = vld [vmem:[%s1644 + $0x194] sm:$0xff]
    %v2936 = vld [vmem:[%s1644 + $0x19c] sm:$0xff]
    %v2937 = vld [vmem:[%s1644 + $0x1a4] sm:$0xff]
    %v2938 = vld [vmem:[%s1644 + $0x1ac] sm:$0xff]
    %v2939 = vld [vmem:[%s1644 + $0x1b4] sm:$0xff]
    %v2940 = vld [vmem:[%s1644 + $0x1bc] sm:$0xff]
    %v2941 = vld [vmem:[%s1644 + $0x1c4] sm:$0xff]
    %v2942 = vld [vmem:[%s1644 + $0x1cc] sm:$0xff]
    %v2943 = vld [vmem:[%s1644 + $0x1d4] sm:$0xff]
    %v2944 = vld [vmem:[%s1644 + $0x1dc] sm:$0xff]
    %v2945 = vld [vmem:[%s1644 + $0x1e4] sm:$0xff]
    %v2946 = vld [vmem:[%s1644 + $0x1ec] sm:$0xff]
    %3009 = vrot.lane.b32.xlu0 %v2885, 64
    %v3010 = vpop.permute.xlu0 %3009
    %3011 = vrot.lane.b32.xlu0 %v2886, 64
    %v3012 = vpop.permute.xlu0 %3011
    %3013 = vrot.lane.b32.xlu0 %v2887, 64
    %v3014 = vpop.permute.xlu0 %3013
    %3015 = vrot.lane.b32.xlu0 %v2888, 64
    %v3016 = vpop.permute.xlu0 %3015
    %3017 = vrot.lane.b32.xlu0 %v2889, 64
    %v3018 = vpop.permute.xlu0 %3017
    %3019 = vrot.lane.b32.xlu0 %v2890, 64
    %v3020 = vpop.permute.xlu0 %3019
    %3021 = vrot.lane.b32.xlu0 %v2891, 64
    %v3022 = vpop.permute.xlu0 %3021
    %3023 = vrot.lane.b32.xlu0 %v2892, 64
    %v3024 = vpop.permute.xlu0 %3023
    %3025 = vrot.lane.b32.xlu0 %v2893, 64
    %v3026 = vpop.permute.xlu0 %3025
    %3027 = vrot.lane.b32.xlu0 %v2894, 64
    %v3028 = vpop.permute.xlu0 %3027
    %3029 = vrot.lane.b32.xlu0 %v2895, 64
    %v3030 = vpop.permute.xlu0 %3029
    %3031 = vrot.lane.b32.xlu0 %v2896, 64
    %v3032 = vpop.permute.xlu0 %3031
    %3033 = vrot.lane.b32.xlu0 %v2897, 64
    %v3034 = vpop.permute.xlu0 %3033
    %3035 = vrot.lane.b32.xlu0 %v2898, 64
    %v3036 = vpop.permute.xlu0 %3035
    %3037 = vrot.lane.b32.xlu0 %v2899, 64
    %v3038 = vpop.permute.xlu0 %3037
    %3039 = vrot.lane.b32.xlu0 %v2900, 64
    %v3040 = vpop.permute.xlu0 %3039
    %3041 = vrot.lane.b32.xlu0 %v2901, 64
    %v3042 = vpop.permute.xlu0 %3041
    %3043 = vrot.lane.b32.xlu0 %v2902, 64
    %v3044 = vpop.permute.xlu0 %3043
    %3045 = vrot.lane.b32.xlu0 %v2903, 64
    %v3046 = vpop.permute.xlu0 %3045
    %3047 = vrot.lane.b32.xlu0 %v2904, 64
    %v3048 = vpop.permute.xlu0 %3047
    %3049 = vrot.lane.b32.xlu0 %v2905, 64
    %v3050 = vpop.permute.xlu0 %3049
    %3051 = vrot.lane.b32.xlu0 %v2906, 64
    %v3052 = vpop.permute.xlu0 %3051
    %3053 = vrot.lane.b32.xlu0 %v2907, 64
    %v3054 = vpop.permute.xlu0 %3053
    %3055 = vrot.lane.b32.xlu0 %v2908, 64
    %v3056 = vpop.permute.xlu0 %3055
    %3057 = vrot.lane.b32.xlu0 %v2909, 64
    %v3058 = vpop.permute.xlu0 %3057
    %3059 = vrot.lane.b32.xlu0 %v2910, 64
    %v3060 = vpop.permute.xlu0 %3059
    %3061 = vrot.lane.b32.xlu0 %v2911, 64
    %v3062 = vpop.permute.xlu0 %3061
    %3063 = vrot.lane.b32.xlu0 %v2912, 64
    %v3064 = vpop.permute.xlu0 %3063
    %3065 = vrot.lane.b32.xlu0 %v2913, 64
    %v3066 = vpop.permute.xlu0 %3065
    %3067 = vrot.lane.b32.xlu0 %v2914, 64
    %v3068 = vpop.permute.xlu0 %3067
    %3069 = vrot.lane.b32.xlu0 %v2915, 64
    %v3070 = vpop.permute.xlu0 %3069
    %3071 = vrot.lane.b32.xlu0 %v2916, 64
    %v3072 = vpop.permute.xlu0 %3071
    %3073 = vrot.lane.b32.xlu0 %v2917, 64
    %v3074 = vpop.permute.xlu0 %3073
    %3075 = vrot.lane.b32.xlu0 %v2918, 64
    %v3076 = vpop.permute.xlu0 %3075
    %3077 = vrot.lane.b32.xlu0 %v2919, 64
    %v3078 = vpop.permute.xlu0 %3077
    %3079 = vrot.lane.b32.xlu0 %v2920, 64
    %v3080 = vpop.permute.xlu0 %3079
    %3081 = vrot.lane.b32.xlu0 %v2921, 64
    %v3082 = vpop.permute.xlu0 %3081
    %3083 = vrot.lane.b32.xlu0 %v2922, 64
    %v3084 = vpop.permute.xlu0 %3083
    %3085 = vrot.lane.b32.xlu0 %v2923, 64
    %v3086 = vpop.permute.xlu0 %3085
    %3087 = vrot.lane.b32.xlu0 %v2924, 64
    %v3088 = vpop.permute.xlu0 %3087
    %3089 = vrot.lane.b32.xlu0 %v2925, 64
    %v3090 = vpop.permute.xlu0 %3089
    %3091 = vrot.lane.b32.xlu0 %v2926, 64
    %v3092 = vpop.permute.xlu0 %3091
    %3093 = vrot.lane.b32.xlu0 %v2927, 64
    %v3094 = vpop.permute.xlu0 %3093
    %3095 = vrot.lane.b32.xlu0 %v2928, 64
    %v3096 = vpop.permute.xlu0 %3095
    %3097 = vrot.lane.b32.xlu0 %v2929, 64
    %v3098 = vpop.permute.xlu0 %3097
    %3099 = vrot.lane.b32.xlu0 %v2930, 64
    %v3100 = vpop.permute.xlu0 %3099
    %3101 = vrot.lane.b32.xlu0 %v2931, 64
    %v3102 = vpop.permute.xlu0 %3101
    %3103 = vrot.lane.b32.xlu0 %v2932, 64
    %v3104 = vpop.permute.xlu0 %3103
    %3105 = vrot.lane.b32.xlu0 %v2933, 64
    %v3106 = vpop.permute.xlu0 %3105
    %3107 = vrot.lane.b32.xlu0 %v2934, 64
    %v3108 = vpop.permute.xlu0 %3107
    %3109 = vrot.lane.b32.xlu0 %v2935, 64
    %v3110 = vpop.permute.xlu0 %3109
    %3111 = vrot.lane.b32.xlu0 %v2936, 64
    %v3112 = vpop.permute.xlu0 %3111
    %3113 = vrot.lane.b32.xlu0 %v2937, 64
    %v3114 = vpop.permute.xlu0 %3113
    %3115 = vrot.lane.b32.xlu0 %v2938, 64
    %v3116 = vpop.permute.xlu0 %3115
    %3117 = vrot.lane.b32.xlu0 %v2939, 64
    %v3118 = vpop.permute.xlu0 %3117
    %3119 = vrot.lane.b32.xlu0 %v2940, 64
    %v3120 = vpop.permute.xlu0 %3119
    %3121 = vrot.lane.b32.xlu0 %v2941, 64
    %v3122 = vpop.permute.xlu0 %3121
    %3123 = vrot.lane.b32.xlu0 %v2942, 64
    %v3124 = vpop.permute.xlu0 %3123
    %3125 = vrot.lane.b32.xlu0 %v2943, 64
    %v3126 = vpop.permute.xlu0 %3125
    %3127 = vrot.lane.b32.xlu0 %v2944, 64
    %v3128 = vpop.permute.xlu0 %3127
    %3129 = vrot.lane.b32.xlu0 %v2945, 64
    %v3130 = vpop.permute.xlu0 %3129
    %3131 = vrot.lane.b32.xlu0 %v2946, 64
    %v3132 = vpop.permute.xlu0 %3131
    %3195 = vst.msk [vmem:[#allocation2 + $0x1f0] sm:$0xff] %vm1581, %v3010
    %3196 = vst.msk [vmem:[#allocation2 + $0x1f8] sm:$0xff] %vm1581, %v3012
    %3197 = vst.msk [vmem:[#allocation2 + $0x200] sm:$0xff] %vm1581, %v3014
    %3198 = vst.msk [vmem:[#allocation2 + $0x208] sm:$0xff] %vm1581, %v3016
    %3199 = vst.msk [vmem:[#allocation2 + $0x210] sm:$0xff] %vm1581, %v3018
    %3200 = vst.msk [vmem:[#allocation2 + $0x218] sm:$0xff] %vm1581, %v3020
    %3201 = vst.msk [vmem:[#allocation2 + $0x220] sm:$0xff] %vm1581, %v3022
    %3202 = vst.msk [vmem:[#allocation2 + $0x228] sm:$0xff] %vm1581, %v3024
    %3203 = vst.msk [vmem:[#allocation2 + $0x230] sm:$0xff] %vm1581, %v3026
    %3204 = vst.msk [vmem:[#allocation2 + $0x238] sm:$0xff] %vm1581, %v3028
    %3205 = vst.msk [vmem:[#allocation2 + $0x240] sm:$0xff] %vm1581, %v3030
    %3206 = vst.msk [vmem:[#allocation2 + $0x248] sm:$0xff] %vm1581, %v3032
    %3207 = vst.msk [vmem:[#allocation2 + $0x250] sm:$0xff] %vm1581, %v3034
    %3208 = vst.msk [vmem:[#allocation2 + $0x258] sm:$0xff] %vm1581, %v3036
    %3209 = vst.msk [vmem:[#allocation2 + $0x260] sm:$0xff] %vm1581, %v3038
    %3210 = vst.msk [vmem:[#allocation2 + $0x268] sm:$0xff] %vm1581, %v3040
    %3211 = vst.msk [vmem:[#allocation2 + $0x270] sm:$0xff] %vm1581, %v3042
    %3212 = vst.msk [vmem:[#allocation2 + $0x278] sm:$0xff] %vm1581, %v3044
    %3213 = vst.msk [vmem:[#allocation2 + $0x280] sm:$0xff] %vm1581, %v3046
    %3214 = vst.msk [vmem:[#allocation2 + $0x288] sm:$0xff] %vm1581, %v3048
    %3215 = vst.msk [vmem:[#allocation2 + $0x290] sm:$0xff] %vm1581, %v3050
    %3216 = vst.msk [vmem:[#allocation2 + $0x298] sm:$0xff] %vm1581, %v3052
    %3217 = vst.msk [vmem:[#allocation2 + $0x2a0] sm:$0xff] %vm1581, %v3054
    %3218 = vst.msk [vmem:[#allocation2 + $0x2a8] sm:$0xff] %vm1581, %v3056
    %3219 = vst.msk [vmem:[#allocation2 + $0x2b0] sm:$0xff] %vm1581, %v3058
    %3220 = vst.msk [vmem:[#allocation2 + $0x2b8] sm:$0xff] %vm1581, %v3060
    %3221 = vst.msk [vmem:[#allocation2 + $0x2c0] sm:$0xff] %vm1581, %v3062
    %3222 = vst.msk [vmem:[#allocation2 + $0x2c8] sm:$0xff] %vm1581, %v3064
    %3223 = vst.msk [vmem:[#allocation2 + $0x2d0] sm:$0xff] %vm1581, %v3066
    %3224 = vst.msk [vmem:[#allocation2 + $0x2d8] sm:$0xff] %vm1581, %v3068
    %3225 = vst.msk [vmem:[#allocation2 + $0x2e0] sm:$0xff] %vm1581, %v3070
    %3226 = vst.msk [vmem:[#allocation2 + $0x2e8] sm:$0xff] %vm1581, %v3072
    %3227 = vst.msk [vmem:[#allocation2 + $0x2f0] sm:$0xff] %vm1581, %v3074
    %3228 = vst.msk [vmem:[#allocation2 + $0x2f8] sm:$0xff] %vm1581, %v3076
    %3229 = vst.msk [vmem:[#allocation2 + $0x300] sm:$0xff] %vm1581, %v3078
    %3230 = vst.msk [vmem:[#allocation2 + $0x308] sm:$0xff] %vm1581, %v3080
    %3231 = vst.msk [vmem:[#allocation2 + $0x310] sm:$0xff] %vm1581, %v3082
    %3232 = vst.msk [vmem:[#allocation2 + $0x318] sm:$0xff] %vm1581, %v3084
    %3233 = vst.msk [vmem:[#allocation2 + $0x320] sm:$0xff] %vm1581, %v3086
    %3234 = vst.msk [vmem:[#allocation2 + $0x328] sm:$0xff] %vm1581, %v3088
    %3235 = vst.msk [vmem:[#allocation2 + $0x330] sm:$0xff] %vm1581, %v3090
    %3236 = vst.msk [vmem:[#allocation2 + $0x338] sm:$0xff] %vm1581, %v3092
    %3237 = vst.msk [vmem:[#allocation2 + $0x340] sm:$0xff] %vm1581, %v3094
    %3238 = vst.msk [vmem:[#allocation2 + $0x348] sm:$0xff] %vm1581, %v3096
    %3239 = vst.msk [vmem:[#allocation2 + $0x350] sm:$0xff] %vm1581, %v3098
    %3240 = vst.msk [vmem:[#allocation2 + $0x358] sm:$0xff] %vm1581, %v3100
    %3241 = vst.msk [vmem:[#allocation2 + $0x360] sm:$0xff] %vm1581, %v3102
    %3242 = vst.msk [vmem:[#allocation2 + $0x368] sm:$0xff] %vm1581, %v3104
    %3243 = vst.msk [vmem:[#allocation2 + $0x370] sm:$0xff] %vm1581, %v3106
    %3244 = vst.msk [vmem:[#allocation2 + $0x378] sm:$0xff] %vm1581, %v3108
    %3245 = vst.msk [vmem:[#allocation2 + $0x380] sm:$0xff] %vm1581, %v3110
    %3246 = vst.msk [vmem:[#allocation2 + $0x388] sm:$0xff] %vm1581, %v3112
    %3247 = vst.msk [vmem:[#allocation2 + $0x390] sm:$0xff] %vm1581, %v3114
    %3248 = vst.msk [vmem:[#allocation2 + $0x398] sm:$0xff] %vm1581, %v3116
    %3249 = vst.msk [vmem:[#allocation2 + $0x3a0] sm:$0xff] %vm1581, %v3118
    %3250 = vst.msk [vmem:[#allocation2 + $0x3a8] sm:$0xff] %vm1581, %v3120
    %3251 = vst.msk [vmem:[#allocation2 + $0x3b0] sm:$0xff] %vm1581, %v3122
    %3252 = vst.msk [vmem:[#allocation2 + $0x3b8] sm:$0xff] %vm1581, %v3124
    %3253 = vst.msk [vmem:[#allocation2 + $0x3c0] sm:$0xff] %vm1581, %v3126
    %3254 = vst.msk [vmem:[#allocation2 + $0x3c8] sm:$0xff] %vm1581, %v3128
    %3255 = vst.msk [vmem:[#allocation2 + $0x3d0] sm:$0xff] %vm1581, %v3130
    %3256 = vst.msk [vmem:[#allocation2 + $0x3d8] sm:$0xff] %vm1581, %v3132
    %v3257 = vld [vmem:[#allocation2] sm:$0xff]
    %v3258 = vld [vmem:[#allocation2 + $0x8] sm:$0xff]
    %v3259 = vld [vmem:[#allocation2 + $0x10] sm:$0xff]
    %v3260 = vld [vmem:[#allocation2 + $0x18] sm:$0xff]
    %v3261 = vld [vmem:[#allocation2 + $0x20] sm:$0xff]
    %v3262 = vld [vmem:[#allocation2 + $0x28] sm:$0xff]
    %v3263 = vld [vmem:[#allocation2 + $0x30] sm:$0xff]
    %v3264 = vld [vmem:[#allocation2 + $0x38] sm:$0xff]
    %v3265 = vld [vmem:[#allocation2 + $0x40] sm:$0xff]
    %v3266 = vld [vmem:[#allocation2 + $0x48] sm:$0xff]
    %v3267 = vld [vmem:[#allocation2 + $0x50] sm:$0xff]
    %v3268 = vld [vmem:[#allocation2 + $0x58] sm:$0xff]
    %v3269 = vld [vmem:[#allocation2 + $0x60] sm:$0xff]
    %v3270 = vld [vmem:[#allocation2 + $0x68] sm:$0xff]
    %v3271 = vld [vmem:[#allocation2 + $0x70] sm:$0xff]
    %v3272 = vld [vmem:[#allocation2 + $0x78] sm:$0xff]
    %v3273 = vld [vmem:[#allocation2 + $0x80] sm:$0xff]
    %v3274 = vld [vmem:[#allocation2 + $0x88] sm:$0xff]
    %v3275 = vld [vmem:[#allocation2 + $0x90] sm:$0xff]
    %v3276 = vld [vmem:[#allocation2 + $0x98] sm:$0xff]
    %v3277 = vld [vmem:[#allocation2 + $0xa0] sm:$0xff]
    %v3278 = vld [vmem:[#allocation2 + $0xa8] sm:$0xff]
    %v3279 = vld [vmem:[#allocation2 + $0xb0] sm:$0xff]
    %v3280 = vld [vmem:[#allocation2 + $0xb8] sm:$0xff]
    %v3281 = vld [vmem:[#allocation2 + $0xc0] sm:$0xff]
    %v3282 = vld [vmem:[#allocation2 + $0xc8] sm:$0xff]
    %v3283 = vld [vmem:[#allocation2 + $0xd0] sm:$0xff]
    %v3284 = vld [vmem:[#allocation2 + $0xd8] sm:$0xff]
    %v3285 = vld [vmem:[#allocation2 + $0xe0] sm:$0xff]
    %v3286 = vld [vmem:[#allocation2 + $0xe8] sm:$0xff]
    %v3287 = vld [vmem:[#allocation2 + $0xf0] sm:$0xff]
    %v3288 = vld [vmem:[#allocation2 + $0xf8] sm:$0xff]
    %v3289 = vld [vmem:[#allocation2 + $0x100] sm:$0xff]
    %v3290 = vld [vmem:[#allocation2 + $0x108] sm:$0xff]
    %v3291 = vld [vmem:[#allocation2 + $0x110] sm:$0xff]
    %v3292 = vld [vmem:[#allocation2 + $0x118] sm:$0xff]
    %v3293 = vld [vmem:[#allocation2 + $0x120] sm:$0xff]
    %v3294 = vld [vmem:[#allocation2 + $0x128] sm:$0xff]
    %v3295 = vld [vmem:[#allocation2 + $0x130] sm:$0xff]
    %v3296 = vld [vmem:[#allocation2 + $0x138] sm:$0xff]
    %v3297 = vld [vmem:[#allocation2 + $0x140] sm:$0xff]
    %v3298 = vld [vmem:[#allocation2 + $0x148] sm:$0xff]
    %v3299 = vld [vmem:[#allocation2 + $0x150] sm:$0xff]
    %v3300 = vld [vmem:[#allocation2 + $0x158] sm:$0xff]
    %v3301 = vld [vmem:[#allocation2 + $0x160] sm:$0xff]
    %v3302 = vld [vmem:[#allocation2 + $0x168] sm:$0xff]
    %v3303 = vld [vmem:[#allocation2 + $0x170] sm:$0xff]
    %v3304 = vld [vmem:[#allocation2 + $0x178] sm:$0xff]
    %v3305 = vld [vmem:[#allocation2 + $0x180] sm:$0xff]
    %v3306 = vld [vmem:[#allocation2 + $0x188] sm:$0xff]
    %v3307 = vld [vmem:[#allocation2 + $0x190] sm:$0xff]
    %v3308 = vld [vmem:[#allocation2 + $0x198] sm:$0xff]
    %v3309 = vld [vmem:[#allocation2 + $0x1a0] sm:$0xff]
    %v3310 = vld [vmem:[#allocation2 + $0x1a8] sm:$0xff]
    %v3311 = vld [vmem:[#allocation2 + $0x1b0] sm:$0xff]
    %v3312 = vld [vmem:[#allocation2 + $0x1b8] sm:$0xff]
    %v3313 = vld [vmem:[#allocation2 + $0x1c0] sm:$0xff]
    %v3314 = vld [vmem:[#allocation2 + $0x1c8] sm:$0xff]
    %v3315 = vld [vmem:[#allocation2 + $0x1d0] sm:$0xff]
    %v3316 = vld [vmem:[#allocation2 + $0x1d8] sm:$0xff]
    %v3317 = vld [vmem:[#allocation2 + $0x1e0] sm:$0xff]
    %v3318 = vld [vmem:[#allocation2 + $0x1e8] sm:$0xff]
    %v3319 = vld [vmem:[#allocation2 + $0x1f0] sm:$0xff]
    %v3320 = vld [vmem:[#allocation2 + $0x1f8] sm:$0xff]
    %v3321 = vld [vmem:[#allocation2 + $0x200] sm:$0xff]
    %v3322 = vld [vmem:[#allocation2 + $0x208] sm:$0xff]
    %v3323 = vld [vmem:[#allocation2 + $0x210] sm:$0xff]
    %v3324 = vld [vmem:[#allocation2 + $0x218] sm:$0xff]
    %v3325 = vld [vmem:[#allocation2 + $0x220] sm:$0xff]
    %v3326 = vld [vmem:[#allocation2 + $0x228] sm:$0xff]
    %v3327 = vld [vmem:[#allocation2 + $0x230] sm:$0xff]
    %v3328 = vld [vmem:[#allocation2 + $0x238] sm:$0xff]
    %v3329 = vld [vmem:[#allocation2 + $0x240] sm:$0xff]
    %v3330 = vld [vmem:[#allocation2 + $0x248] sm:$0xff]
    %v3331 = vld [vmem:[#allocation2 + $0x250] sm:$0xff]
    %v3332 = vld [vmem:[#allocation2 + $0x258] sm:$0xff]
    %v3333 = vld [vmem:[#allocation2 + $0x260] sm:$0xff]
    %v3334 = vld [vmem:[#allocation2 + $0x268] sm:$0xff]
    %v3335 = vld [vmem:[#allocation2 + $0x270] sm:$0xff]
    %v3336 = vld [vmem:[#allocation2 + $0x278] sm:$0xff]
    %v3337 = vld [vmem:[#allocation2 + $0x280] sm:$0xff]
    %v3338 = vld [vmem:[#allocation2 + $0x288] sm:$0xff]
    %v3339 = vld [vmem:[#allocation2 + $0x290] sm:$0xff]
    %v3340 = vld [vmem:[#allocation2 + $0x298] sm:$0xff]
    %v3341 = vld [vmem:[#allocation2 + $0x2a0] sm:$0xff]
    %v3342 = vld [vmem:[#allocation2 + $0x2a8] sm:$0xff]
    %v3343 = vld [vmem:[#allocation2 + $0x2b0] sm:$0xff]
    %v3344 = vld [vmem:[#allocation2 + $0x2b8] sm:$0xff]
    %v3345 = vld [vmem:[#allocation2 + $0x2c0] sm:$0xff]
    %v3346 = vld [vmem:[#allocation2 + $0x2c8] sm:$0xff]
    %v3347 = vld [vmem:[#allocation2 + $0x2d0] sm:$0xff]
    %v3348 = vld [vmem:[#allocation2 + $0x2d8] sm:$0xff]
    %v3349 = vld [vmem:[#allocation2 + $0x2e0] sm:$0xff]
    %v3350 = vld [vmem:[#allocation2 + $0x2e8] sm:$0xff]
    %v3351 = vld [vmem:[#allocation2 + $0x2f0] sm:$0xff]
    %v3352 = vld [vmem:[#allocation2 + $0x2f8] sm:$0xff]
    %v3353 = vld [vmem:[#allocation2 + $0x300] sm:$0xff]
    %v3354 = vld [vmem:[#allocation2 + $0x308] sm:$0xff]
    %v3355 = vld [vmem:[#allocation2 + $0x310] sm:$0xff]
    %v3356 = vld [vmem:[#allocation2 + $0x318] sm:$0xff]
    %v3357 = vld [vmem:[#allocation2 + $0x320] sm:$0xff]
    %v3358 = vld [vmem:[#allocation2 + $0x328] sm:$0xff]
    %v3359 = vld [vmem:[#allocation2 + $0x330] sm:$0xff]
    %v3360 = vld [vmem:[#allocation2 + $0x338] sm:$0xff]
    %v3361 = vld [vmem:[#allocation2 + $0x340] sm:$0xff]
    %v3362 = vld [vmem:[#allocation2 + $0x348] sm:$0xff]
    %v3363 = vld [vmem:[#allocation2 + $0x350] sm:$0xff]
    %v3364 = vld [vmem:[#allocation2 + $0x358] sm:$0xff]
    %v3365 = vld [vmem:[#allocation2 + $0x360] sm:$0xff]
    %v3366 = vld [vmem:[#allocation2 + $0x368] sm:$0xff]
    %v3367 = vld [vmem:[#allocation2 + $0x370] sm:$0xff]
    %v3368 = vld [vmem:[#allocation2 + $0x378] sm:$0xff]
    %v3369 = vld [vmem:[#allocation2 + $0x380] sm:$0xff]
    %v3370 = vld [vmem:[#allocation2 + $0x388] sm:$0xff]
    %v3371 = vld [vmem:[#allocation2 + $0x390] sm:$0xff]
    %v3372 = vld [vmem:[#allocation2 + $0x398] sm:$0xff]
    %v3373 = vld [vmem:[#allocation2 + $0x3a0] sm:$0xff]
    %v3374 = vld [vmem:[#allocation2 + $0x3a8] sm:$0xff]
    %v3375 = vld [vmem:[#allocation2 + $0x3b0] sm:$0xff]
    %v3376 = vld [vmem:[#allocation2 + $0x3b8] sm:$0xff]
    %v3377 = vld [vmem:[#allocation2 + $0x3c0] sm:$0xff]
    %v3378 = vld [vmem:[#allocation2 + $0x3c8] sm:$0xff]
    %v3379 = vld [vmem:[#allocation2 + $0x3d0] sm:$0xff]
    %v3380 = vld [vmem:[#allocation2 + $0x3d8] sm:$0xff]
    %v3381 = vld [vmem:[%s1] sm:$0xff]
    %v3382 = vld [vmem:[%s1 + $0x8] sm:$0xff]
    %v3383 = vld [vmem:[%s1 + $0x10] sm:$0xff]
    %v3384 = vld [vmem:[%s1 + $0x18] sm:$0xff]
    %v3385 = vld [vmem:[%s1 + $0x20] sm:$0xff]
    %v3386 = vld [vmem:[%s1 + $0x28] sm:$0xff]
    %v3387 = vld [vmem:[%s1 + $0x30] sm:$0xff]
    %v3388 = vld [vmem:[%s1 + $0x38] sm:$0xff]
    %v3389 = vld [vmem:[%s1 + $0x40] sm:$0xff]
    %v3390 = vld [vmem:[%s1 + $0x48] sm:$0xff]
    %v3391 = vld [vmem:[%s6] sm:$0x1]
    %v3392 = vperm.slane %v3391, 0
    %vm3393 = vcmask 654336
    %v3395 = vsel %vm3393, %v3257, 0
    %v3398 = vsel %vm3393, %v3258, 0
    %v3401 = vsel %vm3393, %v3259, 0
    %v3404 = vsel %vm3393, %v3260, 0
    %v3407 = vsel %vm3393, %v3261, 0
    %v3410 = vsel %vm3393, %v3262, 0
    %v3413 = vsel %vm3393, %v3263, 0
    %v3416 = vsel %vm3393, %v3264, 0
    %v3419 = vsel %vm3393, %v3265, 0
    %v3422 = vsel %vm3393, %v3266, 0
    %v3425 = vsel %vm3393, %v3267, 0
    %v3428 = vsel %vm3393, %v3268, 0
    %v3431 = vsel %vm3393, %v3269, 0
    %v3434 = vsel %vm3393, %v3270, 0
    %v3437 = vsel %vm3393, %v3271, 0
    %v3440 = vsel %vm3393, %v3272, 0
    %v3443 = vsel %vm3393, %v3273, 0
    %v3446 = vsel %vm3393, %v3274, 0
    %v3449 = vsel %vm3393, %v3275, 0
    %v3452 = vsel %vm3393, %v3276, 0
    %v3455 = vsel %vm3393, %v3277, 0
    %v3458 = vsel %vm3393, %v3278, 0
    %v3461 = vsel %vm3393, %v3279, 0
    %v3464 = vsel %vm3393, %v3280, 0
    %v3467 = vsel %vm3393, %v3281, 0
    %v3470 = vsel %vm3393, %v3282, 0
    %v3473 = vsel %vm3393, %v3283, 0
    %v3476 = vsel %vm3393, %v3284, 0
    %v3479 = vsel %vm3393, %v3285, 0
    %v3482 = vsel %vm3393, %v3286, 0
    %v3485 = vsel %vm3393, %v3287, 0
    %v3488 = vsel %vm3393, %v3288, 0
    %v3491 = vsel %vm3393, %v3289, 0
    %v3494 = vsel %vm3393, %v3290, 0
    %v3497 = vsel %vm3393, %v3291, 0
    %v3500 = vsel %vm3393, %v3292, 0
    %v3503 = vsel %vm3393, %v3293, 0
    %v3506 = vsel %vm3393, %v3294, 0
    %v3509 = vsel %vm3393, %v3295, 0
    %v3512 = vsel %vm3393, %v3296, 0
    %v3515 = vsel %vm3393, %v3297, 0
    %v3518 = vsel %vm3393, %v3298, 0
    %v3521 = vsel %vm3393, %v3299, 0
    %v3524 = vsel %vm3393, %v3300, 0
    %v3527 = vsel %vm3393, %v3301, 0
    %v3530 = vsel %vm3393, %v3302, 0
    %v3533 = vsel %vm3393, %v3303, 0
    %v3536 = vsel %vm3393, %v3304, 0
    %v3539 = vsel %vm3393, %v3305, 0
    %v3542 = vsel %vm3393, %v3306, 0
    %v3545 = vsel %vm3393, %v3307, 0
    %v3548 = vsel %vm3393, %v3308, 0
    %v3551 = vsel %vm3393, %v3309, 0
    %v3554 = vsel %vm3393, %v3310, 0
    %v3557 = vsel %vm3393, %v3311, 0
    %v3560 = vsel %vm3393, %v3312, 0
    %v3563 = vsel %vm3393, %v3313, 0
    %v3566 = vsel %vm3393, %v3314, 0
    %v3569 = vsel %vm3393, %v3315, 0
    %v3572 = vsel %vm3393, %v3316, 0
    %v3575 = vsel %vm3393, %v3317, 0
    %v3578 = vsel %vm3393, %v3318, 0
    %v3581 = vsel %vm3393, %v3319, 0
    %v3584 = vsel %vm3393, %v3320, 0
    %v3587 = vsel %vm3393, %v3321, 0
    %v3590 = vsel %vm3393, %v3322, 0
    %v3593 = vsel %vm3393, %v3323, 0
    %v3596 = vsel %vm3393, %v3324, 0
    %v3599 = vsel %vm3393, %v3325, 0
    %v3602 = vsel %vm3393, %v3326, 0
    %v3605 = vsel %vm3393, %v3327, 0
    %v3608 = vsel %vm3393, %v3328, 0
    %v3611 = vsel %vm3393, %v3329, 0
    %v3614 = vsel %vm3393, %v3330, 0
    %v3617 = vsel %vm3393, %v3331, 0
    %v3620 = vsel %vm3393, %v3332, 0
    %v3623 = vsel %vm3393, %v3333, 0
    %v3626 = vsel %vm3393, %v3334, 0
    %v3629 = vsel %vm3393, %v3335, 0
    %v3632 = vsel %vm3393, %v3336, 0
    %v3635 = vsel %vm3393, %v3337, 0
    %v3638 = vsel %vm3393, %v3338, 0
    %v3641 = vsel %vm3393, %v3339, 0
    %v3644 = vsel %vm3393, %v3340, 0
    %v3647 = vsel %vm3393, %v3341, 0
    %v3650 = vsel %vm3393, %v3342, 0
    %v3653 = vsel %vm3393, %v3343, 0
    %v3656 = vsel %vm3393, %v3344, 0
    %v3659 = vsel %vm3393, %v3345, 0
    %v3662 = vsel %vm3393, %v3346, 0
    %v3665 = vsel %vm3393, %v3347, 0
    %v3668 = vsel %vm3393, %v3348, 0
    %v3671 = vsel %vm3393, %v3349, 0
    %v3674 = vsel %vm3393, %v3350, 0
    %v3677 = vsel %vm3393, %v3351, 0
    %v3680 = vsel %vm3393, %v3352, 0
    %v3683 = vsel %vm3393, %v3353, 0
    %v3686 = vsel %vm3393, %v3354, 0
    %v3689 = vsel %vm3393, %v3355, 0
    %v3692 = vsel %vm3393, %v3356, 0
    %v3695 = vsel %vm3393, %v3357, 0
    %v3698 = vsel %vm3393, %v3358, 0
    %v3701 = vsel %vm3393, %v3359, 0
    %v3704 = vsel %vm3393, %v3360, 0
    %v3707 = vsel %vm3393, %v3361, 0
    %v3710 = vsel %vm3393, %v3362, 0
    %v3713 = vsel %vm3393, %v3363, 0
    %v3716 = vsel %vm3393, %v3364, 0
    %v3719 = vsel %vm3393, %v3365, 0
    %v3722 = vsel %vm3393, %v3366, 0
    %v3725 = vsel %vm3393, %v3367, 0
    %v3728 = vsel %vm3393, %v3368, 0
    %v3731 = vsel %vm3393, %v3369, 0
    %v3734 = vsel %vm3393, %v3370, 0
    %v3737 = vsel %vm3393, %v3371, 0
    %v3740 = vsel %vm3393, %v3372, 0
    %v3743 = vsel %vm3393, %v3373, 0
    %v3746 = vsel %vm3393, %v3374, 0
    %v3749 = vsel %vm3393, %v3375, 0
    %v3752 = vsel %vm3393, %v3376, 0
    %v3755 = vsel %vm3393, %v3377, 0
    %v3758 = vsel %vm3393, %v3378, 0
    %v3761 = vsel %vm3393, %v3379, 0
    %v3764 = vsel %vm3393, %v3380, 0
    %3766 = vmatpush.msra.mxu0 0.0
    %3767 = vmatpush.msra.mxu0 0.0
    %3768 = vmatpush.msra.mxu0 0.0
    %3769 = vmatpush.msra.mxu0 0.0
    %3770 = vmatpush.msra.mxu0 0.0
    %3771 = vmatpush.msra.mxu0 0.0
    %3772 = vmatpush.msra.mxu0 %v3390
    %3773 = vmatpush.msra.mxu0 %v3389
    %3774 = vmatpush.msra.mxu0 %v3388
    %3775 = vmatpush.msra.mxu0 %v3387
    %3776 = vmatpush.msra.mxu0 %v3386
    %3777 = vmatpush.msra.mxu0 %v3385
    %3778 = vmatpush.msra.mxu0 %v3384
    %3779 = vmatpush.msra.mxu0 %v3383
    %3780 = vmatpush.msra.mxu0 %v3382
    %3781 = vmatpush.msra.mxu0 %v3381
    %3782 = vmatmul.f32.gmra.mxu0 %v3395
    %v3783 = vpop.f32.mrf.mxu0
    %v3784 = vadd.f32 %v3392, %v3783
    %3785 = vmatmul.f32.gmra.mxu0 %v3398
    %v3786 = vpop.f32.mrf.mxu0
    %v3787 = vadd.f32 %v3392, %v3786
    %3788 = vmatmul.f32.gmra.mxu0 %v3401
    %v3789 = vpop.f32.mrf.mxu0
    %v3790 = vadd.f32 %v3392, %v3789
    %3791 = vmatmul.f32.gmra.mxu0 %v3404
    %v3792 = vpop.f32.mrf.mxu0
    %v3793 = vadd.f32 %v3392, %v3792
    %3794 = vmatmul.f32.gmra.mxu0 %v3407
    %v3795 = vpop.f32.mrf.mxu0
    %v3796 = vadd.f32 %v3392, %v3795
    %3797 = vmatmul.f32.gmra.mxu0 %v3410
    %v3798 = vpop.f32.mrf.mxu0
    %v3799 = vadd.f32 %v3392, %v3798
    %3800 = vmatmul.f32.gmra.mxu0 %v3413
    %v3801 = vpop.f32.mrf.mxu0
    %v3802 = vadd.f32 %v3392, %v3801
    %3803 = vmatmul.f32.gmra.mxu0 %v3416
    %v3804 = vpop.f32.mrf.mxu0
    %v3805 = vadd.f32 %v3392, %v3804
    %3806 = vmatmul.f32.gmra.mxu0 %v3419
    %v3807 = vpop.f32.mrf.mxu0
    %v3808 = vadd.f32 %v3392, %v3807
    %3809 = vmatmul.f32.gmra.mxu0 %v3422
    %v3810 = vpop.f32.mrf.mxu0
    %v3811 = vadd.f32 %v3392, %v3810
    %3812 = vmatmul.f32.gmra.mxu0 %v3425
    %v3813 = vpop.f32.mrf.mxu0
    %v3814 = vadd.f32 %v3392, %v3813
    %3815 = vmatmul.f32.gmra.mxu0 %v3428
    %v3816 = vpop.f32.mrf.mxu0
    %v3817 = vadd.f32 %v3392, %v3816
    %3818 = vmatmul.f32.gmra.mxu0 %v3431
    %v3819 = vpop.f32.mrf.mxu0
    %v3820 = vadd.f32 %v3392, %v3819
    %3821 = vmatmul.f32.gmra.mxu0 %v3434
    %v3822 = vpop.f32.mrf.mxu0
    %v3823 = vadd.f32 %v3392, %v3822
    %3824 = vmatmul.f32.gmra.mxu0 %v3437
    %v3825 = vpop.f32.mrf.mxu0
    %v3826 = vadd.f32 %v3392, %v3825
    %3827 = vmatmul.f32.gmra.mxu0 %v3440
    %v3828 = vpop.f32.mrf.mxu0
    %v3829 = vadd.f32 %v3392, %v3828
    %3830 = vmatmul.f32.gmra.mxu0 %v3443
    %v3831 = vpop.f32.mrf.mxu0
    %v3832 = vadd.f32 %v3392, %v3831
    %3833 = vmatmul.f32.gmra.mxu0 %v3446
    %v3834 = vpop.f32.mrf.mxu0
    %v3835 = vadd.f32 %v3392, %v3834
    %3836 = vmatmul.f32.gmra.mxu0 %v3449
    %v3837 = vpop.f32.mrf.mxu0
    %v3838 = vadd.f32 %v3392, %v3837
    %3839 = vmatmul.f32.gmra.mxu0 %v3452
    %v3840 = vpop.f32.mrf.mxu0
    %v3841 = vadd.f32 %v3392, %v3840
    %3842 = vmatmul.f32.gmra.mxu0 %v3455
    %v3843 = vpop.f32.mrf.mxu0
    %v3844 = vadd.f32 %v3392, %v3843
    %3845 = vmatmul.f32.gmra.mxu0 %v3458
    %v3846 = vpop.f32.mrf.mxu0
    %v3847 = vadd.f32 %v3392, %v3846
    %3848 = vmatmul.f32.gmra.mxu0 %v3461
    %v3849 = vpop.f32.mrf.mxu0
    %v3850 = vadd.f32 %v3392, %v3849
    %3851 = vmatmul.f32.gmra.mxu0 %v3464
    %v3852 = vpop.f32.mrf.mxu0
    %v3853 = vadd.f32 %v3392, %v3852
    %3854 = vmatmul.f32.gmra.mxu0 %v3467
    %v3855 = vpop.f32.mrf.mxu0
    %v3856 = vadd.f32 %v3392, %v3855
    %3857 = vmatmul.f32.gmra.mxu0 %v3470
    %v3858 = vpop.f32.mrf.mxu0
    %v3859 = vadd.f32 %v3392, %v3858
    %3860 = vmatmul.f32.gmra.mxu0 %v3473
    %v3861 = vpop.f32.mrf.mxu0
    %v3862 = vadd.f32 %v3392, %v3861
    %3863 = vmatmul.f32.gmra.mxu0 %v3476
    %v3864 = vpop.f32.mrf.mxu0
    %v3865 = vadd.f32 %v3392, %v3864
    %3866 = vmatmul.f32.gmra.mxu0 %v3479
    %v3867 = vpop.f32.mrf.mxu0
    %v3868 = vadd.f32 %v3392, %v3867
    %3869 = vmatmul.f32.gmra.mxu0 %v3482
    %v3870 = vpop.f32.mrf.mxu0
    %v3871 = vadd.f32 %v3392, %v3870
    %3872 = vmatmul.f32.gmra.mxu0 %v3485
    %v3873 = vpop.f32.mrf.mxu0
    %v3874 = vadd.f32 %v3392, %v3873
    %3875 = vmatmul.f32.gmra.mxu0 %v3488
    %v3876 = vpop.f32.mrf.mxu0
    %v3877 = vadd.f32 %v3392, %v3876
    %3878 = vmatmul.f32.gmra.mxu0 %v3491
    %v3879 = vpop.f32.mrf.mxu0
    %v3880 = vadd.f32 %v3392, %v3879
    %3881 = vmatmul.f32.gmra.mxu0 %v3494
    %v3882 = vpop.f32.mrf.mxu0
    %v3883 = vadd.f32 %v3392, %v3882
    %3884 = vmatmul.f32.gmra.mxu0 %v3497
    %v3885 = vpop.f32.mrf.mxu0
    %v3886 = vadd.f32 %v3392, %v3885
    %3887 = vmatmul.f32.gmra.mxu0 %v3500
    %v3888 = vpop.f32.mrf.mxu0
    %v3889 = vadd.f32 %v3392, %v3888
    %3890 = vmatmul.f32.gmra.mxu0 %v3503
    %v3891 = vpop.f32.mrf.mxu0
    %v3892 = vadd.f32 %v3392, %v3891
    %3893 = vmatmul.f32.gmra.mxu0 %v3506
    %v3894 = vpop.f32.mrf.mxu0
    %v3895 = vadd.f32 %v3392, %v3894
    %3896 = vmatmul.f32.gmra.mxu0 %v3509
    %v3897 = vpop.f32.mrf.mxu0
    %v3898 = vadd.f32 %v3392, %v3897
    %3899 = vmatmul.f32.gmra.mxu0 %v3512
    %v3900 = vpop.f32.mrf.mxu0
    %v3901 = vadd.f32 %v3392, %v3900
    %3902 = vmatmul.f32.gmra.mxu0 %v3515
    %v3903 = vpop.f32.mrf.mxu0
    %v3904 = vadd.f32 %v3392, %v3903
    %3905 = vmatmul.f32.gmra.mxu0 %v3518
    %v3906 = vpop.f32.mrf.mxu0
    %v3907 = vadd.f32 %v3392, %v3906
    %3908 = vmatmul.f32.gmra.mxu0 %v3521
    %v3909 = vpop.f32.mrf.mxu0
    %v3910 = vadd.f32 %v3392, %v3909
    %3911 = vmatmul.f32.gmra.mxu0 %v3524
    %v3912 = vpop.f32.mrf.mxu0
    %v3913 = vadd.f32 %v3392, %v3912
    %3914 = vmatmul.f32.gmra.mxu0 %v3527
    %v3915 = vpop.f32.mrf.mxu0
    %v3916 = vadd.f32 %v3392, %v3915
    %3917 = vmatmul.f32.gmra.mxu0 %v3530
    %v3918 = vpop.f32.mrf.mxu0
    %v3919 = vadd.f32 %v3392, %v3918
    %3920 = vmatmul.f32.gmra.mxu0 %v3533
    %v3921 = vpop.f32.mrf.mxu0
    %v3922 = vadd.f32 %v3392, %v3921
    %3923 = vmatmul.f32.gmra.mxu0 %v3536
    %v3924 = vpop.f32.mrf.mxu0
    %v3925 = vadd.f32 %v3392, %v3924
    %3926 = vmatmul.f32.gmra.mxu0 %v3539
    %v3927 = vpop.f32.mrf.mxu0
    %v3928 = vadd.f32 %v3392, %v3927
    %3929 = vmatmul.f32.gmra.mxu0 %v3542
    %v3930 = vpop.f32.mrf.mxu0
    %v3931 = vadd.f32 %v3392, %v3930
    %3932 = vmatmul.f32.gmra.mxu0 %v3545
    %v3933 = vpop.f32.mrf.mxu0
    %v3934 = vadd.f32 %v3392, %v3933
    %3935 = vmatmul.f32.gmra.mxu0 %v3548
    %v3936 = vpop.f32.mrf.mxu0
    %v3937 = vadd.f32 %v3392, %v3936
    %3938 = vmatmul.f32.gmra.mxu0 %v3551
    %v3939 = vpop.f32.mrf.mxu0
    %v3940 = vadd.f32 %v3392, %v3939
    %3941 = vmatmul.f32.gmra.mxu0 %v3554
    %v3942 = vpop.f32.mrf.mxu0
    %v3943 = vadd.f32 %v3392, %v3942
    %3944 = vmatmul.f32.gmra.mxu0 %v3557
    %v3945 = vpop.f32.mrf.mxu0
    %v3946 = vadd.f32 %v3392, %v3945
    %3947 = vmatmul.f32.gmra.mxu0 %v3560
    %v3948 = vpop.f32.mrf.mxu0
    %v3949 = vadd.f32 %v3392, %v3948
    %3950 = vmatmul.f32.gmra.mxu0 %v3563
    %v3951 = vpop.f32.mrf.mxu0
    %v3952 = vadd.f32 %v3392, %v3951
    %3953 = vmatmul.f32.gmra.mxu0 %v3566
    %v3954 = vpop.f32.mrf.mxu0
    %v3955 = vadd.f32 %v3392, %v3954
    %3956 = vmatmul.f32.gmra.mxu0 %v3569
    %v3957 = vpop.f32.mrf.mxu0
    %v3958 = vadd.f32 %v3392, %v3957
    %3959 = vmatmul.f32.gmra.mxu0 %v3572
    %v3960 = vpop.f32.mrf.mxu0
    %v3961 = vadd.f32 %v3392, %v3960
    %3962 = vmatmul.f32.gmra.mxu0 %v3575
    %v3963 = vpop.f32.mrf.mxu0
    %v3964 = vadd.f32 %v3392, %v3963
    %3965 = vmatmul.f32.gmra.mxu0 %v3578
    %v3966 = vpop.f32.mrf.mxu0
    %v3967 = vadd.f32 %v3392, %v3966
    %3968 = vmatmul.f32.gmra.mxu0 %v3581
    %v3969 = vpop.f32.mrf.mxu0
    %v3970 = vadd.f32 %v3392, %v3969
    %3971 = vmatmul.f32.gmra.mxu0 %v3584
    %v3972 = vpop.f32.mrf.mxu0
    %v3973 = vadd.f32 %v3392, %v3972
    %3974 = vmatmul.f32.gmra.mxu0 %v3587
    %v3975 = vpop.f32.mrf.mxu0
    %v3976 = vadd.f32 %v3392, %v3975
    %3977 = vmatmul.f32.gmra.mxu0 %v3590
    %v3978 = vpop.f32.mrf.mxu0
    %v3979 = vadd.f32 %v3392, %v3978
    %3980 = vmatmul.f32.gmra.mxu0 %v3593
    %v3981 = vpop.f32.mrf.mxu0
    %v3982 = vadd.f32 %v3392, %v3981
    %3983 = vmatmul.f32.gmra.mxu0 %v3596
    %v3984 = vpop.f32.mrf.mxu0
    %v3985 = vadd.f32 %v3392, %v3984
    %3986 = vmatmul.f32.gmra.mxu0 %v3599
    %v3987 = vpop.f32.mrf.mxu0
    %v3988 = vadd.f32 %v3392, %v3987
    %3989 = vmatmul.f32.gmra.mxu0 %v3602
    %v3990 = vpop.f32.mrf.mxu0
    %v3991 = vadd.f32 %v3392, %v3990
    %3992 = vmatmul.f32.gmra.mxu0 %v3605
    %v3993 = vpop.f32.mrf.mxu0
    %v3994 = vadd.f32 %v3392, %v3993
    %3995 = vmatmul.f32.gmra.mxu0 %v3608
    %v3996 = vpop.f32.mrf.mxu0
    %v3997 = vadd.f32 %v3392, %v3996
    %3998 = vmatmul.f32.gmra.mxu0 %v3611
    %v3999 = vpop.f32.mrf.mxu0
    %v4000 = vadd.f32 %v3392, %v3999
    %4001 = vmatmul.f32.gmra.mxu0 %v3614
    %v4002 = vpop.f32.mrf.mxu0
    %v4003 = vadd.f32 %v3392, %v4002
    %4004 = vmatmul.f32.gmra.mxu0 %v3617
    %v4005 = vpop.f32.mrf.mxu0
    %v4006 = vadd.f32 %v3392, %v4005
    %4007 = vmatmul.f32.gmra.mxu0 %v3620
    %v4008 = vpop.f32.mrf.mxu0
    %v4009 = vadd.f32 %v3392, %v4008
    %4010 = vmatmul.f32.gmra.mxu0 %v3623
    %v4011 = vpop.f32.mrf.mxu0
    %v4012 = vadd.f32 %v3392, %v4011
    %4013 = vmatmul.f32.gmra.mxu0 %v3626
    %v4014 = vpop.f32.mrf.mxu0
    %v4015 = vadd.f32 %v3392, %v4014
    %4016 = vmatmul.f32.gmra.mxu0 %v3629
    %v4017 = vpop.f32.mrf.mxu0
    %v4018 = vadd.f32 %v3392, %v4017
    %4019 = vmatmul.f32.gmra.mxu0 %v3632
    %v4020 = vpop.f32.mrf.mxu0
    %v4021 = vadd.f32 %v3392, %v4020
    %4022 = vmatmul.f32.gmra.mxu0 %v3635
    %v4023 = vpop.f32.mrf.mxu0
    %v4024 = vadd.f32 %v3392, %v4023
    %4025 = vmatmul.f32.gmra.mxu0 %v3638
    %v4026 = vpop.f32.mrf.mxu0
    %v4027 = vadd.f32 %v3392, %v4026
    %4028 = vmatmul.f32.gmra.mxu0 %v3641
    %v4029 = vpop.f32.mrf.mxu0
    %v4030 = vadd.f32 %v3392, %v4029
    %4031 = vmatmul.f32.gmra.mxu0 %v3644
    %v4032 = vpop.f32.mrf.mxu0
    %v4033 = vadd.f32 %v3392, %v4032
    %4034 = vmatmul.f32.gmra.mxu0 %v3647
    %v4035 = vpop.f32.mrf.mxu0
    %v4036 = vadd.f32 %v3392, %v4035
    %4037 = vmatmul.f32.gmra.mxu0 %v3650
    %v4038 = vpop.f32.mrf.mxu0
    %v4039 = vadd.f32 %v3392, %v4038
    %4040 = vmatmul.f32.gmra.mxu0 %v3653
    %v4041 = vpop.f32.mrf.mxu0
    %v4042 = vadd.f32 %v3392, %v4041
    %4043 = vmatmul.f32.gmra.mxu0 %v3656
    %v4044 = vpop.f32.mrf.mxu0
    %v4045 = vadd.f32 %v3392, %v4044
    %4046 = vmatmul.f32.gmra.mxu0 %v3659
    %v4047 = vpop.f32.mrf.mxu0
    %v4048 = vadd.f32 %v3392, %v4047
    %4049 = vmatmul.f32.gmra.mxu0 %v3662
    %v4050 = vpop.f32.mrf.mxu0
    %v4051 = vadd.f32 %v3392, %v4050
    %4052 = vmatmul.f32.gmra.mxu0 %v3665
    %v4053 = vpop.f32.mrf.mxu0
    %v4054 = vadd.f32 %v3392, %v4053
    %4055 = vmatmul.f32.gmra.mxu0 %v3668
    %v4056 = vpop.f32.mrf.mxu0
    %v4057 = vadd.f32 %v3392, %v4056
    %4058 = vmatmul.f32.gmra.mxu0 %v3671
    %v4059 = vpop.f32.mrf.mxu0
    %v4060 = vadd.f32 %v3392, %v4059
    %4061 = vmatmul.f32.gmra.mxu0 %v3674
    %v4062 = vpop.f32.mrf.mxu0
    %v4063 = vadd.f32 %v3392, %v4062
    %4064 = vmatmul.f32.gmra.mxu0 %v3677
    %v4065 = vpop.f32.mrf.mxu0
    %v4066 = vadd.f32 %v3392, %v4065
    %4067 = vmatmul.f32.gmra.mxu0 %v3680
    %v4068 = vpop.f32.mrf.mxu0
    %v4069 = vadd.f32 %v3392, %v4068
    %4070 = vmatmul.f32.gmra.mxu0 %v3683
    %v4071 = vpop.f32.mrf.mxu0
    %v4072 = vadd.f32 %v3392, %v4071
    %4073 = vmatmul.f32.gmra.mxu0 %v3686
    %v4074 = vpop.f32.mrf.mxu0
    %v4075 = vadd.f32 %v3392, %v4074
    %4076 = vmatmul.f32.gmra.mxu0 %v3689
    %v4077 = vpop.f32.mrf.mxu0
    %v4078 = vadd.f32 %v3392, %v4077
    %4079 = vmatmul.f32.gmra.mxu0 %v3692
    %v4080 = vpop.f32.mrf.mxu0
    %v4081 = vadd.f32 %v3392, %v4080
    %4082 = vmatmul.f32.gmra.mxu0 %v3695
    %v4083 = vpop.f32.mrf.mxu0
    %v4084 = vadd.f32 %v3392, %v4083
    %4085 = vmatmul.f32.gmra.mxu0 %v3698
    %v4086 = vpop.f32.mrf.mxu0
    %v4087 = vadd.f32 %v3392, %v4086
    %4088 = vmatmul.f32.gmra.mxu0 %v3701
    %v4089 = vpop.f32.mrf.mxu0
    %v4090 = vadd.f32 %v3392, %v4089
    %4091 = vmatmul.f32.gmra.mxu0 %v3704
    %v4092 = vpop.f32.mrf.mxu0
    %v4093 = vadd.f32 %v3392, %v4092
    %4094 = vmatmul.f32.gmra.mxu0 %v3707
    %v4095 = vpop.f32.mrf.mxu0
    %v4096 = vadd.f32 %v3392, %v4095
    %4097 = vmatmul.f32.gmra.mxu0 %v3710
    %v4098 = vpop.f32.mrf.mxu0
    %v4099 = vadd.f32 %v3392, %v4098
    %4100 = vmatmul.f32.gmra.mxu0 %v3713
    %v4101 = vpop.f32.mrf.mxu0
    %v4102 = vadd.f32 %v3392, %v4101
    %4103 = vmatmul.f32.gmra.mxu0 %v3716
    %v4104 = vpop.f32.mrf.mxu0
    %v4105 = vadd.f32 %v3392, %v4104
    %4106 = vmatmul.f32.gmra.mxu0 %v3719
    %v4107 = vpop.f32.mrf.mxu0
    %v4108 = vadd.f32 %v3392, %v4107
    %4109 = vmatmul.f32.gmra.mxu0 %v3722
    %v4110 = vpop.f32.mrf.mxu0
    %v4111 = vadd.f32 %v3392, %v4110
    %4112 = vmatmul.f32.gmra.mxu0 %v3725
    %v4113 = vpop.f32.mrf.mxu0
    %v4114 = vadd.f32 %v3392, %v4113
    %4115 = vmatmul.f32.gmra.mxu0 %v3728
    %v4116 = vpop.f32.mrf.mxu0
    %v4117 = vadd.f32 %v3392, %v4116
    %4118 = vmatmul.f32.gmra.mxu0 %v3731
    %v4119 = vpop.f32.mrf.mxu0
    %v4120 = vadd.f32 %v3392, %v4119
    %4121 = vmatmul.f32.gmra.mxu0 %v3734
    %v4122 = vpop.f32.mrf.mxu0
    %v4123 = vadd.f32 %v3392, %v4122
    %4124 = vmatmul.f32.gmra.mxu0 %v3737
    %v4125 = vpop.f32.mrf.mxu0
    %v4126 = vadd.f32 %v3392, %v4125
    %4127 = vmatmul.f32.gmra.mxu0 %v3740
    %v4128 = vpop.f32.mrf.mxu0
    %v4129 = vadd.f32 %v3392, %v4128
    %4130 = vmatmul.f32.gmra.mxu0 %v3743
    %v4131 = vpop.f32.mrf.mxu0
    %v4132 = vadd.f32 %v3392, %v4131
    %4133 = vmatmul.f32.gmra.mxu0 %v3746
    %v4134 = vpop.f32.mrf.mxu0
    %v4135 = vadd.f32 %v3392, %v4134
    %4136 = vmatmul.f32.gmra.mxu0 %v3749
    %v4137 = vpop.f32.mrf.mxu0
    %v4138 = vadd.f32 %v3392, %v4137
    %4139 = vmatmul.f32.gmra.mxu0 %v3752
    %v4140 = vpop.f32.mrf.mxu0
    %v4141 = vadd.f32 %v3392, %v4140
    %4142 = vmatmul.f32.gmra.mxu0 %v3755
    %v4143 = vpop.f32.mrf.mxu0
    %v4144 = vadd.f32 %v3392, %v4143
    %4145 = vmatmul.f32.gmra.mxu0 %v3758
    %v4146 = vpop.f32.mrf.mxu0
    %v4147 = vadd.f32 %v3392, %v4146
    %4148 = vmatmul.f32.gmra.mxu0 %v3761
    %v4149 = vpop.f32.mrf.mxu0
    %v4150 = vadd.f32 %v3392, %v4149
    %4151 = vmatmul.f32.gmra.mxu0 %v3764
    %v4152 = vpop.f32.mrf.mxu0
    %v4153 = vadd.f32 %v3392, %v4152
    %4154 = vdwg.mxu0
    %vm4155 = vcmask 261120
    %4156 = vst.msk [vmem:[#allocation3] sm:$0xff] %vm4155, %v3784
    %4157 = vst.msk [vmem:[#allocation3 + $0x8] sm:$0xff] %vm4155, %v3787
    %4158 = vst.msk [vmem:[#allocation3 + $0x10] sm:$0xff] %vm4155, %v3790
    %4159 = vst.msk [vmem:[#allocation3 + $0x18] sm:$0xff] %vm4155, %v3793
    %4160 = vst.msk [vmem:[#allocation3 + $0x20] sm:$0xff] %vm4155, %v3796
    %4161 = vst.msk [vmem:[#allocation3 + $0x28] sm:$0xff] %vm4155, %v3799
    %4162 = vst.msk [vmem:[#allocation3 + $0x30] sm:$0xff] %vm4155, %v3802
    %4163 = vst.msk [vmem:[#allocation3 + $0x38] sm:$0xff] %vm4155, %v3805
    %4164 = vst.msk [vmem:[#allocation3 + $0x40] sm:$0xff] %vm4155, %v3808
    %4165 = vst.msk [vmem:[#allocation3 + $0x48] sm:$0xff] %vm4155, %v3811
    %4166 = vst.msk [vmem:[#allocation3 + $0x50] sm:$0xff] %vm4155, %v3814
    %4167 = vst.msk [vmem:[#allocation3 + $0x58] sm:$0xff] %vm4155, %v3817
    %4168 = vst.msk [vmem:[#allocation3 + $0x60] sm:$0xff] %vm4155, %v3820
    %4169 = vst.msk [vmem:[#allocation3 + $0x68] sm:$0xff] %vm4155, %v3823
    %4170 = vst.msk [vmem:[#allocation3 + $0x70] sm:$0xff] %vm4155, %v3826
    %4171 = vst.msk [vmem:[#allocation3 + $0x78] sm:$0xff] %vm4155, %v3829
    %4172 = vst.msk [vmem:[#allocation3 + $0x80] sm:$0xff] %vm4155, %v3832
    %4173 = vst.msk [vmem:[#allocation3 + $0x88] sm:$0xff] %vm4155, %v3835
    %4174 = vst.msk [vmem:[#allocation3 + $0x90] sm:$0xff] %vm4155, %v3838
    %4175 = vst.msk [vmem:[#allocation3 + $0x98] sm:$0xff] %vm4155, %v3841
    %4176 = vst.msk [vmem:[#allocation3 + $0xa0] sm:$0xff] %vm4155, %v3844
    %4177 = vst.msk [vmem:[#allocation3 + $0xa8] sm:$0xff] %vm4155, %v3847
    %4178 = vst.msk [vmem:[#allocation3 + $0xb0] sm:$0xff] %vm4155, %v3850
    %4179 = vst.msk [vmem:[#allocation3 + $0xb8] sm:$0xff] %vm4155, %v3853
    %4180 = vst.msk [vmem:[#allocation3 + $0xc0] sm:$0xff] %vm4155, %v3856
    %4181 = vst.msk [vmem:[#allocation3 + $0xc8] sm:$0xff] %vm4155, %v3859
    %4182 = vst.msk [vmem:[#allocation3 + $0xd0] sm:$0xff] %vm4155, %v3862
    %4183 = vst.msk [vmem:[#allocation3 + $0xd8] sm:$0xff] %vm4155, %v3865
    %4184 = vst.msk [vmem:[#allocation3 + $0xe0] sm:$0xff] %vm4155, %v3868
    %4185 = vst.msk [vmem:[#allocation3 + $0xe8] sm:$0xff] %vm4155, %v3871
    %4186 = vst.msk [vmem:[#allocation3 + $0xf0] sm:$0xff] %vm4155, %v3874
    %4187 = vst.msk [vmem:[#allocation3 + $0xf8] sm:$0xff] %vm4155, %v3877
    %4188 = vst.msk [vmem:[#allocation3 + $0x100] sm:$0xff] %vm4155, %v3880
    %4189 = vst.msk [vmem:[#allocation3 + $0x108] sm:$0xff] %vm4155, %v3883
    %4190 = vst.msk [vmem:[#allocation3 + $0x110] sm:$0xff] %vm4155, %v3886
    %4191 = vst.msk [vmem:[#allocation3 + $0x118] sm:$0xff] %vm4155, %v3889
    %4192 = vst.msk [vmem:[#allocation3 + $0x120] sm:$0xff] %vm4155, %v3892
    %4193 = vst.msk [vmem:[#allocation3 + $0x128] sm:$0xff] %vm4155, %v3895
    %4194 = vst.msk [vmem:[#allocation3 + $0x130] sm:$0xff] %vm4155, %v3898
    %4195 = vst.msk [vmem:[#allocation3 + $0x138] sm:$0xff] %vm4155, %v3901
    %4196 = vst.msk [vmem:[#allocation3 + $0x140] sm:$0xff] %vm4155, %v3904
    %4197 = vst.msk [vmem:[#allocation3 + $0x148] sm:$0xff] %vm4155, %v3907
    %4198 = vst.msk [vmem:[#allocation3 + $0x150] sm:$0xff] %vm4155, %v3910
    %4199 = vst.msk [vmem:[#allocation3 + $0x158] sm:$0xff] %vm4155, %v3913
    %4200 = vst.msk [vmem:[#allocation3 + $0x160] sm:$0xff] %vm4155, %v3916
    %4201 = vst.msk [vmem:[#allocation3 + $0x168] sm:$0xff] %vm4155, %v3919
    %4202 = vst.msk [vmem:[#allocation3 + $0x170] sm:$0xff] %vm4155, %v3922
    %4203 = vst.msk [vmem:[#allocation3 + $0x178] sm:$0xff] %vm4155, %v3925
    %4204 = vst.msk [vmem:[#allocation3 + $0x180] sm:$0xff] %vm4155, %v3928
    %4205 = vst.msk [vmem:[#allocation3 + $0x188] sm:$0xff] %vm4155, %v3931
    %4206 = vst.msk [vmem:[#allocation3 + $0x190] sm:$0xff] %vm4155, %v3934
    %4207 = vst.msk [vmem:[#allocation3 + $0x198] sm:$0xff] %vm4155, %v3937
    %4208 = vst.msk [vmem:[#allocation3 + $0x1a0] sm:$0xff] %vm4155, %v3940
    %4209 = vst.msk [vmem:[#allocation3 + $0x1a8] sm:$0xff] %vm4155, %v3943
    %4210 = vst.msk [vmem:[#allocation3 + $0x1b0] sm:$0xff] %vm4155, %v3946
    %4211 = vst.msk [vmem:[#allocation3 + $0x1b8] sm:$0xff] %vm4155, %v3949
    %4212 = vst.msk [vmem:[#allocation3 + $0x1c0] sm:$0xff] %vm4155, %v3952
    %4213 = vst.msk [vmem:[#allocation3 + $0x1c8] sm:$0xff] %vm4155, %v3955
    %4214 = vst.msk [vmem:[#allocation3 + $0x1d0] sm:$0xff] %vm4155, %v3958
    %4215 = vst.msk [vmem:[#allocation3 + $0x1d8] sm:$0xff] %vm4155, %v3961
    %4216 = vst.msk [vmem:[#allocation3 + $0x1e0] sm:$0xff] %vm4155, %v3964
    %4217 = vst.msk [vmem:[#allocation3 + $0x1e8] sm:$0xff] %vm4155, %v3967
    %4218 = vst.msk [vmem:[#allocation3 + $0x1f0] sm:$0xff] %vm4155, %v3970
    %4219 = vst.msk [vmem:[#allocation3 + $0x1f8] sm:$0xff] %vm4155, %v3973
    %4220 = vst.msk [vmem:[#allocation3 + $0x200] sm:$0xff] %vm4155, %v3976
    %4221 = vst.msk [vmem:[#allocation3 + $0x208] sm:$0xff] %vm4155, %v3979
    %4222 = vst.msk [vmem:[#allocation3 + $0x210] sm:$0xff] %vm4155, %v3982
    %4223 = vst.msk [vmem:[#allocation3 + $0x218] sm:$0xff] %vm4155, %v3985
    %4224 = vst.msk [vmem:[#allocation3 + $0x220] sm:$0xff] %vm4155, %v3988
    %4225 = vst.msk [vmem:[#allocation3 + $0x228] sm:$0xff] %vm4155, %v3991
    %4226 = vst.msk [vmem:[#allocation3 + $0x230] sm:$0xff] %vm4155, %v3994
    %4227 = vst.msk [vmem:[#allocation3 + $0x238] sm:$0xff] %vm4155, %v3997
    %4228 = vst.msk [vmem:[#allocation3 + $0x240] sm:$0xff] %vm4155, %v4000
    %4229 = vst.msk [vmem:[#allocation3 + $0x248] sm:$0xff] %vm4155, %v4003
    %4230 = vst.msk [vmem:[#allocation3 + $0x250] sm:$0xff] %vm4155, %v4006
    %4231 = vst.msk [vmem:[#allocation3 + $0x258] sm:$0xff] %vm4155, %v4009
    %4232 = vst.msk [vmem:[#allocation3 + $0x260] sm:$0xff] %vm4155, %v4012
    %4233 = vst.msk [vmem:[#allocation3 + $0x268] sm:$0xff] %vm4155, %v4015
    %4234 = vst.msk [vmem:[#allocation3 + $0x270] sm:$0xff] %vm4155, %v4018
    %4235 = vst.msk [vmem:[#allocation3 + $0x278] sm:$0xff] %vm4155, %v4021
    %4236 = vst.msk [vmem:[#allocation3 + $0x280] sm:$0xff] %vm4155, %v4024
    %4237 = vst.msk [vmem:[#allocation3 + $0x288] sm:$0xff] %vm4155, %v4027
    %4238 = vst.msk [vmem:[#allocation3 + $0x290] sm:$0xff] %vm4155, %v4030
    %4239 = vst.msk [vmem:[#allocation3 + $0x298] sm:$0xff] %vm4155, %v4033
    %4240 = vst.msk [vmem:[#allocation3 + $0x2a0] sm:$0xff] %vm4155, %v4036
    %4241 = vst.msk [vmem:[#allocation3 + $0x2a8] sm:$0xff] %vm4155, %v4039
    %4242 = vst.msk [vmem:[#allocation3 + $0x2b0] sm:$0xff] %vm4155, %v4042
    %4243 = vst.msk [vmem:[#allocation3 + $0x2b8] sm:$0xff] %vm4155, %v4045
    %4244 = vst.msk [vmem:[#allocation3 + $0x2c0] sm:$0xff] %vm4155, %v4048
    %4245 = vst.msk [vmem:[#allocation3 + $0x2c8] sm:$0xff] %vm4155, %v4051
    %4246 = vst.msk [vmem:[#allocation3 + $0x2d0] sm:$0xff] %vm4155, %v4054
    %4247 = vst.msk [vmem:[#allocation3 + $0x2d8] sm:$0xff] %vm4155, %v4057
    %4248 = vst.msk [vmem:[#allocation3 + $0x2e0] sm:$0xff] %vm4155, %v4060
    %4249 = vst.msk [vmem:[#allocation3 + $0x2e8] sm:$0xff] %vm4155, %v4063
    %4250 = vst.msk [vmem:[#allocation3 + $0x2f0] sm:$0xff] %vm4155, %v4066
    %4251 = vst.msk [vmem:[#allocation3 + $0x2f8] sm:$0xff] %vm4155, %v4069
    %4252 = vst.msk [vmem:[#allocation3 + $0x300] sm:$0xff] %vm4155, %v4072
    %4253 = vst.msk [vmem:[#allocation3 + $0x308] sm:$0xff] %vm4155, %v4075
    %4254 = vst.msk [vmem:[#allocation3 + $0x310] sm:$0xff] %vm4155, %v4078
    %4255 = vst.msk [vmem:[#allocation3 + $0x318] sm:$0xff] %vm4155, %v4081
    %4256 = vst.msk [vmem:[#allocation3 + $0x320] sm:$0xff] %vm4155, %v4084
    %4257 = vst.msk [vmem:[#allocation3 + $0x328] sm:$0xff] %vm4155, %v4087
    %4258 = vst.msk [vmem:[#allocation3 + $0x330] sm:$0xff] %vm4155, %v4090
    %4259 = vst.msk [vmem:[#allocation3 + $0x338] sm:$0xff] %vm4155, %v4093
    %4260 = vst.msk [vmem:[#allocation3 + $0x340] sm:$0xff] %vm4155, %v4096
    %4261 = vst.msk [vmem:[#allocation3 + $0x348] sm:$0xff] %vm4155, %v4099
    %4262 = vst.msk [vmem:[#allocation3 + $0x350] sm:$0xff] %vm4155, %v4102
    %4263 = vst.msk [vmem:[#allocation3 + $0x358] sm:$0xff] %vm4155, %v4105
    %4264 = vst.msk [vmem:[#allocation3 + $0x360] sm:$0xff] %vm4155, %v4108
    %4265 = vst.msk [vmem:[#allocation3 + $0x368] sm:$0xff] %vm4155, %v4111
    %4266 = vst.msk [vmem:[#allocation3 + $0x370] sm:$0xff] %vm4155, %v4114
    %4267 = vst.msk [vmem:[#allocation3 + $0x378] sm:$0xff] %vm4155, %v4117
    %4268 = vst.msk [vmem:[#allocation3 + $0x380] sm:$0xff] %vm4155, %v4120
    %4269 = vst.msk [vmem:[#allocation3 + $0x388] sm:$0xff] %vm4155, %v4123
    %4270 = vst.msk [vmem:[#allocation3 + $0x390] sm:$0xff] %vm4155, %v4126
    %4271 = vst.msk [vmem:[#allocation3 + $0x398] sm:$0xff] %vm4155, %v4129
    %4272 = vst.msk [vmem:[#allocation3 + $0x3a0] sm:$0xff] %vm4155, %v4132
    %4273 = vst.msk [vmem:[#allocation3 + $0x3a8] sm:$0xff] %vm4155, %v4135
    %4274 = vst.msk [vmem:[#allocation3 + $0x3b0] sm:$0xff] %vm4155, %v4138
    %4275 = vst.msk [vmem:[#allocation3 + $0x3b8] sm:$0xff] %vm4155, %v4141
    %4276 = vst.msk [vmem:[#allocation3 + $0x3c0] sm:$0xff] %vm4155, %v4144
    %4277 = vst.msk [vmem:[#allocation3 + $0x3c8] sm:$0xff] %vm4155, %v4147
    %4278 = vst.msk [vmem:[#allocation3 + $0x3d0] sm:$0xff] %vm4155, %v4150
    %4279 = vst.msk [vmem:[#allocation3 + $0x3d8] sm:$0xff] %vm4155, %v4153
    loop: start=0, step=1, limit=4
    $region30: #{m5_forward.1} parent=1 // loop_pre_header
      _
    $region31: #{m5_forward.1} parent=1 // loop_header
      %s4281 = sphi 0, %s4285
      %p4282 = scmp.ge.s32.totalorder %s4281, 4
      %v4286 = vphi 0.0, %v4387
    $region32: #{m5_forward.1} parent=1 // loop_header_branch
      %4284 = sbr.rel (%p4282) target = $region36
    $region33: #{m5_forward.1} parent=1 // loop_body
      %s4287 = smul.u32 %s4281, 248
      %s4288 = scalar_lea.vmem [#allocation3], %s4287
      %v4289 = vld [vmem:[%s4288] sm:$0xff]
      %v4290 = vld [vmem:[%s4288 + $0x8] sm:$0xff]
      %v4291 = vld [vmem:[%s4288 + $0x10] sm:$0xff]
      %v4292 = vld [vmem:[%s4288 + $0x18] sm:$0xff]
      %v4293 = vld [vmem:[%s4288 + $0x20] sm:$0xff]
      %v4294 = vld [vmem:[%s4288 + $0x28] sm:$0xff]
      %v4295 = vld [vmem:[%s4288 + $0x30] sm:$0xff]
      %v4296 = vld [vmem:[%s4288 + $0x38] sm:$0xff]
      %v4297 = vld [vmem:[%s4288 + $0x40] sm:$0xff]
      %v4298 = vld [vmem:[%s4288 + $0x48] sm:$0xff]
      %v4299 = vld [vmem:[%s4288 + $0x50] sm:$0xff]
      %v4300 = vld [vmem:[%s4288 + $0x58] sm:$0xff]
      %v4301 = vld [vmem:[%s4288 + $0x60] sm:$0xff]
      %v4302 = vld [vmem:[%s4288 + $0x68] sm:$0xff]
      %v4303 = vld [vmem:[%s4288 + $0x70] sm:$0xff]
      %v4304 = vld [vmem:[%s4288 + $0x78] sm:$0xff]
      %v4305 = vld [vmem:[%s4288 + $0x80] sm:$0xff]
      %v4306 = vld [vmem:[%s4288 + $0x88] sm:$0xff]
      %v4307 = vld [vmem:[%s4288 + $0x90] sm:$0xff]
      %v4308 = vld [vmem:[%s4288 + $0x98] sm:$0xff]
      %v4309 = vld [vmem:[%s4288 + $0xa0] sm:$0xff]
      %v4310 = vld [vmem:[%s4288 + $0xa8] sm:$0xff]
      %v4311 = vld [vmem:[%s4288 + $0xb0] sm:$0xff]
      %v4312 = vld [vmem:[%s4288 + $0xb8] sm:$0xff]
      %v4313 = vld [vmem:[%s4288 + $0xc0] sm:$0xff]
      %v4314 = vld [vmem:[%s4288 + $0xc8] sm:$0xff]
      %v4315 = vld [vmem:[%s4288 + $0xd0] sm:$0xff]
      %v4316 = vld [vmem:[%s4288 + $0xd8] sm:$0xff]
      %v4317 = vld [vmem:[%s4288 + $0xe0] sm:$0xff]
      %v4318 = vld [vmem:[%s4288 + $0xe8] sm:$0xff]
      %v4319 = vld [vmem:[%s4288 + $0xf0] sm:$0xff]
      %v4320 = vsel %vm4155, %v4289, 0.0
      %v4321 = vsel %vm4155, %v4290, 0.0
      %v4322 = vadd.f32 %v4320, %v4321
      %v4323 = vsel %vm4155, %v4291, 0.0
      %v4324 = vadd.f32 %v4322, %v4323
      %v4325 = vsel %vm4155, %v4292, 0.0
      %v4326 = vadd.f32 %v4324, %v4325
      %v4327 = vsel %vm4155, %v4293, 0.0
      %v4328 = vadd.f32 %v4326, %v4327
      %v4329 = vsel %vm4155, %v4294, 0.0
      %v4330 = vadd.f32 %v4328, %v4329
      %v4331 = vsel %vm4155, %v4295, 0.0
      %v4332 = vadd.f32 %v4330, %v4331
      %v4333 = vsel %vm4155, %v4296, 0.0
      %v4334 = vadd.f32 %v4332, %v4333
      %v4335 = vsel %vm4155, %v4297, 0.0
      %v4336 = vadd.f32 %v4334, %v4335
      %v4337 = vsel %vm4155, %v4298, 0.0
      %v4338 = vadd.f32 %v4336, %v4337
      %v4339 = vsel %vm4155, %v4299, 0.0
      %v4340 = vadd.f32 %v4338, %v4339
      %v4341 = vsel %vm4155, %v4300, 0.0
      %v4342 = vadd.f32 %v4340, %v4341
      %v4343 = vsel %vm4155, %v4301, 0.0
      %v4344 = vadd.f32 %v4342, %v4343
      %v4345 = vsel %vm4155, %v4302, 0.0
      %v4346 = vadd.f32 %v4344, %v4345
      %v4347 = vsel %vm4155, %v4303, 0.0
      %v4348 = vadd.f32 %v4346, %v4347
      %v4349 = vsel %vm4155, %v4304, 0.0
      %v4350 = vadd.f32 %v4348, %v4349
      %v4351 = vsel %vm4155, %v4305, 0.0
      %v4352 = vadd.f32 %v4350, %v4351
      %v4353 = vsel %vm4155, %v4306, 0.0
      %v4354 = vadd.f32 %v4352, %v4353
      %v4355 = vsel %vm4155, %v4307, 0.0
      %v4356 = vadd.f32 %v4354, %v4355
      %v4357 = vsel %vm4155, %v4308, 0.0
      %v4358 = vadd.f32 %v4356, %v4357
      %v4359 = vsel %vm4155, %v4309, 0.0
      %v4360 = vadd.f32 %v4358, %v4359
      %v4361 = vsel %vm4155, %v4310, 0.0
      %v4362 = vadd.f32 %v4360, %v4361
      %v4363 = vsel %vm4155, %v4311, 0.0
      %v4364 = vadd.f32 %v4362, %v4363
      %v4365 = vsel %vm4155, %v4312, 0.0
      %v4366 = vadd.f32 %v4364, %v4365
      %v4367 = vsel %vm4155, %v4313, 0.0
      %v4368 = vadd.f32 %v4366, %v4367
      %v4369 = vsel %vm4155, %v4314, 0.0
      %v4370 = vadd.f32 %v4368, %v4369
      %v4371 = vsel %vm4155, %v4315, 0.0
      %v4372 = vadd.f32 %v4370, %v4371
      %v4373 = vsel %vm4155, %v4316, 0.0
      %v4374 = vadd.f32 %v4372, %v4373
      %v4375 = vsel %vm4155, %v4317, 0.0
      %v4376 = vadd.f32 %v4374, %v4375
      %v4377 = vsel %vm4155, %v4318, 0.0
      %v4378 = vadd.f32 %v4376, %v4377
      %v4379 = vsel %vm4155, %v4319, 0.0
      %v4380 = vadd.f32 %v4378, %v4379
      %v4381 = vrot.slane %v4380, 4
      %v4382 = vadd.f32 %v4380, %v4381
      %v4383 = vrot.slane %v4382, 2
      %v4384 = vadd.f32 %v4382, %v4383
      %v4385 = vrot.slane %v4384, 1
      %v4386 = vadd.f32 %v4384, %v4385
      %v4387 = vadd.f32 %v4286, %v4386
    $region34: #{m5_forward.1} parent=1 // loop_footer
      %s4285 = sadd.s32 1, %s4281
    $region35: #{m5_forward.1} parent=1 // loop_footer_branch
      %4280 = sbr.rel target = $region31
    $region36: #{m5_forward.1} parent=1 // loop_exit
      _
    %v4388 = vmul.f32 %v4286, 0.0010080645
    loop: start=0, step=1, limit=4
    $region37: #{m5_forward.1} parent=1 // loop_pre_header
      _
    $region38: #{m5_forward.1} parent=1 // loop_header
      %s4390 = sphi 0, %s4394
      %p4391 = scmp.ge.s32.totalorder %s4390, 4
      %v4395 = vphi 0.0, %v4558
    $region39: #{m5_forward.1} parent=1 // loop_header_branch
      %4393 = sbr.rel (%p4391) target = $region43
    $region40: #{m5_forward.1} parent=1 // loop_body
      %s4396 = smul.u32 %s4390, 248
      %s4397 = scalar_lea.vmem [#allocation3], %s4396
      %v4398 = vld [vmem:[%s4397] sm:$0xff]
      %v4399 = vld [vmem:[%s4397 + $0x8] sm:$0xff]
      %v4400 = vld [vmem:[%s4397 + $0x10] sm:$0xff]
      %v4401 = vld [vmem:[%s4397 + $0x18] sm:$0xff]
      %v4402 = vld [vmem:[%s4397 + $0x20] sm:$0xff]
      %v4403 = vld [vmem:[%s4397 + $0x28] sm:$0xff]
      %v4404 = vld [vmem:[%s4397 + $0x30] sm:$0xff]
      %v4405 = vld [vmem:[%s4397 + $0x38] sm:$0xff]
      %v4406 = vld [vmem:[%s4397 + $0x40] sm:$0xff]
      %v4407 = vld [vmem:[%s4397 + $0x48] sm:$0xff]
      %v4408 = vld [vmem:[%s4397 + $0x50] sm:$0xff]
      %v4409 = vld [vmem:[%s4397 + $0x58] sm:$0xff]
      %v4410 = vld [vmem:[%s4397 + $0x60] sm:$0xff]
      %v4411 = vld [vmem:[%s4397 + $0x68] sm:$0xff]
      %v4412 = vld [vmem:[%s4397 + $0x70] sm:$0xff]
      %v4413 = vld [vmem:[%s4397 + $0x78] sm:$0xff]
      %v4414 = vld [vmem:[%s4397 + $0x80] sm:$0xff]
      %v4415 = vld [vmem:[%s4397 + $0x88] sm:$0xff]
      %v4416 = vld [vmem:[%s4397 + $0x90] sm:$0xff]
      %v4417 = vld [vmem:[%s4397 + $0x98] sm:$0xff]
      %v4418 = vld [vmem:[%s4397 + $0xa0] sm:$0xff]
      %v4419 = vld [vmem:[%s4397 + $0xa8] sm:$0xff]
      %v4420 = vld [vmem:[%s4397 + $0xb0] sm:$0xff]
      %v4421 = vld [vmem:[%s4397 + $0xb8] sm:$0xff]
      %v4422 = vld [vmem:[%s4397 + $0xc0] sm:$0xff]
      %v4423 = vld [vmem:[%s4397 + $0xc8] sm:$0xff]
      %v4424 = vld [vmem:[%s4397 + $0xd0] sm:$0xff]
      %v4425 = vld [vmem:[%s4397 + $0xd8] sm:$0xff]
      %v4426 = vld [vmem:[%s4397 + $0xe0] sm:$0xff]
      %v4427 = vld [vmem:[%s4397 + $0xe8] sm:$0xff]
      %v4428 = vld [vmem:[%s4397 + $0xf0] sm:$0xff]
      %v4429 = vsub.f32 %v4398, %v4388
      %v4430 = vsub.f32 %v4399, %v4388
      %v4431 = vsub.f32 %v4400, %v4388
      %v4432 = vsub.f32 %v4401, %v4388
      %v4433 = vsub.f32 %v4402, %v4388
      %v4434 = vsub.f32 %v4403, %v4388
      %v4435 = vsub.f32 %v4404, %v4388
      %v4436 = vsub.f32 %v4405, %v4388
      %v4437 = vsub.f32 %v4406, %v4388
      %v4438 = vsub.f32 %v4407, %v4388
      %v4439 = vsub.f32 %v4408, %v4388
      %v4440 = vsub.f32 %v4409, %v4388
      %v4441 = vsub.f32 %v4410, %v4388
      %v4442 = vsub.f32 %v4411, %v4388
      %v4443 = vsub.f32 %v4412, %v4388
      %v4444 = vsub.f32 %v4413, %v4388
      %v4445 = vsub.f32 %v4414, %v4388
      %v4446 = vsub.f32 %v4415, %v4388
      %v4447 = vsub.f32 %v4416, %v4388
      %v4448 = vsub.f32 %v4417, %v4388
      %v4449 = vsub.f32 %v4418, %v4388
      %v4450 = vsub.f32 %v4419, %v4388
      %v4451 = vsub.f32 %v4420, %v4388
      %v4452 = vsub.f32 %v4421, %v4388
      %v4453 = vsub.f32 %v4422, %v4388
      %v4454 = vsub.f32 %v4423, %v4388
      %v4455 = vsub.f32 %v4424, %v4388
      %v4456 = vsub.f32 %v4425, %v4388
      %v4457 = vsub.f32 %v4426, %v4388
      %v4458 = vsub.f32 %v4427, %v4388
      %v4459 = vsub.f32 %v4428, %v4388
      %v4460 = vmul.f32 %v4429, %v4429
      %v4461 = vmul.f32 %v4430, %v4430
      %v4462 = vmul.f32 %v4431, %v4431
      %v4463 = vmul.f32 %v4432, %v4432
      %v4464 = vmul.f32 %v4433, %v4433
      %v4465 = vmul.f32 %v4434, %v4434
      %v4466 = vmul.f32 %v4435, %v4435
      %v4467 = vmul.f32 %v4436, %v4436
      %v4468 = vmul.f32 %v4437, %v4437
      %v4469 = vmul.f32 %v4438, %v4438
      %v4470 = vmul.f32 %v4439, %v4439
      %v4471 = vmul.f32 %v4440, %v4440
      %v4472 = vmul.f32 %v4441, %v4441
      %v4473 = vmul.f32 %v4442, %v4442
      %v4474 = vmul.f32 %v4443, %v4443
      %v4475 = vmul.f32 %v4444, %v4444
      %v4476 = vmul.f32 %v4445, %v4445
      %v4477 = vmul.f32 %v4446, %v4446
      %v4478 = vmul.f32 %v4447, %v4447
      %v4479 = vmul.f32 %v4448, %v4448
      %v4480 = vmul.f32 %v4449, %v4449
      %v4481 = vmul.f32 %v4450, %v4450
      %v4482 = vmul.f32 %v4451, %v4451
      %v4483 = vmul.f32 %v4452, %v4452
      %v4484 = vmul.f32 %v4453, %v4453
      %v4485 = vmul.f32 %v4454, %v4454
      %v4486 = vmul.f32 %v4455, %v4455
      %v4487 = vmul.f32 %v4456, %v4456
      %v4488 = vmul.f32 %v4457, %v4457
      %v4489 = vmul.f32 %v4458, %v4458
      %v4490 = vmul.f32 %v4459, %v4459
      %v4491 = vsel %vm4155, %v4460, 0.0
      %v4492 = vsel %vm4155, %v4461, 0.0
      %v4493 = vadd.f32 %v4491, %v4492
      %v4494 = vsel %vm4155, %v4462, 0.0
      %v4495 = vadd.f32 %v4493, %v4494
      %v4496 = vsel %vm4155, %v4463, 0.0
      %v4497 = vadd.f32 %v4495, %v4496
      %v4498 = vsel %vm4155, %v4464, 0.0
      %v4499 = vadd.f32 %v4497, %v4498
      %v4500 = vsel %vm4155, %v4465, 0.0
      %v4501 = vadd.f32 %v4499, %v4500
      %v4502 = vsel %vm4155, %v4466, 0.0
      %v4503 = vadd.f32 %v4501, %v4502
      %v4504 = vsel %vm4155, %v4467, 0.0
      %v4505 = vadd.f32 %v4503, %v4504
      %v4506 = vsel %vm4155, %v4468, 0.0
      %v4507 = vadd.f32 %v4505, %v4506
      %v4508 = vsel %vm4155, %v4469, 0.0
      %v4509 = vadd.f32 %v4507, %v4508
      %v4510 = vsel %vm4155, %v4470, 0.0
      %v4511 = vadd.f32 %v4509, %v4510
      %v4512 = vsel %vm4155, %v4471, 0.0
      %v4513 = vadd.f32 %v4511, %v4512
      %v4514 = vsel %vm4155, %v4472, 0.0
      %v4515 = vadd.f32 %v4513, %v4514
      %v4516 = vsel %vm4155, %v4473, 0.0
      %v4517 = vadd.f32 %v4515, %v4516
      %v4518 = vsel %vm4155, %v4474, 0.0
      %v4519 = vadd.f32 %v4517, %v4518
      %v4520 = vsel %vm4155, %v4475, 0.0
      %v4521 = vadd.f32 %v4519, %v4520
      %v4522 = vsel %vm4155, %v4476, 0.0
      %v4523 = vadd.f32 %v4521, %v4522
      %v4524 = vsel %vm4155, %v4477, 0.0
      %v4525 = vadd.f32 %v4523, %v4524
      %v4526 = vsel %vm4155, %v4478, 0.0
      %v4527 = vadd.f32 %v4525, %v4526
      %v4528 = vsel %vm4155, %v4479, 0.0
      %v4529 = vadd.f32 %v4527, %v4528
      %v4530 = vsel %vm4155, %v4480, 0.0
      %v4531 = vadd.f32 %v4529, %v4530
      %v4532 = vsel %vm4155, %v4481, 0.0
      %v4533 = vadd.f32 %v4531, %v4532
      %v4534 = vsel %vm4155, %v4482, 0.0
      %v4535 = vadd.f32 %v4533, %v4534
      %v4536 = vsel %vm4155, %v4483, 0.0
      %v4537 = vadd.f32 %v4535, %v4536
      %v4538 = vsel %vm4155, %v4484, 0.0
      %v4539 = vadd.f32 %v4537, %v4538
      %v4540 = vsel %vm4155, %v4485, 0.0
      %v4541 = vadd.f32 %v4539, %v4540
      %v4542 = vsel %vm4155, %v4486, 0.0
      %v4543 = vadd.f32 %v4541, %v4542
      %v4544 = vsel %vm4155, %v4487, 0.0
      %v4545 = vadd.f32 %v4543, %v4544
      %v4546 = vsel %vm4155, %v4488, 0.0
      %v4547 = vadd.f32 %v4545, %v4546
      %v4548 = vsel %vm4155, %v4489, 0.0
      %v4549 = vadd.f32 %v4547, %v4548
      %v4550 = vsel %vm4155, %v4490, 0.0
      %v4551 = vadd.f32 %v4549, %v4550
      %v4552 = vrot.slane %v4551, 4
      %v4553 = vadd.f32 %v4551, %v4552
      %v4554 = vrot.slane %v4553, 2
      %v4555 = vadd.f32 %v4553, %v4554
      %v4556 = vrot.slane %v4555, 1
      %v4557 = vadd.f32 %v4555, %v4556
      %v4558 = vadd.f32 %v4395, %v4557
    $region41: #{m5_forward.1} parent=1 // loop_footer
      %s4394 = sadd.s32 1, %s4390
    $region42: #{m5_forward.1} parent=1 // loop_footer_branch
      %4389 = sbr.rel target = $region38
    $region43: #{m5_forward.1} parent=1 // loop_exit
      _
    %v4559 = vmul.f32 %v4395, 0.0010080645
    %v4560 = vadd.f32 %v4559, 1e-05
    %v4561 = vrsqrt.pop %v4560
    %v4562 = vmul.f32 %v4561, %v4560
    %v4563 = vmul.f32 %v4562, %v4561
    %v4564 = vmul.f32 0.5, %v4563
    %v4565 = vsub.f32 1.5, %v4564
    %v4566 = vmul.f32 %v4561, %v4565
    %vm4567 = vweird.f32 %v4560
    %vm4568 = vweird.f32 %v4561
    %vm4569 = vmor %vm4567, %vm4568
    %v4570 = vsel %vm4569, %v4561, %v4566
    %v4571 = vld [vmem:[%s6 + $0x1] sm:$0x1]
    %v4572 = vmul.f32 %v4570, %v4571
    %v4573 = vld [vmem:[%s6 + $0x2] sm:$0x1]
    %v4574 = vmul.f32 %v4388, %v4572
    %v4575 = vsub.f32 %v4573, %v4574
    loop: start=0, step=1, limit=4
    $region44: #{m5_forward.1} parent=1 // loop_pre_header
      _
    $region45: #{m5_forward.1} parent=1 // loop_header
      %s4577 = sphi 0, %s4581
      %p4578 = scmp.ge.s32.totalorder %s4577, 4
    $region46: #{m5_forward.1} parent=1 // loop_header_branch
      %4580 = sbr.rel (%p4578) target = $region50
    $region47: #{m5_forward.1} parent=1 // loop_body
      %s4582 = smul.u32 %s4577, 248
      %s4583 = scalar_lea.vmem [#allocation3], %s4582
      %v4584 = vld [vmem:[%s4583] sm:$0xff]
      %v4585 = vld [vmem:[%s4583 + $0x8] sm:$0xff]
      %v4586 = vld [vmem:[%s4583 + $0x10] sm:$0xff]
      %v4587 = vld [vmem:[%s4583 + $0x18] sm:$0xff]
      %v4588 = vld [vmem:[%s4583 + $0x20] sm:$0xff]
      %v4589 = vld [vmem:[%s4583 + $0x28] sm:$0xff]
      %v4590 = vld [vmem:[%s4583 + $0x30] sm:$0xff]
      %v4591 = vld [vmem:[%s4583 + $0x38] sm:$0xff]
      %v4592 = vld [vmem:[%s4583 + $0x40] sm:$0xff]
      %v4593 = vld [vmem:[%s4583 + $0x48] sm:$0xff]
      %v4594 = vld [vmem:[%s4583 + $0x50] sm:$0xff]
      %v4595 = vld [vmem:[%s4583 + $0x58] sm:$0xff]
      %v4596 = vld [vmem:[%s4583 + $0x60] sm:$0xff]
      %v4597 = vld [vmem:[%s4583 + $0x68] sm:$0xff]
      %v4598 = vld [vmem:[%s4583 + $0x70] sm:$0xff]
      %v4599 = vld [vmem:[%s4583 + $0x78] sm:$0xff]
      %v4600 = vld [vmem:[%s4583 + $0x80] sm:$0xff]
      %v4601 = vld [vmem:[%s4583 + $0x88] sm:$0xff]
      %v4602 = vld [vmem:[%s4583 + $0x90] sm:$0xff]
      %v4603 = vld [vmem:[%s4583 + $0x98] sm:$0xff]
      %v4604 = vld [vmem:[%s4583 + $0xa0] sm:$0xff]
      %v4605 = vld [vmem:[%s4583 + $0xa8] sm:$0xff]
      %v4606 = vld [vmem:[%s4583 + $0xb0] sm:$0xff]
      %v4607 = vld [vmem:[%s4583 + $0xb8] sm:$0xff]
      %v4608 = vld [vmem:[%s4583 + $0xc0] sm:$0xff]
      %v4609 = vld [vmem:[%s4583 + $0xc8] sm:$0xff]
      %v4610 = vld [vmem:[%s4583 + $0xd0] sm:$0xff]
      %v4611 = vld [vmem:[%s4583 + $0xd8] sm:$0xff]
      %v4612 = vld [vmem:[%s4583 + $0xe0] sm:$0xff]
      %v4613 = vld [vmem:[%s4583 + $0xe8] sm:$0xff]
      %v4614 = vld [vmem:[%s4583 + $0xf0] sm:$0xff]
      %v4615 = vperm.slane %v4572, 0
      %v4616 = vmul.f32 %v4584, %v4615
      %v4617 = vmul.f32 %v4585, %v4615
      %v4618 = vmul.f32 %v4586, %v4615
      %v4619 = vmul.f32 %v4587, %v4615
      %v4620 = vmul.f32 %v4588, %v4615
      %v4621 = vmul.f32 %v4589, %v4615
      %v4622 = vmul.f32 %v4590, %v4615
      %v4623 = vmul.f32 %v4591, %v4615
      %v4624 = vmul.f32 %v4592, %v4615
      %v4625 = vmul.f32 %v4593, %v4615
      %v4626 = vmul.f32 %v4594, %v4615
      %v4627 = vmul.f32 %v4595, %v4615
      %v4628 = vmul.f32 %v4596, %v4615
      %v4629 = vmul.f32 %v4597, %v4615
      %v4630 = vmul.f32 %v4598, %v4615
      %v4631 = vmul.f32 %v4599, %v4615
      %v4632 = vmul.f32 %v4600, %v4615
      %v4633 = vmul.f32 %v4601, %v4615
      %v4634 = vmul.f32 %v4602, %v4615
      %v4635 = vmul.f32 %v4603, %v4615
      %v4636 = vmul.f32 %v4604, %v4615
      %v4637 = vmul.f32 %v4605, %v4615
      %v4638 = vmul.f32 %v4606, %v4615
      %v4639 = vmul.f32 %v4607, %v4615
      %v4640 = vmul.f32 %v4608, %v4615
      %v4641 = vmul.f32 %v4609, %v4615
      %v4642 = vmul.f32 %v4610, %v4615
      %v4643 = vmul.f32 %v4611, %v4615
      %v4644 = vmul.f32 %v4612, %v4615
      %v4645 = vmul.f32 %v4613, %v4615
      %v4646 = vmul.f32 %v4614, %v4615
      %v4647 = vperm.slane %v4575, 0
      %v4648 = vadd.f32 %v4616, %v4647
      %v4649 = vadd.f32 %v4617, %v4647
      %v4650 = vadd.f32 %v4618, %v4647
      %v4651 = vadd.f32 %v4619, %v4647
      %v4652 = vadd.f32 %v4620, %v4647
      %v4653 = vadd.f32 %v4621, %v4647
      %v4654 = vadd.f32 %v4622, %v4647
      %v4655 = vadd.f32 %v4623, %v4647
      %v4656 = vadd.f32 %v4624, %v4647
      %v4657 = vadd.f32 %v4625, %v4647
      %v4658 = vadd.f32 %v4626, %v4647
      %v4659 = vadd.f32 %v4627, %v4647
      %v4660 = vadd.f32 %v4628, %v4647
      %v4661 = vadd.f32 %v4629, %v4647
      %v4662 = vadd.f32 %v4630, %v4647
      %v4663 = vadd.f32 %v4631, %v4647
      %v4664 = vadd.f32 %v4632, %v4647
      %v4665 = vadd.f32 %v4633, %v4647
      %v4666 = vadd.f32 %v4634, %v4647
      %v4667 = vadd.f32 %v4635, %v4647
      %v4668 = vadd.f32 %v4636, %v4647
      %v4669 = vadd.f32 %v4637, %v4647
      %v4670 = vadd.f32 %v4638, %v4647
      %v4671 = vadd.f32 %v4639, %v4647
      %v4672 = vadd.f32 %v4640, %v4647
      %v4673 = vadd.f32 %v4641, %v4647
      %v4674 = vadd.f32 %v4642, %v4647
      %v4675 = vadd.f32 %v4643, %v4647
      %v4676 = vadd.f32 %v4644, %v4647
      %v4677 = vadd.f32 %v4645, %v4647
      %v4678 = vadd.f32 %v4646, %v4647
      %v4679 = vmax.f32 %v4648, 0.0
      %v4680 = vmax.f32 %v4649, 0.0
      %v4681 = vmax.f32 %v4650, 0.0
      %v4682 = vmax.f32 %v4651, 0.0
      %v4683 = vmax.f32 %v4652, 0.0
      %v4684 = vmax.f32 %v4653, 0.0
      %v4685 = vmax.f32 %v4654, 0.0
      %v4686 = vmax.f32 %v4655, 0.0
      %v4687 = vmax.f32 %v4656, 0.0
      %v4688 = vmax.f32 %v4657, 0.0
      %v4689 = vmax.f32 %v4658, 0.0
      %v4690 = vmax.f32 %v4659, 0.0
      %v4691 = vmax.f32 %v4660, 0.0
      %v4692 = vmax.f32 %v4661, 0.0
      %v4693 = vmax.f32 %v4662, 0.0
      %v4694 = vmax.f32 %v4663, 0.0
      %v4695 = vmax.f32 %v4664, 0.0
      %v4696 = vmax.f32 %v4665, 0.0
      %v4697 = vmax.f32 %v4666, 0.0
      %v4698 = vmax.f32 %v4667, 0.0
      %v4699 = vmax.f32 %v4668, 0.0
      %v4700 = vmax.f32 %v4669, 0.0
      %v4701 = vmax.f32 %v4670, 0.0
      %v4702 = vmax.f32 %v4671, 0.0
      %v4703 = vmax.f32 %v4672, 0.0
      %v4704 = vmax.f32 %v4673, 0.0
      %v4705 = vmax.f32 %v4674, 0.0
      %v4706 = vmax.f32 %v4675, 0.0
      %v4707 = vmax.f32 %v4676, 0.0
      %v4708 = vmax.f32 %v4677, 0.0
      %v4709 = vmax.f32 %v4678, 0.0
      %v4710 = vrot.slane %v4679, 1
      %v4711 = vrot.slane %v4680, 1
      %v4712 = vrot.slane %v4681, 1
      %v4713 = vrot.slane %v4682, 1
      %v4714 = vrot.slane %v4683, 1
      %v4715 = vrot.slane %v4684, 1
      %v4716 = vrot.slane %v4685, 1
      %v4717 = vrot.slane %v4686, 1
      %v4718 = vrot.slane %v4687, 1
      %v4719 = vrot.slane %v4688, 1
      %v4720 = vrot.slane %v4689, 1
      %v4721 = vrot.slane %v4690, 1
      %v4722 = vrot.slane %v4691, 1
      %v4723 = vrot.slane %v4692, 1
      %v4724 = vrot.slane %v4693, 1
      %v4725 = vrot.slane %v4694, 1
      %v4726 = vrot.slane %v4695, 1
      %v4727 = vrot.slane %v4696, 1
      %v4728 = vrot.slane %v4697, 1
      %v4729 = vrot.slane %v4698, 1
      %v4730 = vrot.slane %v4699, 1
      %v4731 = vrot.slane %v4700, 1
      %v4732 = vrot.slane %v4701, 1
      %v4733 = vrot.slane %v4702, 1
      %v4734 = vrot.slane %v4703, 1
      %v4735 = vrot.slane %v4704, 1
      %v4736 = vrot.slane %v4705, 1
      %v4737 = vrot.slane %v4706, 1
      %v4738 = vrot.slane %v4707, 1
      %v4739 = vrot.slane %v4708, 1
      %v4740 = vrot.slane %v4709, 1
      %v4741 = vlaneseq
      %v4742 = vshrl.u32 %v4741, 7
      %vm4743 = vcmp.lt.s32.totalorder %v4742, 7
      %v4744 = vsel %vm4743, %v4739, %v4740
      %v4745 = vsel %vm4743, %v4738, %v4739
      %v4746 = vsel %vm4743, %v4737, %v4738
      %v4747 = vsel %vm4743, %v4736, %v4737
      %v4748 = vsel %vm4743, %v4735, %v4736
      %v4749 = vsel %vm4743, %v4734, %v4735
      %v4750 = vsel %vm4743, %v4733, %v4734
      %v4751 = vsel %vm4743, %v4732, %v4733
      %v4752 = vsel %vm4743, %v4731, %v4732
      %v4753 = vsel %vm4743, %v4730, %v4731
      %v4754 = vsel %vm4743, %v4729, %v4730
      %v4755 = vsel %vm4743, %v4728, %v4729
      %v4756 = vsel %vm4743, %v4727, %v4728
      %v4757 = vsel %vm4743, %v4726, %v4727
      %v4758 = vsel %vm4743, %v4725, %v4726
      %v4759 = vsel %vm4743, %v4724, %v4725
      %v4760 = vsel %vm4743, %v4723, %v4724
      %v4761 = vsel %vm4743, %v4722, %v4723
      %v4762 = vsel %vm4743, %v4721, %v4722
      %v4763 = vsel %vm4743, %v4720, %v4721
      %v4764 = vsel %vm4743, %v4719, %v4720
      %v4765 = vsel %vm4743, %v4718, %v4719
      %v4766 = vsel %vm4743, %v4717, %v4718
      %v4767 = vsel %vm4743, %v4716, %v4717
      %v4768 = vsel %vm4743, %v4715, %v4716
      %v4769 = vsel %vm4743, %v4714, %v4715
      %v4770 = vsel %vm4743, %v4713, %v4714
      %v4771 = vsel %vm4743, %v4712, %v4713
      %v4772 = vsel %vm4743, %v4711, %v4712
      %v4773 = vsel %vm4743, %v4710, %v4711
      %v4774 = vsel %vm4743, %v4740, %v4710
      %v4775 = vmax.f32 %v4679, %v4773
      %v4776 = vmax.f32 %v4680, %v4772
      %v4777 = vmax.f32 %v4681, %v4771
      %v4778 = vmax.f32 %v4682, %v4770
      %v4779 = vmax.f32 %v4683, %v4769
      %v4780 = vmax.f32 %v4684, %v4768
      %v4781 = vmax.f32 %v4685, %v4767
      %v4782 = vmax.f32 %v4686, %v4766
      %v4783 = vmax.f32 %v4687, %v4765
      %v4784 = vmax.f32 %v4688, %v4764
      %v4785 = vmax.f32 %v4689, %v4763
      %v4786 = vmax.f32 %v4690, %v4762
      %v4787 = vmax.f32 %v4691, %v4761
      %v4788 = vmax.f32 %v4692, %v4760
      %v4789 = vmax.f32 %v4693, %v4759
      %v4790 = vmax.f32 %v4694, %v4758
      %v4791 = vmax.f32 %v4695, %v4757
      %v4792 = vmax.f32 %v4696, %v4756
      %v4793 = vmax.f32 %v4697, %v4755
      %v4794 = vmax.f32 %v4698, %v4754
      %v4795 = vmax.f32 %v4699, %v4753
      %v4796 = vmax.f32 %v4700, %v4752
      %v4797 = vmax.f32 %v4701, %v4751
      %v4798 = vmax.f32 %v4702, %v4750
      %v4799 = vmax.f32 %v4703, %v4749
      %v4800 = vmax.f32 %v4704, %v4748
      %v4801 = vmax.f32 %v4705, %v4747
      %v4802 = vmax.f32 %v4706, %v4746
      %v4803 = vmax.f32 %v4707, %v4745
      %v4804 = vmax.f32 %v4708, %v4744
      %v4805 = vmax.f32 %v4709, %v4774
      %v4806 = vrot.slane %v4679, 2
      %v4807 = vrot.slane %v4680, 2
      %v4808 = vrot.slane %v4681, 2
      %v4809 = vrot.slane %v4682, 2
      %v4810 = vrot.slane %v4683, 2
      %v4811 = vrot.slane %v4684, 2
      %v4812 = vrot.slane %v4685, 2
      %v4813 = vrot.slane %v4686, 2
      %v4814 = vrot.slane %v4687, 2
      %v4815 = vrot.slane %v4688, 2
      %v4816 = vrot.slane %v4689, 2
      %v4817 = vrot.slane %v4690, 2
      %v4818 = vrot.slane %v4691, 2
      %v4819 = vrot.slane %v4692, 2
      %v4820 = vrot.slane %v4693, 2
      %v4821 = vrot.slane %v4694, 2
      %v4822 = vrot.slane %v4695, 2
      %v4823 = vrot.slane %v4696, 2
      %v4824 = vrot.slane %v4697, 2
      %v4825 = vrot.slane %v4698, 2
      %v4826 = vrot.slane %v4699, 2
      %v4827 = vrot.slane %v4700, 2
      %v4828 = vrot.slane %v4701, 2
      %v4829 = vrot.slane %v4702, 2
      %v4830 = vrot.slane %v4703, 2
      %v4831 = vrot.slane %v4704, 2
      %v4832 = vrot.slane %v4705, 2
      %v4833 = vrot.slane %v4706, 2
      %v4834 = vrot.slane %v4707, 2
      %v4835 = vrot.slane %v4708, 2
      %v4836 = vrot.slane %v4709, 2
      %vm4837 = vcmp.lt.s32.totalorder %v4742, 6
      %v4838 = vsel %vm4837, %v4835, %v4836
      %v4839 = vsel %vm4837, %v4834, %v4835
      %v4840 = vsel %vm4837, %v4833, %v4834
      %v4841 = vsel %vm4837, %v4832, %v4833
      %v4842 = vsel %vm4837, %v4831, %v4832
      %v4843 = vsel %vm4837, %v4830, %v4831
      %v4844 = vsel %vm4837, %v4829, %v4830
      %v4845 = vsel %vm4837, %v4828, %v4829
      %v4846 = vsel %vm4837, %v4827, %v4828
      %v4847 = vsel %vm4837, %v4826, %v4827
      %v4848 = vsel %vm4837, %v4825, %v4826
      %v4849 = vsel %vm4837, %v4824, %v4825
      %v4850 = vsel %vm4837, %v4823, %v4824
      %v4851 = vsel %vm4837, %v4822, %v4823
      %v4852 = vsel %vm4837, %v4821, %v4822
      %v4853 = vsel %vm4837, %v4820, %v4821
      %v4854 = vsel %vm4837, %v4819, %v4820
      %v4855 = vsel %vm4837, %v4818, %v4819
      %v4856 = vsel %vm4837, %v4817, %v4818
      %v4857 = vsel %vm4837, %v4816, %v4817
      %v4858 = vsel %vm4837, %v4815, %v4816
      %v4859 = vsel %vm4837, %v4814, %v4815
      %v4860 = vsel %vm4837, %v4813, %v4814
      %v4861 = vsel %vm4837, %v4812, %v4813
      %v4862 = vsel %vm4837, %v4811, %v4812
      %v4863 = vsel %vm4837, %v4810, %v4811
      %v4864 = vsel %vm4837, %v4809, %v4810
      %v4865 = vsel %vm4837, %v4808, %v4809
      %v4866 = vsel %vm4837, %v4807, %v4808
      %v4867 = vsel %vm4837, %v4806, %v4807
      %v4868 = vsel %vm4837, %v4836, %v4806
      %v4869 = vmax.f32 %v4775, %v4867
      %v4870 = vmax.f32 %v4776, %v4866
      %v4871 = vmax.f32 %v4777, %v4865
      %v4872 = vmax.f32 %v4778, %v4864
      %v4873 = vmax.f32 %v4779, %v4863
      %v4874 = vmax.f32 %v4780, %v4862
      %v4875 = vmax.f32 %v4781, %v4861
      %v4876 = vmax.f32 %v4782, %v4860
      %v4877 = vmax.f32 %v4783, %v4859
      %v4878 = vmax.f32 %v4784, %v4858
      %v4879 = vmax.f32 %v4785, %v4857
      %v4880 = vmax.f32 %v4786, %v4856
      %v4881 = vmax.f32 %v4787, %v4855
      %v4882 = vmax.f32 %v4788, %v4854
      %v4883 = vmax.f32 %v4789, %v4853
      %v4884 = vmax.f32 %v4790, %v4852
      %v4885 = vmax.f32 %v4791, %v4851
      %v4886 = vmax.f32 %v4792, %v4850
      %v4887 = vmax.f32 %v4793, %v4849
      %v4888 = vmax.f32 %v4794, %v4848
      %v4889 = vmax.f32 %v4795, %v4847
      %v4890 = vmax.f32 %v4796, %v4846
      %v4891 = vmax.f32 %v4797, %v4845
      %v4892 = vmax.f32 %v4798, %v4844
      %v4893 = vmax.f32 %v4799, %v4843
      %v4894 = vmax.f32 %v4800, %v4842
      %v4895 = vmax.f32 %v4801, %v4841
      %v4896 = vmax.f32 %v4802, %v4840
      %v4897 = vmax.f32 %v4803, %v4839
      %v4898 = vmax.f32 %v4804, %v4838
      %v4899 = vmax.f32 %v4805, %v4868
      %v4900 = vrot.slane %v4679, 3
      %v4901 = vrot.slane %v4680, 3
      %v4902 = vrot.slane %v4681, 3
      %v4903 = vrot.slane %v4682, 3
      %v4904 = vrot.slane %v4683, 3
      %v4905 = vrot.slane %v4684, 3
      %v4906 = vrot.slane %v4685, 3
      %v4907 = vrot.slane %v4686, 3
      %v4908 = vrot.slane %v4687, 3
      %v4909 = vrot.slane %v4688, 3
      %v4910 = vrot.slane %v4689, 3
      %v4911 = vrot.slane %v4690, 3
      %v4912 = vrot.slane %v4691, 3
      %v4913 = vrot.slane %v4692, 3
      %v4914 = vrot.slane %v4693, 3
      %v4915 = vrot.slane %v4694, 3
      %v4916 = vrot.slane %v4695, 3
      %v4917 = vrot.slane %v4696, 3
      %v4918 = vrot.slane %v4697, 3
      %v4919 = vrot.slane %v4698, 3
      %v4920 = vrot.slane %v4699, 3
      %v4921 = vrot.slane %v4700, 3
      %v4922 = vrot.slane %v4701, 3
      %v4923 = vrot.slane %v4702, 3
      %v4924 = vrot.slane %v4703, 3
      %v4925 = vrot.slane %v4704, 3
      %v4926 = vrot.slane %v4705, 3
      %v4927 = vrot.slane %v4706, 3
      %v4928 = vrot.slane %v4707, 3
      %v4929 = vrot.slane %v4708, 3
      %v4930 = vrot.slane %v4709, 3
      %vm4931 = vcmp.lt.s32.totalorder %v4742, 5
      %v4932 = vsel %vm4931, %v4929, %v4930
      %v4933 = vsel %vm4931, %v4928, %v4929
      %v4934 = vsel %vm4931, %v4927, %v4928
      %v4935 = vsel %vm4931, %v4926, %v4927
      %v4936 = vsel %vm4931, %v4925, %v4926
      %v4937 = vsel %vm4931, %v4924, %v4925
      %v4938 = vsel %vm4931, %v4923, %v4924
      %v4939 = vsel %vm4931, %v4922, %v4923
      %v4940 = vsel %vm4931, %v4921, %v4922
      %v4941 = vsel %vm4931, %v4920, %v4921
      %v4942 = vsel %vm4931, %v4919, %v4920
      %v4943 = vsel %vm4931, %v4918, %v4919
      %v4944 = vsel %vm4931, %v4917, %v4918
      %v4945 = vsel %vm4931, %v4916, %v4917
      %v4946 = vsel %vm4931, %v4915, %v4916
      %v4947 = vsel %vm4931, %v4914, %v4915
      %v4948 = vsel %vm4931, %v4913, %v4914
      %v4949 = vsel %vm4931, %v4912, %v4913
      %v4950 = vsel %vm4931, %v4911, %v4912
      %v4951 = vsel %vm4931, %v4910, %v4911
      %v4952 = vsel %vm4931, %v4909, %v4910
      %v4953 = vsel %vm4931, %v4908, %v4909
      %v4954 = vsel %vm4931, %v4907, %v4908
      %v4955 = vsel %vm4931, %v4906, %v4907
      %v4956 = vsel %vm4931, %v4905, %v4906
      %v4957 = vsel %vm4931, %v4904, %v4905
      %v4958 = vsel %vm4931, %v4903, %v4904
      %v4959 = vsel %vm4931, %v4902, %v4903
      %v4960 = vsel %vm4931, %v4901, %v4902
      %v4961 = vsel %vm4931, %v4900, %v4901
      %v4962 = vsel %vm4931, %v4930, %v4900
      %v4963 = vmax.f32 %v4869, %v4961
      %v4964 = vmax.f32 %v4870, %v4960
      %v4965 = vmax.f32 %v4871, %v4959
      %v4966 = vmax.f32 %v4872, %v4958
      %v4967 = vmax.f32 %v4873, %v4957
      %v4968 = vmax.f32 %v4874, %v4956
      %v4969 = vmax.f32 %v4875, %v4955
      %v4970 = vmax.f32 %v4876, %v4954
      %v4971 = vmax.f32 %v4877, %v4953
      %v4972 = vmax.f32 %v4878, %v4952
      %v4973 = vmax.f32 %v4879, %v4951
      %v4974 = vmax.f32 %v4880, %v4950
      %v4975 = vmax.f32 %v4881, %v4949
      %v4976 = vmax.f32 %v4882, %v4948
      %v4977 = vmax.f32 %v4883, %v4947
      %v4978 = vmax.f32 %v4884, %v4946
      %v4979 = vmax.f32 %v4885, %v4945
      %v4980 = vmax.f32 %v4886, %v4944
      %v4981 = vmax.f32 %v4887, %v4943
      %v4982 = vmax.f32 %v4888, %v4942
      %v4983 = vmax.f32 %v4889, %v4941
      %v4984 = vmax.f32 %v4890, %v4940
      %v4985 = vmax.f32 %v4891, %v4939
      %v4986 = vmax.f32 %v4892, %v4938
      %v4987 = vmax.f32 %v4893, %v4937
      %v4988 = vmax.f32 %v4894, %v4936
      %v4989 = vmax.f32 %v4895, %v4935
      %v4990 = vmax.f32 %v4896, %v4934
      %v4991 = vmax.f32 %v4897, %v4933
      %v4992 = vmax.f32 %v4898, %v4932
      %v4993 = vmax.f32 %v4899, %v4962
      %4994 = vst.msk [vmem:[%s4583] sm:$0xff] %vm4155, %v4963
      %4995 = vst.msk [vmem:[%s4583 + $0x8] sm:$0xff] %vm4155, %v4964
      %4996 = vst.msk [vmem:[%s4583 + $0x10] sm:$0xff] %vm4155, %v4965
      %4997 = vst.msk [vmem:[%s4583 + $0x18] sm:$0xff] %vm4155, %v4966
      %4998 = vst.msk [vmem:[%s4583 + $0x20] sm:$0xff] %vm4155, %v4967
      %4999 = vst.msk [vmem:[%s4583 + $0x28] sm:$0xff] %vm4155, %v4968
      %5000 = vst.msk [vmem:[%s4583 + $0x30] sm:$0xff] %vm4155, %v4969
      %5001 = vst.msk [vmem:[%s4583 + $0x38] sm:$0xff] %vm4155, %v4970
      %5002 = vst.msk [vmem:[%s4583 + $0x40] sm:$0xff] %vm4155, %v4971
      %5003 = vst.msk [vmem:[%s4583 + $0x48] sm:$0xff] %vm4155, %v4972
      %5004 = vst.msk [vmem:[%s4583 + $0x50] sm:$0xff] %vm4155, %v4973
      %5005 = vst.msk [vmem:[%s4583 + $0x58] sm:$0xff] %vm4155, %v4974
      %5006 = vst.msk [vmem:[%s4583 + $0x60] sm:$0xff] %vm4155, %v4975
      %5007 = vst.msk [vmem:[%s4583 + $0x68] sm:$0xff] %vm4155, %v4976
      %5008 = vst.msk [vmem:[%s4583 + $0x70] sm:$0xff] %vm4155, %v4977
      %5009 = vst.msk [vmem:[%s4583 + $0x78] sm:$0xff] %vm4155, %v4978
      %5010 = vst.msk [vmem:[%s4583 + $0x80] sm:$0xff] %vm4155, %v4979
      %5011 = vst.msk [vmem:[%s4583 + $0x88] sm:$0xff] %vm4155, %v4980
      %5012 = vst.msk [vmem:[%s4583 + $0x90] sm:$0xff] %vm4155, %v4981
      %5013 = vst.msk [vmem:[%s4583 + $0x98] sm:$0xff] %vm4155, %v4982
      %5014 = vst.msk [vmem:[%s4583 + $0xa0] sm:$0xff] %vm4155, %v4983
      %5015 = vst.msk [vmem:[%s4583 + $0xa8] sm:$0xff] %vm4155, %v4984
      %5016 = vst.msk [vmem:[%s4583 + $0xb0] sm:$0xff] %vm4155, %v4985
      %5017 = vst.msk [vmem:[%s4583 + $0xb8] sm:$0xff] %vm4155, %v4986
      %5018 = vst.msk [vmem:[%s4583 + $0xc0] sm:$0xff] %vm4155, %v4987
      %5019 = vst.msk [vmem:[%s4583 + $0xc8] sm:$0xff] %vm4155, %v4988
      %5020 = vst.msk [vmem:[%s4583 + $0xd0] sm:$0xff] %vm4155, %v4989
      %5021 = vst.msk [vmem:[%s4583 + $0xd8] sm:$0xff] %vm4155, %v4990
      %5022 = vst.msk [vmem:[%s4583 + $0xe0] sm:$0xff] %vm4155, %v4991
      %5023 = vst.msk [vmem:[%s4583 + $0xe8] sm:$0xff] %vm4155, %v4992
      %5024 = vst.msk [vmem:[%s4583 + $0xf0] sm:$0xff] %vm4155, %v4993
    $region48: #{m5_forward.1} parent=1 // loop_footer
      %s4581 = sadd.s32 1, %s4577
    $region49: #{m5_forward.1} parent=1 // loop_footer_branch
      %4576 = sbr.rel target = $region45
    $region50: #{m5_forward.1} parent=1 // loop_exit
      _
    %v5025 = vld [vmem:[#allocation3] ss:$4 sm:$0xff]
    %s5026 = scalar_lea.vmem [#allocation3], 32
    %v5027 = vld [vmem:[%s5026] ss:$4 sm:$0xff]
    %s5028 = scalar_lea.vmem [#allocation3], 64
    %v5029 = vld [vmem:[%s5028] ss:$4 sm:$0xff]
    %s5030 = scalar_lea.vmem [#allocation3], 96
    %v5031 = vld [vmem:[%s5030] ss:$4 sm:$0xff]
    %s5032 = scalar_lea.vmem [#allocation3], 128
    %v5033 = vld [vmem:[%s5032] ss:$4 sm:$0xff]
    %s5034 = scalar_lea.vmem [#allocation3], 160
    %v5035 = vld [vmem:[%s5034] ss:$4 sm:$0xff]
    %s5036 = scalar_lea.vmem [#allocation3], 192
    %v5037 = vld [vmem:[%s5036] ss:$4 sm:$0xff]
    %s5038 = scalar_lea.vmem [#allocation3], 224
    %v5039 = vld [vmem:[%s5038] ss:$4 sm:$0xff]
    %s5040 = scalar_lea.vmem [#allocation3], 256
    %v5041 = vld [vmem:[%s5040] ss:$4 sm:$0xff]
    %s5042 = scalar_lea.vmem [#allocation3], 288
    %v5043 = vld [vmem:[%s5042] ss:$4 sm:$0xff]
    %s5044 = scalar_lea.vmem [#allocation3], 320
    %v5045 = vld [vmem:[%s5044] ss:$4 sm:$0xff]
    %s5046 = scalar_lea.vmem [#allocation3], 352
    %v5047 = vld [vmem:[%s5046] ss:$4 sm:$0xff]
    %s5048 = scalar_lea.vmem [#allocation3], 384
    %v5049 = vld [vmem:[%s5048] ss:$4 sm:$0xff]
    %s5050 = scalar_lea.vmem [#allocation3], 416
    %v5051 = vld [vmem:[%s5050] ss:$4 sm:$0xff]
    %s5052 = scalar_lea.vmem [#allocation3], 448
    %v5053 = vld [vmem:[%s5052] ss:$4 sm:$0xff]
    %s5054 = scalar_lea.vmem [#allocation3], 480
    %v5055 = vld [vmem:[%s5054] ss:$4 sm:$0xf]
    %5056 = vst.msk [vmem:[#allocation4] sm:$0xff] %vm4155, %v5025
    %5057 = vst.msk [vmem:[#allocation4 + $0x8] sm:$0xff] %vm4155, %v5027
    %5058 = vst.msk [vmem:[#allocation4 + $0x10] sm:$0xff] %vm4155, %v5029
    %5059 = vst.msk [vmem:[#allocation4 + $0x18] sm:$0xff] %vm4155, %v5031
    %5060 = vst.msk [vmem:[#allocation4 + $0x20] sm:$0xff] %vm4155, %v5033
    %5061 = vst.msk [vmem:[#allocation4 + $0x28] sm:$0xff] %vm4155, %v5035
    %5062 = vst.msk [vmem:[#allocation4 + $0x30] sm:$0xff] %vm4155, %v5037
    %5063 = vst.msk [vmem:[#allocation4 + $0x38] sm:$0xff] %vm4155, %v5039
    %5064 = vst.msk [vmem:[#allocation4 + $0x40] sm:$0xff] %vm4155, %v5041
    %5065 = vst.msk [vmem:[#allocation4 + $0x48] sm:$0xff] %vm4155, %v5043
    %5066 = vst.msk [vmem:[#allocation4 + $0x50] sm:$0xff] %vm4155, %v5045
    %5067 = vst.msk [vmem:[#allocation4 + $0x58] sm:$0xff] %vm4155, %v5047
    %5068 = vst.msk [vmem:[#allocation4 + $0x60] sm:$0xff] %vm4155, %v5049
    %5069 = vst.msk [vmem:[#allocation4 + $0x68] sm:$0xff] %vm4155, %v5051
    %5070 = vst.msk [vmem:[#allocation4 + $0x70] sm:$0xff] %vm4155, %v5053
    %vm5071 = vcmask 257024
    %5072 = vst.msk [vmem:[#allocation4 + $0x78] sm:$0xf] %vm5071, %v5055
    %s5073 = scalar_lea.vmem [#allocation3], 496
    %v5074 = vld [vmem:[%s5073] ss:$4 sm:$0xff]
    %s5075 = scalar_lea.vmem [#allocation3], 528
    %v5076 = vld [vmem:[%s5075] ss:$4 sm:$0xff]
    %s5077 = scalar_lea.vmem [#allocation3], 560
    %v5078 = vld [vmem:[%s5077] ss:$4 sm:$0xff]
    %s5079 = scalar_lea.vmem [#allocation3], 592
    %v5080 = vld [vmem:[%s5079] ss:$4 sm:$0xff]
    %s5081 = scalar_lea.vmem [#allocation3], 624
    %v5082 = vld [vmem:[%s5081] ss:$4 sm:$0xff]
    %s5083 = scalar_lea.vmem [#allocation3], 656
    %v5084 = vld [vmem:[%s5083] ss:$4 sm:$0xff]
    %s5085 = scalar_lea.vmem [#allocation3], 688
    %v5086 = vld [vmem:[%s5085] ss:$4 sm:$0xff]
    %s5087 = scalar_lea.vmem [#allocation3], 720
    %v5088 = vld [vmem:[%s5087] ss:$4 sm:$0xff]
    %s5089 = scalar_lea.vmem [#allocation3], 752
    %v5090 = vld [vmem:[%s5089] ss:$4 sm:$0xff]
    %s5091 = scalar_lea.vmem [#allocation3], 784
    %v5092 = vld [vmem:[%s5091] ss:$4 sm:$0xff]
    %s5093 = scalar_lea.vmem [#allocation3], 816
    %v5094 = vld [vmem:[%s5093] ss:$4 sm:$0xff]
    %s5095 = scalar_lea.vmem [#allocation3], 848
    %v5096 = vld [vmem:[%s5095] ss:$4 sm:$0xff]
    %s5097 = scalar_lea.vmem [#allocation3], 880
    %v5098 = vld [vmem:[%s5097] ss:$4 sm:$0xff]
    %s5099 = scalar_lea.vmem [#allocation3], 912
    %v5100 = vld [vmem:[%s5099] ss:$4 sm:$0xff]
    %s5101 = scalar_lea.vmem [#allocation3], 944
    %v5102 = vld [vmem:[%s5101] ss:$4 sm:$0xff]
    %s5103 = scalar_lea.vmem [#allocation3], 976
    %v5104 = vld [vmem:[%s5103] ss:$4 sm:$0xf]
    %s5105 = scalar_lea.vmem [#allocation4], 128
    %5106 = vst.msk [vmem:[%s5105] sm:$0xff] %vm4155, %v5074
    %5107 = vst.msk [vmem:[%s5105 + $0x8] sm:$0xff] %vm4155, %v5076
    %5108 = vst.msk [vmem:[%s5105 + $0x10] sm:$0xff] %vm4155, %v5078
    %5109 = vst.msk [vmem:[%s5105 + $0x18] sm:$0xff] %vm4155, %v5080
    %5110 = vst.msk [vmem:[%s5105 + $0x20] sm:$0xff] %vm4155, %v5082
    %5111 = vst.msk [vmem:[%s5105 + $0x28] sm:$0xff] %vm4155, %v5084
    %5112 = vst.msk [vmem:[%s5105 + $0x30] sm:$0xff] %vm4155, %v5086
    %5113 = vst.msk [vmem:[%s5105 + $0x38] sm:$0xff] %vm4155, %v5088
    %5114 = vst.msk [vmem:[%s5105 + $0x40] sm:$0xff] %vm4155, %v5090
    %5115 = vst.msk [vmem:[%s5105 + $0x48] sm:$0xff] %vm4155, %v5092
    %5116 = vst.msk [vmem:[%s5105 + $0x50] sm:$0xff] %vm4155, %v5094
    %5117 = vst.msk [vmem:[%s5105 + $0x58] sm:$0xff] %vm4155, %v5096
    %5118 = vst.msk [vmem:[%s5105 + $0x60] sm:$0xff] %vm4155, %v5098
    %5119 = vst.msk [vmem:[%s5105 + $0x68] sm:$0xff] %vm4155, %v5100
    %5120 = vst.msk [vmem:[%s5105 + $0x70] sm:$0xff] %vm4155, %v5102
    %5121 = vst.msk [vmem:[%s5105 + $0x78] sm:$0xf] %vm5071, %v5104
    %v5122 = vld [vmem:[%s6 + $0x3] sm:$0x1]
    %v5123 = vld [vmem:[%s6 + $0x4] sm:$0x1]
    %v5124 = vld [vmem:[%s6 + $0x5] sm:$0x1]
    %v5125 = vld [vmem:[#allocation4] sm:$0xff]
    %v5126 = vld [vmem:[#allocation4 + $0x8] sm:$0xff]
    %v5127 = vld [vmem:[#allocation4 + $0x10] sm:$0xff]
    %v5128 = vld [vmem:[#allocation4 + $0x18] sm:$0xff]
    %v5129 = vld [vmem:[#allocation4 + $0x20] sm:$0xff]
    %v5130 = vld [vmem:[#allocation4 + $0x28] sm:$0xff]
    %v5131 = vld [vmem:[#allocation4 + $0x30] sm:$0xff]
    %v5132 = vld [vmem:[#allocation4 + $0x38] sm:$0xff]
    %v5133 = vld [vmem:[#allocation4 + $0x40] sm:$0xff]
    %v5134 = vld [vmem:[#allocation4 + $0x48] sm:$0xff]
    %v5135 = vld [vmem:[#allocation4 + $0x50] sm:$0xff]
    %v5136 = vld [vmem:[#allocation4 + $0x58] sm:$0xff]
    %v5137 = vld [vmem:[#allocation4 + $0x60] sm:$0xff]
    %v5138 = vld [vmem:[#allocation4 + $0x68] sm:$0xff]
    %v5139 = vld [vmem:[#allocation4 + $0x70] sm:$0xff]
    %v5140 = vld [vmem:[#allocation4 + $0x78] sm:$0x3]
    %5141 = vst.msk [vmem:[#allocation5] sm:$0xff] %vm4155, %v5125
    %5142 = vst.msk [vmem:[#allocation5 + $0x8] sm:$0xff] %vm4155, %v5126
    %5143 = vst.msk [vmem:[#allocation5 + $0x10] sm:$0xff] %vm4155, %v5127
    %5144 = vst.msk [vmem:[#allocation5 + $0x18] sm:$0xff] %vm4155, %v5128
    %5145 = vst.msk [vmem:[#allocation5 + $0x20] sm:$0xff] %vm4155, %v5129
    %5146 = vst.msk [vmem:[#allocation5 + $0x28] sm:$0xff] %vm4155, %v5130
    %5147 = vst.msk [vmem:[#allocation5 + $0x30] sm:$0xff] %vm4155, %v5131
    %5148 = vst.msk [vmem:[#allocation5 + $0x38] sm:$0xff] %vm4155, %v5132
    %5149 = vst.msk [vmem:[#allocation5 + $0x40] sm:$0xff] %vm4155, %v5133
    %5150 = vst.msk [vmem:[#allocation5 + $0x48] sm:$0xff] %vm4155, %v5134
    %5151 = vst.msk [vmem:[#allocation5 + $0x50] sm:$0xff] %vm4155, %v5135
    %5152 = vst.msk [vmem:[#allocation5 + $0x58] sm:$0xff] %vm4155, %v5136
    %5153 = vst.msk [vmem:[#allocation5 + $0x60] sm:$0xff] %vm4155, %v5137
    %5154 = vst.msk [vmem:[#allocation5 + $0x68] sm:$0xff] %vm4155, %v5138
    %5155 = vst.msk [vmem:[#allocation5 + $0x70] sm:$0xff] %vm4155, %v5139
    %vm5156 = vcmask 254976
    %5157 = vst.msk [vmem:[#allocation5 + $0x78] sm:$0x3] %vm5156, %v5140
    %v5158 = vld [vmem:[#allocation4 + $0x1] sm:$0xff]
    %v5159 = vld [vmem:[#allocation4 + $0x9] sm:$0xff]
    %v5160 = vld [vmem:[#allocation4 + $0x11] sm:$0xff]
    %v5161 = vld [vmem:[#allocation4 + $0x19] sm:$0xff]
    %v5162 = vld [vmem:[#allocation4 + $0x21] sm:$0xff]
    %v5163 = vld [vmem:[#allocation4 + $0x29] sm:$0xff]
    %v5164 = vld [vmem:[#allocation4 + $0x31] sm:$0xff]
    %v5165 = vld [vmem:[#allocation4 + $0x39] sm:$0xff]
    %v5166 = vld [vmem:[#allocation4 + $0x41] sm:$0xff]
    %v5167 = vld [vmem:[#allocation4 + $0x49] sm:$0xff]
    %v5168 = vld [vmem:[#allocation4 + $0x51] sm:$0xff]
    %v5169 = vld [vmem:[#allocation4 + $0x59] sm:$0xff]
    %v5170 = vld [vmem:[#allocation4 + $0x61] sm:$0xff]
    %v5171 = vld [vmem:[#allocation4 + $0x69] sm:$0xff]
    %v5172 = vld [vmem:[#allocation4 + $0x71] sm:$0xff]
    %v5173 = vld [vmem:[#allocation4 + $0x79] sm:$0x3]
    %5190 = vrot.lane.b32.xlu0 %v5158, 32
    %v5191 = vpop.permute.xlu0 %5190
    %5192 = vrot.lane.b32.xlu0 %v5159, 32
    %v5193 = vpop.permute.xlu0 %5192
    %5194 = vrot.lane.b32.xlu0 %v5160, 32
    %v5195 = vpop.permute.xlu0 %5194
    %5196 = vrot.lane.b32.xlu0 %v5161, 32
    %v5197 = vpop.permute.xlu0 %5196
    %5198 = vrot.lane.b32.xlu0 %v5162, 32
    %v5199 = vpop.permute.xlu0 %5198
    %5200 = vrot.lane.b32.xlu0 %v5163, 32
    %v5201 = vpop.permute.xlu0 %5200
    %5202 = vrot.lane.b32.xlu0 %v5164, 32
    %v5203 = vpop.permute.xlu0 %5202
    %5204 = vrot.lane.b32.xlu0 %v5165, 32
    %v5205 = vpop.permute.xlu0 %5204
    %5206 = vrot.lane.b32.xlu0 %v5166, 32
    %v5207 = vpop.permute.xlu0 %5206
    %5208 = vrot.lane.b32.xlu0 %v5167, 32
    %v5209 = vpop.permute.xlu0 %5208
    %5210 = vrot.lane.b32.xlu0 %v5168, 32
    %v5211 = vpop.permute.xlu0 %5210
    %5212 = vrot.lane.b32.xlu0 %v5169, 32
    %v5213 = vpop.permute.xlu0 %5212
    %5214 = vrot.lane.b32.xlu0 %v5170, 32
    %v5215 = vpop.permute.xlu0 %5214
    %5216 = vrot.lane.b32.xlu0 %v5171, 32
    %v5217 = vpop.permute.xlu0 %5216
    %5218 = vrot.lane.b32.xlu0 %v5172, 32
    %v5219 = vpop.permute.xlu0 %5218
    %5220 = vrot.lane.b32.xlu0 %v5173, 32
    %v5221 = vpop.permute.xlu0 %5220
    %vm5238 = vcmask 523520
    %5239 = vst.msk [vmem:[#allocation5] sm:$0xff] %vm5238, %v5191
    %5240 = vst.msk [vmem:[#allocation5 + $0x8] sm:$0xff] %vm5238, %v5193
    %5241 = vst.msk [vmem:[#allocation5 + $0x10] sm:$0xff] %vm5238, %v5195
    %5242 = vst.msk [vmem:[#allocation5 + $0x18] sm:$0xff] %vm5238, %v5197
    %5243 = vst.msk [vmem:[#allocation5 + $0x20] sm:$0xff] %vm5238, %v5199
    %5244 = vst.msk [vmem:[#allocation5 + $0x28] sm:$0xff] %vm5238, %v5201
    %5245 = vst.msk [vmem:[#allocation5 + $0x30] sm:$0xff] %vm5238, %v5203
    %5246 = vst.msk [vmem:[#allocation5 + $0x38] sm:$0xff] %vm5238, %v5205
    %5247 = vst.msk [vmem:[#allocation5 + $0x40] sm:$0xff] %vm5238, %v5207
    %5248 = vst.msk [vmem:[#allocation5 + $0x48] sm:$0xff] %vm5238, %v5209
    %5249 = vst.msk [vmem:[#allocation5 + $0x50] sm:$0xff] %vm5238, %v5211
    %5250 = vst.msk [vmem:[#allocation5 + $0x58] sm:$0xff] %vm5238, %v5213
    %5251 = vst.msk [vmem:[#allocation5 + $0x60] sm:$0xff] %vm5238, %v5215
    %5252 = vst.msk [vmem:[#allocation5 + $0x68] sm:$0xff] %vm5238, %v5217
    %5253 = vst.msk [vmem:[#allocation5 + $0x70] sm:$0xff] %vm5238, %v5219
    %vm5254 = vcmask 517376
    %5255 = vst.msk [vmem:[#allocation5 + $0x78] sm:$0x3] %vm5254, %v5221
    %v5256 = vld [vmem:[#allocation4 + $0x2] sm:$0xff]
    %v5257 = vld [vmem:[#allocation4 + $0xa] sm:$0xff]
    %v5258 = vld [vmem:[#allocation4 + $0x12] sm:$0xff]
    %v5259 = vld [vmem:[#allocation4 + $0x1a] sm:$0xff]
    %v5260 = vld [vmem:[#allocation4 + $0x22] sm:$0xff]
    %v5261 = vld [vmem:[#allocation4 + $0x2a] sm:$0xff]
    %v5262 = vld [vmem:[#allocation4 + $0x32] sm:$0xff]
    %v5263 = vld [vmem:[#allocation4 + $0x3a] sm:$0xff]
    %v5264 = vld [vmem:[#allocation4 + $0x42] sm:$0xff]
    %v5265 = vld [vmem:[#allocation4 + $0x4a] sm:$0xff]
    %v5266 = vld [vmem:[#allocation4 + $0x52] sm:$0xff]
    %v5267 = vld [vmem:[#allocation4 + $0x5a] sm:$0xff]
    %v5268 = vld [vmem:[#allocation4 + $0x62] sm:$0xff]
    %v5269 = vld [vmem:[#allocation4 + $0x6a] sm:$0xff]
    %v5270 = vld [vmem:[#allocation4 + $0x72] sm:$0xff]
    %v5271 = vld [vmem:[#allocation4 + $0x7a] sm:$0x3]
    %5288 = vrot.lane.b32.xlu0 %v5256, 64
    %v5289 = vpop.permute.xlu0 %5288
    %5290 = vrot.lane.b32.xlu0 %v5257, 64
    %v5291 = vpop.permute.xlu0 %5290
    %5292 = vrot.lane.b32.xlu0 %v5258, 64
    %v5293 = vpop.permute.xlu0 %5292
    %5294 = vrot.lane.b32.xlu0 %v5259, 64
    %v5295 = vpop.permute.xlu0 %5294
    %5296 = vrot.lane.b32.xlu0 %v5260, 64
    %v5297 = vpop.permute.xlu0 %5296
    %5298 = vrot.lane.b32.xlu0 %v5261, 64
    %v5299 = vpop.permute.xlu0 %5298
    %5300 = vrot.lane.b32.xlu0 %v5262, 64
    %v5301 = vpop.permute.xlu0 %5300
    %5302 = vrot.lane.b32.xlu0 %v5263, 64
    %v5303 = vpop.permute.xlu0 %5302
    %5304 = vrot.lane.b32.xlu0 %v5264, 64
    %v5305 = vpop.permute.xlu0 %5304
    %5306 = vrot.lane.b32.xlu0 %v5265, 64
    %v5307 = vpop.permute.xlu0 %5306
    %5308 = vrot.lane.b32.xlu0 %v5266, 64
    %v5309 = vpop.permute.xlu0 %5308
    %5310 = vrot.lane.b32.xlu0 %v5267, 64
    %v5311 = vpop.permute.xlu0 %5310
    %5312 = vrot.lane.b32.xlu0 %v5268, 64
    %v5313 = vpop.permute.xlu0 %5312
    %5314 = vrot.lane.b32.xlu0 %v5269, 64
    %v5315 = vpop.permute.xlu0 %5314
    %5316 = vrot.lane.b32.xlu0 %v5270, 64
    %v5317 = vpop.permute.xlu0 %5316
    %5318 = vrot.lane.b32.xlu0 %v5271, 64
    %v5319 = vpop.permute.xlu0 %5318
    %vm5336 = vcmask 785920
    %5337 = vst.msk [vmem:[#allocation5] sm:$0xff] %vm5336, %v5289
    %5338 = vst.msk [vmem:[#allocation5 + $0x8] sm:$0xff] %vm5336, %v5291
    %5339 = vst.msk [vmem:[#allocation5 + $0x10] sm:$0xff] %vm5336, %v5293
    %5340 = vst.msk [vmem:[#allocation5 + $0x18] sm:$0xff] %vm5336, %v5295
    %5341 = vst.msk [vmem:[#allocation5 + $0x20] sm:$0xff] %vm5336, %v5297
    %5342 = vst.msk [vmem:[#allocation5 + $0x28] sm:$0xff] %vm5336, %v5299
    %5343 = vst.msk [vmem:[#allocation5 + $0x30] sm:$0xff] %vm5336, %v5301
    %5344 = vst.msk [vmem:[#allocation5 + $0x38] sm:$0xff] %vm5336, %v5303
    %5345 = vst.msk [vmem:[#allocation5 + $0x40] sm:$0xff] %vm5336, %v5305
    %5346 = vst.msk [vmem:[#allocation5 + $0x48] sm:$0xff] %vm5336, %v5307
    %5347 = vst.msk [vmem:[#allocation5 + $0x50] sm:$0xff] %vm5336, %v5309
    %5348 = vst.msk [vmem:[#allocation5 + $0x58] sm:$0xff] %vm5336, %v5311
    %5349 = vst.msk [vmem:[#allocation5 + $0x60] sm:$0xff] %vm5336, %v5313
    %5350 = vst.msk [vmem:[#allocation5 + $0x68] sm:$0xff] %vm5336, %v5315
    %5351 = vst.msk [vmem:[#allocation5 + $0x70] sm:$0xff] %vm5336, %v5317
    %vm5352 = vcmask 779776
    %5353 = vst.msk [vmem:[#allocation5 + $0x78] sm:$0x3] %vm5352, %v5319
    %v5354 = vld [vmem:[%s5105] sm:$0xff]
    %v5355 = vld [vmem:[%s5105 + $0x8] sm:$0xff]
    %v5356 = vld [vmem:[%s5105 + $0x10] sm:$0xff]
    %v5357 = vld [vmem:[%s5105 + $0x18] sm:$0xff]
    %v5358 = vld [vmem:[%s5105 + $0x20] sm:$0xff]
    %v5359 = vld [vmem:[%s5105 + $0x28] sm:$0xff]
    %v5360 = vld [vmem:[%s5105 + $0x30] sm:$0xff]
    %v5361 = vld [vmem:[%s5105 + $0x38] sm:$0xff]
    %v5362 = vld [vmem:[%s5105 + $0x40] sm:$0xff]
    %v5363 = vld [vmem:[%s5105 + $0x48] sm:$0xff]
    %v5364 = vld [vmem:[%s5105 + $0x50] sm:$0xff]
    %v5365 = vld [vmem:[%s5105 + $0x58] sm:$0xff]
    %v5366 = vld [vmem:[%s5105 + $0x60] sm:$0xff]
    %v5367 = vld [vmem:[%s5105 + $0x68] sm:$0xff]
    %v5368 = vld [vmem:[%s5105 + $0x70] sm:$0xff]
    %v5369 = vld [vmem:[%s5105 + $0x78] sm:$0x3]
    %5370 = vst.msk [vmem:[#allocation5 + $0x7a] sm:$0xff] %vm4155, %v5354
    %5371 = vst.msk [vmem:[#allocation5 + $0x82] sm:$0xff] %vm4155, %v5355
    %5372 = vst.msk [vmem:[#allocation5 + $0x8a] sm:$0xff] %vm4155, %v5356
    %5373 = vst.msk [vmem:[#allocation5 + $0x92] sm:$0xff] %vm4155, %v5357
    %5374 = vst.msk [vmem:[#allocation5 + $0x9a] sm:$0xff] %vm4155, %v5358
    %5375 = vst.msk [vmem:[#allocation5 + $0xa2] sm:$0xff] %vm4155, %v5359
    %5376 = vst.msk [vmem:[#allocation5 + $0xaa] sm:$0xff] %vm4155, %v5360
    %5377 = vst.msk [vmem:[#allocation5 + $0xb2] sm:$0xff] %vm4155, %v5361
    %5378 = vst.msk [vmem:[#allocation5 + $0xba] sm:$0xff] %vm4155, %v5362
    %5379 = vst.msk [vmem:[#allocation5 + $0xc2] sm:$0xff] %vm4155, %v5363
    %5380 = vst.msk [vmem:[#allocation5 + $0xca] sm:$0xff] %vm4155, %v5364
    %5381 = vst.msk [vmem:[#allocation5 + $0xd2] sm:$0xff] %vm4155, %v5365
    %5382 = vst.msk [vmem:[#allocation5 + $0xda] sm:$0xff] %vm4155, %v5366
    %5383 = vst.msk [vmem:[#allocation5 + $0xe2] sm:$0xff] %vm4155, %v5367
    %5384 = vst.msk [vmem:[#allocation5 + $0xea] sm:$0xff] %vm4155, %v5368
    %5385 = vst.msk [vmem:[#allocation5 + $0xf2] sm:$0x3] %vm5156, %v5369
    %v5386 = vld [vmem:[%s5105 + $0x1] sm:$0xff]
    %v5387 = vld [vmem:[%s5105 + $0x9] sm:$0xff]
    %v5388 = vld [vmem:[%s5105 + $0x11] sm:$0xff]
    %v5389 = vld [vmem:[%s5105 + $0x19] sm:$0xff]
    %v5390 = vld [vmem:[%s5105 + $0x21] sm:$0xff]
    %v5391 = vld [vmem:[%s5105 + $0x29] sm:$0xff]
    %v5392 = vld [vmem:[%s5105 + $0x31] sm:$0xff]
    %v5393 = vld [vmem:[%s5105 + $0x39] sm:$0xff]
    %v5394 = vld [vmem:[%s5105 + $0x41] sm:$0xff]
    %v5395 = vld [vmem:[%s5105 + $0x49] sm:$0xff]
    %v5396 = vld [vmem:[%s5105 + $0x51] sm:$0xff]
    %v5397 = vld [vmem:[%s5105 + $0x59] sm:$0xff]
    %v5398 = vld [vmem:[%s5105 + $0x61] sm:$0xff]
    %v5399 = vld [vmem:[%s5105 + $0x69] sm:$0xff]
    %v5400 = vld [vmem:[%s5105 + $0x71] sm:$0xff]
    %v5401 = vld [vmem:[%s5105 + $0x79] sm:$0x3]
    %5418 = vrot.lane.b32.xlu0 %v5386, 32
    %v5419 = vpop.permute.xlu0 %5418
    %5420 = vrot.lane.b32.xlu0 %v5387, 32
    %v5421 = vpop.permute.xlu0 %5420
    %5422 = vrot.lane.b32.xlu0 %v5388, 32
    %v5423 = vpop.permute.xlu0 %5422
    %5424 = vrot.lane.b32.xlu0 %v5389, 32
    %v5425 = vpop.permute.xlu0 %5424
    %5426 = vrot.lane.b32.xlu0 %v5390, 32
    %v5427 = vpop.permute.xlu0 %5426
    %5428 = vrot.lane.b32.xlu0 %v5391, 32
    %v5429 = vpop.permute.xlu0 %5428
    %5430 = vrot.lane.b32.xlu0 %v5392, 32
    %v5431 = vpop.permute.xlu0 %5430
    %5432 = vrot.lane.b32.xlu0 %v5393, 32
    %v5433 = vpop.permute.xlu0 %5432
    %5434 = vrot.lane.b32.xlu0 %v5394, 32
    %v5435 = vpop.permute.xlu0 %5434
    %5436 = vrot.lane.b32.xlu0 %v5395, 32
    %v5437 = vpop.permute.xlu0 %5436
    %5438 = vrot.lane.b32.xlu0 %v5396, 32
    %v5439 = vpop.permute.xlu0 %5438
    %5440 = vrot.lane.b32.xlu0 %v5397, 32
    %v5441 = vpop.permute.xlu0 %5440
    %5442 = vrot.lane.b32.xlu0 %v5398, 32
    %v5443 = vpop.permute.xlu0 %5442
    %5444 = vrot.lane.b32.xlu0 %v5399, 32
    %v5445 = vpop.permute.xlu0 %5444
    %5446 = vrot.lane.b32.xlu0 %v5400, 32
    %v5447 = vpop.permute.xlu0 %5446
    %5448 = vrot.lane.b32.xlu0 %v5401, 32
    %v5449 = vpop.permute.xlu0 %5448
    %5466 = vst.msk [vmem:[#allocation5 + $0x7a] sm:$0xff] %vm5238, %v5419
    %5467 = vst.msk [vmem:[#allocation5 + $0x82] sm:$0xff] %vm5238, %v5421
    %5468 = vst.msk [vmem:[#allocation5 + $0x8a] sm:$0xff] %vm5238, %v5423
    %5469 = vst.msk [vmem:[#allocation5 + $0x92] sm:$0xff] %vm5238, %v5425
    %5470 = vst.msk [vmem:[#allocation5 + $0x9a] sm:$0xff] %vm5238, %v5427
    %5471 = vst.msk [vmem:[#allocation5 + $0xa2] sm:$0xff] %vm5238, %v5429
    %5472 = vst.msk [vmem:[#allocation5 + $0xaa] sm:$0xff] %vm5238, %v5431
    %5473 = vst.msk [vmem:[#allocation5 + $0xb2] sm:$0xff] %vm5238, %v5433
    %5474 = vst.msk [vmem:[#allocation5 + $0xba] sm:$0xff] %vm5238, %v5435
    %5475 = vst.msk [vmem:[#allocation5 + $0xc2] sm:$0xff] %vm5238, %v5437
    %5476 = vst.msk [vmem:[#allocation5 + $0xca] sm:$0xff] %vm5238, %v5439
    %5477 = vst.msk [vmem:[#allocation5 + $0xd2] sm:$0xff] %vm5238, %v5441
    %5478 = vst.msk [vmem:[#allocation5 + $0xda] sm:$0xff] %vm5238, %v5443
    %5479 = vst.msk [vmem:[#allocation5 + $0xe2] sm:$0xff] %vm5238, %v5445
    %5480 = vst.msk [vmem:[#allocation5 + $0xea] sm:$0xff] %vm5238, %v5447
    %5481 = vst.msk [vmem:[#allocation5 + $0xf2] sm:$0x3] %vm5254, %v5449
    %v5482 = vld [vmem:[%s5105 + $0x2] sm:$0xff]
    %v5483 = vld [vmem:[%s5105 + $0xa] sm:$0xff]
    %v5484 = vld [vmem:[%s5105 + $0x12] sm:$0xff]
    %v5485 = vld [vmem:[%s5105 + $0x1a] sm:$0xff]
    %v5486 = vld [vmem:[%s5105 + $0x22] sm:$0xff]
    %v5487 = vld [vmem:[%s5105 + $0x2a] sm:$0xff]
    %v5488 = vld [vmem:[%s5105 + $0x32] sm:$0xff]
    %v5489 = vld [vmem:[%s5105 + $0x3a] sm:$0xff]
    %v5490 = vld [vmem:[%s5105 + $0x42] sm:$0xff]
    %v5491 = vld [vmem:[%s5105 + $0x4a] sm:$0xff]
    %v5492 = vld [vmem:[%s5105 + $0x52] sm:$0xff]
    %v5493 = vld [vmem:[%s5105 + $0x5a] sm:$0xff]
    %v5494 = vld [vmem:[%s5105 + $0x62] sm:$0xff]
    %v5495 = vld [vmem:[%s5105 + $0x6a] sm:$0xff]
    %v5496 = vld [vmem:[%s5105 + $0x72] sm:$0xff]
    %v5497 = vld [vmem:[%s5105 + $0x7a] sm:$0x3]
    %5514 = vrot.lane.b32.xlu0 %v5482, 64
    %v5515 = vpop.permute.xlu0 %5514
    %5516 = vrot.lane.b32.xlu0 %v5483, 64
    %v5517 = vpop.permute.xlu0 %5516
    %5518 = vrot.lane.b32.xlu0 %v5484, 64
    %v5519 = vpop.permute.xlu0 %5518
    %5520 = vrot.lane.b32.xlu0 %v5485, 64
    %v5521 = vpop.permute.xlu0 %5520
    %5522 = vrot.lane.b32.xlu0 %v5486, 64
    %v5523 = vpop.permute.xlu0 %5522
    %5524 = vrot.lane.b32.xlu0 %v5487, 64
    %v5525 = vpop.permute.xlu0 %5524
    %5526 = vrot.lane.b32.xlu0 %v5488, 64
    %v5527 = vpop.permute.xlu0 %5526
    %5528 = vrot.lane.b32.xlu0 %v5489, 64
    %v5529 = vpop.permute.xlu0 %5528
    %5530 = vrot.lane.b32.xlu0 %v5490, 64
    %v5531 = vpop.permute.xlu0 %5530
    %5532 = vrot.lane.b32.xlu0 %v5491, 64
    %v5533 = vpop.permute.xlu0 %5532
    %5534 = vrot.lane.b32.xlu0 %v5492, 64
    %v5535 = vpop.permute.xlu0 %5534
    %5536 = vrot.lane.b32.xlu0 %v5493, 64
    %v5537 = vpop.permute.xlu0 %5536
    %5538 = vrot.lane.b32.xlu0 %v5494, 64
    %v5539 = vpop.permute.xlu0 %5538
    %5540 = vrot.lane.b32.xlu0 %v5495, 64
    %v5541 = vpop.permute.xlu0 %5540
    %5542 = vrot.lane.b32.xlu0 %v5496, 64
    %v5543 = vpop.permute.xlu0 %5542
    %5544 = vrot.lane.b32.xlu0 %v5497, 64
    %v5545 = vpop.permute.xlu0 %5544
    %5562 = vst.msk [vmem:[#allocation5 + $0x7a] sm:$0xff] %vm5336, %v5515
    %5563 = vst.msk [vmem:[#allocation5 + $0x82] sm:$0xff] %vm5336, %v5517
    %5564 = vst.msk [vmem:[#allocation5 + $0x8a] sm:$0xff] %vm5336, %v5519
    %5565 = vst.msk [vmem:[#allocation5 + $0x92] sm:$0xff] %vm5336, %v5521
    %5566 = vst.msk [vmem:[#allocation5 + $0x9a] sm:$0xff] %vm5336, %v5523
    %5567 = vst.msk [vmem:[#allocation5 + $0xa2] sm:$0xff] %vm5336, %v5525
    %5568 = vst.msk [vmem:[#allocation5 + $0xaa] sm:$0xff] %vm5336, %v5527
    %5569 = vst.msk [vmem:[#allocation5 + $0xb2] sm:$0xff] %vm5336, %v5529
    %5570 = vst.msk [vmem:[#allocation5 + $0xba] sm:$0xff] %vm5336, %v5531
    %5571 = vst.msk [vmem:[#allocation5 + $0xc2] sm:$0xff] %vm5336, %v5533
    %5572 = vst.msk [vmem:[#allocation5 + $0xca] sm:$0xff] %vm5336, %v5535
    %5573 = vst.msk [vmem:[#allocation5 + $0xd2] sm:$0xff] %vm5336, %v5537
    %5574 = vst.msk [vmem:[#allocation5 + $0xda] sm:$0xff] %vm5336, %v5539
    %5575 = vst.msk [vmem:[#allocation5 + $0xe2] sm:$0xff] %vm5336, %v5541
    %5576 = vst.msk [vmem:[#allocation5 + $0xea] sm:$0xff] %vm5336, %v5543
    %5577 = vst.msk [vmem:[#allocation5 + $0xf2] sm:$0x3] %vm5352, %v5545
    %v5578 = vld [vmem:[#allocation5] sm:$0xff]
    %v5579 = vld [vmem:[#allocation5 + $0x8] sm:$0xff]
    %v5580 = vld [vmem:[#allocation5 + $0x10] sm:$0xff]
    %v5581 = vld [vmem:[#allocation5 + $0x18] sm:$0xff]
    %v5582 = vld [vmem:[#allocation5 + $0x20] sm:$0xff]
    %v5583 = vld [vmem:[#allocation5 + $0x28] sm:$0xff]
    %v5584 = vld [vmem:[#allocation5 + $0x30] sm:$0xff]
    %v5585 = vld [vmem:[#allocation5 + $0x38] sm:$0xff]
    %v5586 = vld [vmem:[#allocation5 + $0x40] sm:$0xff]
    %v5587 = vld [vmem:[#allocation5 + $0x48] sm:$0xff]
    %v5588 = vld [vmem:[#allocation5 + $0x50] sm:$0xff]
    %v5589 = vld [vmem:[#allocation5 + $0x58] sm:$0xff]
    %v5590 = vld [vmem:[#allocation5 + $0x60] sm:$0xff]
    %v5591 = vld [vmem:[#allocation5 + $0x68] sm:$0xff]
    %v5592 = vld [vmem:[#allocation5 + $0x70] sm:$0xff]
    %v5593 = vld [vmem:[#allocation5 + $0x78] sm:$0xff]
    %v5594 = vld [vmem:[#allocation5 + $0x80] sm:$0xff]
    %v5595 = vld [vmem:[#allocation5 + $0x88] sm:$0xff]
    %v5596 = vld [vmem:[#allocation5 + $0x90] sm:$0xff]
    %v5597 = vld [vmem:[#allocation5 + $0x98] sm:$0xff]
    %v5598 = vld [vmem:[#allocation5 + $0xa0] sm:$0xff]
    %v5599 = vld [vmem:[#allocation5 + $0xa8] sm:$0xff]
    %v5600 = vld [vmem:[#allocation5 + $0xb0] sm:$0xff]
    %v5601 = vld [vmem:[#allocation5 + $0xb8] sm:$0xff]
    %v5602 = vld [vmem:[#allocation5 + $0xc0] sm:$0xff]
    %v5603 = vld [vmem:[#allocation5 + $0xc8] sm:$0xff]
    %v5604 = vld [vmem:[#allocation5 + $0xd0] sm:$0xff]
    %v5605 = vld [vmem:[#allocation5 + $0xd8] sm:$0xff]
    %v5606 = vld [vmem:[#allocation5 + $0xe0] sm:$0xff]
    %v5607 = vld [vmem:[#allocation5 + $0xe8] sm:$0xff]
    %v5608 = vld [vmem:[#allocation5 + $0xf0] sm:$0xf]
    %v5609 = vld [vmem:[%s2] sm:$0xff]
    %v5610 = vld [vmem:[%s2 + $0x8] sm:$0xff]
    %v5611 = vld [vmem:[%s2 + $0x10] sm:$0xff]
    %v5612 = vld [vmem:[%s2 + $0x18] sm:$0xff]
    %v5613 = vld [vmem:[%s2 + $0x20] sm:$0xff]
    %v5614 = vld [vmem:[%s2 + $0x28] sm:$0xff]
    %v5615 = vld [vmem:[%s2 + $0x30] sm:$0xff]
    %v5616 = vld [vmem:[%s2 + $0x38] sm:$0xff]
    %v5617 = vld [vmem:[%s2 + $0x40] sm:$0xff]
    %v5618 = vld [vmem:[%s2 + $0x48] sm:$0xff]
    %v5619 = vld [vmem:[%s2 + $0x50] sm:$0xff]
    %v5620 = vld [vmem:[%s2 + $0x58] sm:$0xff]
    %v5621 = vperm.slane %v5122, 0
    %vm5622 = vcmask 785408
    %v5624 = vsel %vm5622, %v5578, 0
    %v5627 = vsel %vm5622, %v5579, 0
    %v5630 = vsel %vm5622, %v5580, 0
    %v5633 = vsel %vm5622, %v5581, 0
    %v5636 = vsel %vm5622, %v5582, 0
    %v5639 = vsel %vm5622, %v5583, 0
    %v5642 = vsel %vm5622, %v5584, 0
    %v5645 = vsel %vm5622, %v5585, 0
    %v5648 = vsel %vm5622, %v5586, 0
    %v5651 = vsel %vm5622, %v5587, 0
    %v5654 = vsel %vm5622, %v5588, 0
    %v5657 = vsel %vm5622, %v5589, 0
    %v5660 = vsel %vm5622, %v5590, 0
    %v5663 = vsel %vm5622, %v5591, 0
    %v5666 = vsel %vm5622, %v5592, 0
    %v5669 = vsel %vm5622, %v5593, 0
    %v5672 = vsel %vm5622, %v5594, 0
    %v5675 = vsel %vm5622, %v5595, 0
    %v5678 = vsel %vm5622, %v5596, 0
    %v5681 = vsel %vm5622, %v5597, 0
    %v5684 = vsel %vm5622, %v5598, 0
    %v5687 = vsel %vm5622, %v5599, 0
    %v5690 = vsel %vm5622, %v5600, 0
    %v5693 = vsel %vm5622, %v5601, 0
    %v5696 = vsel %vm5622, %v5602, 0
    %v5699 = vsel %vm5622, %v5603, 0
    %v5702 = vsel %vm5622, %v5604, 0
    %v5705 = vsel %vm5622, %v5605, 0
    %v5708 = vsel %vm5622, %v5606, 0
    %v5711 = vsel %vm5622, %v5607, 0
    %v5714 = vsel %vm5622, %v5608, 0
    %5716 = vmatpush.msra.mxu0 0.0
    %5717 = vmatpush.msra.mxu0 0.0
    %5718 = vmatpush.msra.mxu0 0.0
    %5719 = vmatpush.msra.mxu0 0.0
    %5720 = vmatpush.msra.mxu0 %v5620
    %5721 = vmatpush.msra.mxu0 %v5619
    %5722 = vmatpush.msra.mxu0 %v5618
    %5723 = vmatpush.msra.mxu0 %v5617
    %5724 = vmatpush.msra.mxu0 %v5616
    %5725 = vmatpush.msra.mxu0 %v5615
    %5726 = vmatpush.msra.mxu0 %v5614
    %5727 = vmatpush.msra.mxu0 %v5613
    %5728 = vmatpush.msra.mxu0 %v5612
    %5729 = vmatpush.msra.mxu0 %v5611
    %5730 = vmatpush.msra.mxu0 %v5610
    %5731 = vmatpush.msra.mxu0 %v5609
    %5732 = vmatmul.f32.gmra.mxu0 %v5624
    %v5733 = vpop.f32.mrf.mxu0
    %v5734 = vadd.f32 %v5621, %v5733
    %5735 = vmatmul.f32.gmra.mxu0 %v5627
    %v5736 = vpop.f32.mrf.mxu0
    %v5737 = vadd.f32 %v5621, %v5736
    %5738 = vmatmul.f32.gmra.mxu0 %v5630
    %v5739 = vpop.f32.mrf.mxu0
    %v5740 = vadd.f32 %v5621, %v5739
    %5741 = vmatmul.f32.gmra.mxu0 %v5633
    %v5742 = vpop.f32.mrf.mxu0
    %v5743 = vadd.f32 %v5621, %v5742
    %5744 = vmatmul.f32.gmra.mxu0 %v5636
    %v5745 = vpop.f32.mrf.mxu0
    %v5746 = vadd.f32 %v5621, %v5745
    %5747 = vmatmul.f32.gmra.mxu0 %v5639
    %v5748 = vpop.f32.mrf.mxu0
    %v5749 = vadd.f32 %v5621, %v5748
    %5750 = vmatmul.f32.gmra.mxu0 %v5642
    %v5751 = vpop.f32.mrf.mxu0
    %v5752 = vadd.f32 %v5621, %v5751
    %5753 = vmatmul.f32.gmra.mxu0 %v5645
    %v5754 = vpop.f32.mrf.mxu0
    %v5755 = vadd.f32 %v5621, %v5754
    %5756 = vmatmul.f32.gmra.mxu0 %v5648
    %v5757 = vpop.f32.mrf.mxu0
    %v5758 = vadd.f32 %v5621, %v5757
    %5759 = vmatmul.f32.gmra.mxu0 %v5651
    %v5760 = vpop.f32.mrf.mxu0
    %v5761 = vadd.f32 %v5621, %v5760
    %5762 = vmatmul.f32.gmra.mxu0 %v5654
    %v5763 = vpop.f32.mrf.mxu0
    %v5764 = vadd.f32 %v5621, %v5763
    %5765 = vmatmul.f32.gmra.mxu0 %v5657
    %v5766 = vpop.f32.mrf.mxu0
    %v5767 = vadd.f32 %v5621, %v5766
    %5768 = vmatmul.f32.gmra.mxu0 %v5660
    %v5769 = vpop.f32.mrf.mxu0
    %v5770 = vadd.f32 %v5621, %v5769
    %5771 = vmatmul.f32.gmra.mxu0 %v5663
    %v5772 = vpop.f32.mrf.mxu0
    %v5773 = vadd.f32 %v5621, %v5772
    %5774 = vmatmul.f32.gmra.mxu0 %v5666
    %v5775 = vpop.f32.mrf.mxu0
    %v5776 = vadd.f32 %v5621, %v5775
    %5777 = vmatmul.f32.gmra.mxu0 %v5669
    %v5778 = vpop.f32.mrf.mxu0
    %v5779 = vadd.f32 %v5621, %v5778
    %5780 = vmatmul.f32.gmra.mxu0 %v5672
    %v5781 = vpop.f32.mrf.mxu0
    %v5782 = vadd.f32 %v5621, %v5781
    %5783 = vmatmul.f32.gmra.mxu0 %v5675
    %v5784 = vpop.f32.mrf.mxu0
    %v5785 = vadd.f32 %v5621, %v5784
    %5786 = vmatmul.f32.gmra.mxu0 %v5678
    %v5787 = vpop.f32.mrf.mxu0
    %v5788 = vadd.f32 %v5621, %v5787
    %5789 = vmatmul.f32.gmra.mxu0 %v5681
    %v5790 = vpop.f32.mrf.mxu0
    %v5791 = vadd.f32 %v5621, %v5790
    %5792 = vmatmul.f32.gmra.mxu0 %v5684
    %v5793 = vpop.f32.mrf.mxu0
    %v5794 = vadd.f32 %v5621, %v5793
    %5795 = vmatmul.f32.gmra.mxu0 %v5687
    %v5796 = vpop.f32.mrf.mxu0
    %v5797 = vadd.f32 %v5621, %v5796
    %5798 = vmatmul.f32.gmra.mxu0 %v5690
    %v5799 = vpop.f32.mrf.mxu0
    %v5800 = vadd.f32 %v5621, %v5799
    %5801 = vmatmul.f32.gmra.mxu0 %v5693
    %v5802 = vpop.f32.mrf.mxu0
    %v5803 = vadd.f32 %v5621, %v5802
    %5804 = vmatmul.f32.gmra.mxu0 %v5696
    %v5805 = vpop.f32.mrf.mxu0
    %v5806 = vadd.f32 %v5621, %v5805
    %5807 = vmatmul.f32.gmra.mxu0 %v5699
    %v5808 = vpop.f32.mrf.mxu0
    %v5809 = vadd.f32 %v5621, %v5808
    %5810 = vmatmul.f32.gmra.mxu0 %v5702
    %v5811 = vpop.f32.mrf.mxu0
    %v5812 = vadd.f32 %v5621, %v5811
    %5813 = vmatmul.f32.gmra.mxu0 %v5705
    %v5814 = vpop.f32.mrf.mxu0
    %v5815 = vadd.f32 %v5621, %v5814
    %5816 = vmatmul.f32.gmra.mxu0 %v5708
    %v5817 = vpop.f32.mrf.mxu0
    %v5818 = vadd.f32 %v5621, %v5817
    %5819 = vmatmul.f32.gmra.mxu0 %v5711
    %v5820 = vpop.f32.mrf.mxu0
    %v5821 = vadd.f32 %v5621, %v5820
    %5822 = vmatmul.f32.gmra.mxu0 %v5714
    %v5823 = vpop.f32.mrf.mxu0
    %v5824 = vadd.f32 %v5621, %v5823
    %5825 = vdwg.mxu0
    %5826 = vst.msk [vmem:[#allocation6] sm:$0xff] %vm4155, %v5734
    %5827 = vst.msk [vmem:[#allocation6 + $0x8] sm:$0xff] %vm4155, %v5737
    %5828 = vst.msk [vmem:[#allocation6 + $0x10] sm:$0xff] %vm4155, %v5740
    %5829 = vst.msk [vmem:[#allocation6 + $0x18] sm:$0xff] %vm4155, %v5743
    %5830 = vst.msk [vmem:[#allocation6 + $0x20] sm:$0xff] %vm4155, %v5746
    %5831 = vst.msk [vmem:[#allocation6 + $0x28] sm:$0xff] %vm4155, %v5749
    %5832 = vst.msk [vmem:[#allocation6 + $0x30] sm:$0xff] %vm4155, %v5752
    %5833 = vst.msk [vmem:[#allocation6 + $0x38] sm:$0xff] %vm4155, %v5755
    %5834 = vst.msk [vmem:[#allocation6 + $0x40] sm:$0xff] %vm4155, %v5758
    %5835 = vst.msk [vmem:[#allocation6 + $0x48] sm:$0xff] %vm4155, %v5761
    %5836 = vst.msk [vmem:[#allocation6 + $0x50] sm:$0xff] %vm4155, %v5764
    %5837 = vst.msk [vmem:[#allocation6 + $0x58] sm:$0xff] %vm4155, %v5767
    %5838 = vst.msk [vmem:[#allocation6 + $0x60] sm:$0xff] %vm4155, %v5770
    %5839 = vst.msk [vmem:[#allocation6 + $0x68] sm:$0xff] %vm4155, %v5773
    %5840 = vst.msk [vmem:[#allocation6 + $0x70] sm:$0xff] %vm4155, %v5776
    %5841 = vst.msk [vmem:[#allocation6 + $0x78] sm:$0xff] %vm4155, %v5779
    %5842 = vst.msk [vmem:[#allocation6 + $0x80] sm:$0xff] %vm4155, %v5782
    %5843 = vst.msk [vmem:[#allocation6 + $0x88] sm:$0xff] %vm4155, %v5785
    %5844 = vst.msk [vmem:[#allocation6 + $0x90] sm:$0xff] %vm4155, %v5788
    %5845 = vst.msk [vmem:[#allocation6 + $0x98] sm:$0xff] %vm4155, %v5791
    %5846 = vst.msk [vmem:[#allocation6 + $0xa0] sm:$0xff] %vm4155, %v5794
    %5847 = vst.msk [vmem:[#allocation6 + $0xa8] sm:$0xff] %vm4155, %v5797
    %5848 = vst.msk [vmem:[#allocation6 + $0xb0] sm:$0xff] %vm4155, %v5800
    %5849 = vst.msk [vmem:[#allocation6 + $0xb8] sm:$0xff] %vm4155, %v5803
    %5850 = vst.msk [vmem:[#allocation6 + $0xc0] sm:$0xff] %vm4155, %v5806
    %5851 = vst.msk [vmem:[#allocation6 + $0xc8] sm:$0xff] %vm4155, %v5809
    %5852 = vst.msk [vmem:[#allocation6 + $0xd0] sm:$0xff] %vm4155, %v5812
    %5853 = vst.msk [vmem:[#allocation6 + $0xd8] sm:$0xff] %vm4155, %v5815
    %5854 = vst.msk [vmem:[#allocation6 + $0xe0] sm:$0xff] %vm4155, %v5818
    %5855 = vst.msk [vmem:[#allocation6 + $0xe8] sm:$0xff] %vm4155, %v5821
    %5856 = vst.msk [vmem:[#allocation6 + $0xf0] sm:$0xf] %vm5071, %v5824
    %v5857 = vld [vmem:[#allocation6] sm:$0xff]
    %v5858 = vld [vmem:[#allocation6 + $0x8] sm:$0xff]
    %v5859 = vld [vmem:[#allocation6 + $0x10] sm:$0xff]
    %v5860 = vld [vmem:[#allocation6 + $0x18] sm:$0xff]
    %v5861 = vld [vmem:[#allocation6 + $0x20] sm:$0xff]
    %v5862 = vld [vmem:[#allocation6 + $0x28] sm:$0xff]
    %v5863 = vld [vmem:[#allocation6 + $0x30] sm:$0xff]
    %v5864 = vld [vmem:[#allocation6 + $0x38] sm:$0xff]
    %v5865 = vld [vmem:[#allocation6 + $0x40] sm:$0xff]
    %v5866 = vld [vmem:[#allocation6 + $0x48] sm:$0xff]
    %v5867 = vld [vmem:[#allocation6 + $0x50] sm:$0xff]
    %v5868 = vld [vmem:[#allocation6 + $0x58] sm:$0xff]
    %v5869 = vld [vmem:[#allocation6 + $0x60] sm:$0xff]
    %v5870 = vld [vmem:[#allocation6 + $0x68] sm:$0xff]
    %v5871 = vld [vmem:[#allocation6 + $0x70] sm:$0xff]
    %v5872 = vld [vmem:[#allocation6 + $0x78] sm:$0xff]
    %v5873 = vld [vmem:[#allocation6 + $0x80] sm:$0xff]
    %v5874 = vld [vmem:[#allocation6 + $0x88] sm:$0xff]
    %v5875 = vld [vmem:[#allocation6 + $0x90] sm:$0xff]
    %v5876 = vld [vmem:[#allocation6 + $0x98] sm:$0xff]
    %v5877 = vld [vmem:[#allocation6 + $0xa0] sm:$0xff]
    %v5878 = vld [vmem:[#allocation6 + $0xa8] sm:$0xff]
    %v5879 = vld [vmem:[#allocation6 + $0xb0] sm:$0xff]
    %v5880 = vld [vmem:[#allocation6 + $0xb8] sm:$0xff]
    %v5881 = vld [vmem:[#allocation6 + $0xc0] sm:$0xff]
    %v5882 = vld [vmem:[#allocation6 + $0xc8] sm:$0xff]
    %v5883 = vld [vmem:[#allocation6 + $0xd0] sm:$0xff]
    %v5884 = vld [vmem:[#allocation6 + $0xd8] sm:$0xff]
    %v5885 = vld [vmem:[#allocation6 + $0xe0] sm:$0xff]
    %v5886 = vld [vmem:[#allocation6 + $0xe8] sm:$0xff]
    %v5887 = vld [vmem:[#allocation6 + $0xf0] sm:$0xf]
    %v5888 = vsel %vm4155, %v5857, 0.0
    %v5889 = vsel %vm4155, %v5858, 0.0
    %v5890 = vadd.f32 %v5888, %v5889
    %v5891 = vsel %vm4155, %v5859, 0.0
    %v5892 = vadd.f32 %v5890, %v5891
    %v5893 = vsel %vm4155, %v5860, 0.0
    %v5894 = vadd.f32 %v5892, %v5893
    %v5895 = vsel %vm4155, %v5861, 0.0
    %v5896 = vadd.f32 %v5894, %v5895
    %v5897 = vsel %vm4155, %v5862, 0.0
    %v5898 = vadd.f32 %v5896, %v5897
    %v5899 = vsel %vm4155, %v5863, 0.0
    %v5900 = vadd.f32 %v5898, %v5899
    %v5901 = vsel %vm4155, %v5864, 0.0
    %v5902 = vadd.f32 %v5900, %v5901
    %v5903 = vsel %vm4155, %v5865, 0.0
    %v5904 = vadd.f32 %v5902, %v5903
    %v5905 = vsel %vm4155, %v5866, 0.0
    %v5906 = vadd.f32 %v5904, %v5905
    %v5907 = vsel %vm4155, %v5867, 0.0
    %v5908 = vadd.f32 %v5906, %v5907
    %v5909 = vsel %vm4155, %v5868, 0.0
    %v5910 = vadd.f32 %v5908, %v5909
    %v5911 = vsel %vm4155, %v5869, 0.0
    %v5912 = vadd.f32 %v5910, %v5911
    %v5913 = vsel %vm4155, %v5870, 0.0
    %v5914 = vadd.f32 %v5912, %v5913
    %v5915 = vsel %vm4155, %v5871, 0.0
    %v5916 = vadd.f32 %v5914, %v5915
    %v5917 = vsel %vm4155, %v5872, 0.0
    %v5918 = vadd.f32 %v5916, %v5917
    %v5919 = vsel %vm4155, %v5873, 0.0
    %v5920 = vadd.f32 %v5918, %v5919
    %v5921 = vsel %vm4155, %v5874, 0.0
    %v5922 = vadd.f32 %v5920, %v5921
    %v5923 = vsel %vm4155, %v5875, 0.0
    %v5924 = vadd.f32 %v5922, %v5923
    %v5925 = vsel %vm4155, %v5876, 0.0
    %v5926 = vadd.f32 %v5924, %v5925
    %v5927 = vsel %vm4155, %v5877, 0.0
    %v5928 = vadd.f32 %v5926, %v5927
    %v5929 = vsel %vm4155, %v5878, 0.0
    %v5930 = vadd.f32 %v5928, %v5929
    %v5931 = vsel %vm4155, %v5879, 0.0
    %v5932 = vadd.f32 %v5930, %v5931
    %v5933 = vsel %vm4155, %v5880, 0.0
    %v5934 = vadd.f32 %v5932, %v5933
    %v5935 = vsel %vm4155, %v5881, 0.0
    %v5936 = vadd.f32 %v5934, %v5935
    %v5937 = vsel %vm4155, %v5882, 0.0
    %v5938 = vadd.f32 %v5936, %v5937
    %v5939 = vsel %vm4155, %v5883, 0.0
    %v5940 = vadd.f32 %v5938, %v5939
    %v5941 = vsel %vm4155, %v5884, 0.0
    %v5942 = vadd.f32 %v5940, %v5941
    %v5943 = vsel %vm4155, %v5885, 0.0
    %v5944 = vadd.f32 %v5942, %v5943
    %v5945 = vsel %vm4155, %v5886, 0.0
    %v5946 = vadd.f32 %v5944, %v5945
    %v5947 = vsel %vm5071, %v5887, 0.0
    %v5948 = vadd.f32 %v5946, %v5947
    %v5949 = vrot.slane %v5948, 4
    %v5950 = vadd.f32 %v5948, %v5949
    %v5951 = vrot.slane %v5950, 2
    %v5952 = vadd.f32 %v5950, %v5951
    %v5953 = vrot.slane %v5952, 1
    %v5954 = vadd.f32 %v5952, %v5953
    %v5955 = vmul.f32 %v5954, 0.0040983604
    %v5956 = vsub.f32 %v5857, %v5955
    %v5957 = vsub.f32 %v5858, %v5955
    %v5958 = vsub.f32 %v5859, %v5955
    %v5959 = vsub.f32 %v5860, %v5955
    %v5960 = vsub.f32 %v5861, %v5955
    %v5961 = vsub.f32 %v5862, %v5955
    %v5962 = vsub.f32 %v5863, %v5955
    %v5963 = vsub.f32 %v5864, %v5955
    %v5964 = vsub.f32 %v5865, %v5955
    %v5965 = vsub.f32 %v5866, %v5955
    %v5966 = vsub.f32 %v5867, %v5955
    %v5967 = vsub.f32 %v5868, %v5955
    %v5968 = vsub.f32 %v5869, %v5955
    %v5969 = vsub.f32 %v5870, %v5955
    %v5970 = vsub.f32 %v5871, %v5955
    %v5971 = vsub.f32 %v5872, %v5955
    %v5972 = vsub.f32 %v5873, %v5955
    %v5973 = vsub.f32 %v5874, %v5955
    %v5974 = vsub.f32 %v5875, %v5955
    %v5975 = vsub.f32 %v5876, %v5955
    %v5976 = vsub.f32 %v5877, %v5955
    %v5977 = vsub.f32 %v5878, %v5955
    %v5978 = vsub.f32 %v5879, %v5955
    %v5979 = vsub.f32 %v5880, %v5955
    %v5980 = vsub.f32 %v5881, %v5955
    %v5981 = vsub.f32 %v5882, %v5955
    %v5982 = vsub.f32 %v5883, %v5955
    %v5983 = vsub.f32 %v5884, %v5955
    %v5984 = vsub.f32 %v5885, %v5955
    %v5985 = vsub.f32 %v5886, %v5955
    %v5986 = vsub.f32 %v5887, %v5955
    %v5987 = vmul.f32 %v5956, %v5956
    %v5988 = vmul.f32 %v5957, %v5957
    %v5989 = vmul.f32 %v5958, %v5958
    %v5990 = vmul.f32 %v5959, %v5959
    %v5991 = vmul.f32 %v5960, %v5960
    %v5992 = vmul.f32 %v5961, %v5961
    %v5993 = vmul.f32 %v5962, %v5962
    %v5994 = vmul.f32 %v5963, %v5963
    %v5995 = vmul.f32 %v5964, %v5964
    %v5996 = vmul.f32 %v5965, %v5965
    %v5997 = vmul.f32 %v5966, %v5966
    %v5998 = vmul.f32 %v5967, %v5967
    %v5999 = vmul.f32 %v5968, %v5968
    %v6000 = vmul.f32 %v5969, %v5969
    %v6001 = vmul.f32 %v5970, %v5970
    %v6002 = vmul.f32 %v5971, %v5971
    %v6003 = vmul.f32 %v5972, %v5972
    %v6004 = vmul.f32 %v5973, %v5973
    %v6005 = vmul.f32 %v5974, %v5974
    %v6006 = vmul.f32 %v5975, %v5975
    %v6007 = vmul.f32 %v5976, %v5976
    %v6008 = vmul.f32 %v5977, %v5977
    %v6009 = vmul.f32 %v5978, %v5978
    %v6010 = vmul.f32 %v5979, %v5979
    %v6011 = vmul.f32 %v5980, %v5980
    %v6012 = vmul.f32 %v5981, %v5981
    %v6013 = vmul.f32 %v5982, %v5982
    %v6014 = vmul.f32 %v5983, %v5983
    %v6015 = vmul.f32 %v5984, %v5984
    %v6016 = vmul.f32 %v5985, %v5985
    %v6017 = vmul.f32 %v5986, %v5986
    %v6018 = vsel %vm4155, %v5987, 0.0
    %v6019 = vsel %vm4155, %v5988, 0.0
    %v6020 = vadd.f32 %v6018, %v6019
    %v6021 = vsel %vm4155, %v5989, 0.0
    %v6022 = vadd.f32 %v6020, %v6021
    %v6023 = vsel %vm4155, %v5990, 0.0
    %v6024 = vadd.f32 %v6022, %v6023
    %v6025 = vsel %vm4155, %v5991, 0.0
    %v6026 = vadd.f32 %v6024, %v6025
    %v6027 = vsel %vm4155, %v5992, 0.0
    %v6028 = vadd.f32 %v6026, %v6027
    %v6029 = vsel %vm4155, %v5993, 0.0
    %v6030 = vadd.f32 %v6028, %v6029
    %v6031 = vsel %vm4155, %v5994, 0.0
    %v6032 = vadd.f32 %v6030, %v6031
    %v6033 = vsel %vm4155, %v5995, 0.0
    %v6034 = vadd.f32 %v6032, %v6033
    %v6035 = vsel %vm4155, %v5996, 0.0
    %v6036 = vadd.f32 %v6034, %v6035
    %v6037 = vsel %vm4155, %v5997, 0.0
    %v6038 = vadd.f32 %v6036, %v6037
    %v6039 = vsel %vm4155, %v5998, 0.0
    %v6040 = vadd.f32 %v6038, %v6039
    %v6041 = vsel %vm4155, %v5999, 0.0
    %v6042 = vadd.f32 %v6040, %v6041
    %v6043 = vsel %vm4155, %v6000, 0.0
    %v6044 = vadd.f32 %v6042, %v6043
    %v6045 = vsel %vm4155, %v6001, 0.0
    %v6046 = vadd.f32 %v6044, %v6045
    %v6047 = vsel %vm4155, %v6002, 0.0
    %v6048 = vadd.f32 %v6046, %v6047
    %v6049 = vsel %vm4155, %v6003, 0.0
    %v6050 = vadd.f32 %v6048, %v6049
    %v6051 = vsel %vm4155, %v6004, 0.0
    %v6052 = vadd.f32 %v6050, %v6051
    %v6053 = vsel %vm4155, %v6005, 0.0
    %v6054 = vadd.f32 %v6052, %v6053
    %v6055 = vsel %vm4155, %v6006, 0.0
    %v6056 = vadd.f32 %v6054, %v6055
    %v6057 = vsel %vm4155, %v6007, 0.0
    %v6058 = vadd.f32 %v6056, %v6057
    %v6059 = vsel %vm4155, %v6008, 0.0
    %v6060 = vadd.f32 %v6058, %v6059
    %v6061 = vsel %vm4155, %v6009, 0.0
    %v6062 = vadd.f32 %v6060, %v6061
    %v6063 = vsel %vm4155, %v6010, 0.0
    %v6064 = vadd.f32 %v6062, %v6063
    %v6065 = vsel %vm4155, %v6011, 0.0
    %v6066 = vadd.f32 %v6064, %v6065
    %v6067 = vsel %vm4155, %v6012, 0.0
    %v6068 = vadd.f32 %v6066, %v6067
    %v6069 = vsel %vm4155, %v6013, 0.0
    %v6070 = vadd.f32 %v6068, %v6069
    %v6071 = vsel %vm4155, %v6014, 0.0
    %v6072 = vadd.f32 %v6070, %v6071
    %v6073 = vsel %vm4155, %v6015, 0.0
    %v6074 = vadd.f32 %v6072, %v6073
    %v6075 = vsel %vm4155, %v6016, 0.0
    %v6076 = vadd.f32 %v6074, %v6075
    %v6077 = vsel %vm5071, %v6017, 0.0
    %v6078 = vadd.f32 %v6076, %v6077
    %v6079 = vrot.slane %v6078, 4
    %v6080 = vadd.f32 %v6078, %v6079
    %v6081 = vrot.slane %v6080, 2
    %v6082 = vadd.f32 %v6080, %v6081
    %v6083 = vrot.slane %v6082, 1
    %v6084 = vadd.f32 %v6082, %v6083
    %v6085 = vmul.f32 %v6084, 0.0040983604
    %v6086 = vadd.f32 %v6085, 1e-05
    %v6087 = vrsqrt.pop %v6086
    %v6088 = vmul.f32 %v6087, %v6086
    %v6089 = vmul.f32 %v6088, %v6087
    %v6090 = vmul.f32 0.5, %v6089
    %v6091 = vsub.f32 1.5, %v6090
    %v6092 = vmul.f32 %v6087, %v6091
    %vm6093 = vweird.f32 %v6086
    %vm6094 = vweird.f32 %v6087
    %vm6095 = vmor %vm6093, %vm6094
    %v6096 = vsel %vm6095, %v6087, %v6092
    %v6097 = vmul.f32 %v6096, %v5123
    %v6098 = vmul.f32 %v5955, %v6097
    %v6099 = vsub.f32 %v5124, %v6098
    %v6100 = vperm.slane %v6097, 0
    %v6101 = vmul.f32 %v5857, %v6100
    %v6102 = vmul.f32 %v5858, %v6100
    %v6103 = vmul.f32 %v5859, %v6100
    %v6104 = vmul.f32 %v5860, %v6100
    %v6105 = vmul.f32 %v5861, %v6100
    %v6106 = vmul.f32 %v5862, %v6100
    %v6107 = vmul.f32 %v5863, %v6100
    %v6108 = vmul.f32 %v5864, %v6100
    %v6109 = vmul.f32 %v5865, %v6100
    %v6110 = vmul.f32 %v5866, %v6100
    %v6111 = vmul.f32 %v5867, %v6100
    %v6112 = vmul.f32 %v5868, %v6100
    %v6113 = vmul.f32 %v5869, %v6100
    %v6114 = vmul.f32 %v5870, %v6100
    %v6115 = vmul.f32 %v5871, %v6100
    %v6116 = vmul.f32 %v5872, %v6100
    %v6117 = vmul.f32 %v5873, %v6100
    %v6118 = vmul.f32 %v5874, %v6100
    %v6119 = vmul.f32 %v5875, %v6100
    %v6120 = vmul.f32 %v5876, %v6100
    %v6121 = vmul.f32 %v5877, %v6100
    %v6122 = vmul.f32 %v5878, %v6100
    %v6123 = vmul.f32 %v5879, %v6100
    %v6124 = vmul.f32 %v5880, %v6100
    %v6125 = vmul.f32 %v5881, %v6100
    %v6126 = vmul.f32 %v5882, %v6100
    %v6127 = vmul.f32 %v5883, %v6100
    %v6128 = vmul.f32 %v5884, %v6100
    %v6129 = vmul.f32 %v5885, %v6100
    %v6130 = vmul.f32 %v5886, %v6100
    %v6131 = vmul.f32 %v5887, %v6100
    %v6132 = vperm.slane %v6099, 0
    %v6133 = vadd.f32 %v6101, %v6132
    %v6134 = vadd.f32 %v6102, %v6132
    %v6135 = vadd.f32 %v6103, %v6132
    %v6136 = vadd.f32 %v6104, %v6132
    %v6137 = vadd.f32 %v6105, %v6132
    %v6138 = vadd.f32 %v6106, %v6132
    %v6139 = vadd.f32 %v6107, %v6132
    %v6140 = vadd.f32 %v6108, %v6132
    %v6141 = vadd.f32 %v6109, %v6132
    %v6142 = vadd.f32 %v6110, %v6132
    %v6143 = vadd.f32 %v6111, %v6132
    %v6144 = vadd.f32 %v6112, %v6132
    %v6145 = vadd.f32 %v6113, %v6132
    %v6146 = vadd.f32 %v6114, %v6132
    %v6147 = vadd.f32 %v6115, %v6132
    %v6148 = vadd.f32 %v6116, %v6132
    %v6149 = vadd.f32 %v6117, %v6132
    %v6150 = vadd.f32 %v6118, %v6132
    %v6151 = vadd.f32 %v6119, %v6132
    %v6152 = vadd.f32 %v6120, %v6132
    %v6153 = vadd.f32 %v6121, %v6132
    %v6154 = vadd.f32 %v6122, %v6132
    %v6155 = vadd.f32 %v6123, %v6132
    %v6156 = vadd.f32 %v6124, %v6132
    %v6157 = vadd.f32 %v6125, %v6132
    %v6158 = vadd.f32 %v6126, %v6132
    %v6159 = vadd.f32 %v6127, %v6132
    %v6160 = vadd.f32 %v6128, %v6132
    %v6161 = vadd.f32 %v6129, %v6132
    %v6162 = vadd.f32 %v6130, %v6132
    %v6163 = vadd.f32 %v6131, %v6132
    %v6164 = vmax.f32 %v6133, 0.0
    %v6165 = vmax.f32 %v6134, 0.0
    %v6166 = vmax.f32 %v6135, 0.0
    %v6167 = vmax.f32 %v6136, 0.0
    %v6168 = vmax.f32 %v6137, 0.0
    %v6169 = vmax.f32 %v6138, 0.0
    %v6170 = vmax.f32 %v6139, 0.0
    %v6171 = vmax.f32 %v6140, 0.0
    %v6172 = vmax.f32 %v6141, 0.0
    %v6173 = vmax.f32 %v6142, 0.0
    %v6174 = vmax.f32 %v6143, 0.0
    %v6175 = vmax.f32 %v6144, 0.0
    %v6176 = vmax.f32 %v6145, 0.0
    %v6177 = vmax.f32 %v6146, 0.0
    %v6178 = vmax.f32 %v6147, 0.0
    %v6179 = vmax.f32 %v6148, 0.0
    %v6180 = vmax.f32 %v6149, 0.0
    %v6181 = vmax.f32 %v6150, 0.0
    %v6182 = vmax.f32 %v6151, 0.0
    %v6183 = vmax.f32 %v6152, 0.0
    %v6184 = vmax.f32 %v6153, 0.0
    %v6185 = vmax.f32 %v6154, 0.0
    %v6186 = vmax.f32 %v6155, 0.0
    %v6187 = vmax.f32 %v6156, 0.0
    %v6188 = vmax.f32 %v6157, 0.0
    %v6189 = vmax.f32 %v6158, 0.0
    %v6190 = vmax.f32 %v6159, 0.0
    %v6191 = vmax.f32 %v6160, 0.0
    %v6192 = vmax.f32 %v6161, 0.0
    %v6193 = vmax.f32 %v6162, 0.0
    %v6194 = vmax.f32 %v6163, 0.0
    %6195 = vst.msk [vmem:[#allocation6] sm:$0xff] %vm4155, %v6164
    %6196 = vst.msk [vmem:[#allocation6 + $0x8] sm:$0xff] %vm4155, %v6165
    %6197 = vst.msk [vmem:[#allocation6 + $0x10] sm:$0xff] %vm4155, %v6166
    %6198 = vst.msk [vmem:[#allocation6 + $0x18] sm:$0xff] %vm4155, %v6167
    %6199 = vst.msk [vmem:[#allocation6 + $0x20] sm:$0xff] %vm4155, %v6168
    %6200 = vst.msk [vmem:[#allocation6 + $0x28] sm:$0xff] %vm4155, %v6169
    %6201 = vst.msk [vmem:[#allocation6 + $0x30] sm:$0xff] %vm4155, %v6170
    %6202 = vst.msk [vmem:[#allocation6 + $0x38] sm:$0xff] %vm4155, %v6171
    %6203 = vst.msk [vmem:[#allocation6 + $0x40] sm:$0xff] %vm4155, %v6172
    %6204 = vst.msk [vmem:[#allocation6 + $0x48] sm:$0xff] %vm4155, %v6173
    %6205 = vst.msk [vmem:[#allocation6 + $0x50] sm:$0xff] %vm4155, %v6174
    %6206 = vst.msk [vmem:[#allocation6 + $0x58] sm:$0xff] %vm4155, %v6175
    %6207 = vst.msk [vmem:[#allocation6 + $0x60] sm:$0xff] %vm4155, %v6176
    %6208 = vst.msk [vmem:[#allocation6 + $0x68] sm:$0xff] %vm4155, %v6177
    %6209 = vst.msk [vmem:[#allocation6 + $0x70] sm:$0xff] %vm4155, %v6178
    %6210 = vst.msk [vmem:[#allocation6 + $0x78] sm:$0xff] %vm4155, %v6179
    %6211 = vst.msk [vmem:[#allocation6 + $0x80] sm:$0xff] %vm4155, %v6180
    %6212 = vst.msk [vmem:[#allocation6 + $0x88] sm:$0xff] %vm4155, %v6181
    %6213 = vst.msk [vmem:[#allocation6 + $0x90] sm:$0xff] %vm4155, %v6182
    %6214 = vst.msk [vmem:[#allocation6 + $0x98] sm:$0xff] %vm4155, %v6183
    %6215 = vst.msk [vmem:[#allocation6 + $0xa0] sm:$0xff] %vm4155, %v6184
    %6216 = vst.msk [vmem:[#allocation6 + $0xa8] sm:$0xff] %vm4155, %v6185
    %6217 = vst.msk [vmem:[#allocation6 + $0xb0] sm:$0xff] %vm4155, %v6186
    %6218 = vst.msk [vmem:[#allocation6 + $0xb8] sm:$0xff] %vm4155, %v6187
    %6219 = vst.msk [vmem:[#allocation6 + $0xc0] sm:$0xff] %vm4155, %v6188
    %6220 = vst.msk [vmem:[#allocation6 + $0xc8] sm:$0xff] %vm4155, %v6189
    %6221 = vst.msk [vmem:[#allocation6 + $0xd0] sm:$0xff] %vm4155, %v6190
    %6222 = vst.msk [vmem:[#allocation6 + $0xd8] sm:$0xff] %vm4155, %v6191
    %6223 = vst.msk [vmem:[#allocation6 + $0xe0] sm:$0xff] %vm4155, %v6192
    %6224 = vst.msk [vmem:[#allocation6 + $0xe8] sm:$0xff] %vm4155, %v6193
    %6225 = vst.msk [vmem:[#allocation6 + $0xf0] sm:$0xf] %vm5071, %v6194
    %v6226 = vld [vmem:[#allocation6] ss:$4 sm:$0xff]
    %s6227 = scalar_lea.vmem [#allocation6], 32
    %v6228 = vld [vmem:[%s6227] ss:$4 sm:$0xff]
    %s6229 = scalar_lea.vmem [#allocation6], 64
    %v6230 = vld [vmem:[%s6229] ss:$4 sm:$0xff]
    %s6231 = scalar_lea.vmem [#allocation6], 96
    %v6232 = vld [vmem:[%s6231] ss:$4 sm:$0x3f]
    %s6233 = scalar_lea.vmem [#allocation6], 1
    %v6234 = vld [vmem:[%s6233] ss:$4 sm:$0xff]
    %s6235 = scalar_lea.vmem [#allocation6], 33
    %v6236 = vld [vmem:[%s6235] ss:$4 sm:$0xff]
    %s6237 = scalar_lea.vmem [#allocation6], 65
    %v6238 = vld [vmem:[%s6237] ss:$4 sm:$0xff]
    %s6239 = scalar_lea.vmem [#allocation6], 97
    %v6240 = vld [vmem:[%s6239] ss:$4 sm:$0x3f]
    %v6241 = vmax.f32 %v6226, %v6234
    %v6242 = vmax.f32 %v6228, %v6236
    %v6243 = vmax.f32 %v6230, %v6238
    %v6244 = vmax.f32 %v6232, %v6240
    %s6245 = scalar_lea.vmem [#allocation6], 2
    %v6246 = vld [vmem:[%s6245] ss:$4 sm:$0xff]
    %s6247 = scalar_lea.vmem [#allocation6], 34
    %v6248 = vld [vmem:[%s6247] ss:$4 sm:$0xff]
    %s6249 = scalar_lea.vmem [#allocation6], 66
    %v6250 = vld [vmem:[%s6249] ss:$4 sm:$0xff]
    %s6251 = scalar_lea.vmem [#allocation6], 98
    %v6252 = vld [vmem:[%s6251] ss:$4 sm:$0x3f]
    %v6253 = vmax.f32 %v6241, %v6246
    %v6254 = vmax.f32 %v6242, %v6248
    %v6255 = vmax.f32 %v6243, %v6250
    %v6256 = vmax.f32 %v6244, %v6252
    %s6257 = scalar_lea.vmem [#allocation6], 3
    %v6258 = vld [vmem:[%s6257] ss:$4 sm:$0xff]
    %s6259 = scalar_lea.vmem [#allocation6], 35
    %v6260 = vld [vmem:[%s6259] ss:$4 sm:$0xff]
    %s6261 = scalar_lea.vmem [#allocation6], 67
    %v6262 = vld [vmem:[%s6261] ss:$4 sm:$0xff]
    %s6263 = scalar_lea.vmem [#allocation6], 99
    %v6264 = vld [vmem:[%s6263] ss:$4 sm:$0x3f]
    %v6265 = vmax.f32 %v6253, %v6258
    %v6266 = vmax.f32 %v6254, %v6260
    %v6267 = vmax.f32 %v6255, %v6262
    %v6268 = vmax.f32 %v6256, %v6264
    %6269 = vst.msk [vmem:[#allocation7] sm:$0xff] %vm4155, %v6265
    %6270 = vst.msk [vmem:[#allocation7 + $0x8] sm:$0xff] %vm4155, %v6266
    %6271 = vst.msk [vmem:[#allocation7 + $0x10] sm:$0xff] %vm4155, %v6267
    %vm6272 = vcmask 259072
    %6273 = vst.msk [vmem:[#allocation7 + $0x18] sm:$0x3f] %vm6272, %v6268
    %s6274 = scalar_lea.vmem [#allocation6], 122
    %v6275 = vld [vmem:[%s6274] ss:$4 sm:$0xff]
    %s6276 = scalar_lea.vmem [#allocation6], 154
    %v6277 = vld [vmem:[%s6276] ss:$4 sm:$0xff]
    %s6278 = scalar_lea.vmem [#allocation6], 186
    %v6279 = vld [vmem:[%s6278] ss:$4 sm:$0xff]
    %s6280 = scalar_lea.vmem [#allocation6], 218
    %v6281 = vld [vmem:[%s6280] ss:$4 sm:$0x3f]
    %s6282 = scalar_lea.vmem [#allocation6], 123
    %v6283 = vld [vmem:[%s6282] ss:$4 sm:$0xff]
    %s6284 = scalar_lea.vmem [#allocation6], 155
    %v6285 = vld [vmem:[%s6284] ss:$4 sm:$0xff]
    %s6286 = scalar_lea.vmem [#allocation6], 187
    %v6287 = vld [vmem:[%s6286] ss:$4 sm:$0xff]
    %s6288 = scalar_lea.vmem [#allocation6], 219
    %v6289 = vld [vmem:[%s6288] ss:$4 sm:$0x3f]
    %v6290 = vmax.f32 %v6275, %v6283
    %v6291 = vmax.f32 %v6277, %v6285
    %v6292 = vmax.f32 %v6279, %v6287
    %v6293 = vmax.f32 %v6281, %v6289
    %s6294 = scalar_lea.vmem [#allocation6], 124
    %v6295 = vld [vmem:[%s6294] ss:$4 sm:$0xff]
    %s6296 = scalar_lea.vmem [#allocation6], 156
    %v6297 = vld [vmem:[%s6296] ss:$4 sm:$0xff]
    %s6298 = scalar_lea.vmem [#allocation6], 188
    %v6299 = vld [vmem:[%s6298] ss:$4 sm:$0xff]
    %s6300 = scalar_lea.vmem [#allocation6], 220
    %v6301 = vld [vmem:[%s6300] ss:$4 sm:$0x3f]
    %v6302 = vmax.f32 %v6290, %v6295
    %v6303 = vmax.f32 %v6291, %v6297
    %v6304 = vmax.f32 %v6292, %v6299
    %v6305 = vmax.f32 %v6293, %v6301
    %s6306 = scalar_lea.vmem [#allocation6], 125
    %v6307 = vld [vmem:[%s6306] ss:$4 sm:$0xff]
    %s6308 = scalar_lea.vmem [#allocation6], 157
    %v6309 = vld [vmem:[%s6308] ss:$4 sm:$0xff]
    %s6310 = scalar_lea.vmem [#allocation6], 189
    %v6311 = vld [vmem:[%s6310] ss:$4 sm:$0xff]
    %s6312 = scalar_lea.vmem [#allocation6], 221
    %v6313 = vld [vmem:[%s6312] ss:$4 sm:$0x3f]
    %v6314 = vmax.f32 %v6302, %v6307
    %v6315 = vmax.f32 %v6303, %v6309
    %v6316 = vmax.f32 %v6304, %v6311
    %v6317 = vmax.f32 %v6305, %v6313
    %s6318 = scalar_lea.vmem [#allocation7], 32
    %6319 = vst.msk [vmem:[%s6318] sm:$0xff] %vm4155, %v6314
    %6320 = vst.msk [vmem:[%s6318 + $0x8] sm:$0xff] %vm4155, %v6315
    %6321 = vst.msk [vmem:[%s6318 + $0x10] sm:$0xff] %vm4155, %v6316
    %6322 = vst.msk [vmem:[%s6318 + $0x18] sm:$0x3f] %vm6272, %v6317
    %v6323 = vld [vmem:[%s6 + $0x6] sm:$0x1]
    %v6324 = vld [vmem:[%s6 + $0x7] sm:$0x1]
    %v6325 = vld [vmem:[%s6 + $0x8] sm:$0x1]
    %v6326 = vld [vmem:[#allocation7] sm:$0xff]
    %v6327 = vld [vmem:[#allocation7 + $0x8] sm:$0xff]
    %v6328 = vld [vmem:[#allocation7 + $0x10] sm:$0xff]
    %v6329 = vld [vmem:[#allocation7 + $0x18] sm:$0xf]
    %6330 = vst.msk [vmem:[#allocation8] sm:$0xff] %vm4155, %v6326
    %6331 = vst.msk [vmem:[#allocation8 + $0x8] sm:$0xff] %vm4155, %v6327
    %6332 = vst.msk [vmem:[#allocation8 + $0x10] sm:$0xff] %vm4155, %v6328
    %6333 = vst.msk [vmem:[#allocation8 + $0x18] sm:$0xf] %vm5071, %v6329
    %v6334 = vld [vmem:[#allocation7 + $0x1] sm:$0xff]
    %v6335 = vld [vmem:[#allocation7 + $0x9] sm:$0xff]
    %v6336 = vld [vmem:[#allocation7 + $0x11] sm:$0xff]
    %v6337 = vld [vmem:[#allocation7 + $0x19] sm:$0xf]
    %6342 = vrot.lane.b32.xlu0 %v6334, 32
    %v6343 = vpop.permute.xlu0 %6342
    %6344 = vrot.lane.b32.xlu0 %v6335, 32
    %v6345 = vpop.permute.xlu0 %6344
    %6346 = vrot.lane.b32.xlu0 %v6336, 32
    %v6347 = vpop.permute.xlu0 %6346
    %6348 = vrot.lane.b32.xlu0 %v6337, 32
    %v6349 = vpop.permute.xlu0 %6348
    %6354 = vst.msk [vmem:[#allocation8] sm:$0xff] %vm5238, %v6343
    %6355 = vst.msk [vmem:[#allocation8 + $0x8] sm:$0xff] %vm5238, %v6345
    %6356 = vst.msk [vmem:[#allocation8 + $0x10] sm:$0xff] %vm5238, %v6347
    %vm6357 = vcmask 519424
    %6358 = vst.msk [vmem:[#allocation8 + $0x18] sm:$0xf] %vm6357, %v6349
    %v6359 = vld [vmem:[#allocation7 + $0x2] sm:$0xff]
    %v6360 = vld [vmem:[#allocation7 + $0xa] sm:$0xff]
    %v6361 = vld [vmem:[#allocation7 + $0x12] sm:$0xff]
    %v6362 = vld [vmem:[#allocation7 + $0x1a] sm:$0xf]
    %6367 = vrot.lane.b32.xlu0 %v6359, 64
    %v6368 = vpop.permute.xlu0 %6367
    %6369 = vrot.lane.b32.xlu0 %v6360, 64
    %v6370 = vpop.permute.xlu0 %6369
    %6371 = vrot.lane.b32.xlu0 %v6361, 64
    %v6372 = vpop.permute.xlu0 %6371
    %6373 = vrot.lane.b32.xlu0 %v6362, 64
    %v6374 = vpop.permute.xlu0 %6373
    %6379 = vst.msk [vmem:[#allocation8] sm:$0xff] %vm5336, %v6368
    %6380 = vst.msk [vmem:[#allocation8 + $0x8] sm:$0xff] %vm5336, %v6370
    %6381 = vst.msk [vmem:[#allocation8 + $0x10] sm:$0xff] %vm5336, %v6372
    %vm6382 = vcmask 781824
    %6383 = vst.msk [vmem:[#allocation8 + $0x18] sm:$0xf] %vm6382, %v6374
    %v6384 = vld [vmem:[%s6318] sm:$0xff]
    %v6385 = vld [vmem:[%s6318 + $0x8] sm:$0xff]
    %v6386 = vld [vmem:[%s6318 + $0x10] sm:$0xff]
    %v6387 = vld [vmem:[%s6318 + $0x18] sm:$0xf]
    %6388 = vst.msk [vmem:[#allocation8 + $0x1c] sm:$0xff] %vm4155, %v6384
    %6389 = vst.msk [vmem:[#allocation8 + $0x24] sm:$0xff] %vm4155, %v6385
    %6390 = vst.msk [vmem:[#allocation8 + $0x2c] sm:$0xff] %vm4155, %v6386
    %6391 = vst.msk [vmem:[#allocation8 + $0x34] sm:$0xf] %vm5071, %v6387
    %v6392 = vld [vmem:[%s6318 + $0x1] sm:$0xff]
    %v6393 = vld [vmem:[%s6318 + $0x9] sm:$0xff]
    %v6394 = vld [vmem:[%s6318 + $0x11] sm:$0xff]
    %v6395 = vld [vmem:[%s6318 + $0x19] sm:$0xf]
    %6400 = vrot.lane.b32.xlu0 %v6392, 32
    %v6401 = vpop.permute.xlu0 %6400
    %6402 = vrot.lane.b32.xlu0 %v6393, 32
    %v6403 = vpop.permute.xlu0 %6402
    %6404 = vrot.lane.b32.xlu0 %v6394, 32
    %v6405 = vpop.permute.xlu0 %6404
    %6406 = vrot.lane.b32.xlu0 %v6395, 32
    %v6407 = vpop.permute.xlu0 %6406
    %6412 = vst.msk [vmem:[#allocation8 + $0x1c] sm:$0xff] %vm5238, %v6401
    %6413 = vst.msk [vmem:[#allocation8 + $0x24] sm:$0xff] %vm5238, %v6403
    %6414 = vst.msk [vmem:[#allocation8 + $0x2c] sm:$0xff] %vm5238, %v6405
    %6415 = vst.msk [vmem:[#allocation8 + $0x34] sm:$0xf] %vm6357, %v6407
    %v6416 = vld [vmem:[%s6318 + $0x2] sm:$0xff]
    %v6417 = vld [vmem:[%s6318 + $0xa] sm:$0xff]
    %v6418 = vld [vmem:[%s6318 + $0x12] sm:$0xff]
    %v6419 = vld [vmem:[%s6318 + $0x1a] sm:$0xf]
    %6424 = vrot.lane.b32.xlu0 %v6416, 64
    %v6425 = vpop.permute.xlu0 %6424
    %6426 = vrot.lane.b32.xlu0 %v6417, 64
    %v6427 = vpop.permute.xlu0 %6426
    %6428 = vrot.lane.b32.xlu0 %v6418, 64
    %v6429 = vpop.permute.xlu0 %6428
    %6430 = vrot.lane.b32.xlu0 %v6419, 64
    %v6431 = vpop.permute.xlu0 %6430
    %6436 = vst.msk [vmem:[#allocation8 + $0x1c] sm:$0xff] %vm5336, %v6425
    %6437 = vst.msk [vmem:[#allocation8 + $0x24] sm:$0xff] %vm5336, %v6427
    %6438 = vst.msk [vmem:[#allocation8 + $0x2c] sm:$0xff] %vm5336, %v6429
    %6439 = vst.msk [vmem:[#allocation8 + $0x34] sm:$0xf] %vm6382, %v6431
    %v6440 = vld [vmem:[#allocation8] sm:$0xff]
    %v6441 = vld [vmem:[#allocation8 + $0x8] sm:$0xff]
    %v6442 = vld [vmem:[#allocation8 + $0x10] sm:$0xff]
    %v6443 = vld [vmem:[#allocation8 + $0x18] sm:$0xff]
    %v6444 = vld [vmem:[#allocation8 + $0x20] sm:$0xff]
    %v6445 = vld [vmem:[#allocation8 + $0x28] sm:$0xff]
    %v6446 = vld [vmem:[#allocation8 + $0x30] sm:$0xff]
    %v6447 = vld [vmem:[%s3] sm:$0xff]
    %v6448 = vld [vmem:[%s3 + $0x8] sm:$0xff]
    %v6449 = vld [vmem:[%s3 + $0x10] sm:$0xff]
    %v6450 = vld [vmem:[%s3 + $0x18] sm:$0xff]
    %v6451 = vld [vmem:[%s3 + $0x20] sm:$0xff]
    %v6452 = vld [vmem:[%s3 + $0x28] sm:$0xff]
    %v6453 = vld [vmem:[%s3 + $0x30] sm:$0xff]
    %v6454 = vld [vmem:[%s3 + $0x38] sm:$0xff]
    %v6455 = vld [vmem:[%s3 + $0x40] sm:$0xff]
    %v6456 = vld [vmem:[%s3 + $0x48] sm:$0xff]
    %v6457 = vld [vmem:[%s3 + $0x50] sm:$0xff]
    %v6458 = vld [vmem:[%s3 + $0x58] sm:$0xff]
    %v6459 = vperm.slane %v6323, 0
    %v6461 = vsel %vm5622, %v6440, 0
    %v6464 = vsel %vm5622, %v6441, 0
    %v6467 = vsel %vm5622, %v6442, 0
    %v6470 = vsel %vm5622, %v6443, 0
    %v6473 = vsel %vm5622, %v6444, 0
    %v6476 = vsel %vm5622, %v6445, 0
    %v6479 = vsel %vm5622, %v6446, 0
    %6481 = vmatpush.msra.mxu0 0.0
    %6482 = vmatpush.msra.mxu0 0.0
    %6483 = vmatpush.msra.mxu0 0.0
    %6484 = vmatpush.msra.mxu0 0.0
    %6485 = vmatpush.msra.mxu0 %v6458
    %6486 = vmatpush.msra.mxu0 %v6457
    %6487 = vmatpush.msra.mxu0 %v6456
    %6488 = vmatpush.msra.mxu0 %v6455
    %6489 = vmatpush.msra.mxu0 %v6454
    %6490 = vmatpush.msra.mxu0 %v6453
    %6491 = vmatpush.msra.mxu0 %v6452
    %6492 = vmatpush.msra.mxu0 %v6451
    %6493 = vmatpush.msra.mxu0 %v6450
    %6494 = vmatpush.msra.mxu0 %v6449
    %6495 = vmatpush.msra.mxu0 %v6448
    %6496 = vmatpush.msra.mxu0 %v6447
    %6497 = vmatmul.f32.gmra.mxu0 %v6461
    %v6498 = vpop.f32.mrf.mxu0
    %v6499 = vadd.f32 %v6459, %v6498
    %6500 = vmatmul.f32.gmra.mxu0 %v6464
    %v6501 = vpop.f32.mrf.mxu0
    %v6502 = vadd.f32 %v6459, %v6501
    %6503 = vmatmul.f32.gmra.mxu0 %v6467
    %v6504 = vpop.f32.mrf.mxu0
    %v6505 = vadd.f32 %v6459, %v6504
    %6506 = vmatmul.f32.gmra.mxu0 %v6470
    %v6507 = vpop.f32.mrf.mxu0
    %v6508 = vadd.f32 %v6459, %v6507
    %6509 = vmatmul.f32.gmra.mxu0 %v6473
    %v6510 = vpop.f32.mrf.mxu0
    %v6511 = vadd.f32 %v6459, %v6510
    %6512 = vmatmul.f32.gmra.mxu0 %v6476
    %v6513 = vpop.f32.mrf.mxu0
    %v6514 = vadd.f32 %v6459, %v6513
    %6515 = vmatmul.f32.gmra.mxu0 %v6479
    %v6516 = vpop.f32.mrf.mxu0
    %v6517 = vadd.f32 %v6459, %v6516
    %6518 = vdwg.mxu0
    %vm6519 = vcmask 523264
    %6520 = vst.msk [vmem:[#allocation9] sm:$0xff] %vm6519, %v6499
    %6521 = vst.msk [vmem:[#allocation9 + $0x8] sm:$0xff] %vm6519, %v6502
    %6522 = vst.msk [vmem:[#allocation9 + $0x10] sm:$0xff] %vm6519, %v6505
    %6523 = vst.msk [vmem:[#allocation9 + $0x18] sm:$0xff] %vm6519, %v6508
    %6524 = vst.msk [vmem:[#allocation9 + $0x20] sm:$0xff] %vm6519, %v6511
    %6525 = vst.msk [vmem:[#allocation9 + $0x28] sm:$0xff] %vm6519, %v6514
    %6526 = vst.msk [vmem:[#allocation9 + $0x30] sm:$0xff] %vm6519, %v6517
    %v6527 = vld [vmem:[#allocation9] sm:$0xff]
    %v6528 = vld [vmem:[#allocation9 + $0x8] sm:$0xff]
    %v6529 = vld [vmem:[#allocation9 + $0x10] sm:$0xff]
    %v6530 = vld [vmem:[#allocation9 + $0x18] sm:$0xff]
    %v6531 = vld [vmem:[#allocation9 + $0x20] sm:$0xff]
    %v6532 = vld [vmem:[#allocation9 + $0x28] sm:$0xff]
    %v6533 = vld [vmem:[#allocation9 + $0x30] sm:$0xff]
    %v6534 = vsel %vm6519, %v6527, 0.0
    %v6535 = vsel %vm6519, %v6528, 0.0
    %v6536 = vadd.f32 %v6534, %v6535
    %v6537 = vsel %vm6519, %v6529, 0.0
    %v6538 = vadd.f32 %v6536, %v6537
    %v6539 = vsel %vm6519, %v6530, 0.0
    %v6540 = vadd.f32 %v6538, %v6539
    %v6541 = vsel %vm6519, %v6531, 0.0
    %v6542 = vadd.f32 %v6540, %v6541
    %v6543 = vsel %vm6519, %v6532, 0.0
    %v6544 = vadd.f32 %v6542, %v6543
    %v6545 = vsel %vm6519, %v6533, 0.0
    %v6546 = vadd.f32 %v6544, %v6545
    %v6547 = vrot.slane %v6546, 4
    %v6548 = vadd.f32 %v6546, %v6547
    %v6549 = vrot.slane %v6548, 2
    %v6550 = vadd.f32 %v6548, %v6549
    %v6551 = vrot.slane %v6550, 1
    %v6552 = vadd.f32 %v6550, %v6551
    %v6553 = vmul.f32 %v6552, 0.017857144
    %v6554 = vsub.f32 %v6527, %v6553
    %v6555 = vsub.f32 %v6528, %v6553
    %v6556 = vsub.f32 %v6529, %v6553
    %v6557 = vsub.f32 %v6530, %v6553
    %v6558 = vsub.f32 %v6531, %v6553
    %v6559 = vsub.f32 %v6532, %v6553
    %v6560 = vsub.f32 %v6533, %v6553
    %v6561 = vmul.f32 %v6554, %v6554
    %v6562 = vmul.f32 %v6555, %v6555
    %v6563 = vmul.f32 %v6556, %v6556
    %v6564 = vmul.f32 %v6557, %v6557
    %v6565 = vmul.f32 %v6558, %v6558
    %v6566 = vmul.f32 %v6559, %v6559
    %v6567 = vmul.f32 %v6560, %v6560
    %v6568 = vsel %vm6519, %v6561, 0.0
    %v6569 = vsel %vm6519, %v6562, 0.0
    %v6570 = vadd.f32 %v6568, %v6569
    %v6571 = vsel %vm6519, %v6563, 0.0
    %v6572 = vadd.f32 %v6570, %v6571
    %v6573 = vsel %vm6519, %v6564, 0.0
    %v6574 = vadd.f32 %v6572, %v6573
    %v6575 = vsel %vm6519, %v6565, 0.0
    %v6576 = vadd.f32 %v6574, %v6575
    %v6577 = vsel %vm6519, %v6566, 0.0
    %v6578 = vadd.f32 %v6576, %v6577
    %v6579 = vsel %vm6519, %v6567, 0.0
    %v6580 = vadd.f32 %v6578, %v6579
    %v6581 = vrot.slane %v6580, 4
    %v6582 = vadd.f32 %v6580, %v6581
    %v6583 = vrot.slane %v6582, 2
    %v6584 = vadd.f32 %v6582, %v6583
    %v6585 = vrot.slane %v6584, 1
    %v6586 = vadd.f32 %v6584, %v6585
    %v6587 = vmul.f32 %v6586, 0.017857144
    %v6588 = vadd.f32 %v6587, 1e-05
    %v6589 = vrsqrt.pop %v6588
    %v6590 = vmul.f32 %v6589, %v6588
    %v6591 = vmul.f32 %v6590, %v6589
    %v6592 = vmul.f32 0.5, %v6591
    %v6593 = vsub.f32 1.5, %v6592
    %v6594 = vmul.f32 %v6589, %v6593
    %vm6595 = vweird.f32 %v6588
    %vm6596 = vweird.f32 %v6589
    %vm6597 = vmor %vm6595, %vm6596
    %v6598 = vsel %vm6597, %v6589, %v6594
    %v6599 = vmul.f32 %v6598, %v6324
    %v6600 = vmul.f32 %v6553, %v6599
    %v6601 = vsub.f32 %v6325, %v6600
    %v6602 = vperm.slane %v6599, 0
    %v6603 = vmul.f32 %v6527, %v6602
    %v6604 = vmul.f32 %v6528, %v6602
    %v6605 = vmul.f32 %v6529, %v6602
    %v6606 = vmul.f32 %v6530, %v6602
    %v6607 = vmul.f32 %v6531, %v6602
    %v6608 = vmul.f32 %v6532, %v6602
    %v6609 = vmul.f32 %v6533, %v6602
    %v6610 = vperm.slane %v6601, 0
    %v6611 = vadd.f32 %v6603, %v6610
    %v6612 = vadd.f32 %v6604, %v6610
    %v6613 = vadd.f32 %v6605, %v6610
    %v6614 = vadd.f32 %v6606, %v6610
    %v6615 = vadd.f32 %v6607, %v6610
    %v6616 = vadd.f32 %v6608, %v6610
    %v6617 = vadd.f32 %v6609, %v6610
    %v6618 = vmax.f32 %v6611, 0.0
    %v6619 = vmax.f32 %v6612, 0.0
    %v6620 = vmax.f32 %v6613, 0.0
    %v6621 = vmax.f32 %v6614, 0.0
    %v6622 = vmax.f32 %v6615, 0.0
    %v6623 = vmax.f32 %v6616, 0.0
    %v6624 = vmax.f32 %v6617, 0.0
    %6625 = vst.msk [vmem:[#allocation9] sm:$0xff] %vm6519, %v6618
    %6626 = vst.msk [vmem:[#allocation9 + $0x8] sm:$0xff] %vm6519, %v6619
    %6627 = vst.msk [vmem:[#allocation9 + $0x10] sm:$0xff] %vm6519, %v6620
    %6628 = vst.msk [vmem:[#allocation9 + $0x18] sm:$0xff] %vm6519, %v6621
    %6629 = vst.msk [vmem:[#allocation9 + $0x20] sm:$0xff] %vm6519, %v6622
    %6630 = vst.msk [vmem:[#allocation9 + $0x28] sm:$0xff] %vm6519, %v6623
    %6631 = vst.msk [vmem:[#allocation9 + $0x30] sm:$0xff] %vm6519, %v6624
    %v6632 = vld [vmem:[#allocation9] ss:$4 sm:$0x7f]
    %s6633 = scalar_lea.vmem [#allocation9], 1
    %v6634 = vld [vmem:[%s6633] ss:$4 sm:$0x7f]
    %v6635 = vmax.f32 %v6632, %v6634
    %s6636 = scalar_lea.vmem [#allocation9], 2
    %v6637 = vld [vmem:[%s6636] ss:$4 sm:$0x7f]
    %v6638 = vmax.f32 %v6635, %v6637
    %s6639 = scalar_lea.vmem [#allocation9], 3
    %v6640 = vld [vmem:[%s6639] ss:$4 sm:$0x7f]
    %v6641 = vmax.f32 %v6638, %v6640
    %vm6642 = vcmask 522240
    %6643 = vst.msk [vmem:[#allocation10] sm:$0x7f] %vm6642, %v6641
    %s6644 = scalar_lea.vmem [#allocation9], 28
    %v6645 = vld [vmem:[%s6644] ss:$4 sm:$0x7f]
    %s6646 = scalar_lea.vmem [#allocation9], 29
    %v6647 = vld [vmem:[%s6646] ss:$4 sm:$0x7f]
    %v6648 = vmax.f32 %v6645, %v6647
    %s6649 = scalar_lea.vmem [#allocation9], 30
    %v6650 = vld [vmem:[%s6649] ss:$4 sm:$0x7f]
    %v6651 = vmax.f32 %v6648, %v6650
    %s6652 = scalar_lea.vmem [#allocation9], 31
    %v6653 = vld [vmem:[%s6652] ss:$4 sm:$0x7f]
    %v6654 = vmax.f32 %v6651, %v6653
    %s6655 = scalar_lea.vmem [#allocation10], 8
    %6656 = vst.msk [vmem:[%s6655] sm:$0x7f] %vm6642, %v6654
    %v6657 = vld [vmem:[%s6 + $0x9] sm:$0x1]
    %v6658 = vld [vmem:[%s6 + $0xa] sm:$0x1]
    %v6659 = vld [vmem:[%s6 + $0xb] sm:$0x1]
    %v6660 = vld [vmem:[#allocation10] sm:$0x1f]
    %vm6661 = vcmask 520192
    %6662 = vst.msk [vmem:[#allocation11] sm:$0x1f] %vm6661, %v6660
    %v6663 = vld [vmem:[#allocation10 + $0x1] sm:$0x1f]
    %6665 = vrot.lane.b32.xlu0 %v6663, 64
    %v6666 = vpop.permute.xlu0 %6665
    %vm6668 = vcmask 1044992
    %6669 = vst.msk [vmem:[#allocation11] sm:$0x1f] %vm6668, %v6666
    %v6670 = vld [vmem:[#allocation10 + $0x2] sm:$0x1f]
    %6671 = vst.msk [vmem:[#allocation11 + $0x8] sm:$0x1f] %vm6661, %v6670
    %v6672 = vld [vmem:[%s6655] sm:$0x1f]
    %v6674 = vrot.slane %v6672, 3
    %vm6676 = vcmask 523269
    %6677 = vst.msk [vmem:[#allocation11] sm:$0xe0] %vm6676, %v6674
    %vm6678 = vcmask 517120
    %6679 = vst.msk [vmem:[#allocation11 + $0x10] sm:$0x3] %vm6678, %v6674
    %v6680 = vld [vmem:[%s6655 + $0x1] sm:$0x1f]
    %v6682 = vrot.slane %v6680, 3
    %6683 = vrot.lane.b32.xlu0 %v6682, 64
    %v6684 = vpop.permute.xlu0 %6683
    %vm6686 = vcmask 1048069
    %6687 = vst.msk [vmem:[#allocation11] sm:$0xe0] %vm6686, %v6684
    %vm6688 = vcmask 1041920
    %6689 = vst.msk [vmem:[#allocation11 + $0x10] sm:$0x3] %vm6688, %v6684
    %v6690 = vld [vmem:[%s6655 + $0x2] sm:$0x1f]
    %v6692 = vrot.slane %v6690, 3
    %6694 = vst.msk [vmem:[#allocation11 + $0x8] sm:$0xe0] %vm6676, %v6692
    %6695 = vst.msk [vmem:[#allocation11 + $0x18] sm:$0x3] %vm6678, %v6692
    %v6696 = vld [vmem:[#allocation11] sm:$0xff]
    %v6697 = vld [vmem:[#allocation11 + $0x8] sm:$0xff]
    %v6698 = vld [vmem:[#allocation11 + $0x10] sm:$0x3]
    %v6699 = vld [vmem:[#allocation11 + $0x18] sm:$0x3]
    %v6700 = vld [vmem:[%s4] sm:$0xff]
    %v6701 = vld [vmem:[%s4 + $0x8] sm:$0xff]
    %v6702 = vld [vmem:[%s4 + $0x10] sm:$0xff]
    %v6703 = vld [vmem:[%s4 + $0x18] sm:$0xff]
    %v6704 = vld [vmem:[%s4 + $0x20] sm:$0xff]
    %v6705 = vld [vmem:[%s4 + $0x28] sm:$0xff]
    %v6706 = vld [vmem:[%s4 + $0x30] sm:$0xff]
    %v6707 = vld [vmem:[%s4 + $0x38] sm:$0xff]
    %v6708 = vld [vmem:[%s4 + $0x40] sm:$0xff]
    %v6709 = vld [vmem:[%s4 + $0x48] sm:$0xff]
    %v6710 = vld [vmem:[%s4 + $0x50] sm:$0xff]
    %v6711 = vld [vmem:[%s4 + $0x58] sm:$0xff]
    %v6712 = vld [vmem:[%s4 + $0x60] sm:$0xff]
    %v6713 = vld [vmem:[%s4 + $0x68] sm:$0xff]
    %v6714 = vld [vmem:[%s4 + $0x70] sm:$0xff]
    %v6715 = vld [vmem:[%s4 + $0x78] sm:$0xff]
    %v6716 = vld [vmem:[%s4 + $0x80] sm:$0xff]
    %v6717 = vld [vmem:[%s4 + $0x88] sm:$0xff]
    %v6718 = vld [vmem:[%s4 + $0x90] sm:$0xff]
    %v6719 = vld [vmem:[%s4 + $0x98] sm:$0xff]
    %v6720 = vld [vmem:[%s4 + $0xa0] sm:$0xff]
    %v6721 = vld [vmem:[%s4 + $0xa8] sm:$0xff]
    %v6722 = vld [vmem:[%s4 + $0xb0] sm:$0xff]
    %v6723 = vld [vmem:[%s4 + $0xb8] sm:$0xff]
    %v6724 = vperm.slane %v6657, 0
    %v6726 = vsel %vm6519, %v6697, 0
    %v6729 = vsel %vm6519, %v6699, 0
    %6731 = vmatpush.msra.mxu0 %v6715
    %6732 = vmatpush.msra.mxu0 %v6714
    %6733 = vmatpush.msra.mxu0 %v6713
    %6734 = vmatpush.msra.mxu0 %v6712
    %6735 = vmatpush.msra.mxu0 %v6711
    %6736 = vmatpush.msra.mxu0 %v6710
    %6737 = vmatpush.msra.mxu0 %v6709
    %6738 = vmatpush.msra.mxu0 %v6708
    %6739 = vmatpush.msra.mxu0 %v6707
    %6740 = vmatpush.msra.mxu0 %v6706
    %6741 = vmatpush.msra.mxu0 %v6705
    %6742 = vmatpush.msra.mxu0 %v6704
    %6743 = vmatpush.msra.mxu0 %v6703
    %6744 = vmatpush.msra.mxu0 %v6702
    %6745 = vmatpush.msra.mxu0 %v6701
    %6746 = vmatpush.msra.mxu0 %v6700
    %6747 = vmatmul.f32.gmra.mxu0 %v6696
    %v6748 = vpop.f32.mrf.mxu0
    %v6749 = vadd.f32 %v6724, %v6748
    %6750 = vmatmul.f32.gmra.mxu0 %v6698
    %v6751 = vpop.f32.mrf.mxu0
    %v6752 = vadd.f32 %v6724, %v6751
    %6753 = vdwg.mxu0
    %6754 = vmatpush.msra.mxu0 0.0
    %6755 = vmatpush.msra.mxu0 0.0
    %6756 = vmatpush.msra.mxu0 0.0
    %6757 = vmatpush.msra.mxu0 0.0
    %6758 = vmatpush.msra.mxu0 0.0
    %6759 = vmatpush.msra.mxu0 0.0
    %6760 = vmatpush.msra.mxu0 0.0
    %6761 = vmatpush.msra.mxu0 0.0
    %6762 = vmatpush.msra.mxu0 %v6723
    %6763 = vmatpush.msra.mxu0 %v6722
    %6764 = vmatpush.msra.mxu0 %v6721
    %6765 = vmatpush.msra.mxu0 %v6720
    %6766 = vmatpush.msra.mxu0 %v6719
    %6767 = vmatpush.msra.mxu0 %v6718
    %6768 = vmatpush.msra.mxu0 %v6717
    %6769 = vmatpush.msra.mxu0 %v6716
    %6770 = vmatmul.f32.gmra.mxu0 %v6726
    %v6771 = vpop.f32.mrf.mxu0
    %v6772 = vadd.f32 %v6749, %v6771
    %6773 = vmatmul.f32.gmra.mxu0 %v6729
    %v6774 = vpop.f32.mrf.mxu0
    %v6775 = vadd.f32 %v6752, %v6774
    %6776 = vdwg.mxu0
    %6777 = vst.msk [vmem:[#allocation12] sm:$0xff] %vm6519, %v6772
    %6778 = vst.msk [vmem:[#allocation12 + $0x8] sm:$0x3] %vm6678, %v6775
    %v6779 = vld [vmem:[#allocation12] sm:$0xff]
    %v6780 = vld [vmem:[#allocation12 + $0x8] sm:$0x3]
    %v6781 = vsel %vm6519, %v6779, 0.0
    %v6782 = vsel %vm6678, %v6780, 0.0
    %v6783 = vadd.f32 %v6781, %v6782
    %v6784 = vrot.slane %v6783, 4
    %v6785 = vadd.f32 %v6783, %v6784
    %v6786 = vrot.slane %v6785, 2
    %v6787 = vadd.f32 %v6785, %v6786
    %v6788 = vrot.slane %v6787, 1
    %v6789 = vadd.f32 %v6787, %v6788
    %v6790 = vmul.f32 %v6789, 0.1
    %v6791 = vsub.f32 %v6779, %v6790
    %v6792 = vsub.f32 %v6780, %v6790
    %v6793 = vmul.f32 %v6791, %v6791
    %v6794 = vmul.f32 %v6792, %v6792
    %v6795 = vsel %vm6519, %v6793, 0.0
    %v6796 = vsel %vm6678, %v6794, 0.0
    %v6797 = vadd.f32 %v6795, %v6796
    %v6798 = vrot.slane %v6797, 4
    %v6799 = vadd.f32 %v6797, %v6798
    %v6800 = vrot.slane %v6799, 2
    %v6801 = vadd.f32 %v6799, %v6800
    %v6802 = vrot.slane %v6801, 1
    %v6803 = vadd.f32 %v6801, %v6802
    %v6804 = vmul.f32 %v6803, 0.1
    %v6805 = vadd.f32 %v6804, 1e-05
    %v6806 = vrsqrt.pop %v6805
    %v6807 = vmul.f32 %v6806, %v6805
    %v6808 = vmul.f32 %v6807, %v6806
    %v6809 = vmul.f32 0.5, %v6808
    %v6810 = vsub.f32 1.5, %v6809
    %v6811 = vmul.f32 %v6806, %v6810
    %vm6812 = vweird.f32 %v6805
    %vm6813 = vweird.f32 %v6806
    %vm6814 = vmor %vm6812, %vm6813
    %v6815 = vsel %vm6814, %v6806, %v6811
    %v6816 = vmul.f32 %v6815, %v6658
    %v6817 = vmul.f32 %v6790, %v6816
    %v6818 = vsub.f32 %v6659, %v6817
    %v6819 = vperm.slane %v6816, 0
    %v6820 = vmul.f32 %v6779, %v6819
    %v6821 = vmul.f32 %v6780, %v6819
    %v6822 = vperm.slane %v6818, 0
    %v6823 = vadd.f32 %v6820, %v6822
    %v6824 = vadd.f32 %v6821, %v6822
    %v6825 = vmax.f32 %v6823, 0.0
    %v6826 = vmax.f32 %v6824, 0.0
    %6827 = vst.msk [vmem:[#allocation12] sm:$0xff] %vm6519, %v6825
    %6828 = vst.msk [vmem:[#allocation12 + $0x8] sm:$0x3] %vm6678, %v6826
    %v6829 = vld [vmem:[#allocation12] ss:$4 sm:$0x1]
    %s6830 = scalar_lea.vmem [#allocation12], 1
    %v6831 = vld [vmem:[%s6830] ss:$4 sm:$0x1]
    %v6832 = vmax.f32 %v6829, %v6831
    %s6833 = scalar_lea.vmem [#allocation12], 2
    %v6834 = vld [vmem:[%s6833] ss:$4 sm:$0x1]
    %v6835 = vmax.f32 %v6832, %v6834
    %s6836 = scalar_lea.vmem [#allocation12], 3
    %v6837 = vld [vmem:[%s6836] ss:$4 sm:$0x1]
    %v6838 = vmax.f32 %v6835, %v6837
    %vm6839 = vcmask 516096
    %6840 = vst.msk [vmem:[#allocation13] sm:$0x1] %vm6839, %v6838
    %s6841 = scalar_lea.vmem [#allocation12], 5
    %v6842 = vld [vmem:[%s6841] ss:$4 sm:$0x1]
    %s6843 = scalar_lea.vmem [#allocation12], 6
    %v6844 = vld [vmem:[%s6843] ss:$4 sm:$0x1]
    %v6845 = vmax.f32 %v6842, %v6844
    %s6846 = scalar_lea.vmem [#allocation12], 7
    %v6847 = vld [vmem:[%s6846] ss:$4 sm:$0x1]
    %v6848 = vmax.f32 %v6845, %v6847
    %s6849 = scalar_lea.vmem [#allocation12], 8
    %v6850 = vld [vmem:[%s6849] ss:$4 sm:$0x1]
    %v6851 = vmax.f32 %v6848, %v6850
    %s6852 = scalar_lea.vmem [#allocation13], 1
    %6853 = vst.msk [vmem:[%s6852] sm:$0x1] %vm6839, %v6851
    %v6854 = vld [vmem:[#allocation13] sm:$0x1]
    %v6855 = vld [vmem:[#allocation13 + $0x1] sm:$0x1]
    %v6856 = vadd.f32 %v6854, 0.0
    %v6857 = vadd.f32 %v6855, 0.0
    %v6858 = vld [vmem:[%s5] sm:$0xff]
    %v6859 = vld [vmem:[%s5 + $0x8] sm:$0xff]
    %v6860 = vld [vmem:[%s5 + $0x10] sm:$0xff]
    %v6861 = vld [vmem:[%s5 + $0x18] sm:$0xff]
    %v6862 = vld [vmem:[%s5 + $0x20] sm:$0xff]
    %v6863 = vld [vmem:[%s5 + $0x28] sm:$0xff]
    %v6864 = vld [vmem:[%s5 + $0x30] sm:$0xff]
    %v6865 = vld [vmem:[%s5 + $0x38] sm:$0xff]
    %v6866 = vld [vmem:[%s6 + $0xc] sm:$0x1]
    %v6867 = vperm.slane %v6866, 0
    %6870 = vst [vmem:[#allocation1] ss:$9 sm:$0xff] %v6856
    %s6871 = scalar_lea.vmem [#allocation1], 1
    %6872 = vst [vmem:[%s6871] ss:$9 sm:$0xff] %v6857
    %v6873 = vld [vmem:[#allocation1] sm:$0xff]
    %v6874 = vsel %vm6519, %v6873, 0
    %6876 = vmatpush.msra.mxu0 0.0
    %6877 = vmatpush.msra.mxu0 0.0
    %6878 = vmatpush.msra.mxu0 0.0
    %6879 = vmatpush.msra.mxu0 0.0
    %6880 = vmatpush.msra.mxu0 0.0
    %6881 = vmatpush.msra.mxu0 0.0
    %6882 = vmatpush.msra.mxu0 0.0
    %6883 = vmatpush.msra.mxu0 0.0
    %6884 = vmatpush.msra.mxu0 %v6865
    %6885 = vmatpush.msra.mxu0 %v6864
    %6886 = vmatpush.msra.mxu0 %v6863
    %6887 = vmatpush.msra.mxu0 %v6862
    %6888 = vmatpush.msra.mxu0 %v6861
    %6889 = vmatpush.msra.mxu0 %v6860
    %6890 = vmatpush.msra.mxu0 %v6859
    %6891 = vmatpush.msra.mxu0 %v6858
    %6892 = vmatmul.f32.gmra.mxu0 %v6874
    %v6893 = vpop.f32.mrf.mxu0
    %v6894 = vadd.f32 %v6867, %v6893
    %6895 = vdwg.mxu0
    %v6896 = vlaneseq
    %v6897 = vand.u32 %v6896, 127
    %vm6898 = vcmp.lt.s32.totalorder %v6897, 35
    %v6899 = vsel %vm6898, %v6894, -1e+30
    %vm6900 = vcmask 1041408
    %v6901 = vsel %vm6900, %v6899, -inf
    %6902 = vmax.xlane.f32.xlu0 %v6901
    %v6903 = vpop.xlane.xlu0 %6902
    %v6904 = vsub.f32 %v6899, %v6903
    %v6905 = vmul.f32 %v6904, 1.442695
    %v6906 = vpow.pop %v6905
    %v6907 = vsel %vm6900, %v6906, 0.0
    %6908 = vadd.xlane.f32.xlu0 %v6907
    %v6909 = vpop.xlane.xlu0 %6908
    %v6910 = vlog2.pop %v6909
    %v6911 = vmul.f32 %v6910, 0.6931472
    %v6912 = vsub.f32 %v6904, %v6911
    %6913 = vst [vmem:[#allocation14] sm:$0x3] %v6912
    // Predicated region
    $region51: #{m5_forward.1} parent=1 // pred_check
      _
    $region52: #{m5_forward.1} parent=1 // pred_check_branch
      %6915 = sbr.rel (0) target = $region54
    $region53: #{m5_forward.1} parent=1 // pred_region
      %6917 = vsyncadd [#allocation15], 0
      %s6919 = sshll.u32 [#allocation14], 4
      %s6920 = int_to_ptr.vmem [resolvable:$true] %s6919
      %s6921 = sshll.u32 %s7, 4
      %s6922 = int_to_ptr.hbm [resolvable:$true] %s6921
      %6924 = dma.vmem_to_hbm [thread:$0]  %s6920, 32, %s6922, [#allocation15]
    $region54: #{m5_forward.1} parent=1 // pred_fallthru
      _
    // Predicated region
    $region55: #{m5_forward.1} parent=1 // pred_check
      _
    $region56: #{m5_forward.1} parent=1 // pred_check_branch
      %6926 = sbr.rel (0) target = $region58
    $region57: #{m5_forward.1} parent=1 // pred_region
      %6928 = dma.done [#allocation15], 32
    $region58: #{m5_forward.1} parent=1 // pred_fallthru
      _
    %6929 = vsyncpa [#allocation15], 1

</llo_original>
